<compile_context>
chip_gen: v7x
topology: tpu7x:2x2x1
jax: 0.10.0
libtpu: 0.0.40
codegen_flags: <defaults>
</compile_context>

<pallas_src>
from functools import partial

import numpy as np
import jax
import jax.numpy as jnp
from jax import lax
from jax.experimental import pallas as pl
from jax.experimental.pallas import tpu as pltpu


# ----------------------------------------------------------------------------- kernel

def _conv_gn_silu(x, cw_ref, blk_idx, cb, gw, gb, pb, gs, taps):
    """One 'Block': Conv1d(k, padding=k//2) -> per-sample GroupNorm(G) -> SiLU,
    on the folded (B*N, C) slab.

    Conv taps = hoisted sublane rolls + per-sequence boundary masks; each tap is one
    bf16 (B*N, C) @ (C, C) MXU matmul accumulated into an f32 accumulator.
    """
    acc = None
    for k, (shift, mask) in enumerate(taps):               # static unrolled taps
        t = x if shift == 0 else pltpu.roll(x, shift=shift, axis=0)
        if mask is not None:
            t = jnp.where(mask, t, 0.0)                    # zero across sequence borders
        d = jnp.dot(t.astype(jnp.bfloat16), cw_ref[0, blk_idx, k],
                    preferred_element_type=jnp.float32)
        acc = d if acc is None else acc + d
    y = acc + cb                                           # (B*N, C) f32

    # Per-sample per-group stats (batch is folded):  mean = Pb @ (y @ Gs); centered var.
    # Pb (BN,BN) selects rows of the same sample, Gs (C,C) averages channels of the same
    # group (includes 1/(N*Cg)).  Kept in f32 for stat accuracy (tiny matmuls).
    mean = jnp.dot(pb, jnp.dot(y, gs, preferred_element_type=jnp.float32),
                   preferred_element_type=jnp.float32)
    yc = y - mean
    var = jnp.dot(pb, jnp.dot(yc * yc, gs, preferred_element_type=jnp.float32),
                  preferred_element_type=jnp.float32)
    yn = yc * lax.rsqrt(var + 1e-5) * gw + gb
    return yn * jax.nn.sigmoid(yn)                         # SiLU


def _rmsnorm_attn(x, p_b16, gamma, wq_ref, wk_ref, wv_ref, wo_ref,
                  *, heads, dim_head, n_batch, seq_n, seq_m, rms_scale):
    """RMSNorm(x) -> per-sample cross-attn with context = [norm(x); prompts] -> + x."""
    sumsq = jnp.sum(x * x, axis=-1, keepdims=True)
    xn = x * lax.rsqrt(jnp.maximum(sumsq, 1e-24)) * rms_scale * gamma      # (B*N, C)
    xn_b16 = xn.astype(jnp.bfloat16)

    scale = dim_head ** -0.5
    dn = (((1,), (1,)), ((), ()))                          # contract last dim vs last dim
    out = x                                                # residual with pre-norm x
    for h in range(heads):                                 # per-head weights: no lane slices
        q = jnp.dot(xn_b16, wq_ref[0, h], preferred_element_type=jnp.float32) * scale
        kx = jnp.dot(xn_b16, wk_ref[0, h], preferred_element_type=jnp.float32)
        kp = jnp.dot(p_b16, wk_ref[0, h], preferred_element_type=jnp.float32)
        vx = jnp.dot(xn_b16, wv_ref[0, h], preferred_element_type=jnp.float32)
        vp = jnp.dot(p_b16, wv_ref[0, h], preferred_element_type=jnp.float32)
        per_sample = []
        for b in range(n_batch):                           # per-sample attention; slices
            qb = q[b * seq_n:(b + 1) * seq_n]              # are static & sublane-aligned
            kb = jnp.concatenate([kx[b * seq_n:(b + 1) * seq_n],
                                  kp[b * seq_m:(b + 1) * seq_m]], axis=0)   # (N+M, D)
            vb = jnp.concatenate([vx[b * seq_n:(b + 1) * seq_n],
                                  vp[b * seq_m:(b + 1) * seq_m]], axis=0)
            s = lax.dot_general(qb.astype(jnp.bfloat16), kb.astype(jnp.bfloat16), dn,
                                preferred_element_type=jnp.float32)         # (N, N+M)
            s = s - jnp.max(s, axis=-1, keepdims=True)
            e = jnp.exp(s)
            r = jnp.sum(e, axis=-1, keepdims=True)
            ob = jnp.dot(e.astype(jnp.bfloat16), vb.astype(jnp.bfloat16),
                         preferred_element_type=jnp.float32)                # (N, D) unnormed
            per_sample.append(ob * pl.reciprocal(r, approx=True))           # EUP recip
        o_h = jnp.concatenate(per_sample, axis=0)                           # (B*N, D)
        out = out + jnp.dot(o_h.astype(jnp.bfloat16), wo_ref[0, h],
                            preferred_element_type=jnp.float32)             # accumulate
    return out


def trunk_kernel(x_ref, p_ref, pb_ref, gs_ref,
                 convw_ref, convb_ref, gnw_ref, gnb_ref, gamma_ref,
                 wq_ref, wk_ref, wv_ref, wo_ref, predw_ref, predb_ref,
                 o_ref, x_sc,
                 *, n_res, n_convs, K, heads, dim_head,
                 n_batch, seq_n, seq_m, rms_scale):
    l = pl.program_id(0)                                   # layer index (grid axis)

    @pl.when(l == 0)
    def _():                                               # load activations once
        x_sc[...] = x_ref[...]

    x = x_sc[...]                                          # (B*N, C), resident in VMEM
    p_b16 = p_ref[...].astype(jnp.bfloat16)                # (B*M, C) prompts, cast once
    pb = pb_ref[...]                                       # (B*N, B*N) per-sample selector
    gs = gs_ref[...]                                       # (C, C) group-average matrix
    BN, C = x.shape

    # Hoisted per-sequence conv boundary masks (computed once per layer step).
    pad = K // 2
    seq_row = lax.broadcasted_iota(jnp.int32, (BN, C), 0) % seq_n
    taps = []
    for k in range(K):
        d = k - pad                                        # tap k reads x[n + d] (zero pad)
        if d == 0:
            taps.append((0, None))
        elif d < 0:
            taps.append(((-d) % BN, seq_row >= -d))
        else:
            taps.append(((-d) % BN, seq_row < seq_n - d))

    for r in range(n_res):                                 # conv = Sequential(R x ResnetBlock)
        h = x
        for s in range(n_convs):                           # ResnetBlock(num_convs)
            idx = r * n_convs + s
            h = _conv_gn_silu(h, convw_ref, idx, convb_ref[0, idx],
                              gnw_ref[0, idx], gnb_ref[0, idx], pb, gs, taps)
        x = h + x                                          # res_conv is Identity (dim == dim_out)

    x = _rmsnorm_attn(x, p_b16, gamma_ref[0], wq_ref, wk_ref, wv_ref, wo_ref,
                      heads=heads, dim_head=dim_head, n_batch=n_batch,
                      seq_n=seq_n, seq_m=seq_m, rms_scale=rms_scale)

    x_sc[...] = x                                          # carry to the next layer step

    @pl.when(l == pl.num_programs(0) - 1)
    def _():
        # to_pred: Linear(dim,1) -> squeeze -> ReLU, emitted lane-dense as one (1, B*N) row.
        # (kept f32: a single-row matmul, negligible MXU time, max output accuracy)
        y = lax.dot_general(predw_ref[...], x, (((1,), (1,)), ((), ())),
                            preferred_element_type=jnp.float32)             # (1, B*N)
        o_ref[...] = jnp.maximum(y + predb_ref[...], 0.0)


# --------------------------------------------------------------------------- wrapper

def _stack_params(params, cfg):
    """Stack per-layer weights with a leading L dim (streamed by the layer grid axis).
    Matmul weights are stored in bf16; biases / norm affines stay f32."""
    C = cfg["dim"]
    H, D = cfg["heads"], cfg["dim_head"]
    layers = params["layers"]
    bf = jnp.bfloat16

    conv_w = jnp.stack([jnp.stack([blk["w"] for rb in lp["resnets"] for blk in rb["blocks"]])
                        for lp in layers]).astype(bf)                        # (L, R*S, K, C, C)
    conv_b = jnp.stack([jnp.stack([blk["b"] for rb in lp["resnets"] for blk in rb["blocks"]])
                        for lp in layers])                                   # (L, R*S, 1, C)
    gn_w = jnp.stack([jnp.stack([blk["gw"] for rb in lp["resnets"] for blk in rb["blocks"]])
                      for lp in layers])
    gn_b = jnp.stack([jnp.stack([blk["gb"] for rb in lp["resnets"] for blk in rb["blocks"]])
                      for lp in layers])
    gamma = jnp.stack([lp["gamma"] for lp in layers])                        # (L, 1, C)
    # per-head layout: wq/wk/wv -> (L, H, C, D), wo -> (L, H, D, C)
    wq = jnp.stack([lp["wq"].reshape(C, H, D).transpose(1, 0, 2) for lp in layers]).astype(bf)
    wk = jnp.stack([lp["wk"].reshape(C, H, D).transpose(1, 0, 2) for lp in layers]).astype(bf)
    wv = jnp.stack([lp["wv"].reshape(C, H, D).transpose(1, 0, 2) for lp in layers]).astype(bf)
    wo = jnp.stack([lp["wo"].reshape(H, D, C) for lp in layers]).astype(bf)
    return conv_w, conv_b, gn_w, gn_b, gamma, wq, wk, wv, wo


def forward_pallas(x, prompts, params, cfg):
    B, N, C = x.shape
    M = prompts.shape[1]
    G, K, L = cfg["groups"], cfg["kernel"], cfg["depth"]
    H, D = cfg["heads"], cfg["dim_head"]
    Cg = C // G
    BN, BM = B * N, B * M

    # Constant selector matrices for per-sample GroupNorm stats (exact in f32).
    rows = jnp.arange(BN) // N
    pb = (rows[:, None] == rows[None, :]).astype(jnp.float32)                # (BN, BN)
    gidx = jnp.arange(C) // Cg
    gs = (gidx[:, None] == gidx[None, :]).astype(jnp.float32) / float(N * Cg)  # (C, C)

    conv_w, conv_b, gn_w, gn_b, gamma, wq, wk, wv, wo = _stack_params(params, cfg)

    x_flat = x.reshape(BN, C)
    p_flat = prompts.reshape(BM, C)
    args = (x_flat, p_flat, pb, gs, conv_w, conv_b, gn_w, gn_b, gamma,
            wq, wk, wv, wo, params["pred_w"], params["pred_b"])

    def _const_spec(a):                                    # fetched once (constant index)
        n = a.ndim
        return pl.BlockSpec(a.shape, lambda l, _n=n: (0,) * _n)

    def _layer_spec(a):                                    # streamed per layer step
        n = a.ndim
        return pl.BlockSpec((1,) + a.shape[1:], lambda l, _n=n: (l,) + (0,) * (_n - 1))

    in_specs = [_const_spec(x_flat), _const_spec(p_flat), _const_spec(pb), _const_spec(gs),
                _layer_spec(conv_w), _layer_spec(conv_b), _layer_spec(gn_w), _layer_spec(gn_b),
                _layer_spec(gamma), _layer_spec(wq), _layer_spec(wk), _layer_spec(wv),
                _layer_spec(wo), _const_spec(params["pred_w"]), _const_spec(params["pred_b"])]

    kern = partial(trunk_kernel,
                   n_res=cfg["num_convolutions_per_block"],
                   n_convs=cfg["num_convs_per_resnet_block"],
                   K=K, heads=H, dim_head=D,
                   n_batch=B, seq_n=N, seq_m=M, rms_scale=float(C) ** 0.5)

    out = pl.pallas_call(
        kern,
        out_shape=jax.ShapeDtypeStruct((1, BN), jnp.float32),
        grid=(L,),
        in_specs=in_specs,
        out_specs=pl.BlockSpec((1, BN), lambda l: (0, 0)),
        scratch_shapes=[pltpu.VMEM((BN, C), jnp.float32)],   # activation slab, layer-carried
        compiler_params=pltpu.CompilerParams(
            dimension_semantics=("arbitrary",),              # layers are a serial dependency
            vmem_limit_bytes=48 * 1024 * 1024),              # headroom below v7x's 64 MiB
    )(*args)
    return out.reshape(B, N)                                 # lane-dense (1, B*N) -> (B, N)


# --------------------------------------------------------------- pure-JAX reference

def _ref_conv_gn_silu(x, blk, groups):
    B, N, C = x.shape
    K = blk["w"].shape[0]
    pad = K // 2
    xp = jnp.pad(x, ((0, 0), (pad, pad), (0, 0)))
    y = sum(jnp.einsum("bnc,cd->bnd", xp[:, k:k + N], blk["w"][k]) for k in range(K)) + blk["b"]
    Cg = C // groups
    yg = y.reshape(B, N, groups, Cg)
    mean = yg.mean(axis=(1, 3), keepdims=True)
    var = jnp.mean((yg - mean) ** 2, axis=(1, 3), keepdims=True)
    yn = ((yg - mean) / jnp.sqrt(var + 1e-5)).reshape(B, N, C)
    yn = yn * blk["gw"] + blk["gb"]
    return yn * jax.nn.sigmoid(yn)


def _ref_attn(x, prompts, lp, cfg):
    B, N, C = x.shape
    H, D = cfg["heads"], cfg["dim_head"]
    nrm = jnp.linalg.norm(x, axis=-1, keepdims=True)
    xn = x / jnp.maximum(nrm, 1e-12) * (C ** 0.5) * lp["gamma"]
    ctx = jnp.concatenate([xn, prompts], axis=1)
    q, k, v = xn @ lp["wq"], ctx @ lp["wk"], ctx @ lp["wv"]
    split = lambda t: t.reshape(t.shape[0], t.shape[1], H, D).transpose(0, 2, 1, 3)
    qh, kh, vh = split(q), split(k), split(v)
    sim = jnp.einsum("bhid,bhjd->bhij", qh, kh) * (D ** -0.5)
    attn = jax.nn.softmax(sim, axis=-1)
    o = jnp.einsum("bhij,bhjd->bhid", attn, vh).transpose(0, 2, 1, 3).reshape(B, N, H * D)
    return o @ lp["wo"] + x


def forward_reference(x, prompts, params, cfg):
    for lp in params["layers"]:
        for rb in lp["resnets"]:
            h = x
            for blk in rb["blocks"]:
                h = _ref_conv_gn_silu(h, blk, cfg["groups"])
            x = h + x
        x = _ref_attn(x, prompts, lp, cfg)
    y = jnp.einsum("bnc,c->bn", x, params["pred_w"][0]) + params["pred_b"][0, 0]
    return jnp.maximum(y, 0.0)


# ------------------------------------------------------------------------- params

def init_params(key, cfg):
    dim, K = cfg["dim"], cfg["kernel"]
    inner = cfg["heads"] * cfg["dim_head"]
    keys = iter(jax.random.split(key, 1024))
    rnd = lambda shape, s: jax.random.normal(next(keys), shape, jnp.float32) * s

    layers = []
    for _ in range(cfg["depth"]):
        resnets = []
        for _ in range(cfg["num_convolutions_per_block"]):
            blocks = []
            for _ in range(cfg["num_convs_per_resnet_block"]):
                blocks.append(dict(
                    w=rnd((K, dim, dim), 0.08),      # w[k, c_in, c_out]
                    b=rnd((1, dim), 0.05),
                    gw=1.0 + rnd((1, dim), 0.05),    # GroupNorm affine
                    gb=rnd((1, dim), 0.05),
                ))
            resnets.append(dict(blocks=blocks))
        layers.append(dict(
            resnets=resnets,
            gamma=1.0 + rnd((1, dim), 0.05),         # RMSNorm gamma
            wq=rnd((dim, inner), 0.08),
            wk=rnd((dim, inner), 0.08),
            wv=rnd((dim, inner), 0.08),
            wo=rnd((inner, dim), 0.08),
        ))
    return dict(layers=layers,
                pred_w=rnd((1, dim), 0.1),
                pred_b=rnd((1, 1), 0.1))


# --------------------------------------------------------------------------- main

if __name__ == "__main__":
    cfg = dict(dim=32, depth=2, kernel=3, heads=2, dim_head=8, groups=8,
               num_convs_per_resnet_block=2, num_convolutions_per_block=3)
    B, N, M = 2, 8, 8

    key = jax.random.PRNGKey(0)
    kx, kp, kw = jax.random.split(key, 3)
    x = jax.random.normal(kx, (B, N, cfg["dim"]), jnp.float32)
    encoded_prompts = jax.random.normal(kp, (B, M, cfg["dim"]), jnp.float32)
    params = init_params(kw, cfg)

    out = forward_pallas(x, encoded_prompts, params, cfg)
    out = jax.block_until_ready(out)
    assert out.shape == (B, N), out.shape

    ref = forward_reference(x, encoded_prompts, params, cfg)
    # Kernel uses bf16 MXU operands (f32 accumulation) + approx reciprocal for the
    # softmax denominator, so tolerance is slightly looser than an all-f32 compare.
    np.testing.assert_allclose(np.asarray(out), np.asarray(ref), rtol=2e-2, atol=3e-2)

    print("KERNEL_OK")
</pallas_src>

<mosaic_0001>
module attributes {stable_mosaic.version = 11 : i64} {
  func.func @trunk_kernel(%arg0: i32, %arg1: memref<16x32xf32, #tpu.memory_space<vmem>>, %arg2: memref<16x32xf32, #tpu.memory_space<vmem>>, %arg3: memref<16x16xf32, #tpu.memory_space<vmem>>, %arg4: memref<32x32xf32, #tpu.memory_space<vmem>>, %arg5: memref<1x6x3x32x32xbf16, #tpu.memory_space<vmem>>, %arg6: memref<1x6x1x32xf32, #tpu.memory_space<vmem>>, %arg7: memref<1x6x1x32xf32, #tpu.memory_space<vmem>>, %arg8: memref<1x6x1x32xf32, #tpu.memory_space<vmem>>, %arg9: memref<1x1x32xf32, #tpu.memory_space<vmem>>, %arg10: memref<1x2x32x8xbf16, #tpu.memory_space<vmem>>, %arg11: memref<1x2x32x8xbf16, #tpu.memory_space<vmem>>, %arg12: memref<1x2x32x8xbf16, #tpu.memory_space<vmem>>, %arg13: memref<1x2x8x32xbf16, #tpu.memory_space<vmem>>, %arg14: memref<1x32xf32, #tpu.memory_space<vmem>>, %arg15: memref<1x1xf32, #tpu.memory_space<vmem>>, %arg16: memref<1x16xf32, #tpu.memory_space<vmem>>, %arg17: memref<16x32xf32, #tpu.memory_space<vmem>>) attributes {dimension_semantics = [#tpu.dimension_semantics<arbitrary>], iteration_bounds = array<i64: 2>, scalar_prefetch = 0 : i64, scratch_operands = 1 : i64, tpu.core_type = #tpu.core_type<tc>, window_params = [{pipeline_mode = #tpu.pipeline_mode<synchronous>, transform_indices = @transform_0, window_bounds = array<i64: 16, 32>}, {pipeline_mode = #tpu.pipeline_mode<synchronous>, transform_indices = @transform_1, window_bounds = array<i64: 16, 32>}, {pipeline_mode = #tpu.pipeline_mode<synchronous>, transform_indices = @transform_2, window_bounds = array<i64: 16, 16>}, {pipeline_mode = #tpu.pipeline_mode<synchronous>, transform_indices = @transform_3, window_bounds = array<i64: 32, 32>}, {transform_indices = @transform_4, window_bounds = array<i64: 1, 6, 3, 32, 32>}, {transform_indices = @transform_5, window_bounds = array<i64: 1, 6, 1, 32>}, {transform_indices = @transform_6, window_bounds = array<i64: 1, 6, 1, 32>}, {transform_indices = @transform_7, window_bounds = array<i64: 1, 6, 1, 32>}, {transform_indices = @transform_8, window_bounds = array<i64: 1, 1, 32>}, {transform_indices = @transform_9, window_bounds = array<i64: 1, 2, 32, 8>}, {transform_indices = @transform_10, window_bounds = array<i64: 1, 2, 32, 8>}, {transform_indices = @transform_11, window_bounds = array<i64: 1, 2, 32, 8>}, {transform_indices = @transform_12, window_bounds = array<i64: 1, 2, 8, 32>}, {pipeline_mode = #tpu.pipeline_mode<synchronous>, transform_indices = @transform_13, window_bounds = array<i64: 1, 32>}, {pipeline_mode = #tpu.pipeline_mode<synchronous>, transform_indices = @transform_14, window_bounds = array<i64: 1, 1>}, {pipeline_mode = #tpu.pipeline_mode<synchronous>, transform_indices = @transform_15, window_bounds = array<i64: 1, 16>}]} {
    %c0_i32 = arith.constant 0 : i32
    %0 = arith.cmpi eq, %arg0, %c0_i32 : i32
    %1 = arith.extui %0 : i1 to i32
    %c0_i32_0 = arith.constant 0 : i32
    %2 = arith.cmpi ne, %1, %c0_i32_0 : i32
    scf.if %2 {
      %c0_334 = arith.constant 0 : index
      %c0_335 = arith.constant 0 : index
      %477 = vector.load %arg1[%c0_334, %c0_335] : memref<16x32xf32, #tpu.memory_space<vmem>>, vector<16x32xf32>
      %c0_336 = arith.constant 0 : index
      %c0_337 = arith.constant 0 : index
      %478 = vector.load %arg17[%c0_336, %c0_337] : memref<16x32xf32, #tpu.memory_space<vmem>>, vector<16x32xf32>
      tpu.vector_store %arg17[%c0_336, %c0_337], %477 {strides = array<i32>} : memref<16x32xf32, #tpu.memory_space<vmem>>, vector<16x32xf32>,
    } else {
    }
    %c0 = arith.constant 0 : index
    %c0_1 = arith.constant 0 : index
    %3 = vector.load %arg17[%c0, %c0_1] : memref<16x32xf32, #tpu.memory_space<vmem>>, vector<16x32xf32>
    %c0_2 = arith.constant 0 : index
    %c0_3 = arith.constant 0 : index
    %4 = vector.load %arg2[%c0_2, %c0_3] : memref<16x32xf32, #tpu.memory_space<vmem>>, vector<16x32xf32>
    %5 = arith.truncf %4 : vector<16x32xf32> to vector<16x32xbf16>
    %c0_4 = arith.constant 0 : index
    %c0_5 = arith.constant 0 : index
    %6 = vector.load %arg3[%c0_4, %c0_5] : memref<16x16xf32, #tpu.memory_space<vmem>>, vector<16x16xf32>
    %c0_6 = arith.constant 0 : index
    %c0_7 = arith.constant 0 : index
    %7 = vector.load %arg4[%c0_6, %c0_7] : memref<32x32xf32, #tpu.memory_space<vmem>>, vector<32x32xf32>
    %8 = tpu.iota {dimensions = array<i32: 0>} : vector<16x32xi32>
    %c8_i32 = arith.constant 8 : i32
    %c0_i32_8 = arith.constant 0 : i32
    %9 = arith.cmpi eq, %c8_i32, %c0_i32_8 : i32
    %c1_i32 = arith.constant 1 : i32
    %10 = arith.select %9, %c1_i32, %c8_i32 : i32
    %11 = vector.broadcast %10 : i32 to vector<16x32xi32>
    %12 = arith.remsi %8, %11 : vector<16x32xi32>
    %c0_i32_9 = arith.constant 0 : i32
    %13 = vector.broadcast %c0_i32_9 : i32 to vector<16x32xi32>
    %14 = arith.cmpi ne, %12, %13 : vector<16x32xi32>
    %c0_i32_10 = arith.constant 0 : i32
    %15 = vector.broadcast %c0_i32_10 : i32 to vector<16x32xi32>
    %16 = arith.cmpi slt, %12, %15 : vector<16x32xi32>
    %c0_i32_11 = arith.constant 0 : i32
    %17 = arith.cmpi slt, %10, %c0_i32_11 : i32
    %18 = vector.broadcast %17 : i1 to vector<16x32xi1>
    %19 = vector.broadcast %18 : vector<16x32xi1> to vector<16x32xi1>
    %20 = arith.xori %16, %19 : vector<16x32xi1>
    %21 = arith.andi %20, %14 : vector<16x32xi1>
    %22 = vector.broadcast %10 : i32 to vector<16x32xi32>
    %23 = arith.addi %12, %22 : vector<16x32xi32>
    %24 = arith.select %21, %23, %12 : vector<16x32xi1>, vector<16x32xi32>
    %c1_i32_12 = arith.constant 1 : i32
    %25 = vector.broadcast %c1_i32_12 : i32 to vector<16x32xi32>
    %26 = arith.cmpi sge, %24, %25 : vector<16x32xi32>
    %c7_i32 = arith.constant 7 : i32
    %27 = vector.broadcast %c7_i32 : i32 to vector<16x32xi32>
    %28 = arith.cmpi slt, %24, %27 : vector<16x32xi32>
    %c0_13 = arith.constant 0 : index
    %c0_14 = arith.constant 0 : index
    %c0_15 = arith.constant 0 : index
    %c0_16 = arith.constant 0 : index
    %29 = vector.load %arg6[%c0_13, %c0_14, %c0_15, %c0_16] : memref<1x6x1x32xf32, #tpu.memory_space<vmem>>, vector<1x1x1x32xf32>
    %30 = vector.shape_cast %29 : vector<1x1x1x32xf32> to vector<1x32xf32>
    %c0_17 = arith.constant 0 : index
    %c0_18 = arith.constant 0 : index
    %c0_19 = arith.constant 0 : index
    %c0_20 = arith.constant 0 : index
    %31 = vector.load %arg7[%c0_17, %c0_18, %c0_19, %c0_20] : memref<1x6x1x32xf32, #tpu.memory_space<vmem>>, vector<1x1x1x32xf32>
    %32 = vector.shape_cast %31 : vector<1x1x1x32xf32> to vector<1x32xf32>
    %c0_21 = arith.constant 0 : index
    %c0_22 = arith.constant 0 : index
    %c0_23 = arith.constant 0 : index
    %c0_24 = arith.constant 0 : index
    %33 = vector.load %arg8[%c0_21, %c0_22, %c0_23, %c0_24] : memref<1x6x1x32xf32, #tpu.memory_space<vmem>>, vector<1x1x1x32xf32>
    %34 = vector.shape_cast %33 : vector<1x1x1x32xf32> to vector<1x32xf32>
    %c1_i32_25 = arith.constant 1 : i32
    %35 = tpu.dynamic_rotate %3 by %c1_i32_25 dim 0 : vector<16x32xf32>, i32 -> vector<16x32xf32>
    %cst = arith.constant 0.000000e+00 : f32
    %36 = vector.broadcast %cst : f32 to vector<16x32xf32>
    %37 = arith.select %26, %35, %36 : vector<16x32xi1>, vector<16x32xf32>
    %38 = arith.truncf %37 : vector<16x32xf32> to vector<16x32xbf16>
    %c0_26 = arith.constant 0 : index
    %c0_27 = arith.constant 0 : index
    %c0_28 = arith.constant 0 : index
    %c0_29 = arith.constant 0 : index
    %c0_30 = arith.constant 0 : index
    %39 = vector.load %arg5[%c0_26, %c0_27, %c0_28, %c0_29, %c0_30] : memref<1x6x3x32x32xbf16, #tpu.memory_space<vmem>>, vector<1x1x1x32x32xbf16>
    %40 = vector.shape_cast %39 : vector<1x1x1x32x32xbf16> to vector<32x32xbf16>
    %cst_31 = arith.constant dense<0.000000e+00> : vector<16x32xf32>
    %41 = tpu.matmul %38, %40, %cst_31 {dimension_numbers = #tpu.dot_dimension_numbers<[1], [0], [0], [1], [0, 0, 1, 1], [], []>} : vector<16x32xbf16>, vector<32x32xbf16>, vector<16x32xf32> -> vector<16x32xf32>
    %42 = arith.truncf %3 : vector<16x32xf32> to vector<16x32xbf16>
    %c0_32 = arith.constant 0 : index
    %c0_33 = arith.constant 0 : index
    %c1 = arith.constant 1 : index
    %c0_34 = arith.constant 0 : index
    %c0_35 = arith.constant 0 : index
    %43 = vector.load %arg5[%c0_32, %c0_33, %c1, %c0_34, %c0_35] : memref<1x6x3x32x32xbf16, #tpu.memory_space<vmem>>, vector<1x1x1x32x32xbf16>
    %44 = vector.shape_cast %43 : vector<1x1x1x32x32xbf16> to vector<32x32xbf16>
    %cst_36 = arith.constant dense<0.000000e+00> : vector<16x32xf32>
    %45 = tpu.matmul %42, %44, %cst_36 {dimension_numbers = #tpu.dot_dimension_numbers<[1], [0], [0], [1], [0, 0, 1, 1], [], []>} : vector<16x32xbf16>, vector<32x32xbf16>, vector<16x32xf32> -> vector<16x32xf32>
    %46 = arith.addf %41, %45 : vector<16x32xf32>
    %c15_i32 = arith.constant 15 : i32
    %47 = tpu.dynamic_rotate %3 by %c15_i32 dim 0 : vector<16x32xf32>, i32 -> vector<16x32xf32>
    %cst_37 = arith.constant 0.000000e+00 : f32
    %48 = vector.broadcast %cst_37 : f32 to vector<16x32xf32>
    %49 = arith.select %28, %47, %48 : vector<16x32xi1>, vector<16x32xf32>
    %50 = arith.truncf %49 : vector<16x32xf32> to vector<16x32xbf16>
    %c0_38 = arith.constant 0 : index
    %c0_39 = arith.constant 0 : index
    %c2 = arith.constant 2 : index
    %c0_40 = arith.constant 0 : index
    %c0_41 = arith.constant 0 : index
    %51 = vector.load %arg5[%c0_38, %c0_39, %c2, %c0_40, %c0_41] : memref<1x6x3x32x32xbf16, #tpu.memory_space<vmem>>, vector<1x1x1x32x32xbf16>
    %52 = vector.shape_cast %51 : vector<1x1x1x32x32xbf16> to vector<32x32xbf16>
    %cst_42 = arith.constant dense<0.000000e+00> : vector<16x32xf32>
    %53 = tpu.matmul %50, %52, %cst_42 {dimension_numbers = #tpu.dot_dimension_numbers<[1], [0], [0], [1], [0, 0, 1, 1], [], []>} : vector<16x32xbf16>, vector<32x32xbf16>, vector<16x32xf32> -> vector<16x32xf32>
    %54 = arith.addf %46, %53 : vector<16x32xf32>
    %55 = vector.broadcast %30 : vector<1x32xf32> to vector<16x32xf32>
    %56 = arith.addf %54, %55 : vector<16x32xf32>
    %cst_43 = arith.constant dense<0.000000e+00> : vector<16x32xf32>
    %57 = tpu.matmul %56, %7, %cst_43 {dimension_numbers = #tpu.dot_dimension_numbers<[1], [0], [0], [1], [0, 0, 1, 1], [], []>} : vector<16x32xf32>, vector<32x32xf32>, vector<16x32xf32> -> vector<16x32xf32>
    %cst_44 = arith.constant dense<0.000000e+00> : vector<16x32xf32>
    %58 = tpu.matmul %6, %57, %cst_44 {dimension_numbers = #tpu.dot_dimension_numbers<[1], [0], [0], [1], [0, 0, 1, 1], [], []>} : vector<16x16xf32>, vector<16x32xf32>, vector<16x32xf32> -> vector<16x32xf32>
    %59 = arith.subf %56, %58 : vector<16x32xf32>
    %60 = arith.mulf %59, %59 : vector<16x32xf32>
    %cst_45 = arith.constant dense<0.000000e+00> : vector<16x32xf32>
    %61 = tpu.matmul %60, %7, %cst_45 {dimension_numbers = #tpu.dot_dimension_numbers<[1], [0], [0], [1], [0, 0, 1, 1], [], []>} : vector<16x32xf32>, vector<32x32xf32>, vector<16x32xf32> -> vector<16x32xf32>
    %cst_46 = arith.constant dense<0.000000e+00> : vector<16x32xf32>
    %62 = tpu.matmul %6, %61, %cst_46 {dimension_numbers = #tpu.dot_dimension_numbers<[1], [0], [0], [1], [0, 0, 1, 1], [], []>} : vector<16x16xf32>, vector<16x32xf32>, vector<16x32xf32> -> vector<16x32xf32>
    %cst_47 = arith.constant 9.99999974E-6 : f32
    %63 = vector.broadcast %cst_47 : f32 to vector<16x32xf32>
    %64 = arith.addf %62, %63 : vector<16x32xf32>
    %65 = math.rsqrt %64 : vector<16x32xf32>
    %66 = arith.mulf %59, %65 : vector<16x32xf32>
    %67 = vector.broadcast %32 : vector<1x32xf32> to vector<16x32xf32>
    %68 = arith.mulf %66, %67 : vector<16x32xf32>
    %69 = vector.broadcast %34 : vector<1x32xf32> to vector<16x32xf32>
    %70 = arith.addf %68, %69 : vector<16x32xf32>
    %71 = arith.negf %70 : vector<16x32xf32>
    %72 = math.exp %71 : vector<16x32xf32>
    %cst_48 = arith.constant 1.000000e+00 : f32
    %73 = vector.broadcast %cst_48 : f32 to vector<16x32xf32>
    %74 = arith.addf %73, %72 : vector<16x32xf32>
    %75 = arith.divf %73, %74 : vector<16x32xf32>
    %76 = arith.mulf %70, %75 : vector<16x32xf32>
    %c0_49 = arith.constant 0 : index
    %c1_50 = arith.constant 1 : index
    %c0_51 = arith.constant 0 : index
    %c0_52 = arith.constant 0 : index
    %77 = vector.load %arg6[%c0_49, %c1_50, %c0_51, %c0_52] : memref<1x6x1x32xf32, #tpu.memory_space<vmem>>, vector<1x1x1x32xf32>
    %78 = vector.shape_cast %77 : vector<1x1x1x32xf32> to vector<1x32xf32>
    %c0_53 = arith.constant 0 : index
    %c1_54 = arith.constant 1 : index
    %c0_55 = arith.constant 0 : index
    %c0_56 = arith.constant 0 : index
    %79 = vector.load %arg7[%c0_53, %c1_54, %c0_55, %c0_56] : memref<1x6x1x32xf32, #tpu.memory_space<vmem>>, vector<1x1x1x32xf32>
    %80 = vector.shape_cast %79 : vector<1x1x1x32xf32> to vector<1x32xf32>
    %c0_57 = arith.constant 0 : index
    %c1_58 = arith.constant 1 : index
    %c0_59 = arith.constant 0 : index
    %c0_60 = arith.constant 0 : index
    %81 = vector.load %arg8[%c0_57, %c1_58, %c0_59, %c0_60] : memref<1x6x1x32xf32, #tpu.memory_space<vmem>>, vector<1x1x1x32xf32>
    %82 = vector.shape_cast %81 : vector<1x1x1x32xf32> to vector<1x32xf32>
    %c1_i32_61 = arith.constant 1 : i32
    %83 = tpu.dynamic_rotate %76 by %c1_i32_61 dim 0 : vector<16x32xf32>, i32 -> vector<16x32xf32>
    %cst_62 = arith.constant 0.000000e+00 : f32
    %84 = vector.broadcast %cst_62 : f32 to vector<16x32xf32>
    %85 = arith.select %26, %83, %84 : vector<16x32xi1>, vector<16x32xf32>
    %86 = arith.truncf %85 : vector<16x32xf32> to vector<16x32xbf16>
    %c0_63 = arith.constant 0 : index
    %c1_64 = arith.constant 1 : index
    %c0_65 = arith.constant 0 : index
    %c0_66 = arith.constant 0 : index
    %c0_67 = arith.constant 0 : index
    %87 = vector.load %arg5[%c0_63, %c1_64, %c0_65, %c0_66, %c0_67] : memref<1x6x3x32x32xbf16, #tpu.memory_space<vmem>>, vector<1x1x1x32x32xbf16>
    %88 = vector.shape_cast %87 : vector<1x1x1x32x32xbf16> to vector<32x32xbf16>
    %cst_68 = arith.constant dense<0.000000e+00> : vector<16x32xf32>
    %89 = tpu.matmul %86, %88, %cst_68 {dimension_numbers = #tpu.dot_dimension_numbers<[1], [0], [0], [1], [0, 0, 1, 1], [], []>} : vector<16x32xbf16>, vector<32x32xbf16>, vector<16x32xf32> -> vector<16x32xf32>
    %90 = arith.truncf %76 : vector<16x32xf32> to vector<16x32xbf16>
    %c0_69 = arith.constant 0 : index
    %c1_70 = arith.constant 1 : index
    %c1_71 = arith.constant 1 : index
    %c0_72 = arith.constant 0 : index
    %c0_73 = arith.constant 0 : index
    %91 = vector.load %arg5[%c0_69, %c1_70, %c1_71, %c0_72, %c0_73] : memref<1x6x3x32x32xbf16, #tpu.memory_space<vmem>>, vector<1x1x1x32x32xbf16>
    %92 = vector.shape_cast %91 : vector<1x1x1x32x32xbf16> to vector<32x32xbf16>
    %cst_74 = arith.constant dense<0.000000e+00> : vector<16x32xf32>
    %93 = tpu.matmul %90, %92, %cst_74 {dimension_numbers = #tpu.dot_dimension_numbers<[1], [0], [0], [1], [0, 0, 1, 1], [], []>} : vector<16x32xbf16>, vector<32x32xbf16>, vector<16x32xf32> -> vector<16x32xf32>
    %94 = arith.addf %89, %93 : vector<16x32xf32>
    %c15_i32_75 = arith.constant 15 : i32
    %95 = tpu.dynamic_rotate %76 by %c15_i32_75 dim 0 : vector<16x32xf32>, i32 -> vector<16x32xf32>
    %cst_76 = arith.constant 0.000000e+00 : f32
    %96 = vector.broadcast %cst_76 : f32 to vector<16x32xf32>
    %97 = arith.select %28, %95, %96 : vector<16x32xi1>, vector<16x32xf32>
    %98 = arith.truncf %97 : vector<16x32xf32> to vector<16x32xbf16>
    %c0_77 = arith.constant 0 : index
    %c1_78 = arith.constant 1 : index
    %c2_79 = arith.constant 2 : index
    %c0_80 = arith.constant 0 : index
    %c0_81 = arith.constant 0 : index
    %99 = vector.load %arg5[%c0_77, %c1_78, %c2_79, %c0_80, %c0_81] : memref<1x6x3x32x32xbf16, #tpu.memory_space<vmem>>, vector<1x1x1x32x32xbf16>
    %100 = vector.shape_cast %99 : vector<1x1x1x32x32xbf16> to vector<32x32xbf16>
    %cst_82 = arith.constant dense<0.000000e+00> : vector<16x32xf32>
    %101 = tpu.matmul %98, %100, %cst_82 {dimension_numbers = #tpu.dot_dimension_numbers<[1], [0], [0], [1], [0, 0, 1, 1], [], []>} : vector<16x32xbf16>, vector<32x32xbf16>, vector<16x32xf32> -> vector<16x32xf32>
    %102 = arith.addf %94, %101 : vector<16x32xf32>
    %103 = vector.broadcast %78 : vector<1x32xf32> to vector<16x32xf32>
    %104 = arith.addf %102, %103 : vector<16x32xf32>
    %cst_83 = arith.constant dense<0.000000e+00> : vector<16x32xf32>
    %105 = tpu.matmul %104, %7, %cst_83 {dimension_numbers = #tpu.dot_dimension_numbers<[1], [0], [0], [1], [0, 0, 1, 1], [], []>} : vector<16x32xf32>, vector<32x32xf32>, vector<16x32xf32> -> vector<16x32xf32>
    %cst_84 = arith.constant dense<0.000000e+00> : vector<16x32xf32>
    %106 = tpu.matmul %6, %105, %cst_84 {dimension_numbers = #tpu.dot_dimension_numbers<[1], [0], [0], [1], [0, 0, 1, 1], [], []>} : vector<16x16xf32>, vector<16x32xf32>, vector<16x32xf32> -> vector<16x32xf32>
    %107 = arith.subf %104, %106 : vector<16x32xf32>
    %108 = arith.mulf %107, %107 : vector<16x32xf32>
    %cst_85 = arith.constant dense<0.000000e+00> : vector<16x32xf32>
    %109 = tpu.matmul %108, %7, %cst_85 {dimension_numbers = #tpu.dot_dimension_numbers<[1], [0], [0], [1], [0, 0, 1, 1], [], []>} : vector<16x32xf32>, vector<32x32xf32>, vector<16x32xf32> -> vector<16x32xf32>
    %cst_86 = arith.constant dense<0.000000e+00> : vector<16x32xf32>
    %110 = tpu.matmul %6, %109, %cst_86 {dimension_numbers = #tpu.dot_dimension_numbers<[1], [0], [0], [1], [0, 0, 1, 1], [], []>} : vector<16x16xf32>, vector<16x32xf32>, vector<16x32xf32> -> vector<16x32xf32>
    %cst_87 = arith.constant 9.99999974E-6 : f32
    %111 = vector.broadcast %cst_87 : f32 to vector<16x32xf32>
    %112 = arith.addf %110, %111 : vector<16x32xf32>
    %113 = math.rsqrt %112 : vector<16x32xf32>
    %114 = arith.mulf %107, %113 : vector<16x32xf32>
    %115 = vector.broadcast %80 : vector<1x32xf32> to vector<16x32xf32>
    %116 = arith.mulf %114, %115 : vector<16x32xf32>
    %117 = vector.broadcast %82 : vector<1x32xf32> to vector<16x32xf32>
    %118 = arith.addf %116, %117 : vector<16x32xf32>
    %119 = arith.negf %118 : vector<16x32xf32>
    %120 = math.exp %119 : vector<16x32xf32>
    %cst_88 = arith.constant 1.000000e+00 : f32
    %121 = vector.broadcast %cst_88 : f32 to vector<16x32xf32>
    %122 = arith.addf %121, %120 : vector<16x32xf32>
    %123 = arith.divf %121, %122 : vector<16x32xf32>
    %124 = arith.mulf %118, %123 : vector<16x32xf32>
    %125 = arith.addf %124, %3 : vector<16x32xf32>
    %c0_89 = arith.constant 0 : index
    %c2_90 = arith.constant 2 : index
    %c0_91 = arith.constant 0 : index
    %c0_92 = arith.constant 0 : index
    %126 = vector.load %arg6[%c0_89, %c2_90, %c0_91, %c0_92] : memref<1x6x1x32xf32, #tpu.memory_space<vmem>>, vector<1x1x1x32xf32>
    %127 = vector.shape_cast %126 : vector<1x1x1x32xf32> to vector<1x32xf32>
    %c0_93 = arith.constant 0 : index
    %c2_94 = arith.constant 2 : index
    %c0_95 = arith.constant 0 : index
    %c0_96 = arith.constant 0 : index
    %128 = vector.load %arg7[%c0_93, %c2_94, %c0_95, %c0_96] : memref<1x6x1x32xf32, #tpu.memory_space<vmem>>, vector<1x1x1x32xf32>
    %129 = vector.shape_cast %128 : vector<1x1x1x32xf32> to vector<1x32xf32>
    %c0_97 = arith.constant 0 : index
    %c2_98 = arith.constant 2 : index
    %c0_99 = arith.constant 0 : index
    %c0_100 = arith.constant 0 : index
    %130 = vector.load %arg8[%c0_97, %c2_98, %c0_99, %c0_100] : memref<1x6x1x32xf32, #tpu.memory_space<vmem>>, vector<1x1x1x32xf32>
    %131 = vector.shape_cast %130 : vector<1x1x1x32xf32> to vector<1x32xf32>
    %c1_i32_101 = arith.constant 1 : i32
    %132 = tpu.dynamic_rotate %125 by %c1_i32_101 dim 0 : vector<16x32xf32>, i32 -> vector<16x32xf32>
    %cst_102 = arith.constant 0.000000e+00 : f32
    %133 = vector.broadcast %cst_102 : f32 to vector<16x32xf32>
    %134 = arith.select %26, %132, %133 : vector<16x32xi1>, vector<16x32xf32>
    %135 = arith.truncf %134 : vector<16x32xf32> to vector<16x32xbf16>
    %c0_103 = arith.constant 0 : index
    %c2_104 = arith.constant 2 : index
    %c0_105 = arith.constant 0 : index
    %c0_106 = arith.constant 0 : index
    %c0_107 = arith.constant 0 : index
    %136 = vector.load %arg5[%c0_103, %c2_104, %c0_105, %c0_106, %c0_107] : memref<1x6x3x32x32xbf16, #tpu.memory_space<vmem>>, vector<1x1x1x32x32xbf16>
    %137 = vector.shape_cast %136 : vector<1x1x1x32x32xbf16> to vector<32x32xbf16>
    %cst_108 = arith.constant dense<0.000000e+00> : vector<16x32xf32>
    %138 = tpu.matmul %135, %137, %cst_108 {dimension_numbers = #tpu.dot_dimension_numbers<[1], [0], [0], [1], [0, 0, 1, 1], [], []>} : vector<16x32xbf16>, vector<32x32xbf16>, vector<16x32xf32> -> vector<16x32xf32>
    %139 = arith.truncf %125 : vector<16x32xf32> to vector<16x32xbf16>
    %c0_109 = arith.constant 0 : index
    %c2_110 = arith.constant 2 : index
    %c1_111 = arith.constant 1 : index
    %c0_112 = arith.constant 0 : index
    %c0_113 = arith.constant 0 : index
    %140 = vector.load %arg5[%c0_109, %c2_110, %c1_111, %c0_112, %c0_113] : memref<1x6x3x32x32xbf16, #tpu.memory_space<vmem>>, vector<1x1x1x32x32xbf16>
    %141 = vector.shape_cast %140 : vector<1x1x1x32x32xbf16> to vector<32x32xbf16>
    %cst_114 = arith.constant dense<0.000000e+00> : vector<16x32xf32>
    %142 = tpu.matmul %139, %141, %cst_114 {dimension_numbers = #tpu.dot_dimension_numbers<[1], [0], [0], [1], [0, 0, 1, 1], [], []>} : vector<16x32xbf16>, vector<32x32xbf16>, vector<16x32xf32> -> vector<16x32xf32>
    %143 = arith.addf %138, %142 : vector<16x32xf32>
    %c15_i32_115 = arith.constant 15 : i32
    %144 = tpu.dynamic_rotate %125 by %c15_i32_115 dim 0 : vector<16x32xf32>, i32 -> vector<16x32xf32>
    %cst_116 = arith.constant 0.000000e+00 : f32
    %145 = vector.broadcast %cst_116 : f32 to vector<16x32xf32>
    %146 = arith.select %28, %144, %145 : vector<16x32xi1>, vector<16x32xf32>
    %147 = arith.truncf %146 : vector<16x32xf32> to vector<16x32xbf16>
    %c0_117 = arith.constant 0 : index
    %c2_118 = arith.constant 2 : index
    %c2_119 = arith.constant 2 : index
    %c0_120 = arith.constant 0 : index
    %c0_121 = arith.constant 0 : index
    %148 = vector.load %arg5[%c0_117, %c2_118, %c2_119, %c0_120, %c0_121] : memref<1x6x3x32x32xbf16, #tpu.memory_space<vmem>>, vector<1x1x1x32x32xbf16>
    %149 = vector.shape_cast %148 : vector<1x1x1x32x32xbf16> to vector<32x32xbf16>
    %cst_122 = arith.constant dense<0.000000e+00> : vector<16x32xf32>
    %150 = tpu.matmul %147, %149, %cst_122 {dimension_numbers = #tpu.dot_dimension_numbers<[1], [0], [0], [1], [0, 0, 1, 1], [], []>} : vector<16x32xbf16>, vector<32x32xbf16>, vector<16x32xf32> -> vector<16x32xf32>
    %151 = arith.addf %143, %150 : vector<16x32xf32>
    %152 = vector.broadcast %127 : vector<1x32xf32> to vector<16x32xf32>
    %153 = arith.addf %151, %152 : vector<16x32xf32>
    %cst_123 = arith.constant dense<0.000000e+00> : vector<16x32xf32>
    %154 = tpu.matmul %153, %7, %cst_123 {dimension_numbers = #tpu.dot_dimension_numbers<[1], [0], [0], [1], [0, 0, 1, 1], [], []>} : vector<16x32xf32>, vector<32x32xf32>, vector<16x32xf32> -> vector<16x32xf32>
    %cst_124 = arith.constant dense<0.000000e+00> : vector<16x32xf32>
    %155 = tpu.matmul %6, %154, %cst_124 {dimension_numbers = #tpu.dot_dimension_numbers<[1], [0], [0], [1], [0, 0, 1, 1], [], []>} : vector<16x16xf32>, vector<16x32xf32>, vector<16x32xf32> -> vector<16x32xf32>
    %156 = arith.subf %153, %155 : vector<16x32xf32>
    %157 = arith.mulf %156, %156 : vector<16x32xf32>
    %cst_125 = arith.constant dense<0.000000e+00> : vector<16x32xf32>
    %158 = tpu.matmul %157, %7, %cst_125 {dimension_numbers = #tpu.dot_dimension_numbers<[1], [0], [0], [1], [0, 0, 1, 1], [], []>} : vector<16x32xf32>, vector<32x32xf32>, vector<16x32xf32> -> vector<16x32xf32>
    %cst_126 = arith.constant dense<0.000000e+00> : vector<16x32xf32>
    %159 = tpu.matmul %6, %158, %cst_126 {dimension_numbers = #tpu.dot_dimension_numbers<[1], [0], [0], [1], [0, 0, 1, 1], [], []>} : vector<16x16xf32>, vector<16x32xf32>, vector<16x32xf32> -> vector<16x32xf32>
    %cst_127 = arith.constant 9.99999974E-6 : f32
    %160 = vector.broadcast %cst_127 : f32 to vector<16x32xf32>
    %161 = arith.addf %159, %160 : vector<16x32xf32>
    %162 = math.rsqrt %161 : vector<16x32xf32>
    %163 = arith.mulf %156, %162 : vector<16x32xf32>
    %164 = vector.broadcast %129 : vector<1x32xf32> to vector<16x32xf32>
    %165 = arith.mulf %163, %164 : vector<16x32xf32>
    %166 = vector.broadcast %131 : vector<1x32xf32> to vector<16x32xf32>
    %167 = arith.addf %165, %166 : vector<16x32xf32>
    %168 = arith.negf %167 : vector<16x32xf32>
    %169 = math.exp %168 : vector<16x32xf32>
    %cst_128 = arith.constant 1.000000e+00 : f32
    %170 = vector.broadcast %cst_128 : f32 to vector<16x32xf32>
    %171 = arith.addf %170, %169 : vector<16x32xf32>
    %172 = arith.divf %170, %171 : vector<16x32xf32>
    %173 = arith.mulf %167, %172 : vector<16x32xf32>
    %c0_129 = arith.constant 0 : index
    %c3 = arith.constant 3 : index
    %c0_130 = arith.constant 0 : index
    %c0_131 = arith.constant 0 : index
    %174 = vector.load %arg6[%c0_129, %c3, %c0_130, %c0_131] : memref<1x6x1x32xf32, #tpu.memory_space<vmem>>, vector<1x1x1x32xf32>
    %175 = vector.shape_cast %174 : vector<1x1x1x32xf32> to vector<1x32xf32>
    %c0_132 = arith.constant 0 : index
    %c3_133 = arith.constant 3 : index
    %c0_134 = arith.constant 0 : index
    %c0_135 = arith.constant 0 : index
    %176 = vector.load %arg7[%c0_132, %c3_133, %c0_134, %c0_135] : memref<1x6x1x32xf32, #tpu.memory_space<vmem>>, vector<1x1x1x32xf32>
    %177 = vector.shape_cast %176 : vector<1x1x1x32xf32> to vector<1x32xf32>
    %c0_136 = arith.constant 0 : index
    %c3_137 = arith.constant 3 : index
    %c0_138 = arith.constant 0 : index
    %c0_139 = arith.constant 0 : index
    %178 = vector.load %arg8[%c0_136, %c3_137, %c0_138, %c0_139] : memref<1x6x1x32xf32, #tpu.memory_space<vmem>>, vector<1x1x1x32xf32>
    %179 = vector.shape_cast %178 : vector<1x1x1x32xf32> to vector<1x32xf32>
    %c1_i32_140 = arith.constant 1 : i32
    %180 = tpu.dynamic_rotate %173 by %c1_i32_140 dim 0 : vector<16x32xf32>, i32 -> vector<16x32xf32>
    %cst_141 = arith.constant 0.000000e+00 : f32
    %181 = vector.broadcast %cst_141 : f32 to vector<16x32xf32>
    %182 = arith.select %26, %180, %181 : vector<16x32xi1>, vector<16x32xf32>
    %183 = arith.truncf %182 : vector<16x32xf32> to vector<16x32xbf16>
    %c0_142 = arith.constant 0 : index
    %c3_143 = arith.constant 3 : index
    %c0_144 = arith.constant 0 : index
    %c0_145 = arith.constant 0 : index
    %c0_146 = arith.constant 0 : index
    %184 = vector.load %arg5[%c0_142, %c3_143, %c0_144, %c0_145, %c0_146] : memref<1x6x3x32x32xbf16, #tpu.memory_space<vmem>>, vector<1x1x1x32x32xbf16>
    %185 = vector.shape_cast %184 : vector<1x1x1x32x32xbf16> to vector<32x32xbf16>
    %cst_147 = arith.constant dense<0.000000e+00> : vector<16x32xf32>
    %186 = tpu.matmul %183, %185, %cst_147 {dimension_numbers = #tpu.dot_dimension_numbers<[1], [0], [0], [1], [0, 0, 1, 1], [], []>} : vector<16x32xbf16>, vector<32x32xbf16>, vector<16x32xf32> -> vector<16x32xf32>
    %187 = arith.truncf %173 : vector<16x32xf32> to vector<16x32xbf16>
    %c0_148 = arith.constant 0 : index
    %c3_149 = arith.constant 3 : index
    %c1_150 = arith.constant 1 : index
    %c0_151 = arith.constant 0 : index
    %c0_152 = arith.constant 0 : index
    %188 = vector.load %arg5[%c0_148, %c3_149, %c1_150, %c0_151, %c0_152] : memref<1x6x3x32x32xbf16, #tpu.memory_space<vmem>>, vector<1x1x1x32x32xbf16>
    %189 = vector.shape_cast %188 : vector<1x1x1x32x32xbf16> to vector<32x32xbf16>
    %cst_153 = arith.constant dense<0.000000e+00> : vector<16x32xf32>
    %190 = tpu.matmul %187, %189, %cst_153 {dimension_numbers = #tpu.dot_dimension_numbers<[1], [0], [0], [1], [0, 0, 1, 1], [], []>} : vector<16x32xbf16>, vector<32x32xbf16>, vector<16x32xf32> -> vector<16x32xf32>
    %191 = arith.addf %186, %190 : vector<16x32xf32>
    %c15_i32_154 = arith.constant 15 : i32
    %192 = tpu.dynamic_rotate %173 by %c15_i32_154 dim 0 : vector<16x32xf32>, i32 -> vector<16x32xf32>
    %cst_155 = arith.constant 0.000000e+00 : f32
    %193 = vector.broadcast %cst_155 : f32 to vector<16x32xf32>
    %194 = arith.select %28, %192, %193 : vector<16x32xi1>, vector<16x32xf32>
    %195 = arith.truncf %194 : vector<16x32xf32> to vector<16x32xbf16>
    %c0_156 = arith.constant 0 : index
    %c3_157 = arith.constant 3 : index
    %c2_158 = arith.constant 2 : index
    %c0_159 = arith.constant 0 : index
    %c0_160 = arith.constant 0 : index
    %196 = vector.load %arg5[%c0_156, %c3_157, %c2_158, %c0_159, %c0_160] : memref<1x6x3x32x32xbf16, #tpu.memory_space<vmem>>, vector<1x1x1x32x32xbf16>
    %197 = vector.shape_cast %196 : vector<1x1x1x32x32xbf16> to vector<32x32xbf16>
    %cst_161 = arith.constant dense<0.000000e+00> : vector<16x32xf32>
    %198 = tpu.matmul %195, %197, %cst_161 {dimension_numbers = #tpu.dot_dimension_numbers<[1], [0], [0], [1], [0, 0, 1, 1], [], []>} : vector<16x32xbf16>, vector<32x32xbf16>, vector<16x32xf32> -> vector<16x32xf32>
    %199 = arith.addf %191, %198 : vector<16x32xf32>
    %200 = vector.broadcast %175 : vector<1x32xf32> to vector<16x32xf32>
    %201 = arith.addf %199, %200 : vector<16x32xf32>
    %cst_162 = arith.constant dense<0.000000e+00> : vector<16x32xf32>
    %202 = tpu.matmul %201, %7, %cst_162 {dimension_numbers = #tpu.dot_dimension_numbers<[1], [0], [0], [1], [0, 0, 1, 1], [], []>} : vector<16x32xf32>, vector<32x32xf32>, vector<16x32xf32> -> vector<16x32xf32>
    %cst_163 = arith.constant dense<0.000000e+00> : vector<16x32xf32>
    %203 = tpu.matmul %6, %202, %cst_163 {dimension_numbers = #tpu.dot_dimension_numbers<[1], [0], [0], [1], [0, 0, 1, 1], [], []>} : vector<16x16xf32>, vector<16x32xf32>, vector<16x32xf32> -> vector<16x32xf32>
    %204 = arith.subf %201, %203 : vector<16x32xf32>
    %205 = arith.mulf %204, %204 : vector<16x32xf32>
    %cst_164 = arith.constant dense<0.000000e+00> : vector<16x32xf32>
    %206 = tpu.matmul %205, %7, %cst_164 {dimension_numbers = #tpu.dot_dimension_numbers<[1], [0], [0], [1], [0, 0, 1, 1], [], []>} : vector<16x32xf32>, vector<32x32xf32>, vector<16x32xf32> -> vector<16x32xf32>
    %cst_165 = arith.constant dense<0.000000e+00> : vector<16x32xf32>
    %207 = tpu.matmul %6, %206, %cst_165 {dimension_numbers = #tpu.dot_dimension_numbers<[1], [0], [0], [1], [0, 0, 1, 1], [], []>} : vector<16x16xf32>, vector<16x32xf32>, vector<16x32xf32> -> vector<16x32xf32>
    %cst_166 = arith.constant 9.99999974E-6 : f32
    %208 = vector.broadcast %cst_166 : f32 to vector<16x32xf32>
    %209 = arith.addf %207, %208 : vector<16x32xf32>
    %210 = math.rsqrt %209 : vector<16x32xf32>
    %211 = arith.mulf %204, %210 : vector<16x32xf32>
    %212 = vector.broadcast %177 : vector<1x32xf32> to vector<16x32xf32>
    %213 = arith.mulf %211, %212 : vector<16x32xf32>
    %214 = vector.broadcast %179 : vector<1x32xf32> to vector<16x32xf32>
    %215 = arith.addf %213, %214 : vector<16x32xf32>
    %216 = arith.negf %215 : vector<16x32xf32>
    %217 = math.exp %216 : vector<16x32xf32>
    %cst_167 = arith.constant 1.000000e+00 : f32
    %218 = vector.broadcast %cst_167 : f32 to vector<16x32xf32>
    %219 = arith.addf %218, %217 : vector<16x32xf32>
    %220 = arith.divf %218, %219 : vector<16x32xf32>
    %221 = arith.mulf %215, %220 : vector<16x32xf32>
    %222 = arith.addf %221, %125 : vector<16x32xf32>
    %c0_168 = arith.constant 0 : index
    %c4 = arith.constant 4 : index
    %c0_169 = arith.constant 0 : index
    %c0_170 = arith.constant 0 : index
    %223 = vector.load %arg6[%c0_168, %c4, %c0_169, %c0_170] : memref<1x6x1x32xf32, #tpu.memory_space<vmem>>, vector<1x1x1x32xf32>
    %224 = vector.shape_cast %223 : vector<1x1x1x32xf32> to vector<1x32xf32>
    %c0_171 = arith.constant 0 : index
    %c4_172 = arith.constant 4 : index
    %c0_173 = arith.constant 0 : index
    %c0_174 = arith.constant 0 : index
    %225 = vector.load %arg7[%c0_171, %c4_172, %c0_173, %c0_174] : memref<1x6x1x32xf32, #tpu.memory_space<vmem>>, vector<1x1x1x32xf32>
    %226 = vector.shape_cast %225 : vector<1x1x1x32xf32> to vector<1x32xf32>
    %c0_175 = arith.constant 0 : index
    %c4_176 = arith.constant 4 : index
    %c0_177 = arith.constant 0 : index
    %c0_178 = arith.constant 0 : index
    %227 = vector.load %arg8[%c0_175, %c4_176, %c0_177, %c0_178] : memref<1x6x1x32xf32, #tpu.memory_space<vmem>>, vector<1x1x1x32xf32>
    %228 = vector.shape_cast %227 : vector<1x1x1x32xf32> to vector<1x32xf32>
    %c1_i32_179 = arith.constant 1 : i32
    %229 = tpu.dynamic_rotate %222 by %c1_i32_179 dim 0 : vector<16x32xf32>, i32 -> vector<16x32xf32>
    %cst_180 = arith.constant 0.000000e+00 : f32
    %230 = vector.broadcast %cst_180 : f32 to vector<16x32xf32>
    %231 = arith.select %26, %229, %230 : vector<16x32xi1>, vector<16x32xf32>
    %232 = arith.truncf %231 : vector<16x32xf32> to vector<16x32xbf16>
    %c0_181 = arith.constant 0 : index
    %c4_182 = arith.constant 4 : index
    %c0_183 = arith.constant 0 : index
    %c0_184 = arith.constant 0 : index
    %c0_185 = arith.constant 0 : index
    %233 = vector.load %arg5[%c0_181, %c4_182, %c0_183, %c0_184, %c0_185] : memref<1x6x3x32x32xbf16, #tpu.memory_space<vmem>>, vector<1x1x1x32x32xbf16>
    %234 = vector.shape_cast %233 : vector<1x1x1x32x32xbf16> to vector<32x32xbf16>
    %cst_186 = arith.constant dense<0.000000e+00> : vector<16x32xf32>
    %235 = tpu.matmul %232, %234, %cst_186 {dimension_numbers = #tpu.dot_dimension_numbers<[1], [0], [0], [1], [0, 0, 1, 1], [], []>} : vector<16x32xbf16>, vector<32x32xbf16>, vector<16x32xf32> -> vector<16x32xf32>
    %236 = arith.truncf %222 : vector<16x32xf32> to vector<16x32xbf16>
    %c0_187 = arith.constant 0 : index
    %c4_188 = arith.constant 4 : index
    %c1_189 = arith.constant 1 : index
    %c0_190 = arith.constant 0 : index
    %c0_191 = arith.constant 0 : index
    %237 = vector.load %arg5[%c0_187, %c4_188, %c1_189, %c0_190, %c0_191] : memref<1x6x3x32x32xbf16, #tpu.memory_space<vmem>>, vector<1x1x1x32x32xbf16>
    %238 = vector.shape_cast %237 : vector<1x1x1x32x32xbf16> to vector<32x32xbf16>
    %cst_192 = arith.constant dense<0.000000e+00> : vector<16x32xf32>
    %239 = tpu.matmul %236, %238, %cst_192 {dimension_numbers = #tpu.dot_dimension_numbers<[1], [0], [0], [1], [0, 0, 1, 1], [], []>} : vector<16x32xbf16>, vector<32x32xbf16>, vector<16x32xf32> -> vector<16x32xf32>
    %240 = arith.addf %235, %239 : vector<16x32xf32>
    %c15_i32_193 = arith.constant 15 : i32
    %241 = tpu.dynamic_rotate %222 by %c15_i32_193 dim 0 : vector<16x32xf32>, i32 -> vector<16x32xf32>
    %cst_194 = arith.constant 0.000000e+00 : f32
    %242 = vector.broadcast %cst_194 : f32 to vector<16x32xf32>
    %243 = arith.select %28, %241, %242 : vector<16x32xi1>, vector<16x32xf32>
    %244 = arith.truncf %243 : vector<16x32xf32> to vector<16x32xbf16>
    %c0_195 = arith.constant 0 : index
    %c4_196 = arith.constant 4 : index
    %c2_197 = arith.constant 2 : index
    %c0_198 = arith.constant 0 : index
    %c0_199 = arith.constant 0 : index
    %245 = vector.load %arg5[%c0_195, %c4_196, %c2_197, %c0_198, %c0_199] : memref<1x6x3x32x32xbf16, #tpu.memory_space<vmem>>, vector<1x1x1x32x32xbf16>
    %246 = vector.shape_cast %245 : vector<1x1x1x32x32xbf16> to vector<32x32xbf16>
    %cst_200 = arith.constant dense<0.000000e+00> : vector<16x32xf32>
    %247 = tpu.matmul %244, %246, %cst_200 {dimension_numbers = #tpu.dot_dimension_numbers<[1], [0], [0], [1], [0, 0, 1, 1], [], []>} : vector<16x32xbf16>, vector<32x32xbf16>, vector<16x32xf32> -> vector<16x32xf32>
    %248 = arith.addf %240, %247 : vector<16x32xf32>
    %249 = vector.broadcast %224 : vector<1x32xf32> to vector<16x32xf32>
    %250 = arith.addf %248, %249 : vector<16x32xf32>
    %cst_201 = arith.constant dense<0.000000e+00> : vector<16x32xf32>
    %251 = tpu.matmul %250, %7, %cst_201 {dimension_numbers = #tpu.dot_dimension_numbers<[1], [0], [0], [1], [0, 0, 1, 1], [], []>} : vector<16x32xf32>, vector<32x32xf32>, vector<16x32xf32> -> vector<16x32xf32>
    %cst_202 = arith.constant dense<0.000000e+00> : vector<16x32xf32>
    %252 = tpu.matmul %6, %251, %cst_202 {dimension_numbers = #tpu.dot_dimension_numbers<[1], [0], [0], [1], [0, 0, 1, 1], [], []>} : vector<16x16xf32>, vector<16x32xf32>, vector<16x32xf32> -> vector<16x32xf32>
    %253 = arith.subf %250, %252 : vector<16x32xf32>
    %254 = arith.mulf %253, %253 : vector<16x32xf32>
    %cst_203 = arith.constant dense<0.000000e+00> : vector<16x32xf32>
    %255 = tpu.matmul %254, %7, %cst_203 {dimension_numbers = #tpu.dot_dimension_numbers<[1], [0], [0], [1], [0, 0, 1, 1], [], []>} : vector<16x32xf32>, vector<32x32xf32>, vector<16x32xf32> -> vector<16x32xf32>
    %cst_204 = arith.constant dense<0.000000e+00> : vector<16x32xf32>
    %256 = tpu.matmul %6, %255, %cst_204 {dimension_numbers = #tpu.dot_dimension_numbers<[1], [0], [0], [1], [0, 0, 1, 1], [], []>} : vector<16x16xf32>, vector<16x32xf32>, vector<16x32xf32> -> vector<16x32xf32>
    %cst_205 = arith.constant 9.99999974E-6 : f32
    %257 = vector.broadcast %cst_205 : f32 to vector<16x32xf32>
    %258 = arith.addf %256, %257 : vector<16x32xf32>
    %259 = math.rsqrt %258 : vector<16x32xf32>
    %260 = arith.mulf %253, %259 : vector<16x32xf32>
    %261 = vector.broadcast %226 : vector<1x32xf32> to vector<16x32xf32>
    %262 = arith.mulf %260, %261 : vector<16x32xf32>
    %263 = vector.broadcast %228 : vector<1x32xf32> to vector<16x32xf32>
    %264 = arith.addf %262, %263 : vector<16x32xf32>
    %265 = arith.negf %264 : vector<16x32xf32>
    %266 = math.exp %265 : vector<16x32xf32>
    %cst_206 = arith.constant 1.000000e+00 : f32
    %267 = vector.broadcast %cst_206 : f32 to vector<16x32xf32>
    %268 = arith.addf %267, %266 : vector<16x32xf32>
    %269 = arith.divf %267, %268 : vector<16x32xf32>
    %270 = arith.mulf %264, %269 : vector<16x32xf32>
    %c0_207 = arith.constant 0 : index
    %c5 = arith.constant 5 : index
    %c0_208 = arith.constant 0 : index
    %c0_209 = arith.constant 0 : index
    %271 = vector.load %arg6[%c0_207, %c5, %c0_208, %c0_209] : memref<1x6x1x32xf32, #tpu.memory_space<vmem>>, vector<1x1x1x32xf32>
    %272 = vector.shape_cast %271 : vector<1x1x1x32xf32> to vector<1x32xf32>
    %c0_210 = arith.constant 0 : index
    %c5_211 = arith.constant 5 : index
    %c0_212 = arith.constant 0 : index
    %c0_213 = arith.constant 0 : index
    %273 = vector.load %arg7[%c0_210, %c5_211, %c0_212, %c0_213] : memref<1x6x1x32xf32, #tpu.memory_space<vmem>>, vector<1x1x1x32xf32>
    %274 = vector.shape_cast %273 : vector<1x1x1x32xf32> to vector<1x32xf32>
    %c0_214 = arith.constant 0 : index
    %c5_215 = arith.constant 5 : index
    %c0_216 = arith.constant 0 : index
    %c0_217 = arith.constant 0 : index
    %275 = vector.load %arg8[%c0_214, %c5_215, %c0_216, %c0_217] : memref<1x6x1x32xf32, #tpu.memory_space<vmem>>, vector<1x1x1x32xf32>
    %276 = vector.shape_cast %275 : vector<1x1x1x32xf32> to vector<1x32xf32>
    %c1_i32_218 = arith.constant 1 : i32
    %277 = tpu.dynamic_rotate %270 by %c1_i32_218 dim 0 : vector<16x32xf32>, i32 -> vector<16x32xf32>
    %cst_219 = arith.constant 0.000000e+00 : f32
    %278 = vector.broadcast %cst_219 : f32 to vector<16x32xf32>
    %279 = arith.select %26, %277, %278 : vector<16x32xi1>, vector<16x32xf32>
    %280 = arith.truncf %279 : vector<16x32xf32> to vector<16x32xbf16>
    %c0_220 = arith.constant 0 : index
    %c5_221 = arith.constant 5 : index
    %c0_222 = arith.constant 0 : index
    %c0_223 = arith.constant 0 : index
    %c0_224 = arith.constant 0 : index
    %281 = vector.load %arg5[%c0_220, %c5_221, %c0_222, %c0_223, %c0_224] : memref<1x6x3x32x32xbf16, #tpu.memory_space<vmem>>, vector<1x1x1x32x32xbf16>
    %282 = vector.shape_cast %281 : vector<1x1x1x32x32xbf16> to vector<32x32xbf16>
    %cst_225 = arith.constant dense<0.000000e+00> : vector<16x32xf32>
    %283 = tpu.matmul %280, %282, %cst_225 {dimension_numbers = #tpu.dot_dimension_numbers<[1], [0], [0], [1], [0, 0, 1, 1], [], []>} : vector<16x32xbf16>, vector<32x32xbf16>, vector<16x32xf32> -> vector<16x32xf32>
    %284 = arith.truncf %270 : vector<16x32xf32> to vector<16x32xbf16>
    %c0_226 = arith.constant 0 : index
    %c5_227 = arith.constant 5 : index
    %c1_228 = arith.constant 1 : index
    %c0_229 = arith.constant 0 : index
    %c0_230 = arith.constant 0 : index
    %285 = vector.load %arg5[%c0_226, %c5_227, %c1_228, %c0_229, %c0_230] : memref<1x6x3x32x32xbf16, #tpu.memory_space<vmem>>, vector<1x1x1x32x32xbf16>
    %286 = vector.shape_cast %285 : vector<1x1x1x32x32xbf16> to vector<32x32xbf16>
    %cst_231 = arith.constant dense<0.000000e+00> : vector<16x32xf32>
    %287 = tpu.matmul %284, %286, %cst_231 {dimension_numbers = #tpu.dot_dimension_numbers<[1], [0], [0], [1], [0, 0, 1, 1], [], []>} : vector<16x32xbf16>, vector<32x32xbf16>, vector<16x32xf32> -> vector<16x32xf32>
    %288 = arith.addf %283, %287 : vector<16x32xf32>
    %c15_i32_232 = arith.constant 15 : i32
    %289 = tpu.dynamic_rotate %270 by %c15_i32_232 dim 0 : vector<16x32xf32>, i32 -> vector<16x32xf32>
    %cst_233 = arith.constant 0.000000e+00 : f32
    %290 = vector.broadcast %cst_233 : f32 to vector<16x32xf32>
    %291 = arith.select %28, %289, %290 : vector<16x32xi1>, vector<16x32xf32>
    %292 = arith.truncf %291 : vector<16x32xf32> to vector<16x32xbf16>
    %c0_234 = arith.constant 0 : index
    %c5_235 = arith.constant 5 : index
    %c2_236 = arith.constant 2 : index
    %c0_237 = arith.constant 0 : index
    %c0_238 = arith.constant 0 : index
    %293 = vector.load %arg5[%c0_234, %c5_235, %c2_236, %c0_237, %c0_238] : memref<1x6x3x32x32xbf16, #tpu.memory_space<vmem>>, vector<1x1x1x32x32xbf16>
    %294 = vector.shape_cast %293 : vector<1x1x1x32x32xbf16> to vector<32x32xbf16>
    %cst_239 = arith.constant dense<0.000000e+00> : vector<16x32xf32>
    %295 = tpu.matmul %292, %294, %cst_239 {dimension_numbers = #tpu.dot_dimension_numbers<[1], [0], [0], [1], [0, 0, 1, 1], [], []>} : vector<16x32xbf16>, vector<32x32xbf16>, vector<16x32xf32> -> vector<16x32xf32>
    %296 = arith.addf %288, %295 : vector<16x32xf32>
    %297 = vector.broadcast %272 : vector<1x32xf32> to vector<16x32xf32>
    %298 = arith.addf %296, %297 : vector<16x32xf32>
    %cst_240 = arith.constant dense<0.000000e+00> : vector<16x32xf32>
    %299 = tpu.matmul %298, %7, %cst_240 {dimension_numbers = #tpu.dot_dimension_numbers<[1], [0], [0], [1], [0, 0, 1, 1], [], []>} : vector<16x32xf32>, vector<32x32xf32>, vector<16x32xf32> -> vector<16x32xf32>
    %cst_241 = arith.constant dense<0.000000e+00> : vector<16x32xf32>
    %300 = tpu.matmul %6, %299, %cst_241 {dimension_numbers = #tpu.dot_dimension_numbers<[1], [0], [0], [1], [0, 0, 1, 1], [], []>} : vector<16x16xf32>, vector<16x32xf32>, vector<16x32xf32> -> vector<16x32xf32>
    %301 = arith.subf %298, %300 : vector<16x32xf32>
    %302 = arith.mulf %301, %301 : vector<16x32xf32>
    %cst_242 = arith.constant dense<0.000000e+00> : vector<16x32xf32>
    %303 = tpu.matmul %302, %7, %cst_242 {dimension_numbers = #tpu.dot_dimension_numbers<[1], [0], [0], [1], [0, 0, 1, 1], [], []>} : vector<16x32xf32>, vector<32x32xf32>, vector<16x32xf32> -> vector<16x32xf32>
    %cst_243 = arith.constant dense<0.000000e+00> : vector<16x32xf32>
    %304 = tpu.matmul %6, %303, %cst_243 {dimension_numbers = #tpu.dot_dimension_numbers<[1], [0], [0], [1], [0, 0, 1, 1], [], []>} : vector<16x16xf32>, vector<16x32xf32>, vector<16x32xf32> -> vector<16x32xf32>
    %cst_244 = arith.constant 9.99999974E-6 : f32
    %305 = vector.broadcast %cst_244 : f32 to vector<16x32xf32>
    %306 = arith.addf %304, %305 : vector<16x32xf32>
    %307 = math.rsqrt %306 : vector<16x32xf32>
    %308 = arith.mulf %301, %307 : vector<16x32xf32>
    %309 = vector.broadcast %274 : vector<1x32xf32> to vector<16x32xf32>
    %310 = arith.mulf %308, %309 : vector<16x32xf32>
    %311 = vector.broadcast %276 : vector<1x32xf32> to vector<16x32xf32>
    %312 = arith.addf %310, %311 : vector<16x32xf32>
    %313 = arith.negf %312 : vector<16x32xf32>
    %314 = math.exp %313 : vector<16x32xf32>
    %cst_245 = arith.constant 1.000000e+00 : f32
    %315 = vector.broadcast %cst_245 : f32 to vector<16x32xf32>
    %316 = arith.addf %315, %314 : vector<16x32xf32>
    %317 = arith.divf %315, %316 : vector<16x32xf32>
    %318 = arith.mulf %312, %317 : vector<16x32xf32>
    %319 = arith.addf %318, %222 : vector<16x32xf32>
    %c0_246 = arith.constant 0 : index
    %c0_247 = arith.constant 0 : index
    %c0_248 = arith.constant 0 : index
    %320 = vector.load %arg9[%c0_246, %c0_247, %c0_248] : memref<1x1x32xf32, #tpu.memory_space<vmem>>, vector<1x1x32xf32>
    %321 = vector.shape_cast %320 : vector<1x1x32xf32> to vector<1x32xf32>
    %322 = arith.mulf %319, %319 : vector<16x32xf32>
    %cst_249 = arith.constant dense<0.000000e+00> : vector<16xf32>
    %323 = vector.multi_reduction <add>, %322, %cst_249 [1] : vector<16x32xf32> to vector<16xf32>
    %324 = vector.shape_cast %323 : vector<16xf32> to vector<16x1xf32>
    %cst_250 = arith.constant 1.000000e-24 : f32
    %325 = vector.broadcast %cst_250 : f32 to vector<16x1xf32>
    %326 = arith.maximumf %324, %325 : vector<16x1xf32>
    %327 = math.rsqrt %326 : vector<16x1xf32>
    %328 = vector.broadcast %327 : vector<16x1xf32> to vector<16x32xf32>
    %329 = arith.mulf %319, %328 : vector<16x32xf32>
    %cst_251 = arith.constant 5.65685415 : f32
    %330 = vector.broadcast %cst_251 : f32 to vector<16x32xf32>
    %331 = arith.mulf %329, %330 : vector<16x32xf32>
    %332 = vector.broadcast %321 : vector<1x32xf32> to vector<16x32xf32>
    %333 = arith.mulf %331, %332 : vector<16x32xf32>
    %334 = arith.truncf %333 : vector<16x32xf32> to vector<16x32xbf16>
    %c0_252 = arith.constant 0 : index
    %c0_253 = arith.constant 0 : index
    %c0_254 = arith.constant 0 : index
    %c0_255 = arith.constant 0 : index
    %335 = vector.load %arg10[%c0_252, %c0_253, %c0_254, %c0_255] : memref<1x2x32x8xbf16, #tpu.memory_space<vmem>>, vector<1x1x32x8xbf16>
    %336 = vector.shape_cast %335 : vector<1x1x32x8xbf16> to vector<32x8xbf16>
    %cst_256 = arith.constant dense<0.000000e+00> : vector<16x8xf32>
    %337 = tpu.matmul %334, %336, %cst_256 {dimension_numbers = #tpu.dot_dimension_numbers<[1], [0], [0], [1], [0, 0, 1, 1], [], []>} : vector<16x32xbf16>, vector<32x8xbf16>, vector<16x8xf32> -> vector<16x8xf32>
    %cst_257 = arith.constant 0.353553385 : f32
    %338 = vector.broadcast %cst_257 : f32 to vector<16x8xf32>
    %339 = arith.mulf %337, %338 : vector<16x8xf32>
    %c0_258 = arith.constant 0 : index
    %c0_259 = arith.constant 0 : index
    %c0_260 = arith.constant 0 : index
    %c0_261 = arith.constant 0 : index
    %340 = vector.load %arg11[%c0_258, %c0_259, %c0_260, %c0_261] : memref<1x2x32x8xbf16, #tpu.memory_space<vmem>>, vector<1x1x32x8xbf16>
    %341 = vector.shape_cast %340 : vector<1x1x32x8xbf16> to vector<32x8xbf16>
    %cst_262 = arith.constant dense<0.000000e+00> : vector<16x8xf32>
    %342 = tpu.matmul %334, %341, %cst_262 {dimension_numbers = #tpu.dot_dimension_numbers<[1], [0], [0], [1], [0, 0, 1, 1], [], []>} : vector<16x32xbf16>, vector<32x8xbf16>, vector<16x8xf32> -> vector<16x8xf32>
    %c0_263 = arith.constant 0 : index
    %c0_264 = arith.constant 0 : index
    %c0_265 = arith.constant 0 : index
    %c0_266 = arith.constant 0 : index
    %343 = vector.load %arg11[%c0_263, %c0_264, %c0_265, %c0_266] : memref<1x2x32x8xbf16, #tpu.memory_space<vmem>>, vector<1x1x32x8xbf16>
    %344 = vector.shape_cast %343 : vector<1x1x32x8xbf16> to vector<32x8xbf16>
    %cst_267 = arith.constant dense<0.000000e+00> : vector<16x8xf32>
    %345 = tpu.matmul %5, %344, %cst_267 {dimension_numbers = #tpu.dot_dimension_numbers<[1], [0], [0], [1], [0, 0, 1, 1], [], []>} : vector<16x32xbf16>, vector<32x8xbf16>, vector<16x8xf32> -> vector<16x8xf32>
    %c0_268 = arith.constant 0 : index
    %c0_269 = arith.constant 0 : index
    %c0_270 = arith.constant 0 : index
    %c0_271 = arith.constant 0 : index
    %346 = vector.load %arg12[%c0_268, %c0_269, %c0_270, %c0_271] : memref<1x2x32x8xbf16, #tpu.memory_space<vmem>>, vector<1x1x32x8xbf16>
    %347 = vector.shape_cast %346 : vector<1x1x32x8xbf16> to vector<32x8xbf16>
    %cst_272 = arith.constant dense<0.000000e+00> : vector<16x8xf32>
    %348 = tpu.matmul %334, %347, %cst_272 {dimension_numbers = #tpu.dot_dimension_numbers<[1], [0], [0], [1], [0, 0, 1, 1], [], []>} : vector<16x32xbf16>, vector<32x8xbf16>, vector<16x8xf32> -> vector<16x8xf32>
    %c0_273 = arith.constant 0 : index
    %c0_274 = arith.constant 0 : index
    %c0_275 = arith.constant 0 : index
    %c0_276 = arith.constant 0 : index
    %349 = vector.load %arg12[%c0_273, %c0_274, %c0_275, %c0_276] : memref<1x2x32x8xbf16, #tpu.memory_space<vmem>>, vector<1x1x32x8xbf16>
    %350 = vector.shape_cast %349 : vector<1x1x32x8xbf16> to vector<32x8xbf16>
    %cst_277 = arith.constant dense<0.000000e+00> : vector<16x8xf32>
    %351 = tpu.matmul %5, %350, %cst_277 {dimension_numbers = #tpu.dot_dimension_numbers<[1], [0], [0], [1], [0, 0, 1, 1], [], []>} : vector<16x32xbf16>, vector<32x8xbf16>, vector<16x8xf32> -> vector<16x8xf32>
    %352 = vector.extract_strided_slice %339 {offsets = [0, 0], sizes = [8, 8], strides = [1, 1]} : vector<16x8xf32> to vector<8x8xf32>
    %353 = vector.extract_strided_slice %342 {offsets = [0, 0], sizes = [8, 8], strides = [1, 1]} : vector<16x8xf32> to vector<8x8xf32>
    %354 = vector.extract_strided_slice %345 {offsets = [0, 0], sizes = [8, 8], strides = [1, 1]} : vector<16x8xf32> to vector<8x8xf32>
    %355 = tpu.concatenate %353, %354 in 0 : vector<8x8xf32>, vector<8x8xf32> -> vector<16x8xf32>
    %356 = vector.extract_strided_slice %348 {offsets = [0, 0], sizes = [8, 8], strides = [1, 1]} : vector<16x8xf32> to vector<8x8xf32>
    %357 = vector.extract_strided_slice %351 {offsets = [0, 0], sizes = [8, 8], strides = [1, 1]} : vector<16x8xf32> to vector<8x8xf32>
    %358 = tpu.concatenate %356, %357 in 0 : vector<8x8xf32>, vector<8x8xf32> -> vector<16x8xf32>
    %359 = arith.truncf %352 : vector<8x8xf32> to vector<8x8xbf16>
    %360 = arith.truncf %355 : vector<16x8xf32> to vector<16x8xbf16>
    %cst_278 = arith.constant dense<0.000000e+00> : vector<8x16xf32>
    %361 = tpu.matmul %359, %360, %cst_278 {dimension_numbers = #tpu.dot_dimension_numbers<[1], [1], [0], [0], [0, 0, 1, 0], [], []>} : vector<8x8xbf16>, vector<16x8xbf16>, vector<8x16xf32> -> vector<8x16xf32>
    %cst_279 = arith.constant dense<0xFF800000> : vector<8xf32>
    %362 = vector.multi_reduction <maximumf>, %361, %cst_279 [1] : vector<8x16xf32> to vector<8xf32>
    %363 = vector.shape_cast %362 : vector<8xf32> to vector<8x1xf32>
    %364 = vector.broadcast %363 : vector<8x1xf32> to vector<8x16xf32>
    %365 = arith.subf %361, %364 : vector<8x16xf32>
    %366 = math.exp %365 : vector<8x16xf32>
    %cst_280 = arith.constant dense<0.000000e+00> : vector<8xf32>
    %367 = vector.multi_reduction <add>, %366, %cst_280 [1] : vector<8x16xf32> to vector<8xf32>
    %368 = vector.shape_cast %367 : vector<8xf32> to vector<8x1xf32>
    %369 = arith.truncf %366 : vector<8x16xf32> to vector<8x16xbf16>
    %370 = arith.truncf %358 : vector<16x8xf32> to vector<16x8xbf16>
    %cst_281 = arith.constant dense<0.000000e+00> : vector<8x8xf32>
    %371 = tpu.matmul %369, %370, %cst_281 {dimension_numbers = #tpu.dot_dimension_numbers<[1], [0], [0], [1], [0, 0, 1, 1], [], []>} : vector<8x16xbf16>, vector<16x8xbf16>, vector<8x8xf32> -> vector<8x8xf32>
    %372 = tpu.reciprocal %368 {approx = true} : vector<8x1xf32> -> vector<8x1xf32>
    %373 = vector.broadcast %372 : vector<8x1xf32> to vector<8x8xf32>
    %374 = arith.mulf %371, %373 : vector<8x8xf32>
    %375 = vector.extract_strided_slice %339 {offsets = [8, 0], sizes = [8, 8], strides = [1, 1]} : vector<16x8xf32> to vector<8x8xf32>
    %376 = vector.extract_strided_slice %342 {offsets = [8, 0], sizes = [8, 8], strides = [1, 1]} : vector<16x8xf32> to vector<8x8xf32>
    %377 = vector.extract_strided_slice %345 {offsets = [8, 0], sizes = [8, 8], strides = [1, 1]} : vector<16x8xf32> to vector<8x8xf32>
    %378 = tpu.concatenate %376, %377 in 0 : vector<8x8xf32>, vector<8x8xf32> -> vector<16x8xf32>
    %379 = vector.extract_strided_slice %348 {offsets = [8, 0], sizes = [8, 8], strides = [1, 1]} : vector<16x8xf32> to vector<8x8xf32>
    %380 = vector.extract_strided_slice %351 {offsets = [8, 0], sizes = [8, 8], strides = [1, 1]} : vector<16x8xf32> to vector<8x8xf32>
    %381 = tpu.concatenate %379, %380 in 0 : vector<8x8xf32>, vector<8x8xf32> -> vector<16x8xf32>
    %382 = arith.truncf %375 : vector<8x8xf32> to vector<8x8xbf16>
    %383 = arith.truncf %378 : vector<16x8xf32> to vector<16x8xbf16>
    %cst_282 = arith.constant dense<0.000000e+00> : vector<8x16xf32>
    %384 = tpu.matmul %382, %383, %cst_282 {dimension_numbers = #tpu.dot_dimension_numbers<[1], [1], [0], [0], [0, 0, 1, 0], [], []>} : vector<8x8xbf16>, vector<16x8xbf16>, vector<8x16xf32> -> vector<8x16xf32>
    %cst_283 = arith.constant dense<0xFF800000> : vector<8xf32>
    %385 = vector.multi_reduction <maximumf>, %384, %cst_283 [1] : vector<8x16xf32> to vector<8xf32>
    %386 = vector.shape_cast %385 : vector<8xf32> to vector<8x1xf32>
    %387 = vector.broadcast %386 : vector<8x1xf32> to vector<8x16xf32>
    %388 = arith.subf %384, %387 : vector<8x16xf32>
    %389 = math.exp %388 : vector<8x16xf32>
    %cst_284 = arith.constant dense<0.000000e+00> : vector<8xf32>
    %390 = vector.multi_reduction <add>, %389, %cst_284 [1] : vector<8x16xf32> to vector<8xf32>
    %391 = vector.shape_cast %390 : vector<8xf32> to vector<8x1xf32>
    %392 = arith.truncf %389 : vector<8x16xf32> to vector<8x16xbf16>
    %393 = arith.truncf %381 : vector<16x8xf32> to vector<16x8xbf16>
    %cst_285 = arith.constant dense<0.000000e+00> : vector<8x8xf32>
    %394 = tpu.matmul %392, %393, %cst_285 {dimension_numbers = #tpu.dot_dimension_numbers<[1], [0], [0], [1], [0, 0, 1, 1], [], []>} : vector<8x16xbf16>, vector<16x8xbf16>, vector<8x8xf32> -> vector<8x8xf32>
    %395 = tpu.reciprocal %391 {approx = true} : vector<8x1xf32> -> vector<8x1xf32>
    %396 = vector.broadcast %395 : vector<8x1xf32> to vector<8x8xf32>
    %397 = arith.mulf %394, %396 : vector<8x8xf32>
    %398 = tpu.concatenate %374, %397 in 0 : vector<8x8xf32>, vector<8x8xf32> -> vector<16x8xf32>
    %399 = arith.truncf %398 : vector<16x8xf32> to vector<16x8xbf16>
    %c0_286 = arith.constant 0 : index
    %c0_287 = arith.constant 0 : index
    %c0_288 = arith.constant 0 : index
    %c0_289 = arith.constant 0 : index
    %400 = vector.load %arg13[%c0_286, %c0_287, %c0_288, %c0_289] : memref<1x2x8x32xbf16, #tpu.memory_space<vmem>>, vector<1x1x8x32xbf16>
    %401 = vector.shape_cast %400 : vector<1x1x8x32xbf16> to vector<8x32xbf16>
    %cst_290 = arith.constant dense<0.000000e+00> : vector<16x32xf32>
    %402 = tpu.matmul %399, %401, %cst_290 {dimension_numbers = #tpu.dot_dimension_numbers<[1], [0], [0], [1], [0, 0, 1, 1], [], []>} : vector<16x8xbf16>, vector<8x32xbf16>, vector<16x32xf32> -> vector<16x32xf32>
    %403 = arith.addf %319, %402 : vector<16x32xf32>
    %c0_291 = arith.constant 0 : index
    %c1_292 = arith.constant 1 : index
    %c0_293 = arith.constant 0 : index
    %c0_294 = arith.constant 0 : index
    %404 = vector.load %arg10[%c0_291, %c1_292, %c0_293, %c0_294] : memref<1x2x32x8xbf16, #tpu.memory_space<vmem>>, vector<1x1x32x8xbf16>
    %405 = vector.shape_cast %404 : vector<1x1x32x8xbf16> to vector<32x8xbf16>
    %cst_295 = arith.constant dense<0.000000e+00> : vector<16x8xf32>
    %406 = tpu.matmul %334, %405, %cst_295 {dimension_numbers = #tpu.dot_dimension_numbers<[1], [0], [0], [1], [0, 0, 1, 1], [], []>} : vector<16x32xbf16>, vector<32x8xbf16>, vector<16x8xf32> -> vector<16x8xf32>
    %cst_296 = arith.constant 0.353553385 : f32
    %407 = vector.broadcast %cst_296 : f32 to vector<16x8xf32>
    %408 = arith.mulf %406, %407 : vector<16x8xf32>
    %c0_297 = arith.constant 0 : index
    %c1_298 = arith.constant 1 : index
    %c0_299 = arith.constant 0 : index
    %c0_300 = arith.constant 0 : index
    %409 = vector.load %arg11[%c0_297, %c1_298, %c0_299, %c0_300] : memref<1x2x32x8xbf16, #tpu.memory_space<vmem>>, vector<1x1x32x8xbf16>
    %410 = vector.shape_cast %409 : vector<1x1x32x8xbf16> to vector<32x8xbf16>
    %cst_301 = arith.constant dense<0.000000e+00> : vector<16x8xf32>
    %411 = tpu.matmul %334, %410, %cst_301 {dimension_numbers = #tpu.dot_dimension_numbers<[1], [0], [0], [1], [0, 0, 1, 1], [], []>} : vector<16x32xbf16>, vector<32x8xbf16>, vector<16x8xf32> -> vector<16x8xf32>
    %c0_302 = arith.constant 0 : index
    %c1_303 = arith.constant 1 : index
    %c0_304 = arith.constant 0 : index
    %c0_305 = arith.constant 0 : index
    %412 = vector.load %arg11[%c0_302, %c1_303, %c0_304, %c0_305] : memref<1x2x32x8xbf16, #tpu.memory_space<vmem>>, vector<1x1x32x8xbf16>
    %413 = vector.shape_cast %412 : vector<1x1x32x8xbf16> to vector<32x8xbf16>
    %cst_306 = arith.constant dense<0.000000e+00> : vector<16x8xf32>
    %414 = tpu.matmul %5, %413, %cst_306 {dimension_numbers = #tpu.dot_dimension_numbers<[1], [0], [0], [1], [0, 0, 1, 1], [], []>} : vector<16x32xbf16>, vector<32x8xbf16>, vector<16x8xf32> -> vector<16x8xf32>
    %c0_307 = arith.constant 0 : index
    %c1_308 = arith.constant 1 : index
    %c0_309 = arith.constant 0 : index
    %c0_310 = arith.constant 0 : index
    %415 = vector.load %arg12[%c0_307, %c1_308, %c0_309, %c0_310] : memref<1x2x32x8xbf16, #tpu.memory_space<vmem>>, vector<1x1x32x8xbf16>
    %416 = vector.shape_cast %415 : vector<1x1x32x8xbf16> to vector<32x8xbf16>
    %cst_311 = arith.constant dense<0.000000e+00> : vector<16x8xf32>
    %417 = tpu.matmul %334, %416, %cst_311 {dimension_numbers = #tpu.dot_dimension_numbers<[1], [0], [0], [1], [0, 0, 1, 1], [], []>} : vector<16x32xbf16>, vector<32x8xbf16>, vector<16x8xf32> -> vector<16x8xf32>
    %c0_312 = arith.constant 0 : index
    %c1_313 = arith.constant 1 : index
    %c0_314 = arith.constant 0 : index
    %c0_315 = arith.constant 0 : index
    %418 = vector.load %arg12[%c0_312, %c1_313, %c0_314, %c0_315] : memref<1x2x32x8xbf16, #tpu.memory_space<vmem>>, vector<1x1x32x8xbf16>
    %419 = vector.shape_cast %418 : vector<1x1x32x8xbf16> to vector<32x8xbf16>
    %cst_316 = arith.constant dense<0.000000e+00> : vector<16x8xf32>
    %420 = tpu.matmul %5, %419, %cst_316 {dimension_numbers = #tpu.dot_dimension_numbers<[1], [0], [0], [1], [0, 0, 1, 1], [], []>} : vector<16x32xbf16>, vector<32x8xbf16>, vector<16x8xf32> -> vector<16x8xf32>
    %421 = vector.extract_strided_slice %408 {offsets = [0, 0], sizes = [8, 8], strides = [1, 1]} : vector<16x8xf32> to vector<8x8xf32>
    %422 = vector.extract_strided_slice %411 {offsets = [0, 0], sizes = [8, 8], strides = [1, 1]} : vector<16x8xf32> to vector<8x8xf32>
    %423 = vector.extract_strided_slice %414 {offsets = [0, 0], sizes = [8, 8], strides = [1, 1]} : vector<16x8xf32> to vector<8x8xf32>
    %424 = tpu.concatenate %422, %423 in 0 : vector<8x8xf32>, vector<8x8xf32> -> vector<16x8xf32>
    %425 = vector.extract_strided_slice %417 {offsets = [0, 0], sizes = [8, 8], strides = [1, 1]} : vector<16x8xf32> to vector<8x8xf32>
    %426 = vector.extract_strided_slice %420 {offsets = [0, 0], sizes = [8, 8], strides = [1, 1]} : vector<16x8xf32> to vector<8x8xf32>
    %427 = tpu.concatenate %425, %426 in 0 : vector<8x8xf32>, vector<8x8xf32> -> vector<16x8xf32>
    %428 = arith.truncf %421 : vector<8x8xf32> to vector<8x8xbf16>
    %429 = arith.truncf %424 : vector<16x8xf32> to vector<16x8xbf16>
    %cst_317 = arith.constant dense<0.000000e+00> : vector<8x16xf32>
    %430 = tpu.matmul %428, %429, %cst_317 {dimension_numbers = #tpu.dot_dimension_numbers<[1], [1], [0], [0], [0, 0, 1, 0], [], []>} : vector<8x8xbf16>, vector<16x8xbf16>, vector<8x16xf32> -> vector<8x16xf32>
    %cst_318 = arith.constant dense<0xFF800000> : vector<8xf32>
    %431 = vector.multi_reduction <maximumf>, %430, %cst_318 [1] : vector<8x16xf32> to vector<8xf32>
    %432 = vector.shape_cast %431 : vector<8xf32> to vector<8x1xf32>
    %433 = vector.broadcast %432 : vector<8x1xf32> to vector<8x16xf32>
    %434 = arith.subf %430, %433 : vector<8x16xf32>
    %435 = math.exp %434 : vector<8x16xf32>
    %cst_319 = arith.constant dense<0.000000e+00> : vector<8xf32>
    %436 = vector.multi_reduction <add>, %435, %cst_319 [1] : vector<8x16xf32> to vector<8xf32>
    %437 = vector.shape_cast %436 : vector<8xf32> to vector<8x1xf32>
    %438 = arith.truncf %435 : vector<8x16xf32> to vector<8x16xbf16>
    %439 = arith.truncf %427 : vector<16x8xf32> to vector<16x8xbf16>
    %cst_320 = arith.constant dense<0.000000e+00> : vector<8x8xf32>
    %440 = tpu.matmul %438, %439, %cst_320 {dimension_numbers = #tpu.dot_dimension_numbers<[1], [0], [0], [1], [0, 0, 1, 1], [], []>} : vector<8x16xbf16>, vector<16x8xbf16>, vector<8x8xf32> -> vector<8x8xf32>
    %441 = tpu.reciprocal %437 {approx = true} : vector<8x1xf32> -> vector<8x1xf32>
    %442 = vector.broadcast %441 : vector<8x1xf32> to vector<8x8xf32>
    %443 = arith.mulf %440, %442 : vector<8x8xf32>
    %444 = vector.extract_strided_slice %408 {offsets = [8, 0], sizes = [8, 8], strides = [1, 1]} : vector<16x8xf32> to vector<8x8xf32>
    %445 = vector.extract_strided_slice %411 {offsets = [8, 0], sizes = [8, 8], strides = [1, 1]} : vector<16x8xf32> to vector<8x8xf32>
    %446 = vector.extract_strided_slice %414 {offsets = [8, 0], sizes = [8, 8], strides = [1, 1]} : vector<16x8xf32> to vector<8x8xf32>
    %447 = tpu.concatenate %445, %446 in 0 : vector<8x8xf32>, vector<8x8xf32> -> vector<16x8xf32>
    %448 = vector.extract_strided_slice %417 {offsets = [8, 0], sizes = [8, 8], strides = [1, 1]} : vector<16x8xf32> to vector<8x8xf32>
    %449 = vector.extract_strided_slice %420 {offsets = [8, 0], sizes = [8, 8], strides = [1, 1]} : vector<16x8xf32> to vector<8x8xf32>
    %450 = tpu.concatenate %448, %449 in 0 : vector<8x8xf32>, vector<8x8xf32> -> vector<16x8xf32>
    %451 = arith.truncf %444 : vector<8x8xf32> to vector<8x8xbf16>
    %452 = arith.truncf %447 : vector<16x8xf32> to vector<16x8xbf16>
    %cst_321 = arith.constant dense<0.000000e+00> : vector<8x16xf32>
    %453 = tpu.matmul %451, %452, %cst_321 {dimension_numbers = #tpu.dot_dimension_numbers<[1], [1], [0], [0], [0, 0, 1, 0], [], []>} : vector<8x8xbf16>, vector<16x8xbf16>, vector<8x16xf32> -> vector<8x16xf32>
    %cst_322 = arith.constant dense<0xFF800000> : vector<8xf32>
    %454 = vector.multi_reduction <maximumf>, %453, %cst_322 [1] : vector<8x16xf32> to vector<8xf32>
    %455 = vector.shape_cast %454 : vector<8xf32> to vector<8x1xf32>
    %456 = vector.broadcast %455 : vector<8x1xf32> to vector<8x16xf32>
    %457 = arith.subf %453, %456 : vector<8x16xf32>
    %458 = math.exp %457 : vector<8x16xf32>
    %cst_323 = arith.constant dense<0.000000e+00> : vector<8xf32>
    %459 = vector.multi_reduction <add>, %458, %cst_323 [1] : vector<8x16xf32> to vector<8xf32>
    %460 = vector.shape_cast %459 : vector<8xf32> to vector<8x1xf32>
    %461 = arith.truncf %458 : vector<8x16xf32> to vector<8x16xbf16>
    %462 = arith.truncf %450 : vector<16x8xf32> to vector<16x8xbf16>
    %cst_324 = arith.constant dense<0.000000e+00> : vector<8x8xf32>
    %463 = tpu.matmul %461, %462, %cst_324 {dimension_numbers = #tpu.dot_dimension_numbers<[1], [0], [0], [1], [0, 0, 1, 1], [], []>} : vector<8x16xbf16>, vector<16x8xbf16>, vector<8x8xf32> -> vector<8x8xf32>
    %464 = tpu.reciprocal %460 {approx = true} : vector<8x1xf32> -> vector<8x1xf32>
    %465 = vector.broadcast %464 : vector<8x1xf32> to vector<8x8xf32>
    %466 = arith.mulf %463, %465 : vector<8x8xf32>
    %467 = tpu.concatenate %443, %466 in 0 : vector<8x8xf32>, vector<8x8xf32> -> vector<16x8xf32>
    %468 = arith.truncf %467 : vector<16x8xf32> to vector<16x8xbf16>
    %c0_325 = arith.constant 0 : index
    %c1_326 = arith.constant 1 : index
    %c0_327 = arith.constant 0 : index
    %c0_328 = arith.constant 0 : index
    %469 = vector.load %arg13[%c0_325, %c1_326, %c0_327, %c0_328] : memref<1x2x8x32xbf16, #tpu.memory_space<vmem>>, vector<1x1x8x32xbf16>
    %470 = vector.shape_cast %469 : vector<1x1x8x32xbf16> to vector<8x32xbf16>
    %cst_329 = arith.constant dense<0.000000e+00> : vector<16x32xf32>
    %471 = tpu.matmul %468, %470, %cst_329 {dimension_numbers = #tpu.dot_dimension_numbers<[1], [0], [0], [1], [0, 0, 1, 1], [], []>} : vector<16x8xbf16>, vector<8x32xbf16>, vector<16x32xf32> -> vector<16x32xf32>
    %472 = arith.addf %403, %471 : vector<16x32xf32>
    %c0_330 = arith.constant 0 : index
    %c0_331 = arith.constant 0 : index
    %473 = vector.load %arg17[%c0_330, %c0_331] : memref<16x32xf32, #tpu.memory_space<vmem>>, vector<16x32xf32>
    tpu.vector_store %arg17[%c0_330, %c0_331], %472 {strides = array<i32>} : memref<16x32xf32, #tpu.memory_space<vmem>>, vector<16x32xf32>,
    %c1_i32_332 = arith.constant 1 : i32
    %474 = arith.cmpi eq, %arg0, %c1_i32_332 : i32
    %475 = arith.extui %474 : i1 to i32
    %c0_i32_333 = arith.constant 0 : i32
    %476 = arith.cmpi ne, %475, %c0_i32_333 : i32
    scf.if %476 {
      %c0_334 = arith.constant 0 : index
      %c0_335 = arith.constant 0 : index
      %477 = vector.load %arg14[%c0_334, %c0_335] : memref<1x32xf32, #tpu.memory_space<vmem>>, vector<1x32xf32>
      %cst_336 = arith.constant dense<0.000000e+00> : vector<1x16xf32>
      %478 = tpu.matmul %477, %472, %cst_336 {dimension_numbers = #tpu.dot_dimension_numbers<[1], [1], [0], [0], [0, 0, 1, 0], [], []>} : vector<1x32xf32>, vector<16x32xf32>, vector<1x16xf32> -> vector<1x16xf32>
      %c0_337 = arith.constant 0 : index
      %c0_338 = arith.constant 0 : index
      %479 = vector.load %arg15[%c0_337, %c0_338] : memref<1x1xf32, #tpu.memory_space<vmem>>, vector<1x1xf32>
      %480 = vector.broadcast %479 : vector<1x1xf32> to vector<1x16xf32>
      %481 = arith.addf %478, %480 : vector<1x16xf32>
      %cst_339 = arith.constant 0.000000e+00 : f32
      %482 = vector.broadcast %cst_339 : f32 to vector<1x16xf32>
      %483 = arith.maximumf %481, %482 : vector<1x16xf32>
      %c0_340 = arith.constant 0 : index
      %c0_341 = arith.constant 0 : index
      %484 = vector.load %arg16[%c0_340, %c0_341] : memref<1x16xf32, #tpu.memory_space<vmem>>, vector<1x16xf32>
      tpu.vector_store %arg16[%c0_340, %c0_341], %483 {strides = array<i32>} : memref<1x16xf32, #tpu.memory_space<vmem>>, vector<1x16xf32>,
    } else {
    }
    return
  }
  func.func @transform_0(%arg0: i32) -> (i32, i32) {
    %c0_i32 = arith.constant 0 : i32
    %c0_i32_0 = arith.constant 0 : i32
    %c0_i32_1 = arith.constant 0 : i32
    return %c0_i32, %c0_i32_0 : i32, i32
  }
  func.func @transform_1(%arg0: i32) -> (i32, i32) {
    %c0_i32 = arith.constant 0 : i32
    %c0_i32_0 = arith.constant 0 : i32
    %c0_i32_1 = arith.constant 0 : i32
    return %c0_i32, %c0_i32_0 : i32, i32
  }
  func.func @transform_2(%arg0: i32) -> (i32, i32) {
    %c0_i32 = arith.constant 0 : i32
    %c0_i32_0 = arith.constant 0 : i32
    %c0_i32_1 = arith.constant 0 : i32
    return %c0_i32, %c0_i32_0 : i32, i32
  }
  func.func @transform_3(%arg0: i32) -> (i32, i32) {
    %c0_i32 = arith.constant 0 : i32
    %c0_i32_0 = arith.constant 0 : i32
    %c0_i32_1 = arith.constant 0 : i32
    return %c0_i32, %c0_i32_0 : i32, i32
  }
  func.func @transform_4(%arg0: i32) -> (i32, i32, i32, i32, i32) {
    %c0_i32 = arith.constant 0 : i32
    %c0_i32_0 = arith.constant 0 : i32
    %c0_i32_1 = arith.constant 0 : i32
    %c0_i32_2 = arith.constant 0 : i32
    %c0_i32_3 = arith.constant 0 : i32
    return %arg0, %c0_i32, %c0_i32_0, %c0_i32_1, %c0_i32_2 : i32, i32, i32, i32, i32
  }
  func.func @transform_5(%arg0: i32) -> (i32, i32, i32, i32) {
    %c0_i32 = arith.constant 0 : i32
    %c0_i32_0 = arith.constant 0 : i32
    %c0_i32_1 = arith.constant 0 : i32
    %c0_i32_2 = arith.constant 0 : i32
    return %arg0, %c0_i32, %c0_i32_0, %c0_i32_1 : i32, i32, i32, i32
  }
  func.func @transform_6(%arg0: i32) -> (i32, i32, i32, i32) {
    %c0_i32 = arith.constant 0 : i32
    %c0_i32_0 = arith.constant 0 : i32
    %c0_i32_1 = arith.constant 0 : i32
    %c0_i32_2 = arith.constant 0 : i32
    return %arg0, %c0_i32, %c0_i32_0, %c0_i32_1 : i32, i32, i32, i32
  }
  func.func @transform_7(%arg0: i32) -> (i32, i32, i32, i32) {
    %c0_i32 = arith.constant 0 : i32
    %c0_i32_0 = arith.constant 0 : i32
    %c0_i32_1 = arith.constant 0 : i32
    %c0_i32_2 = arith.constant 0 : i32
    return %arg0, %c0_i32, %c0_i32_0, %c0_i32_1 : i32, i32, i32, i32
  }
  func.func @transform_8(%arg0: i32) -> (i32, i32, i32) {
    %c0_i32 = arith.constant 0 : i32
    %c0_i32_0 = arith.constant 0 : i32
    %c0_i32_1 = arith.constant 0 : i32
    return %arg0, %c0_i32, %c0_i32_0 : i32, i32, i32
  }
  func.func @transform_9(%arg0: i32) -> (i32, i32, i32, i32) {
    %c0_i32 = arith.constant 0 : i32
    %c0_i32_0 = arith.constant 0 : i32
    %c0_i32_1 = arith.constant 0 : i32
    %c0_i32_2 = arith.constant 0 : i32
    return %arg0, %c0_i32, %c0_i32_0, %c0_i32_1 : i32, i32, i32, i32
  }
  func.func @transform_10(%arg0: i32) -> (i32, i32, i32, i32) {
    %c0_i32 = arith.constant 0 : i32
    %c0_i32_0 = arith.constant 0 : i32
    %c0_i32_1 = arith.constant 0 : i32
    %c0_i32_2 = arith.constant 0 : i32
    return %arg0, %c0_i32, %c0_i32_0, %c0_i32_1 : i32, i32, i32, i32
  }
  func.func @transform_11(%arg0: i32) -> (i32, i32, i32, i32) {
    %c0_i32 = arith.constant 0 : i32
    %c0_i32_0 = arith.constant 0 : i32
    %c0_i32_1 = arith.constant 0 : i32
    %c0_i32_2 = arith.constant 0 : i32
    return %arg0, %c0_i32, %c0_i32_0, %c0_i32_1 : i32, i32, i32, i32
  }
  func.func @transform_12(%arg0: i32) -> (i32, i32, i32, i32) {
    %c0_i32 = arith.constant 0 : i32
    %c0_i32_0 = arith.constant 0 : i32
    %c0_i32_1 = arith.constant 0 : i32
    %c0_i32_2 = arith.constant 0 : i32
    return %arg0, %c0_i32, %c0_i32_0, %c0_i32_1 : i32, i32, i32, i32
  }
  func.func @transform_13(%arg0: i32) -> (i32, i32) {
    %c0_i32 = arith.constant 0 : i32
    %c0_i32_0 = arith.constant 0 : i32
    %c0_i32_1 = arith.constant 0 : i32
    return %c0_i32, %c0_i32_0 : i32, i32
  }
  func.func @transform_14(%arg0: i32) -> (i32, i32) {
    %c0_i32 = arith.constant 0 : i32
    %c0_i32_0 = arith.constant 0 : i32
    %c0_i32_1 = arith.constant 0 : i32
    return %c0_i32, %c0_i32_0 : i32, i32
  }
  func.func @transform_15(%arg0: i32) -> (i32, i32) {
    %c0_i32 = arith.constant 0 : i32
    %c0_i32_0 = arith.constant 0 : i32
    %c0_i32_1 = arith.constant 0 : i32
    return %c0_i32, %c0_i32_0 : i32, i32
  }
}

</mosaic_0001>

<llo_original>
// kernel: tpu_custom_call.1
$region0: #{tpu_custom_call.1}
  #allocation0 [shape = 'u32[]', space=smem, size = 0x4, offset = 0x4, fixed_abs, tag = 'smem constant byte address 0x4 - core index']
  #allocation1 [shape = 'u32[144,128]{1,0:T(1,128)}', space=vmem, size = 0x12000, scoped, tag = 'internal scratch']
  #allocation2 [shape = 'f32[16,32]{1,0:T(8,128)}', space=vmem, size = 0x2000, scoped, tag = 'scratch operand']
  #allocation3 [shape = 'f32[1,1]{1,0:T(1,128)S(1)}', space=vmem, size = 0x200, scoped, tag = 'scoped memory for tpu_custom_call.1']
  %s0 = inlined_call_operand.vmem [shape: f32[16,32], index: 0, kind: input, shape index: {}]
  %s1 = inlined_call_operand.vmem [shape: f32[16,32], index: 1, kind: input, shape index: {}]
  %s2 = inlined_call_operand.vmem [shape: f32[16,16], index: 2, kind: input, shape index: {}]
  %s3 = inlined_call_operand.vmem [shape: f32[32,32], index: 3, kind: input, shape index: {}]
  %s4 = inlined_call_operand.hbm [shape: bf16[2,6,3,32,32], index: 4, kind: input, shape index: {}]
  %s5 = inlined_call_operand.vmem [shape: f32[2,6,1,32], index: 5, kind: input, shape index: {}]
  %s6 = inlined_call_operand.vmem [shape: f32[2,6,1,32], index: 6, kind: input, shape index: {}]
  %s7 = inlined_call_operand.vmem [shape: f32[2,6,1,32], index: 7, kind: input, shape index: {}]
  %s8 = inlined_call_operand.vmem [shape: f32[2,1,32], index: 8, kind: input, shape index: {}]
  %s9 = inlined_call_operand.vmem [shape: bf16[2,2,32,8], index: 9, kind: input, shape index: {}]
  %s10 = inlined_call_operand.vmem [shape: bf16[2,2,32,8], index: 10, kind: input, shape index: {}]
  %s11 = inlined_call_operand.vmem [shape: bf16[2,2,32,8], index: 11, kind: input, shape index: {}]
  %s12 = inlined_call_operand.vmem [shape: bf16[2,2,8,32], index: 12, kind: input, shape index: {}]
  %s13 = inlined_call_operand.vmem [shape: f32[1,32], index: 13, kind: input, shape index: {}]
  %s14 = inlined_call_operand.<no memory space> [shape: f32[1,1], index: 14, kind: input, shape index: {}]
  %s15 = inlined_call_operand.hbm [shape: f32[1,16], index: 15, kind: output, shape index: {}]
  %s16 = sld [smem:[#allocation0]]
  $region105: #{tpu_custom_call.1} parent=0
    _
  %s18 = ssub.s32 1, %s16
  %s19 = scalar_select 0, %s18, %s16
  %v20 = vstv %s14
  %21 = vst [vmem:[#allocation3] sm:$0x1] %v20
  $region1: #{tpu_custom_call.1} parent=0
    #allocation4 [shape = 'u8[294912]{0}', space=vmem, size = 0x48000, scoped, tag = 'input window, operand 4']
    #allocation5 [shape = 's32[2]{0}', space=sflag, size = 0x8, scoped, tag = 'scoped memory for tpu_custom_call.1']
    #allocation6 [shape = 's32[2]{0}', space=sflag, size = 0x8, scoped, tag = 'scoped memory for tpu_custom_call.1']
    #allocation7 [shape = 'u8[512]{0}', space=vmem, size = 0x400, scoped, tag = 'output window, operand 0, single buffered']
    %22 = vsyncpa [#allocation5], 0
    %s23 = scalar_lea.sflag [#allocation5], 1
    %24 = vsyncpa %s23, 0
    %25 = vsyncpa [#allocation6], 0
    loop: start=0, step=1, limit=4
    $region2: #{tpu_custom_call.1} parent=1 // loop_pre_header
      _
    $region3: #{tpu_custom_call.1} parent=1 // loop_header
      %s27 = sphi 0, %s31
      %p28 = scmp.ge.s32.totalorder %s27, 4
      %s35 = sphi 0, %s35
      %s37 = sphi 0, %s35
      %s38 = sphi 0, %s37
      %s52 = sphi 0, %s38
      %s56 = sphi 0, %s56
      %s58 = sphi 0, %s56
      %s59 = sphi 0, %s58
      %s73 = sphi 0, %s59
      %s77 = sphi 0, %s77
      %s79 = sphi 0, %s77
      %s80 = sphi 0, %s79
      %s94 = sphi 0, %s80
      %s98 = sphi 0, %s98
      %s100 = sphi 0, %s98
      %s101 = sphi 0, %s100
      %s115 = sphi 0, %s101
      %s121 = sphi 0, %s123
      %s124 = sphi 0, %s121
      %s125 = sphi 0, %s124
      %s141 = sphi 0, %s125
      %s147 = sphi 0, %s149
      %s150 = sphi 0, %s147
      %s151 = sphi 0, %s150
      %s167 = sphi 0, %s151
      %s173 = sphi 0, %s175
      %s176 = sphi 0, %s173
      %s177 = sphi 0, %s176
      %s193 = sphi 0, %s177
      %s199 = sphi 0, %s201
      %s202 = sphi 0, %s199
      %s203 = sphi 0, %s202
      %s219 = sphi 0, %s203
      %s225 = sphi 0, %s227
      %s228 = sphi 0, %s225
      %s229 = sphi 0, %s228
      %s245 = sphi 0, %s229
      %s251 = sphi 0, %s253
      %s254 = sphi 0, %s251
      %s255 = sphi 0, %s254
      %s271 = sphi 0, %s255
      %s277 = sphi 0, %s279
      %s280 = sphi 0, %s277
      %s281 = sphi 0, %s280
      %s297 = sphi 0, %s281
      %s303 = sphi 0, %s305
      %s306 = sphi 0, %s303
      %s307 = sphi 0, %s306
      %s323 = sphi 0, %s307
      %s329 = sphi 0, %s331
      %s332 = sphi 0, %s329
      %s333 = sphi 0, %s332
      %s349 = sphi 0, %s333
      %s353 = sphi 0, %s353
      %s355 = sphi 0, %s353
      %s356 = sphi 0, %s355
      %s370 = sphi 0, %s356
      %s374 = sphi 0, %s374
      %s376 = sphi 0, %s374
      %s377 = sphi 0, %s376
      %s391 = sphi 0, %s377
      %s395 = sphi 0, %s395
      %s397 = sphi 0, %s395
      %s398 = sphi 0, %s397
      %s412 = sphi 0, %s398
    $region4: #{tpu_custom_call.1} parent=1 // loop_header_branch
      %30 = sbr.rel (%p28) target = $region8
    $region5: #{tpu_custom_call.1} parent=1 // loop_body
      %s32 = ssub.s32 %s27, 1
      %s33 = ssub.s32 %s27, 2
      %s34 = sadd.s32 %s27, 1
      %s36 = sadd.s32 %s35, 1
      %p39 = scmp.eq.s32.totalorder %s27, 1
      %p40 = scmp.ne.s32.totalorder %s35, %s37
      %p41 = scmp.eq.s32.totalorder %s27, 0
      %p42 = por %p40, %p41
      %p43 = scmp.ne.s32.totalorder %s35, %s37
      %p44 = scmp.eq.s32.totalorder %s32, 1
      %p45 = por %p43, %p44
      %p46 = scmp.ne.s32.totalorder %s37, %s38
      %p47 = scmp.eq.s32.totalorder %s32, 0
      %p48 = por %p46, %p47
      %p49 = scmp.ne.s32.totalorder %s37, %s38
      %p50 = scmp.eq.s32.totalorder %s33, 1
      %p51 = por %p49, %p50
      %p53 = scmp.ne.s32.totalorder %s38, %s52
      %p54 = scmp.eq.s32.totalorder %s33, 0
      %p55 = por %p53, %p54
      %s57 = sadd.s32 %s56, 1
      %p60 = scmp.eq.s32.totalorder %s27, 1
      %p61 = scmp.ne.s32.totalorder %s56, %s58
      %p62 = scmp.eq.s32.totalorder %s27, 0
      %p63 = por %p61, %p62
      %p64 = scmp.ne.s32.totalorder %s56, %s58
      %p65 = scmp.eq.s32.totalorder %s32, 1
      %p66 = por %p64, %p65
      %p67 = scmp.ne.s32.totalorder %s58, %s59
      %p68 = scmp.eq.s32.totalorder %s32, 0
      %p69 = por %p67, %p68
      %p70 = scmp.ne.s32.totalorder %s58, %s59
      %p71 = scmp.eq.s32.totalorder %s33, 1
      %p72 = por %p70, %p71
      %p74 = scmp.ne.s32.totalorder %s59, %s73
      %p75 = scmp.eq.s32.totalorder %s33, 0
      %p76 = por %p74, %p75
      %s78 = sadd.s32 %s77, 1
      %p81 = scmp.eq.s32.totalorder %s27, 1
      %p82 = scmp.ne.s32.totalorder %s77, %s79
      %p83 = scmp.eq.s32.totalorder %s27, 0
      %p84 = por %p82, %p83
      %p85 = scmp.ne.s32.totalorder %s77, %s79
      %p86 = scmp.eq.s32.totalorder %s32, 1
      %p87 = por %p85, %p86
      %p88 = scmp.ne.s32.totalorder %s79, %s80
      %p89 = scmp.eq.s32.totalorder %s32, 0
      %p90 = por %p88, %p89
      %p91 = scmp.ne.s32.totalorder %s79, %s80
      %p92 = scmp.eq.s32.totalorder %s33, 1
      %p93 = por %p91, %p92
      %p95 = scmp.ne.s32.totalorder %s80, %s94
      %p96 = scmp.eq.s32.totalorder %s33, 0
      %p97 = por %p95, %p96
      %s99 = sadd.s32 %s98, 1
      %p102 = scmp.eq.s32.totalorder %s27, 1
      %p103 = scmp.ne.s32.totalorder %s98, %s100
      %p104 = scmp.eq.s32.totalorder %s27, 0
      %p105 = por %p103, %p104
      %p106 = scmp.ne.s32.totalorder %s98, %s100
      %p107 = scmp.eq.s32.totalorder %s32, 1
      %p108 = por %p106, %p107
      %p109 = scmp.ne.s32.totalorder %s100, %s101
      %p110 = scmp.eq.s32.totalorder %s32, 0
      %p111 = por %p109, %p110
      %p112 = scmp.ne.s32.totalorder %s100, %s101
      %p113 = scmp.eq.s32.totalorder %s33, 1
      %p114 = por %p112, %p113
      %p116 = scmp.ne.s32.totalorder %s101, %s115
      %p117 = scmp.eq.s32.totalorder %s33, 0
      %p118 = por %p116, %p117
      %s119 = ssub.s32 %s27, %s34
      %p120 = scmp.eq.s32.totalorder %s119, 0
      %s122 = sadd.s32 %s121, 1
      %s123 = scalar_select %p120, %s121, %s122
      %p126 = pneg %p120
      %p127 = scmp.eq.s32.totalorder %s27, 1
      %p128 = por %p126, %p127
      %p129 = scmp.ne.s32.totalorder %s121, %s124
      %p130 = scmp.eq.s32.totalorder %s27, 0
      %p131 = por %p129, %p130
      %p132 = scmp.ne.s32.totalorder %s121, %s124
      %p133 = scmp.eq.s32.totalorder %s32, 1
      %p134 = por %p132, %p133
      %p135 = scmp.ne.s32.totalorder %s124, %s125
      %p136 = scmp.eq.s32.totalorder %s32, 0
      %p137 = por %p135, %p136
      %p138 = scmp.ne.s32.totalorder %s124, %s125
      %p139 = scmp.eq.s32.totalorder %s33, 1
      %p140 = por %p138, %p139
      %p142 = scmp.ne.s32.totalorder %s125, %s141
      %p143 = scmp.eq.s32.totalorder %s33, 0
      %p144 = por %p142, %p143
      %s145 = ssub.s32 %s27, %s34
      %p146 = scmp.eq.s32.totalorder %s145, 0
      %s148 = sadd.s32 %s147, 1
      %s149 = scalar_select %p146, %s147, %s148
      %p152 = pneg %p146
      %p153 = scmp.eq.s32.totalorder %s27, 1
      %p154 = por %p152, %p153
      %p155 = scmp.ne.s32.totalorder %s147, %s150
      %p156 = scmp.eq.s32.totalorder %s27, 0
      %p157 = por %p155, %p156
      %p158 = scmp.ne.s32.totalorder %s147, %s150
      %p159 = scmp.eq.s32.totalorder %s32, 1
      %p160 = por %p158, %p159
      %p161 = scmp.ne.s32.totalorder %s150, %s151
      %p162 = scmp.eq.s32.totalorder %s32, 0
      %p163 = por %p161, %p162
      %p164 = scmp.ne.s32.totalorder %s150, %s151
      %p165 = scmp.eq.s32.totalorder %s33, 1
      %p166 = por %p164, %p165
      %p168 = scmp.ne.s32.totalorder %s151, %s167
      %p169 = scmp.eq.s32.totalorder %s33, 0
      %p170 = por %p168, %p169
      %s171 = ssub.s32 %s27, %s34
      %p172 = scmp.eq.s32.totalorder %s171, 0
      %s174 = sadd.s32 %s173, 1
      %s175 = scalar_select %p172, %s173, %s174
      %p178 = pneg %p172
      %p179 = scmp.eq.s32.totalorder %s27, 1
      %p180 = por %p178, %p179
      %p181 = scmp.ne.s32.totalorder %s173, %s176
      %p182 = scmp.eq.s32.totalorder %s27, 0
      %p183 = por %p181, %p182
      %p184 = scmp.ne.s32.totalorder %s173, %s176
      %p185 = scmp.eq.s32.totalorder %s32, 1
      %p186 = por %p184, %p185
      %p187 = scmp.ne.s32.totalorder %s176, %s177
      %p188 = scmp.eq.s32.totalorder %s32, 0
      %p189 = por %p187, %p188
      %p190 = scmp.ne.s32.totalorder %s176, %s177
      %p191 = scmp.eq.s32.totalorder %s33, 1
      %p192 = por %p190, %p191
      %p194 = scmp.ne.s32.totalorder %s177, %s193
      %p195 = scmp.eq.s32.totalorder %s33, 0
      %p196 = por %p194, %p195
      %s197 = ssub.s32 %s27, %s34
      %p198 = scmp.eq.s32.totalorder %s197, 0
      %s200 = sadd.s32 %s199, 1
      %s201 = scalar_select %p198, %s199, %s200
      %p204 = pneg %p198
      %p205 = scmp.eq.s32.totalorder %s27, 1
      %p206 = por %p204, %p205
      %p207 = scmp.ne.s32.totalorder %s199, %s202
      %p208 = scmp.eq.s32.totalorder %s27, 0
      %p209 = por %p207, %p208
      %p210 = scmp.ne.s32.totalorder %s199, %s202
      %p211 = scmp.eq.s32.totalorder %s32, 1
      %p212 = por %p210, %p211
      %p213 = scmp.ne.s32.totalorder %s202, %s203
      %p214 = scmp.eq.s32.totalorder %s32, 0
      %p215 = por %p213, %p214
      %p216 = scmp.ne.s32.totalorder %s202, %s203
      %p217 = scmp.eq.s32.totalorder %s33, 1
      %p218 = por %p216, %p217
      %p220 = scmp.ne.s32.totalorder %s203, %s219
      %p221 = scmp.eq.s32.totalorder %s33, 0
      %p222 = por %p220, %p221
      %s223 = ssub.s32 %s27, %s34
      %p224 = scmp.eq.s32.totalorder %s223, 0
      %s226 = sadd.s32 %s225, 1
      %s227 = scalar_select %p224, %s225, %s226
      %p230 = pneg %p224
      %p231 = scmp.eq.s32.totalorder %s27, 1
      %p232 = por %p230, %p231
      %p233 = scmp.ne.s32.totalorder %s225, %s228
      %p234 = scmp.eq.s32.totalorder %s27, 0
      %p235 = por %p233, %p234
      %p236 = scmp.ne.s32.totalorder %s225, %s228
      %p237 = scmp.eq.s32.totalorder %s32, 1
      %p238 = por %p236, %p237
      %p239 = scmp.ne.s32.totalorder %s228, %s229
      %p240 = scmp.eq.s32.totalorder %s32, 0
      %p241 = por %p239, %p240
      %p242 = scmp.ne.s32.totalorder %s228, %s229
      %p243 = scmp.eq.s32.totalorder %s33, 1
      %p244 = por %p242, %p243
      %p246 = scmp.ne.s32.totalorder %s229, %s245
      %p247 = scmp.eq.s32.totalorder %s33, 0
      %p248 = por %p246, %p247
      %s249 = ssub.s32 %s27, %s34
      %p250 = scmp.eq.s32.totalorder %s249, 0
      %s252 = sadd.s32 %s251, 1
      %s253 = scalar_select %p250, %s251, %s252
      %p256 = pneg %p250
      %p257 = scmp.eq.s32.totalorder %s27, 1
      %p258 = por %p256, %p257
      %p259 = scmp.ne.s32.totalorder %s251, %s254
      %p260 = scmp.eq.s32.totalorder %s27, 0
      %p261 = por %p259, %p260
      %p262 = scmp.ne.s32.totalorder %s251, %s254
      %p263 = scmp.eq.s32.totalorder %s32, 1
      %p264 = por %p262, %p263
      %p265 = scmp.ne.s32.totalorder %s254, %s255
      %p266 = scmp.eq.s32.totalorder %s32, 0
      %p267 = por %p265, %p266
      %p268 = scmp.ne.s32.totalorder %s254, %s255
      %p269 = scmp.eq.s32.totalorder %s33, 1
      %p270 = por %p268, %p269
      %p272 = scmp.ne.s32.totalorder %s255, %s271
      %p273 = scmp.eq.s32.totalorder %s33, 0
      %p274 = por %p272, %p273
      %s275 = ssub.s32 %s27, %s34
      %p276 = scmp.eq.s32.totalorder %s275, 0
      %s278 = sadd.s32 %s277, 1
      %s279 = scalar_select %p276, %s277, %s278
      %p282 = pneg %p276
      %p283 = scmp.eq.s32.totalorder %s27, 1
      %p284 = por %p282, %p283
      %p285 = scmp.ne.s32.totalorder %s277, %s280
      %p286 = scmp.eq.s32.totalorder %s27, 0
      %p287 = por %p285, %p286
      %p288 = scmp.ne.s32.totalorder %s277, %s280
      %p289 = scmp.eq.s32.totalorder %s32, 1
      %p290 = por %p288, %p289
      %p291 = scmp.ne.s32.totalorder %s280, %s281
      %p292 = scmp.eq.s32.totalorder %s32, 0
      %p293 = por %p291, %p292
      %p294 = scmp.ne.s32.totalorder %s280, %s281
      %p295 = scmp.eq.s32.totalorder %s33, 1
      %p296 = por %p294, %p295
      %p298 = scmp.ne.s32.totalorder %s281, %s297
      %p299 = scmp.eq.s32.totalorder %s33, 0
      %p300 = por %p298, %p299
      %s301 = ssub.s32 %s27, %s34
      %p302 = scmp.eq.s32.totalorder %s301, 0
      %s304 = sadd.s32 %s303, 1
      %s305 = scalar_select %p302, %s303, %s304
      %p308 = pneg %p302
      %p309 = scmp.eq.s32.totalorder %s27, 1
      %p310 = por %p308, %p309
      %p311 = scmp.ne.s32.totalorder %s303, %s306
      %p312 = scmp.eq.s32.totalorder %s27, 0
      %p313 = por %p311, %p312
      %p314 = scmp.ne.s32.totalorder %s303, %s306
      %p315 = scmp.eq.s32.totalorder %s32, 1
      %p316 = por %p314, %p315
      %p317 = scmp.ne.s32.totalorder %s306, %s307
      %p318 = scmp.eq.s32.totalorder %s32, 0
      %p319 = por %p317, %p318
      %p320 = scmp.ne.s32.totalorder %s306, %s307
      %p321 = scmp.eq.s32.totalorder %s33, 1
      %p322 = por %p320, %p321
      %p324 = scmp.ne.s32.totalorder %s307, %s323
      %p325 = scmp.eq.s32.totalorder %s33, 0
      %p326 = por %p324, %p325
      %s327 = ssub.s32 %s27, %s34
      %p328 = scmp.eq.s32.totalorder %s327, 0
      %s330 = sadd.s32 %s329, 1
      %s331 = scalar_select %p328, %s329, %s330
      %p334 = pneg %p328
      %p335 = scmp.eq.s32.totalorder %s27, 1
      %p336 = por %p334, %p335
      %p337 = scmp.ne.s32.totalorder %s329, %s332
      %p338 = scmp.eq.s32.totalorder %s27, 0
      %p339 = por %p337, %p338
      %p340 = scmp.ne.s32.totalorder %s329, %s332
      %p341 = scmp.eq.s32.totalorder %s32, 1
      %p342 = por %p340, %p341
      %p343 = scmp.ne.s32.totalorder %s332, %s333
      %p344 = scmp.eq.s32.totalorder %s32, 0
      %p345 = por %p343, %p344
      %p346 = scmp.ne.s32.totalorder %s332, %s333
      %p347 = scmp.eq.s32.totalorder %s33, 1
      %p348 = por %p346, %p347
      %p350 = scmp.ne.s32.totalorder %s333, %s349
      %p351 = scmp.eq.s32.totalorder %s33, 0
      %p352 = por %p350, %p351
      %s354 = sadd.s32 %s353, 1
      %p357 = scmp.eq.s32.totalorder %s27, 1
      %p358 = scmp.ne.s32.totalorder %s353, %s355
      %p359 = scmp.eq.s32.totalorder %s27, 0
      %p360 = por %p358, %p359
      %p361 = scmp.ne.s32.totalorder %s353, %s355
      %p362 = scmp.eq.s32.totalorder %s32, 1
      %p363 = por %p361, %p362
      %p364 = scmp.ne.s32.totalorder %s355, %s356
      %p365 = scmp.eq.s32.totalorder %s32, 0
      %p366 = por %p364, %p365
      %p367 = scmp.ne.s32.totalorder %s355, %s356
      %p368 = scmp.eq.s32.totalorder %s33, 1
      %p369 = por %p367, %p368
      %p371 = scmp.ne.s32.totalorder %s356, %s370
      %p372 = scmp.eq.s32.totalorder %s33, 0
      %p373 = por %p371, %p372
      %s375 = sadd.s32 %s374, 1
      %p378 = scmp.eq.s32.totalorder %s27, 1
      %p379 = scmp.ne.s32.totalorder %s374, %s376
      %p380 = scmp.eq.s32.totalorder %s27, 0
      %p381 = por %p379, %p380
      %p382 = scmp.ne.s32.totalorder %s374, %s376
      %p383 = scmp.eq.s32.totalorder %s32, 1
      %p384 = por %p382, %p383
      %p385 = scmp.ne.s32.totalorder %s376, %s377
      %p386 = scmp.eq.s32.totalorder %s32, 0
      %p387 = por %p385, %p386
      %p388 = scmp.ne.s32.totalorder %s376, %s377
      %p389 = scmp.eq.s32.totalorder %s33, 1
      %p390 = por %p388, %p389
      %p392 = scmp.ne.s32.totalorder %s377, %s391
      %p393 = scmp.eq.s32.totalorder %s33, 0
      %p394 = por %p392, %p393
      %s396 = sadd.s32 %s395, 1
      %p399 = scmp.eq.s32.totalorder %s27, 1
      %p400 = scmp.ne.s32.totalorder %s395, %s397
      %p401 = scmp.eq.s32.totalorder %s27, 0
      %p402 = por %p400, %p401
      %p403 = scmp.ne.s32.totalorder %s395, %s397
      %p404 = scmp.eq.s32.totalorder %s32, 1
      %p405 = por %p403, %p404
      %p406 = scmp.ne.s32.totalorder %s397, %s398
      %p407 = scmp.eq.s32.totalorder %s32, 0
      %p408 = por %p406, %p407
      %p409 = scmp.ne.s32.totalorder %s397, %s398
      %p410 = scmp.eq.s32.totalorder %s33, 1
      %p411 = por %p409, %p410
      %p413 = scmp.ne.s32.totalorder %s398, %s412
      %p414 = scmp.eq.s32.totalorder %s33, 0
      %p415 = por %p413, %p414
      %p416 = scmp.le.s32.totalorder 1, %s27
      %p417 = scmp.lt.s32.totalorder %s27, 3
      %p418 = pnand %p416, %p417
      %p419 = pneg %p418
      // Predicated region
      $region9: #{tpu_custom_call.1} parent=5 // pred_check
        _
      $region10: #{tpu_custom_call.1} parent=5 // pred_check_branch
        %421 = sbr.rel (%p418) target = $region12
      $region11: #{tpu_custom_call.1} parent=5 // pred_region
        %s422 = ssub.s32 %s27, 1
        // Predicated region
        $region13: #{tpu_custom_call.1} parent=11 // pred_check
          %p423 = pneg %p48
        $region14: #{tpu_custom_call.1} parent=11 // pred_check_branch
          %425 = sbr.rel (%p423) target = $region16
        $region15: #{tpu_custom_call.1} parent=11 // pred_region
          _
        $region16: #{tpu_custom_call.1} parent=11 // pred_fallthru
          _
        // Predicated region
        $region17: #{tpu_custom_call.1} parent=11 // pred_check
          %p426 = pneg %p69
        $region18: #{tpu_custom_call.1} parent=11 // pred_check_branch
          %428 = sbr.rel (%p426) target = $region20
        $region19: #{tpu_custom_call.1} parent=11 // pred_region
          _
        $region20: #{tpu_custom_call.1} parent=11 // pred_fallthru
          _
        // Predicated region
        $region21: #{tpu_custom_call.1} parent=11 // pred_check
          %p429 = pneg %p90
        $region22: #{tpu_custom_call.1} parent=11 // pred_check_branch
          %431 = sbr.rel (%p429) target = $region24
        $region23: #{tpu_custom_call.1} parent=11 // pred_region
          _
        $region24: #{tpu_custom_call.1} parent=11 // pred_fallthru
          _
        // Predicated region
        $region25: #{tpu_custom_call.1} parent=11 // pred_check
          %p432 = pneg %p111
        $region26: #{tpu_custom_call.1} parent=11 // pred_check_branch
          %434 = sbr.rel (%p432) target = $region28
        $region27: #{tpu_custom_call.1} parent=11 // pred_region
          _
        $region28: #{tpu_custom_call.1} parent=11 // pred_fallthru
          _
        // Predicated region
        $region29: #{tpu_custom_call.1} parent=11 // pred_check
          %p435 = pneg %p366
        $region30: #{tpu_custom_call.1} parent=11 // pred_check_branch
          %437 = sbr.rel (%p435) target = $region32
        $region31: #{tpu_custom_call.1} parent=11 // pred_region
          _
        $region32: #{tpu_custom_call.1} parent=11 // pred_fallthru
          _
        // Predicated region
        $region33: #{tpu_custom_call.1} parent=11 // pred_check
          %p438 = pneg %p387
        $region34: #{tpu_custom_call.1} parent=11 // pred_check_branch
          %440 = sbr.rel (%p438) target = $region36
        $region35: #{tpu_custom_call.1} parent=11 // pred_region
          _
        $region36: #{tpu_custom_call.1} parent=11 // pred_fallthru
          _
      $region12: #{tpu_custom_call.1} parent=5 // pred_fallthru
        _
      %p441 = scmp.lt.s32.totalorder %s27, 2
      // Predicated region
      $region37: #{tpu_custom_call.1} parent=5 // pred_check
        %p442 = pneg %p441
      $region38: #{tpu_custom_call.1} parent=5 // pred_check_branch
        %444 = sbr.rel (%p442) target = $region40
      $region39: #{tpu_custom_call.1} parent=5 // pred_region
        // Predicated region
        $region41: #{tpu_custom_call.1} parent=39 // pred_check
          %p445 = pneg %p131
        $region42: #{tpu_custom_call.1} parent=39 // pred_check_branch
          %447 = sbr.rel (%p445) target = $region44
        $region43: #{tpu_custom_call.1} parent=39 // pred_region
          %s448 = sand.u32 %s121, 1
          %s449 = scalar_lea.sflag [#allocation5], %s448
          %s450 = sand.u32 %s121, 1
          %s451 = smul.addr %s450, 288
          %s452 = scalar_lea.vmem [#allocation4], %s451
          %s454 = ssub.s32 4608, 4608
          %455 = vsyncadd %s449, %s454
          %s456 = smul.addr %s27, 72
          %s457 = smul.addr %s456, 64
          %s458 = scalar_lea.hbm %s4, %s457
          %s459 = sshll.u32 %s452, 4
          %s460 = int_to_ptr.vmem [resolvable:$true] %s459
          %465 = dma.hbm_to_vmem [thread:$0]  %s458, 4608, %s460, %s449, 64, 64, 4
        $region44: #{tpu_custom_call.1} parent=39 // pred_fallthru
          _
        // Predicated region
        $region45: #{tpu_custom_call.1} parent=39 // pred_check
          %p466 = pneg %p157
        $region46: #{tpu_custom_call.1} parent=39 // pred_check_branch
          %468 = sbr.rel (%p466) target = $region48
        $region47: #{tpu_custom_call.1} parent=39 // pred_region
          %p469 = scmp.lt.s32.totalorder %s27, 1
          %s470 = scalar_select %p469, %s27, 1
          %s471 = smul.addr %s470, 6
          %s472 = scalar_lea.vmem %s5, %s471
        $region48: #{tpu_custom_call.1} parent=39 // pred_fallthru
          _
        // Predicated region
        $region49: #{tpu_custom_call.1} parent=39 // pred_check
          %p473 = pneg %p183
        $region50: #{tpu_custom_call.1} parent=39 // pred_check_branch
          %475 = sbr.rel (%p473) target = $region52
        $region51: #{tpu_custom_call.1} parent=39 // pred_region
          %p476 = scmp.lt.s32.totalorder %s27, 1
          %s477 = scalar_select %p476, %s27, 1
          %s478 = smul.addr %s477, 6
          %s479 = scalar_lea.vmem %s6, %s478
        $region52: #{tpu_custom_call.1} parent=39 // pred_fallthru
          _
        // Predicated region
        $region53: #{tpu_custom_call.1} parent=39 // pred_check
          %p480 = pneg %p209
        $region54: #{tpu_custom_call.1} parent=39 // pred_check_branch
          %482 = sbr.rel (%p480) target = $region56
        $region55: #{tpu_custom_call.1} parent=39 // pred_region
          %p483 = scmp.lt.s32.totalorder %s27, 1
          %s484 = scalar_select %p483, %s27, 1
          %s485 = smul.addr %s484, 6
          %s486 = scalar_lea.vmem %s7, %s485
        $region56: #{tpu_custom_call.1} parent=39 // pred_fallthru
          _
        // Predicated region
        $region57: #{tpu_custom_call.1} parent=39 // pred_check
          %p487 = pneg %p235
        $region58: #{tpu_custom_call.1} parent=39 // pred_check_branch
          %489 = sbr.rel (%p487) target = $region60
        $region59: #{tpu_custom_call.1} parent=39 // pred_region
          %p490 = scmp.lt.s32.totalorder %s27, 1
          %s491 = scalar_select %p490, %s27, 1
          %s492 = scalar_lea.vmem %s8, %s491
        $region60: #{tpu_custom_call.1} parent=39 // pred_fallthru
          _
        // Predicated region
        $region61: #{tpu_custom_call.1} parent=39 // pred_check
          %p493 = pneg %p261
        $region62: #{tpu_custom_call.1} parent=39 // pred_check_branch
          %495 = sbr.rel (%p493) target = $region64
        $region63: #{tpu_custom_call.1} parent=39 // pred_region
          %p496 = scmp.lt.s32.totalorder %s27, 1
          %s497 = scalar_select %p496, %s27, 1
          %s498 = smul.addr %s497, 8
          %s499 = smul.addr %s498, 4
          %s500 = scalar_lea.vmem %s9, %s499
        $region64: #{tpu_custom_call.1} parent=39 // pred_fallthru
          _
        // Predicated region
        $region65: #{tpu_custom_call.1} parent=39 // pred_check
          %p501 = pneg %p287
        $region66: #{tpu_custom_call.1} parent=39 // pred_check_branch
          %503 = sbr.rel (%p501) target = $region68
        $region67: #{tpu_custom_call.1} parent=39 // pred_region
          %p504 = scmp.lt.s32.totalorder %s27, 1
          %s505 = scalar_select %p504, %s27, 1
          %s506 = smul.addr %s505, 8
          %s507 = smul.addr %s506, 4
          %s508 = scalar_lea.vmem %s10, %s507
        $region68: #{tpu_custom_call.1} parent=39 // pred_fallthru
          _
        // Predicated region
        $region69: #{tpu_custom_call.1} parent=39 // pred_check
          %p509 = pneg %p313
        $region70: #{tpu_custom_call.1} parent=39 // pred_check_branch
          %511 = sbr.rel (%p509) target = $region72
        $region71: #{tpu_custom_call.1} parent=39 // pred_region
          %p512 = scmp.lt.s32.totalorder %s27, 1
          %s513 = scalar_select %p512, %s27, 1
          %s514 = smul.addr %s513, 8
          %s515 = smul.addr %s514, 4
          %s516 = scalar_lea.vmem %s11, %s515
        $region72: #{tpu_custom_call.1} parent=39 // pred_fallthru
          _
        // Predicated region
        $region73: #{tpu_custom_call.1} parent=39 // pred_check
          %p517 = pneg %p339
        $region74: #{tpu_custom_call.1} parent=39 // pred_check_branch
          %519 = sbr.rel (%p517) target = $region76
        $region75: #{tpu_custom_call.1} parent=39 // pred_region
          %p520 = scmp.lt.s32.totalorder %s27, 1
          %s521 = scalar_select %p520, %s27, 1
          %s522 = smul.addr %s521, 2
          %s523 = smul.addr %s522, 4
          %s524 = scalar_lea.vmem %s12, %s523
        $region76: #{tpu_custom_call.1} parent=39 // pred_fallthru
          _
      $region40: #{tpu_custom_call.1} parent=5 // pred_fallthru
        _
      %p525 = scmp.le.s32.totalorder 1, %s27
      %p526 = scmp.lt.s32.totalorder %s27, 3
      %p527 = pnand %p525, %p526
      %p528 = pneg %p527
      // Predicated region
      $region77: #{tpu_custom_call.1} parent=5 // pred_check
        _
      $region78: #{tpu_custom_call.1} parent=5 // pred_check_branch
        %530 = sbr.rel (%p527) target = $region80
      $region79: #{tpu_custom_call.1} parent=5 // pred_region
        %s531 = ssub.s32 %s27, 1
        %s532 = sand.u32 %s124, 1
        %s533 = scalar_lea.sflag [#allocation5], %s532
        %s534 = sand.u32 %s124, 1
        %s535 = smul.addr %s534, 288
        %s536 = scalar_lea.vmem [#allocation4], %s535
        // Predicated region
        $region81: #{tpu_custom_call.1} parent=79 // pred_check
          %p537 = pneg %p137
        $region82: #{tpu_custom_call.1} parent=79 // pred_check_branch
          %539 = sbr.rel (%p537) target = $region84
        $region83: #{tpu_custom_call.1} parent=79 // pred_region
          %540 = dma.done %s533, 4608
        $region84: #{tpu_custom_call.1} parent=79 // pred_fallthru
          _
        %p541 = pneg %p48
        %p542 = pneg %p45
        %p543 = pneg %p69
        %p544 = pneg %p66
        %p545 = pneg %p90
        %p546 = pneg %p87
        %p547 = pneg %p111
        %p548 = pneg %p108
        %s549 = sand.u32 %s124, 1
        %s550 = scalar_lea.sflag [#allocation5], %s549
        %s551 = sand.u32 %s124, 1
        %s552 = smul.addr %s551, 288
        %s553 = scalar_lea.vmem [#allocation4], %s552
        %p554 = pneg %p137
        %p555 = pneg %p134
        %p556 = scmp.lt.s32.totalorder %s32, 1
        %s557 = scalar_select %p556, %s32, 1
        %s558 = smul.addr %s557, 6
        %s559 = scalar_lea.vmem %s5, %s558
        %p560 = pneg %p163
        %p561 = pneg %p160
        %p562 = scmp.lt.s32.totalorder %s32, 1
        %s563 = scalar_select %p562, %s32, 1
        %s564 = smul.addr %s563, 6
        %s565 = scalar_lea.vmem %s6, %s564
        %p566 = pneg %p189
        %p567 = pneg %p186
        %p568 = scmp.lt.s32.totalorder %s32, 1
        %s569 = scalar_select %p568, %s32, 1
        %s570 = smul.addr %s569, 6
        %s571 = scalar_lea.vmem %s7, %s570
        %p572 = pneg %p215
        %p573 = pneg %p212
        %p574 = scmp.lt.s32.totalorder %s32, 1
        %s575 = scalar_select %p574, %s32, 1
        %s576 = scalar_lea.vmem %s8, %s575
        %p577 = pneg %p241
        %p578 = pneg %p238
        %p579 = scmp.lt.s32.totalorder %s32, 1
        %s580 = scalar_select %p579, %s32, 1
        %s581 = smul.addr %s580, 8
        %s582 = smul.addr %s581, 4
        %s583 = scalar_lea.vmem %s9, %s582
        %p584 = pneg %p267
        %p585 = pneg %p264
        %p586 = scmp.lt.s32.totalorder %s32, 1
        %s587 = scalar_select %p586, %s32, 1
        %s588 = smul.addr %s587, 8
        %s589 = smul.addr %s588, 4
        %s590 = scalar_lea.vmem %s10, %s589
        %p591 = pneg %p293
        %p592 = pneg %p290
        %p593 = scmp.lt.s32.totalorder %s32, 1
        %s594 = scalar_select %p593, %s32, 1
        %s595 = smul.addr %s594, 8
        %s596 = smul.addr %s595, 4
        %s597 = scalar_lea.vmem %s11, %s596
        %p598 = pneg %p319
        %p599 = pneg %p316
        %p600 = scmp.lt.s32.totalorder %s32, 1
        %s601 = scalar_select %p600, %s32, 1
        %s602 = smul.addr %s601, 2
        %s603 = smul.addr %s602, 4
        %s604 = scalar_lea.vmem %s12, %s603
        %p605 = pneg %p345
        %p606 = pneg %p342
        %p607 = pneg %p366
        %p608 = pneg %p363
        %p609 = pneg %p387
        %p610 = pneg %p384
        %p611 = pneg %p408
        %p612 = pneg %p405
        %p613 = scmp.lt.s32.totalorder %s32, 1
        %s614 = scalar_select %p613, %s32, 1
        %s615 = smul.addr %s614, 6
        %s616 = scalar_lea.vmem %s5, %s615
        %p617 = scmp.lt.s32.totalorder %s32, 1
        %s618 = scalar_select %p617, %s32, 1
        %s619 = smul.addr %s618, 6
        %s620 = scalar_lea.vmem %s6, %s619
        %p621 = scmp.lt.s32.totalorder %s32, 1
        %s622 = scalar_select %p621, %s32, 1
        %s623 = smul.addr %s622, 6
        %s624 = scalar_lea.vmem %s7, %s623
        %p625 = scmp.lt.s32.totalorder %s32, 1
        %s626 = scalar_select %p625, %s32, 1
        %s627 = scalar_lea.vmem %s8, %s626
        %p628 = scmp.lt.s32.totalorder %s32, 1
        %s629 = scalar_select %p628, %s32, 1
        %s630 = smul.addr %s629, 8
        %s631 = smul.addr %s630, 4
        %s632 = scalar_lea.vmem %s9, %s631
        %p633 = scmp.lt.s32.totalorder %s32, 1
        %s634 = scalar_select %p633, %s32, 1
        %s635 = smul.addr %s634, 8
        %s636 = smul.addr %s635, 4
        %s637 = scalar_lea.vmem %s10, %s636
        %p638 = scmp.lt.s32.totalorder %s32, 1
        %s639 = scalar_select %p638, %s32, 1
        %s640 = smul.addr %s639, 8
        %s641 = smul.addr %s640, 4
        %s642 = scalar_lea.vmem %s11, %s641
        %p643 = scmp.lt.s32.totalorder %s32, 1
        %s644 = scalar_select %p643, %s32, 1
        %s645 = smul.addr %s644, 2
        %s646 = smul.addr %s645, 4
        %s647 = scalar_lea.vmem %s12, %s646
        %p649 = scmp.eq.s32.totalorder %s32, 0
        // Predicated region
        $region85: #{tpu_custom_call.1} parent=79 // pred_check
          %p650 = pneg %p649
        $region86: #{tpu_custom_call.1} parent=79 // pred_check_branch
          %652 = sbr.rel (%p650) target = $region88
        $region87: #{tpu_custom_call.1} parent=79 // pred_region
          %v653 = vld [vmem:[%s0] sm:$0xff]
          %v654 = vld [vmem:[%s0 + $0x8] sm:$0xff]
          %vm655 = vcmask 261120
          %656 = vst.msk [vmem:[#allocation2] sm:$0xff] %vm655, %v653
          %657 = vst.msk [vmem:[#allocation2 + $0x8] sm:$0xff] %vm655, %v654
        $region88: #{tpu_custom_call.1} parent=79 // pred_fallthru
          _
        %v658 = vld [vmem:[#allocation2] sm:$0xff]
        %v659 = vld [vmem:[#allocation2 + $0x8] sm:$0xff]
        %v660 = vld [vmem:[%s1] sm:$0xff]
        %v661 = vld [vmem:[%s1 + $0x8] sm:$0xff]
        %v662 = vpack.c.bf16 %v661, %v660
        %v663 = vld [vmem:[%s2] sm:$0xff]
        %v664 = vld [vmem:[%s2 + $0x8] sm:$0xff]
        %v665 = vld [vmem:[%s3] sm:$0xff]
        %v666 = vld [vmem:[%s3 + $0x8] sm:$0xff]
        %v667 = vld [vmem:[%s3 + $0x10] sm:$0xff]
        %v668 = vld [vmem:[%s3 + $0x18] sm:$0xff]
        %v669 = vlaneseq
        %v670 = vshrl.u32 %v669, 7
        %v671 = vadd.s32 %v670, 8
        %vm672 = vcmp.lt.s32.totalorder %v670, 0
        %v673 = vsub.s32 0, %v670
        %v674 = vsel %vm672, %v673, %v670
        %v675 = vshrl.u32 %v674, 3
        %v676 = vand.u32 %v674, 7
        %v677 = vsub.s32 0, %v676
        %v678 = vsel %vm672, %v677, %v676
        %vm679 = vcmp.lt.s32.totalorder %v671, 0
        %v680 = vsub.s32 0, %v671
        %v681 = vsel %vm679, %v680, %v671
        %v682 = vshrl.u32 %v681, 3
        %v683 = vand.u32 %v681, 7
        %v684 = vsub.s32 0, %v683
        %v685 = vsel %vm679, %v684, %v683
        %vm686 = vcmp.ne.s32.totalorder %v678, 0
        %vm687 = vcmp.ne.s32.totalorder %v685, 0
        %vm688 = vcmp.lt.s32.totalorder %v678, 0
        %vm689 = vcmp.lt.s32.totalorder %v685, 0
        %vm690 = vmand %vm688, %vm686
        %vm691 = vmand %vm689, %vm687
        %v692 = vadd.s32 %v678, 8
        %v693 = vadd.s32 %v685, 8
        %v694 = vsel %vm690, %v692, %v678
        %v695 = vsel %vm691, %v693, %v685
        %vm696 = vcmp.ge.s32.totalorder %v694, 1
        %vm697 = vcmp.ge.s32.totalorder %v695, 1
        %vm698 = vcmp.lt.s32.totalorder %v694, 7
        %vm699 = vcmp.lt.s32.totalorder %v695, 7
        %v700 = vld [vmem:[%s616] sm:$0x1]
        %v701 = vld [vmem:[%s620] sm:$0x1]
        %v702 = vld [vmem:[%s624] sm:$0x1]
        %v703 = vrot.slane %v658, 7
        %v704 = vrot.slane %v659, 7
        %vm705 = vcmp.lt.s32.totalorder %v670, 1
        %v706 = vsel %vm705, %v703, %v704
        %v707 = vsel %vm705, %v704, %v703
        %v708 = vsel %vm696, %v707, 0.0
        %v709 = vsel %vm697, %v706, 0.0
        %v710 = vpack.c.bf16 %v709, %v708
        %v711 = vld [vmem:[%s536] sm:$0xf]
        %v712 = vld [vmem:[%s536 + $0x4] sm:$0xf]
        %v713 = vld [vmem:[%s536 + $0x8] sm:$0xf]
        %v714 = vld [vmem:[%s536 + $0xc] sm:$0xf]
        %v715 = vpack.c.bf16 %v659, %v658
        %s716 = scalar_lea.vmem %s536, 16 [#allocation4]
        %v717 = vld [vmem:[%s716] sm:$0xf]
        %v718 = vld [vmem:[%s716 + $0x4] sm:$0xf]
        %v719 = vld [vmem:[%s716 + $0x8] sm:$0xf]
        %v720 = vld [vmem:[%s716 + $0xc] sm:$0xf]
        %v725 = vunpack.c.l.b16 %v717
        %v726 = vunpack.c.l.b16 %v718
        %v727 = vunpack.c.l.b16 %v719
        %v728 = vunpack.c.l.b16 %v720
        %v729 = vpack.c.b16 %v726, %v725
        %v730 = vpack.c.b16 %v728, %v727
        %vm733 = vcmask 261120
        %v735 = vsel %vm733, %v715, 0
        %737 = vmatprep.subr.bf16.mxu0 0
        %738 = vmatpush1.bf16.msra.mxu0 %v729
        %739 = vmatprep.subr.bf16.mxu0 0
        %740 = vmatpush1.bf16.msra.mxu0 %v730
        %741 = vmatprep.subr.bf16.mxu0 0
        %742 = vmatpush1.bf16.msra.mxu0 0
        %743 = vmatprep.subr.bf16.mxu0 0
        %744 = vmatpush1.bf16.msra.mxu0 0
        %745 = vmatprep.subr.bf16.mxu0 0
        %746 = vmatpush1.bf16.msra.mxu0 0
        %747 = vmatprep.subr.bf16.mxu0 0
        %748 = vmatpush1.bf16.msra.mxu0 0
        %749 = vmatprep.subr.bf16.mxu0 0
        %750 = vmatpush1.bf16.msra.mxu0 0
        %751 = vmatprep.subr.bf16.mxu0 0
        %752 = vmatpush1.bf16.msra.mxu0 0
        %753 = vmatprep.subr.bf16.mxu0 0
        %754 = vmatpush1.bf16.msra.mxu0 0
        %755 = vmatprep.subr.bf16.mxu0 0
        %756 = vmatpush1.bf16.msra.mxu0 0
        %757 = vmatprep.subr.bf16.mxu0 0
        %758 = vmatpush1.bf16.msra.mxu0 0
        %759 = vmatprep.subr.bf16.mxu0 0
        %760 = vmatpush1.bf16.msra.mxu0 0
        %761 = vmatprep.subr.bf16.mxu0 0
        %762 = vmatpush1.bf16.msra.mxu0 0
        %763 = vmatprep.subr.bf16.mxu0 0
        %764 = vmatpush1.bf16.msra.mxu0 0
        %765 = vmatprep.subr.bf16.mxu0 0
        %766 = vmatpush1.bf16.msra.mxu0 0
        %767 = vmatprep.subr.bf16.mxu0 0
        %768 = vmatpush1.bf16.msra.mxu0 0
        %769 = vmatprep.mubr.bf16.mxu0 0
        %770 = vmatmul.mubr.bf16.gmra.mrb[0].mxu0 %v735
        %v771 = vpop.f32.mrb[0].mxu0
        %v772 = vadd.f32 0.0, %v771
        %v773 = vpop.f32.mrb[0].mxu0
        %v774 = vpop.f32.mrb[0].mxu0
        %v775 = vadd.f32 0.0, %v774
        %v776 = vpop.f32.mrb[0].mxu0
        %777 = vdwg.mxu0
        %v782 = vunpack.c.l.b16 %v711
        %v783 = vunpack.c.l.b16 %v712
        %v784 = vunpack.c.l.b16 %v713
        %v785 = vunpack.c.l.b16 %v714
        %v786 = vpack.c.b16 %v783, %v782
        %v787 = vpack.c.b16 %v785, %v784
        %v791 = vsel %vm733, %v710, 0
        %793 = vmatprep.subr.bf16.mxu0 0
        %794 = vmatpush1.bf16.msra.mxu0 %v786
        %795 = vmatprep.subr.bf16.mxu0 0
        %796 = vmatpush1.bf16.msra.mxu0 %v787
        %797 = vmatprep.subr.bf16.mxu0 0
        %798 = vmatpush1.bf16.msra.mxu0 0
        %799 = vmatprep.subr.bf16.mxu0 0
        %800 = vmatpush1.bf16.msra.mxu0 0
        %801 = vmatprep.subr.bf16.mxu0 0
        %802 = vmatpush1.bf16.msra.mxu0 0
        %803 = vmatprep.subr.bf16.mxu0 0
        %804 = vmatpush1.bf16.msra.mxu0 0
        %805 = vmatprep.subr.bf16.mxu0 0
        %806 = vmatpush1.bf16.msra.mxu0 0
        %807 = vmatprep.subr.bf16.mxu0 0
        %808 = vmatpush1.bf16.msra.mxu0 0
        %809 = vmatprep.subr.bf16.mxu0 0
        %810 = vmatpush1.bf16.msra.mxu0 0
        %811 = vmatprep.subr.bf16.mxu0 0
        %812 = vmatpush1.bf16.msra.mxu0 0
        %813 = vmatprep.subr.bf16.mxu0 0
        %814 = vmatpush1.bf16.msra.mxu0 0
        %815 = vmatprep.subr.bf16.mxu0 0
        %816 = vmatpush1.bf16.msra.mxu0 0
        %817 = vmatprep.subr.bf16.mxu0 0
        %818 = vmatpush1.bf16.msra.mxu0 0
        %819 = vmatprep.subr.bf16.mxu0 0
        %820 = vmatpush1.bf16.msra.mxu0 0
        %821 = vmatprep.subr.bf16.mxu0 0
        %822 = vmatpush1.bf16.msra.mxu0 0
        %823 = vmatprep.subr.bf16.mxu0 0
        %824 = vmatpush1.bf16.msra.mxu0 0
        %825 = vmatprep.mubr.bf16.mxu0 0
        %826 = vmatmul.mubr.bf16.gmra.mrb[0].mxu0 %v791
        %v827 = vpop.f32.mrb[0].mxu0
        %v828 = vadd.f32 %v772, %v827
        %v829 = vpop.f32.mrb[0].mxu0
        %v830 = vpop.f32.mrb[0].mxu0
        %v831 = vadd.f32 %v775, %v830
        %v832 = vpop.f32.mrb[0].mxu0
        %833 = vdwg.mxu0
        %v834 = vrot.slane %v658, 1
        %v835 = vrot.slane %v659, 1
        %vm836 = vcmp.lt.s32.totalorder %v670, 7
        %v837 = vsel %vm836, %v834, %v835
        %v838 = vsel %vm836, %v835, %v834
        %v839 = vsel %vm698, %v837, 0.0
        %v840 = vsel %vm699, %v838, 0.0
        %v841 = vpack.c.bf16 %v840, %v839
        %s842 = scalar_lea.vmem %s536, 32 [#allocation4]
        %v843 = vld [vmem:[%s842] sm:$0xf]
        %v844 = vld [vmem:[%s842 + $0x4] sm:$0xf]
        %v845 = vld [vmem:[%s842 + $0x8] sm:$0xf]
        %v846 = vld [vmem:[%s842 + $0xc] sm:$0xf]
        %v851 = vunpack.c.l.b16 %v843
        %v852 = vunpack.c.l.b16 %v844
        %v853 = vunpack.c.l.b16 %v845
        %v854 = vunpack.c.l.b16 %v846
        %v855 = vpack.c.b16 %v852, %v851
        %v856 = vpack.c.b16 %v854, %v853
        %v860 = vsel %vm733, %v841, 0
        %862 = vmatprep.subr.bf16.mxu0 0
        %863 = vmatpush1.bf16.msra.mxu0 %v855
        %864 = vmatprep.subr.bf16.mxu0 0
        %865 = vmatpush1.bf16.msra.mxu0 %v856
        %866 = vmatprep.subr.bf16.mxu0 0
        %867 = vmatpush1.bf16.msra.mxu0 0
        %868 = vmatprep.subr.bf16.mxu0 0
        %869 = vmatpush1.bf16.msra.mxu0 0
        %870 = vmatprep.subr.bf16.mxu0 0
        %871 = vmatpush1.bf16.msra.mxu0 0
        %872 = vmatprep.subr.bf16.mxu0 0
        %873 = vmatpush1.bf16.msra.mxu0 0
        %874 = vmatprep.subr.bf16.mxu0 0
        %875 = vmatpush1.bf16.msra.mxu0 0
        %876 = vmatprep.subr.bf16.mxu0 0
        %877 = vmatpush1.bf16.msra.mxu0 0
        %878 = vmatprep.subr.bf16.mxu0 0
        %879 = vmatpush1.bf16.msra.mxu0 0
        %880 = vmatprep.subr.bf16.mxu0 0
        %881 = vmatpush1.bf16.msra.mxu0 0
        %882 = vmatprep.subr.bf16.mxu0 0
        %883 = vmatpush1.bf16.msra.mxu0 0
        %884 = vmatprep.subr.bf16.mxu0 0
        %885 = vmatpush1.bf16.msra.mxu0 0
        %886 = vmatprep.subr.bf16.mxu0 0
        %887 = vmatpush1.bf16.msra.mxu0 0
        %888 = vmatprep.subr.bf16.mxu0 0
        %889 = vmatpush1.bf16.msra.mxu0 0
        %890 = vmatprep.subr.bf16.mxu0 0
        %891 = vmatpush1.bf16.msra.mxu0 0
        %892 = vmatprep.subr.bf16.mxu0 0
        %893 = vmatpush1.bf16.msra.mxu0 0
        %894 = vmatprep.mubr.bf16.mxu0 0
        %895 = vmatmul.mubr.bf16.gmra.mrb[0].mxu0 %v860
        %v896 = vpop.f32.mrb[0].mxu0
        %v897 = vadd.f32 0.0, %v896
        %v898 = vpop.f32.mrb[0].mxu0
        %v899 = vpop.f32.mrb[0].mxu0
        %v900 = vadd.f32 0.0, %v899
        %v901 = vpop.f32.mrb[0].mxu0
        %902 = vdwg.mxu0
        %v903 = vadd.f32 %v828, %v897
        %v904 = vadd.f32 %v831, %v900
        %v906 = vlaneseq
        %v907 = vshrl.u32 %v906, 7
        %v908 = vsub.s32 0, %v907
        %v909 = vrot.slane %v700, %v908
        %v911 = vadd.f32 %v903, %v909
        %v912 = vadd.f32 %v904, %v909
        %v914 = vsel %vm733, %v911, 0
        %v917 = vsel %vm733, %v912, 0
        %919 = vmatprep.subr.mxu0 0.0
        %920 = vmatpush1.msra.mxu0 %v665
        %921 = vmatprep.subr.mxu0 0.0
        %922 = vmatpush1.msra.mxu0 %v666
        %923 = vmatprep.subr.mxu0 0.0
        %924 = vmatpush1.msra.mxu0 %v667
        %925 = vmatprep.subr.mxu0 0.0
        %926 = vmatpush1.msra.mxu0 %v668
        %927 = vmatprep.subr.mxu0 0.0
        %928 = vmatpush1.msra.mxu0 0.0
        %929 = vmatprep.subr.mxu0 0.0
        %930 = vmatpush1.msra.mxu0 0.0
        %931 = vmatprep.subr.mxu0 0.0
        %932 = vmatpush1.msra.mxu0 0.0
        %933 = vmatprep.subr.mxu0 0.0
        %934 = vmatpush1.msra.mxu0 0.0
        %935 = vmatprep.subr.mxu0 0.0
        %936 = vmatpush1.msra.mxu0 0.0
        %937 = vmatprep.subr.mxu0 0.0
        %938 = vmatpush1.msra.mxu0 0.0
        %939 = vmatprep.subr.mxu0 0.0
        %940 = vmatpush1.msra.mxu0 0.0
        %941 = vmatprep.subr.mxu0 0.0
        %942 = vmatpush1.msra.mxu0 0.0
        %943 = vmatprep.subr.mxu0 0.0
        %944 = vmatpush1.msra.mxu0 0.0
        %945 = vmatprep.subr.mxu0 0.0
        %946 = vmatpush1.msra.mxu0 0.0
        %947 = vmatprep.subr.mxu0 0.0
        %948 = vmatpush1.msra.mxu0 0.0
        %949 = vmatprep.subr.mxu0 0.0
        %950 = vmatpush1.msra.mxu0 0.0
        %951 = vmatprep.subr.mxu0 0.0
        %952 = vmatpush1.msra.mxu0 0.0
        %953 = vmatprep.subr.mxu0 0.0
        %954 = vmatpush1.msra.mxu0 0.0
        %955 = vmatprep.subr.mxu0 0.0
        %956 = vmatpush1.msra.mxu0 0.0
        %957 = vmatprep.subr.mxu0 0.0
        %958 = vmatpush1.msra.mxu0 0.0
        %959 = vmatprep.subr.mxu0 0.0
        %960 = vmatpush1.msra.mxu0 0.0
        %961 = vmatprep.subr.mxu0 0.0
        %962 = vmatpush1.msra.mxu0 0.0
        %963 = vmatprep.subr.mxu0 0.0
        %964 = vmatpush1.msra.mxu0 0.0
        %965 = vmatprep.subr.mxu0 0.0
        %966 = vmatpush1.msra.mxu0 0.0
        %967 = vmatprep.subr.mxu0 0.0
        %968 = vmatpush1.msra.mxu0 0.0
        %969 = vmatprep.subr.mxu0 0.0
        %970 = vmatpush1.msra.mxu0 0.0
        %971 = vmatprep.subr.mxu0 0.0
        %972 = vmatpush1.msra.mxu0 0.0
        %973 = vmatprep.subr.mxu0 0.0
        %974 = vmatpush1.msra.mxu0 0.0
        %975 = vmatprep.subr.mxu0 0.0
        %976 = vmatpush1.msra.mxu0 0.0
        %977 = vmatprep.subr.mxu0 0.0
        %978 = vmatpush1.msra.mxu0 0.0
        %979 = vmatprep.subr.mxu0 0.0
        %980 = vmatpush1.msra.mxu0 0.0
        %981 = vmatprep.subr.mxu0 0.0
        %982 = vmatpush1.msra.mxu0 0.0
        %983 = vmatprep.mubr.f32.mxu0 0.0
        %984 = vmatmul.mubr.f32.gmra.mrb[0].mxu0 %v914
        %v985 = vpop.f32.mrb[0].mxu0
        %v986 = vadd.f32 0.0, %v985
        %v987 = vpop.f32.mrb[0].mxu0
        %988 = vmatprep.mubr.f32.mxu0 0.0
        %989 = vmatmul.mubr.f32.gmra.mrb[0].mxu0 %v917
        %v990 = vpop.f32.mrb[0].mxu0
        %v991 = vadd.f32 0.0, %v990
        %v992 = vpop.f32.mrb[0].mxu0
        %993 = vdwg.mxu0
        %vm994 = vcmask 130048
        %v996 = vsel %vm994, %v663, 0
        %v999 = vsel %vm994, %v664, 0
        %1001 = vmatprep.subr.mxu0 0.0
        %1002 = vmatpush1.msra.mxu0 %v986
        %1003 = vmatprep.subr.mxu0 0.0
        %1004 = vmatpush1.msra.mxu0 %v991
        %1005 = vmatprep.subr.mxu0 0.0
        %1006 = vmatpush1.msra.mxu0 0.0
        %1007 = vmatprep.subr.mxu0 0.0
        %1008 = vmatpush1.msra.mxu0 0.0
        %1009 = vmatprep.subr.mxu0 0.0
        %1010 = vmatpush1.msra.mxu0 0.0
        %1011 = vmatprep.subr.mxu0 0.0
        %1012 = vmatpush1.msra.mxu0 0.0
        %1013 = vmatprep.subr.mxu0 0.0
        %1014 = vmatpush1.msra.mxu0 0.0
        %1015 = vmatprep.subr.mxu0 0.0
        %1016 = vmatpush1.msra.mxu0 0.0
        %1017 = vmatprep.subr.mxu0 0.0
        %1018 = vmatpush1.msra.mxu0 0.0
        %1019 = vmatprep.subr.mxu0 0.0
        %1020 = vmatpush1.msra.mxu0 0.0
        %1021 = vmatprep.subr.mxu0 0.0
        %1022 = vmatpush1.msra.mxu0 0.0
        %1023 = vmatprep.subr.mxu0 0.0
        %1024 = vmatpush1.msra.mxu0 0.0
        %1025 = vmatprep.subr.mxu0 0.0
        %1026 = vmatpush1.msra.mxu0 0.0
        %1027 = vmatprep.subr.mxu0 0.0
        %1028 = vmatpush1.msra.mxu0 0.0
        %1029 = vmatprep.subr.mxu0 0.0
        %1030 = vmatpush1.msra.mxu0 0.0
        %1031 = vmatprep.subr.mxu0 0.0
        %1032 = vmatpush1.msra.mxu0 0.0
        %1033 = vmatprep.subr.mxu0 0.0
        %1034 = vmatpush1.msra.mxu0 0.0
        %1035 = vmatprep.subr.mxu0 0.0
        %1036 = vmatpush1.msra.mxu0 0.0
        %1037 = vmatprep.subr.mxu0 0.0
        %1038 = vmatpush1.msra.mxu0 0.0
        %1039 = vmatprep.subr.mxu0 0.0
        %1040 = vmatpush1.msra.mxu0 0.0
        %1041 = vmatprep.subr.mxu0 0.0
        %1042 = vmatpush1.msra.mxu0 0.0
        %1043 = vmatprep.subr.mxu0 0.0
        %1044 = vmatpush1.msra.mxu0 0.0
        %1045 = vmatprep.subr.mxu0 0.0
        %1046 = vmatpush1.msra.mxu0 0.0
        %1047 = vmatprep.subr.mxu0 0.0
        %1048 = vmatpush1.msra.mxu0 0.0
        %1049 = vmatprep.subr.mxu0 0.0
        %1050 = vmatpush1.msra.mxu0 0.0
        %1051 = vmatprep.subr.mxu0 0.0
        %1052 = vmatpush1.msra.mxu0 0.0
        %1053 = vmatprep.subr.mxu0 0.0
        %1054 = vmatpush1.msra.mxu0 0.0
        %1055 = vmatprep.subr.mxu0 0.0
        %1056 = vmatpush1.msra.mxu0 0.0
        %1057 = vmatprep.subr.mxu0 0.0
        %1058 = vmatpush1.msra.mxu0 0.0
        %1059 = vmatprep.subr.mxu0 0.0
        %1060 = vmatpush1.msra.mxu0 0.0
        %1061 = vmatprep.subr.mxu0 0.0
        %1062 = vmatpush1.msra.mxu0 0.0
        %1063 = vmatprep.subr.mxu0 0.0
        %1064 = vmatpush1.msra.mxu0 0.0
        %1065 = vmatprep.mubr.f32.mxu0 0.0
        %1066 = vmatmul.mubr.f32.gmra.mrb[0].mxu0 %v996
        %v1067 = vpop.f32.mrb[0].mxu0
        %v1068 = vadd.f32 0.0, %v1067
        %v1069 = vpop.f32.mrb[0].mxu0
        %1070 = vmatprep.mubr.f32.mxu0 0.0
        %1071 = vmatmul.mubr.f32.gmra.mrb[0].mxu0 %v999
        %v1072 = vpop.f32.mrb[0].mxu0
        %v1073 = vadd.f32 0.0, %v1072
        %v1074 = vpop.f32.mrb[0].mxu0
        %1075 = vdwg.mxu0
        %v1076 = vsub.f32 %v911, %v1068
        %v1077 = vsub.f32 %v912, %v1073
        %v1078 = vmul.f32 %v1076, %v1076
        %v1079 = vmul.f32 %v1077, %v1077
        %v1081 = vsel %vm733, %v1078, 0
        %v1084 = vsel %vm733, %v1079, 0
        %1086 = vmatprep.subr.mxu0 0.0
        %1087 = vmatpush1.msra.mxu0 %v665
        %1088 = vmatprep.subr.mxu0 0.0
        %1089 = vmatpush1.msra.mxu0 %v666
        %1090 = vmatprep.subr.mxu0 0.0
        %1091 = vmatpush1.msra.mxu0 %v667
        %1092 = vmatprep.subr.mxu0 0.0
        %1093 = vmatpush1.msra.mxu0 %v668
        %1094 = vmatprep.subr.mxu0 0.0
        %1095 = vmatpush1.msra.mxu0 0.0
        %1096 = vmatprep.subr.mxu0 0.0
        %1097 = vmatpush1.msra.mxu0 0.0
        %1098 = vmatprep.subr.mxu0 0.0
        %1099 = vmatpush1.msra.mxu0 0.0
        %1100 = vmatprep.subr.mxu0 0.0
        %1101 = vmatpush1.msra.mxu0 0.0
        %1102 = vmatprep.subr.mxu0 0.0
        %1103 = vmatpush1.msra.mxu0 0.0
        %1104 = vmatprep.subr.mxu0 0.0
        %1105 = vmatpush1.msra.mxu0 0.0
        %1106 = vmatprep.subr.mxu0 0.0
        %1107 = vmatpush1.msra.mxu0 0.0
        %1108 = vmatprep.subr.mxu0 0.0
        %1109 = vmatpush1.msra.mxu0 0.0
        %1110 = vmatprep.subr.mxu0 0.0
        %1111 = vmatpush1.msra.mxu0 0.0
        %1112 = vmatprep.subr.mxu0 0.0
        %1113 = vmatpush1.msra.mxu0 0.0
        %1114 = vmatprep.subr.mxu0 0.0
        %1115 = vmatpush1.msra.mxu0 0.0
        %1116 = vmatprep.subr.mxu0 0.0
        %1117 = vmatpush1.msra.mxu0 0.0
        %1118 = vmatprep.subr.mxu0 0.0
        %1119 = vmatpush1.msra.mxu0 0.0
        %1120 = vmatprep.subr.mxu0 0.0
        %1121 = vmatpush1.msra.mxu0 0.0
        %1122 = vmatprep.subr.mxu0 0.0
        %1123 = vmatpush1.msra.mxu0 0.0
        %1124 = vmatprep.subr.mxu0 0.0
        %1125 = vmatpush1.msra.mxu0 0.0
        %1126 = vmatprep.subr.mxu0 0.0
        %1127 = vmatpush1.msra.mxu0 0.0
        %1128 = vmatprep.subr.mxu0 0.0
        %1129 = vmatpush1.msra.mxu0 0.0
        %1130 = vmatprep.subr.mxu0 0.0
        %1131 = vmatpush1.msra.mxu0 0.0
        %1132 = vmatprep.subr.mxu0 0.0
        %1133 = vmatpush1.msra.mxu0 0.0
        %1134 = vmatprep.subr.mxu0 0.0
        %1135 = vmatpush1.msra.mxu0 0.0
        %1136 = vmatprep.subr.mxu0 0.0
        %1137 = vmatpush1.msra.mxu0 0.0
        %1138 = vmatprep.subr.mxu0 0.0
        %1139 = vmatpush1.msra.mxu0 0.0
        %1140 = vmatprep.subr.mxu0 0.0
        %1141 = vmatpush1.msra.mxu0 0.0
        %1142 = vmatprep.subr.mxu0 0.0
        %1143 = vmatpush1.msra.mxu0 0.0
        %1144 = vmatprep.subr.mxu0 0.0
        %1145 = vmatpush1.msra.mxu0 0.0
        %1146 = vmatprep.subr.mxu0 0.0
        %1147 = vmatpush1.msra.mxu0 0.0
        %1148 = vmatprep.subr.mxu0 0.0
        %1149 = vmatpush1.msra.mxu0 0.0
        %1150 = vmatprep.mubr.f32.mxu0 0.0
        %1151 = vmatmul.mubr.f32.gmra.mrb[0].mxu0 %v1081
        %v1152 = vpop.f32.mrb[0].mxu0
        %v1153 = vadd.f32 0.0, %v1152
        %v1154 = vpop.f32.mrb[0].mxu0
        %1155 = vmatprep.mubr.f32.mxu0 0.0
        %1156 = vmatmul.mubr.f32.gmra.mrb[0].mxu0 %v1084
        %v1157 = vpop.f32.mrb[0].mxu0
        %v1158 = vadd.f32 0.0, %v1157
        %v1159 = vpop.f32.mrb[0].mxu0
        %1160 = vdwg.mxu0
        %1161 = vmatprep.subr.mxu0 0.0
        %1162 = vmatpush1.msra.mxu0 %v1153
        %1163 = vmatprep.subr.mxu0 0.0
        %1164 = vmatpush1.msra.mxu0 %v1158
        %1165 = vmatprep.subr.mxu0 0.0
        %1166 = vmatpush1.msra.mxu0 0.0
        %1167 = vmatprep.subr.mxu0 0.0
        %1168 = vmatpush1.msra.mxu0 0.0
        %1169 = vmatprep.subr.mxu0 0.0
        %1170 = vmatpush1.msra.mxu0 0.0
        %1171 = vmatprep.subr.mxu0 0.0
        %1172 = vmatpush1.msra.mxu0 0.0
        %1173 = vmatprep.subr.mxu0 0.0
        %1174 = vmatpush1.msra.mxu0 0.0
        %1175 = vmatprep.subr.mxu0 0.0
        %1176 = vmatpush1.msra.mxu0 0.0
        %1177 = vmatprep.subr.mxu0 0.0
        %1178 = vmatpush1.msra.mxu0 0.0
        %1179 = vmatprep.subr.mxu0 0.0
        %1180 = vmatpush1.msra.mxu0 0.0
        %1181 = vmatprep.subr.mxu0 0.0
        %1182 = vmatpush1.msra.mxu0 0.0
        %1183 = vmatprep.subr.mxu0 0.0
        %1184 = vmatpush1.msra.mxu0 0.0
        %1185 = vmatprep.subr.mxu0 0.0
        %1186 = vmatpush1.msra.mxu0 0.0
        %1187 = vmatprep.subr.mxu0 0.0
        %1188 = vmatpush1.msra.mxu0 0.0
        %1189 = vmatprep.subr.mxu0 0.0
        %1190 = vmatpush1.msra.mxu0 0.0
        %1191 = vmatprep.subr.mxu0 0.0
        %1192 = vmatpush1.msra.mxu0 0.0
        %1193 = vmatprep.subr.mxu0 0.0
        %1194 = vmatpush1.msra.mxu0 0.0
        %1195 = vmatprep.subr.mxu0 0.0
        %1196 = vmatpush1.msra.mxu0 0.0
        %1197 = vmatprep.subr.mxu0 0.0
        %1198 = vmatpush1.msra.mxu0 0.0
        %1199 = vmatprep.subr.mxu0 0.0
        %1200 = vmatpush1.msra.mxu0 0.0
        %1201 = vmatprep.subr.mxu0 0.0
        %1202 = vmatpush1.msra.mxu0 0.0
        %1203 = vmatprep.subr.mxu0 0.0
        %1204 = vmatpush1.msra.mxu0 0.0
        %1205 = vmatprep.subr.mxu0 0.0
        %1206 = vmatpush1.msra.mxu0 0.0
        %1207 = vmatprep.subr.mxu0 0.0
        %1208 = vmatpush1.msra.mxu0 0.0
        %1209 = vmatprep.subr.mxu0 0.0
        %1210 = vmatpush1.msra.mxu0 0.0
        %1211 = vmatprep.subr.mxu0 0.0
        %1212 = vmatpush1.msra.mxu0 0.0
        %1213 = vmatprep.subr.mxu0 0.0
        %1214 = vmatpush1.msra.mxu0 0.0
        %1215 = vmatprep.subr.mxu0 0.0
        %1216 = vmatpush1.msra.mxu0 0.0
        %1217 = vmatprep.subr.mxu0 0.0
        %1218 = vmatpush1.msra.mxu0 0.0
        %1219 = vmatprep.subr.mxu0 0.0
        %1220 = vmatpush1.msra.mxu0 0.0
        %1221 = vmatprep.subr.mxu0 0.0
        %1222 = vmatpush1.msra.mxu0 0.0
        %1223 = vmatprep.subr.mxu0 0.0
        %1224 = vmatpush1.msra.mxu0 0.0
        %1225 = vmatprep.mubr.f32.mxu0 0.0
        %1226 = vmatmul.mubr.f32.gmra.mrb[0].mxu0 %v996
        %v1227 = vpop.f32.mrb[0].mxu0
        %v1228 = vadd.f32 1e-05, %v1227
        %v1229 = vpop.f32.mrb[0].mxu0
        %1230 = vmatprep.mubr.f32.mxu0 0.0
        %1231 = vmatmul.mubr.f32.gmra.mrb[0].mxu0 %v999
        %v1232 = vpop.f32.mrb[0].mxu0
        %v1233 = vadd.f32 1e-05, %v1232
        %v1234 = vpop.f32.mrb[0].mxu0
        %1235 = vdwg.mxu0
        %v1236 = vrsqrt.pop %v1228
        %v1237 = vrsqrt.pop %v1233
        %v1238 = vmul.f32 %v1076, %v1236
        %v1239 = vmul.f32 %v1077, %v1237
        %v1241 = vlaneseq
        %v1242 = vshrl.u32 %v1241, 7
        %v1243 = vsub.s32 0, %v1242
        %v1244 = vrot.slane %v701, %v1243
        %v1246 = vmul.f32 %v1238, %v1244
        %v1247 = vmul.f32 %v1239, %v1244
        %v1249 = vlaneseq
        %v1250 = vshrl.u32 %v1249, 7
        %v1251 = vsub.s32 0, %v1250
        %v1252 = vrot.slane %v702, %v1251
        %v1254 = vadd.f32 %v1246, %v1252
        %v1255 = vadd.f32 %v1247, %v1252
        %v1256 = vxor.u32 %v1254, 2147483648
        %v1257 = vxor.u32 %v1255, 2147483648
        %v1258 = vmul.f32 %v1256, 1.442695
        %v1259 = vpow.pop %v1258
        %v1260 = vmul.f32 %v1257, 1.442695
        %v1261 = vpow.pop %v1260
        %v1262 = vadd.f32 %v1259, 1.0
        %v1263 = vadd.f32 %v1261, 1.0
        %v1264 = vrcp.pop %v1262
        %v1265 = vmul.f32 1.0, %v1264
        %v1266 = vrcp.pop %v1263
        %v1267 = vmul.f32 1.0, %v1266
        %v1268 = vmul.f32 %v1254, %v1265
        %v1269 = vmul.f32 %v1255, %v1267
        %s1270 = scalar_lea.vmem %s616, 1
        %v1271 = vld [vmem:[%s1270] sm:$0x1]
        %s1272 = scalar_lea.vmem %s620, 1
        %v1273 = vld [vmem:[%s1272] sm:$0x1]
        %s1274 = scalar_lea.vmem %s624, 1
        %v1275 = vld [vmem:[%s1274] sm:$0x1]
        %v1276 = vrot.slane %v1268, 7
        %v1277 = vrot.slane %v1269, 7
        %v1278 = vsel %vm705, %v1276, %v1277
        %v1279 = vsel %vm705, %v1277, %v1276
        %v1280 = vsel %vm696, %v1279, 0.0
        %v1281 = vsel %vm697, %v1278, 0.0
        %v1282 = vpack.c.bf16 %v1281, %v1280
        %s1283 = scalar_lea.vmem %s536, 48 [#allocation4]
        %v1284 = vld [vmem:[%s1283] sm:$0xf]
        %v1285 = vld [vmem:[%s1283 + $0x4] sm:$0xf]
        %v1286 = vld [vmem:[%s1283 + $0x8] sm:$0xf]
        %v1287 = vld [vmem:[%s1283 + $0xc] sm:$0xf]
        %v1288 = vpack.c.bf16 %v1269, %v1268
        %s1289 = scalar_lea.vmem %s536, 64 [#allocation4]
        %v1290 = vld [vmem:[%s1289] sm:$0xf]
        %v1291 = vld [vmem:[%s1289 + $0x4] sm:$0xf]
        %v1292 = vld [vmem:[%s1289 + $0x8] sm:$0xf]
        %v1293 = vld [vmem:[%s1289 + $0xc] sm:$0xf]
        %v1298 = vunpack.c.l.b16 %v1290
        %v1299 = vunpack.c.l.b16 %v1291
        %v1300 = vunpack.c.l.b16 %v1292
        %v1301 = vunpack.c.l.b16 %v1293
        %v1302 = vpack.c.b16 %v1299, %v1298
        %v1303 = vpack.c.b16 %v1301, %v1300
        %v1307 = vsel %vm733, %v1288, 0
        %1309 = vmatprep.subr.bf16.mxu0 0
        %1310 = vmatpush1.bf16.msra.mxu0 %v1302
        %1311 = vmatprep.subr.bf16.mxu0 0
        %1312 = vmatpush1.bf16.msra.mxu0 %v1303
        %1313 = vmatprep.subr.bf16.mxu0 0
        %1314 = vmatpush1.bf16.msra.mxu0 0
        %1315 = vmatprep.subr.bf16.mxu0 0
        %1316 = vmatpush1.bf16.msra.mxu0 0
        %1317 = vmatprep.subr.bf16.mxu0 0
        %1318 = vmatpush1.bf16.msra.mxu0 0
        %1319 = vmatprep.subr.bf16.mxu0 0
        %1320 = vmatpush1.bf16.msra.mxu0 0
        %1321 = vmatprep.subr.bf16.mxu0 0
        %1322 = vmatpush1.bf16.msra.mxu0 0
        %1323 = vmatprep.subr.bf16.mxu0 0
        %1324 = vmatpush1.bf16.msra.mxu0 0
        %1325 = vmatprep.subr.bf16.mxu0 0
        %1326 = vmatpush1.bf16.msra.mxu0 0
        %1327 = vmatprep.subr.bf16.mxu0 0
        %1328 = vmatpush1.bf16.msra.mxu0 0
        %1329 = vmatprep.subr.bf16.mxu0 0
        %1330 = vmatpush1.bf16.msra.mxu0 0
        %1331 = vmatprep.subr.bf16.mxu0 0
        %1332 = vmatpush1.bf16.msra.mxu0 0
        %1333 = vmatprep.subr.bf16.mxu0 0
        %1334 = vmatpush1.bf16.msra.mxu0 0
        %1335 = vmatprep.subr.bf16.mxu0 0
        %1336 = vmatpush1.bf16.msra.mxu0 0
        %1337 = vmatprep.subr.bf16.mxu0 0
        %1338 = vmatpush1.bf16.msra.mxu0 0
        %1339 = vmatprep.subr.bf16.mxu0 0
        %1340 = vmatpush1.bf16.msra.mxu0 0
        %1341 = vmatprep.mubr.bf16.mxu0 0
        %1342 = vmatmul.mubr.bf16.gmra.mrb[0].mxu0 %v1307
        %v1343 = vpop.f32.mrb[0].mxu0
        %v1344 = vadd.f32 0.0, %v1343
        %v1345 = vpop.f32.mrb[0].mxu0
        %v1346 = vpop.f32.mrb[0].mxu0
        %v1347 = vadd.f32 0.0, %v1346
        %v1348 = vpop.f32.mrb[0].mxu0
        %1349 = vdwg.mxu0
        %v1354 = vunpack.c.l.b16 %v1284
        %v1355 = vunpack.c.l.b16 %v1285
        %v1356 = vunpack.c.l.b16 %v1286
        %v1357 = vunpack.c.l.b16 %v1287
        %v1358 = vpack.c.b16 %v1355, %v1354
        %v1359 = vpack.c.b16 %v1357, %v1356
        %v1363 = vsel %vm733, %v1282, 0
        %1365 = vmatprep.subr.bf16.mxu0 0
        %1366 = vmatpush1.bf16.msra.mxu0 %v1358
        %1367 = vmatprep.subr.bf16.mxu0 0
        %1368 = vmatpush1.bf16.msra.mxu0 %v1359
        %1369 = vmatprep.subr.bf16.mxu0 0
        %1370 = vmatpush1.bf16.msra.mxu0 0
        %1371 = vmatprep.subr.bf16.mxu0 0
        %1372 = vmatpush1.bf16.msra.mxu0 0
        %1373 = vmatprep.subr.bf16.mxu0 0
        %1374 = vmatpush1.bf16.msra.mxu0 0
        %1375 = vmatprep.subr.bf16.mxu0 0
        %1376 = vmatpush1.bf16.msra.mxu0 0
        %1377 = vmatprep.subr.bf16.mxu0 0
        %1378 = vmatpush1.bf16.msra.mxu0 0
        %1379 = vmatprep.subr.bf16.mxu0 0
        %1380 = vmatpush1.bf16.msra.mxu0 0
        %1381 = vmatprep.subr.bf16.mxu0 0
        %1382 = vmatpush1.bf16.msra.mxu0 0
        %1383 = vmatprep.subr.bf16.mxu0 0
        %1384 = vmatpush1.bf16.msra.mxu0 0
        %1385 = vmatprep.subr.bf16.mxu0 0
        %1386 = vmatpush1.bf16.msra.mxu0 0
        %1387 = vmatprep.subr.bf16.mxu0 0
        %1388 = vmatpush1.bf16.msra.mxu0 0
        %1389 = vmatprep.subr.bf16.mxu0 0
        %1390 = vmatpush1.bf16.msra.mxu0 0
        %1391 = vmatprep.subr.bf16.mxu0 0
        %1392 = vmatpush1.bf16.msra.mxu0 0
        %1393 = vmatprep.subr.bf16.mxu0 0
        %1394 = vmatpush1.bf16.msra.mxu0 0
        %1395 = vmatprep.subr.bf16.mxu0 0
        %1396 = vmatpush1.bf16.msra.mxu0 0
        %1397 = vmatprep.mubr.bf16.mxu0 0
        %1398 = vmatmul.mubr.bf16.gmra.mrb[0].mxu0 %v1363
        %v1399 = vpop.f32.mrb[0].mxu0
        %v1400 = vadd.f32 %v1344, %v1399
        %v1401 = vpop.f32.mrb[0].mxu0
        %v1402 = vpop.f32.mrb[0].mxu0
        %v1403 = vadd.f32 %v1347, %v1402
        %v1404 = vpop.f32.mrb[0].mxu0
        %1405 = vdwg.mxu0
        %v1406 = vrot.slane %v1268, 1
        %v1407 = vrot.slane %v1269, 1
        %v1408 = vsel %vm836, %v1406, %v1407
        %v1409 = vsel %vm836, %v1407, %v1406
        %v1410 = vsel %vm698, %v1408, 0.0
        %v1411 = vsel %vm699, %v1409, 0.0
        %v1412 = vpack.c.bf16 %v1411, %v1410
        %s1413 = scalar_lea.vmem %s536, 80 [#allocation4]
        %v1414 = vld [vmem:[%s1413] sm:$0xf]
        %v1415 = vld [vmem:[%s1413 + $0x4] sm:$0xf]
        %v1416 = vld [vmem:[%s1413 + $0x8] sm:$0xf]
        %v1417 = vld [vmem:[%s1413 + $0xc] sm:$0xf]
        %v1422 = vunpack.c.l.b16 %v1414
        %v1423 = vunpack.c.l.b16 %v1415
        %v1424 = vunpack.c.l.b16 %v1416
        %v1425 = vunpack.c.l.b16 %v1417
        %v1426 = vpack.c.b16 %v1423, %v1422
        %v1427 = vpack.c.b16 %v1425, %v1424
        %v1431 = vsel %vm733, %v1412, 0
        %1433 = vmatprep.subr.bf16.mxu0 0
        %1434 = vmatpush1.bf16.msra.mxu0 %v1426
        %1435 = vmatprep.subr.bf16.mxu0 0
        %1436 = vmatpush1.bf16.msra.mxu0 %v1427
        %1437 = vmatprep.subr.bf16.mxu0 0
        %1438 = vmatpush1.bf16.msra.mxu0 0
        %1439 = vmatprep.subr.bf16.mxu0 0
        %1440 = vmatpush1.bf16.msra.mxu0 0
        %1441 = vmatprep.subr.bf16.mxu0 0
        %1442 = vmatpush1.bf16.msra.mxu0 0
        %1443 = vmatprep.subr.bf16.mxu0 0
        %1444 = vmatpush1.bf16.msra.mxu0 0
        %1445 = vmatprep.subr.bf16.mxu0 0
        %1446 = vmatpush1.bf16.msra.mxu0 0
        %1447 = vmatprep.subr.bf16.mxu0 0
        %1448 = vmatpush1.bf16.msra.mxu0 0
        %1449 = vmatprep.subr.bf16.mxu0 0
        %1450 = vmatpush1.bf16.msra.mxu0 0
        %1451 = vmatprep.subr.bf16.mxu0 0
        %1452 = vmatpush1.bf16.msra.mxu0 0
        %1453 = vmatprep.subr.bf16.mxu0 0
        %1454 = vmatpush1.bf16.msra.mxu0 0
        %1455 = vmatprep.subr.bf16.mxu0 0
        %1456 = vmatpush1.bf16.msra.mxu0 0
        %1457 = vmatprep.subr.bf16.mxu0 0
        %1458 = vmatpush1.bf16.msra.mxu0 0
        %1459 = vmatprep.subr.bf16.mxu0 0
        %1460 = vmatpush1.bf16.msra.mxu0 0
        %1461 = vmatprep.subr.bf16.mxu0 0
        %1462 = vmatpush1.bf16.msra.mxu0 0
        %1463 = vmatprep.subr.bf16.mxu0 0
        %1464 = vmatpush1.bf16.msra.mxu0 0
        %1465 = vmatprep.mubr.bf16.mxu0 0
        %1466 = vmatmul.mubr.bf16.gmra.mrb[0].mxu0 %v1431
        %v1467 = vpop.f32.mrb[0].mxu0
        %v1468 = vadd.f32 0.0, %v1467
        %v1469 = vpop.f32.mrb[0].mxu0
        %v1470 = vpop.f32.mrb[0].mxu0
        %v1471 = vadd.f32 0.0, %v1470
        %v1472 = vpop.f32.mrb[0].mxu0
        %1473 = vdwg.mxu0
        %v1474 = vadd.f32 %v1400, %v1468
        %v1475 = vadd.f32 %v1403, %v1471
        %v1477 = vlaneseq
        %v1478 = vshrl.u32 %v1477, 7
        %v1479 = vsub.s32 0, %v1478
        %v1480 = vrot.slane %v1271, %v1479
        %v1482 = vadd.f32 %v1474, %v1480
        %v1483 = vadd.f32 %v1475, %v1480
        %v1485 = vsel %vm733, %v1482, 0
        %v1488 = vsel %vm733, %v1483, 0
        %1490 = vmatprep.subr.mxu0 0.0
        %1491 = vmatpush1.msra.mxu0 %v665
        %1492 = vmatprep.subr.mxu0 0.0
        %1493 = vmatpush1.msra.mxu0 %v666
        %1494 = vmatprep.subr.mxu0 0.0
        %1495 = vmatpush1.msra.mxu0 %v667
        %1496 = vmatprep.subr.mxu0 0.0
        %1497 = vmatpush1.msra.mxu0 %v668
        %1498 = vmatprep.subr.mxu0 0.0
        %1499 = vmatpush1.msra.mxu0 0.0
        %1500 = vmatprep.subr.mxu0 0.0
        %1501 = vmatpush1.msra.mxu0 0.0
        %1502 = vmatprep.subr.mxu0 0.0
        %1503 = vmatpush1.msra.mxu0 0.0
        %1504 = vmatprep.subr.mxu0 0.0
        %1505 = vmatpush1.msra.mxu0 0.0
        %1506 = vmatprep.subr.mxu0 0.0
        %1507 = vmatpush1.msra.mxu0 0.0
        %1508 = vmatprep.subr.mxu0 0.0
        %1509 = vmatpush1.msra.mxu0 0.0
        %1510 = vmatprep.subr.mxu0 0.0
        %1511 = vmatpush1.msra.mxu0 0.0
        %1512 = vmatprep.subr.mxu0 0.0
        %1513 = vmatpush1.msra.mxu0 0.0
        %1514 = vmatprep.subr.mxu0 0.0
        %1515 = vmatpush1.msra.mxu0 0.0
        %1516 = vmatprep.subr.mxu0 0.0
        %1517 = vmatpush1.msra.mxu0 0.0
        %1518 = vmatprep.subr.mxu0 0.0
        %1519 = vmatpush1.msra.mxu0 0.0
        %1520 = vmatprep.subr.mxu0 0.0
        %1521 = vmatpush1.msra.mxu0 0.0
        %1522 = vmatprep.subr.mxu0 0.0
        %1523 = vmatpush1.msra.mxu0 0.0
        %1524 = vmatprep.subr.mxu0 0.0
        %1525 = vmatpush1.msra.mxu0 0.0
        %1526 = vmatprep.subr.mxu0 0.0
        %1527 = vmatpush1.msra.mxu0 0.0
        %1528 = vmatprep.subr.mxu0 0.0
        %1529 = vmatpush1.msra.mxu0 0.0
        %1530 = vmatprep.subr.mxu0 0.0
        %1531 = vmatpush1.msra.mxu0 0.0
        %1532 = vmatprep.subr.mxu0 0.0
        %1533 = vmatpush1.msra.mxu0 0.0
        %1534 = vmatprep.subr.mxu0 0.0
        %1535 = vmatpush1.msra.mxu0 0.0
        %1536 = vmatprep.subr.mxu0 0.0
        %1537 = vmatpush1.msra.mxu0 0.0
        %1538 = vmatprep.subr.mxu0 0.0
        %1539 = vmatpush1.msra.mxu0 0.0
        %1540 = vmatprep.subr.mxu0 0.0
        %1541 = vmatpush1.msra.mxu0 0.0
        %1542 = vmatprep.subr.mxu0 0.0
        %1543 = vmatpush1.msra.mxu0 0.0
        %1544 = vmatprep.subr.mxu0 0.0
        %1545 = vmatpush1.msra.mxu0 0.0
        %1546 = vmatprep.subr.mxu0 0.0
        %1547 = vmatpush1.msra.mxu0 0.0
        %1548 = vmatprep.subr.mxu0 0.0
        %1549 = vmatpush1.msra.mxu0 0.0
        %1550 = vmatprep.subr.mxu0 0.0
        %1551 = vmatpush1.msra.mxu0 0.0
        %1552 = vmatprep.subr.mxu0 0.0
        %1553 = vmatpush1.msra.mxu0 0.0
        %1554 = vmatprep.mubr.f32.mxu0 0.0
        %1555 = vmatmul.mubr.f32.gmra.mrb[0].mxu0 %v1485
        %v1556 = vpop.f32.mrb[0].mxu0
        %v1557 = vadd.f32 0.0, %v1556
        %v1558 = vpop.f32.mrb[0].mxu0
        %1559 = vmatprep.mubr.f32.mxu0 0.0
        %1560 = vmatmul.mubr.f32.gmra.mrb[0].mxu0 %v1488
        %v1561 = vpop.f32.mrb[0].mxu0
        %v1562 = vadd.f32 0.0, %v1561
        %v1563 = vpop.f32.mrb[0].mxu0
        %1564 = vdwg.mxu0
        %1565 = vmatprep.subr.mxu0 0.0
        %1566 = vmatpush1.msra.mxu0 %v1557
        %1567 = vmatprep.subr.mxu0 0.0
        %1568 = vmatpush1.msra.mxu0 %v1562
        %1569 = vmatprep.subr.mxu0 0.0
        %1570 = vmatpush1.msra.mxu0 0.0
        %1571 = vmatprep.subr.mxu0 0.0
        %1572 = vmatpush1.msra.mxu0 0.0
        %1573 = vmatprep.subr.mxu0 0.0
        %1574 = vmatpush1.msra.mxu0 0.0
        %1575 = vmatprep.subr.mxu0 0.0
        %1576 = vmatpush1.msra.mxu0 0.0
        %1577 = vmatprep.subr.mxu0 0.0
        %1578 = vmatpush1.msra.mxu0 0.0
        %1579 = vmatprep.subr.mxu0 0.0
        %1580 = vmatpush1.msra.mxu0 0.0
        %1581 = vmatprep.subr.mxu0 0.0
        %1582 = vmatpush1.msra.mxu0 0.0
        %1583 = vmatprep.subr.mxu0 0.0
        %1584 = vmatpush1.msra.mxu0 0.0
        %1585 = vmatprep.subr.mxu0 0.0
        %1586 = vmatpush1.msra.mxu0 0.0
        %1587 = vmatprep.subr.mxu0 0.0
        %1588 = vmatpush1.msra.mxu0 0.0
        %1589 = vmatprep.subr.mxu0 0.0
        %1590 = vmatpush1.msra.mxu0 0.0
        %1591 = vmatprep.subr.mxu0 0.0
        %1592 = vmatpush1.msra.mxu0 0.0
        %1593 = vmatprep.subr.mxu0 0.0
        %1594 = vmatpush1.msra.mxu0 0.0
        %1595 = vmatprep.subr.mxu0 0.0
        %1596 = vmatpush1.msra.mxu0 0.0
        %1597 = vmatprep.subr.mxu0 0.0
        %1598 = vmatpush1.msra.mxu0 0.0
        %1599 = vmatprep.subr.mxu0 0.0
        %1600 = vmatpush1.msra.mxu0 0.0
        %1601 = vmatprep.subr.mxu0 0.0
        %1602 = vmatpush1.msra.mxu0 0.0
        %1603 = vmatprep.subr.mxu0 0.0
        %1604 = vmatpush1.msra.mxu0 0.0
        %1605 = vmatprep.subr.mxu0 0.0
        %1606 = vmatpush1.msra.mxu0 0.0
        %1607 = vmatprep.subr.mxu0 0.0
        %1608 = vmatpush1.msra.mxu0 0.0
        %1609 = vmatprep.subr.mxu0 0.0
        %1610 = vmatpush1.msra.mxu0 0.0
        %1611 = vmatprep.subr.mxu0 0.0
        %1612 = vmatpush1.msra.mxu0 0.0
        %1613 = vmatprep.subr.mxu0 0.0
        %1614 = vmatpush1.msra.mxu0 0.0
        %1615 = vmatprep.subr.mxu0 0.0
        %1616 = vmatpush1.msra.mxu0 0.0
        %1617 = vmatprep.subr.mxu0 0.0
        %1618 = vmatpush1.msra.mxu0 0.0
        %1619 = vmatprep.subr.mxu0 0.0
        %1620 = vmatpush1.msra.mxu0 0.0
        %1621 = vmatprep.subr.mxu0 0.0
        %1622 = vmatpush1.msra.mxu0 0.0
        %1623 = vmatprep.subr.mxu0 0.0
        %1624 = vmatpush1.msra.mxu0 0.0
        %1625 = vmatprep.subr.mxu0 0.0
        %1626 = vmatpush1.msra.mxu0 0.0
        %1627 = vmatprep.subr.mxu0 0.0
        %1628 = vmatpush1.msra.mxu0 0.0
        %1629 = vmatprep.mubr.f32.mxu0 0.0
        %1630 = vmatmul.mubr.f32.gmra.mrb[0].mxu0 %v996
        %v1631 = vpop.f32.mrb[0].mxu0
        %v1632 = vadd.f32 0.0, %v1631
        %v1633 = vpop.f32.mrb[0].mxu0
        %1634 = vmatprep.mubr.f32.mxu0 0.0
        %1635 = vmatmul.mubr.f32.gmra.mrb[0].mxu0 %v999
        %v1636 = vpop.f32.mrb[0].mxu0
        %v1637 = vadd.f32 0.0, %v1636
        %v1638 = vpop.f32.mrb[0].mxu0
        %1639 = vdwg.mxu0
        %v1640 = vsub.f32 %v1482, %v1632
        %v1641 = vsub.f32 %v1483, %v1637
        %v1642 = vmul.f32 %v1640, %v1640
        %v1643 = vmul.f32 %v1641, %v1641
        %v1645 = vsel %vm733, %v1642, 0
        %v1648 = vsel %vm733, %v1643, 0
        %1650 = vmatprep.subr.mxu0 0.0
        %1651 = vmatpush1.msra.mxu0 %v665
        %1652 = vmatprep.subr.mxu0 0.0
        %1653 = vmatpush1.msra.mxu0 %v666
        %1654 = vmatprep.subr.mxu0 0.0
        %1655 = vmatpush1.msra.mxu0 %v667
        %1656 = vmatprep.subr.mxu0 0.0
        %1657 = vmatpush1.msra.mxu0 %v668
        %1658 = vmatprep.subr.mxu0 0.0
        %1659 = vmatpush1.msra.mxu0 0.0
        %1660 = vmatprep.subr.mxu0 0.0
        %1661 = vmatpush1.msra.mxu0 0.0
        %1662 = vmatprep.subr.mxu0 0.0
        %1663 = vmatpush1.msra.mxu0 0.0
        %1664 = vmatprep.subr.mxu0 0.0
        %1665 = vmatpush1.msra.mxu0 0.0
        %1666 = vmatprep.subr.mxu0 0.0
        %1667 = vmatpush1.msra.mxu0 0.0
        %1668 = vmatprep.subr.mxu0 0.0
        %1669 = vmatpush1.msra.mxu0 0.0
        %1670 = vmatprep.subr.mxu0 0.0
        %1671 = vmatpush1.msra.mxu0 0.0
        %1672 = vmatprep.subr.mxu0 0.0
        %1673 = vmatpush1.msra.mxu0 0.0
        %1674 = vmatprep.subr.mxu0 0.0
        %1675 = vmatpush1.msra.mxu0 0.0
        %1676 = vmatprep.subr.mxu0 0.0
        %1677 = vmatpush1.msra.mxu0 0.0
        %1678 = vmatprep.subr.mxu0 0.0
        %1679 = vmatpush1.msra.mxu0 0.0
        %1680 = vmatprep.subr.mxu0 0.0
        %1681 = vmatpush1.msra.mxu0 0.0
        %1682 = vmatprep.subr.mxu0 0.0
        %1683 = vmatpush1.msra.mxu0 0.0
        %1684 = vmatprep.subr.mxu0 0.0
        %1685 = vmatpush1.msra.mxu0 0.0
        %1686 = vmatprep.subr.mxu0 0.0
        %1687 = vmatpush1.msra.mxu0 0.0
        %1688 = vmatprep.subr.mxu0 0.0
        %1689 = vmatpush1.msra.mxu0 0.0
        %1690 = vmatprep.subr.mxu0 0.0
        %1691 = vmatpush1.msra.mxu0 0.0
        %1692 = vmatprep.subr.mxu0 0.0
        %1693 = vmatpush1.msra.mxu0 0.0
        %1694 = vmatprep.subr.mxu0 0.0
        %1695 = vmatpush1.msra.mxu0 0.0
        %1696 = vmatprep.subr.mxu0 0.0
        %1697 = vmatpush1.msra.mxu0 0.0
        %1698 = vmatprep.subr.mxu0 0.0
        %1699 = vmatpush1.msra.mxu0 0.0
        %1700 = vmatprep.subr.mxu0 0.0
        %1701 = vmatpush1.msra.mxu0 0.0
        %1702 = vmatprep.subr.mxu0 0.0
        %1703 = vmatpush1.msra.mxu0 0.0
        %1704 = vmatprep.subr.mxu0 0.0
        %1705 = vmatpush1.msra.mxu0 0.0
        %1706 = vmatprep.subr.mxu0 0.0
        %1707 = vmatpush1.msra.mxu0 0.0
        %1708 = vmatprep.subr.mxu0 0.0
        %1709 = vmatpush1.msra.mxu0 0.0
        %1710 = vmatprep.subr.mxu0 0.0
        %1711 = vmatpush1.msra.mxu0 0.0
        %1712 = vmatprep.subr.mxu0 0.0
        %1713 = vmatpush1.msra.mxu0 0.0
        %1714 = vmatprep.mubr.f32.mxu0 0.0
        %1715 = vmatmul.mubr.f32.gmra.mrb[0].mxu0 %v1645
        %v1716 = vpop.f32.mrb[0].mxu0
        %v1717 = vadd.f32 0.0, %v1716
        %v1718 = vpop.f32.mrb[0].mxu0
        %1719 = vmatprep.mubr.f32.mxu0 0.0
        %1720 = vmatmul.mubr.f32.gmra.mrb[0].mxu0 %v1648
        %v1721 = vpop.f32.mrb[0].mxu0
        %v1722 = vadd.f32 0.0, %v1721
        %v1723 = vpop.f32.mrb[0].mxu0
        %1724 = vdwg.mxu0
        %1725 = vmatprep.subr.mxu0 0.0
        %1726 = vmatpush1.msra.mxu0 %v1717
        %1727 = vmatprep.subr.mxu0 0.0
        %1728 = vmatpush1.msra.mxu0 %v1722
        %1729 = vmatprep.subr.mxu0 0.0
        %1730 = vmatpush1.msra.mxu0 0.0
        %1731 = vmatprep.subr.mxu0 0.0
        %1732 = vmatpush1.msra.mxu0 0.0
        %1733 = vmatprep.subr.mxu0 0.0
        %1734 = vmatpush1.msra.mxu0 0.0
        %1735 = vmatprep.subr.mxu0 0.0
        %1736 = vmatpush1.msra.mxu0 0.0
        %1737 = vmatprep.subr.mxu0 0.0
        %1738 = vmatpush1.msra.mxu0 0.0
        %1739 = vmatprep.subr.mxu0 0.0
        %1740 = vmatpush1.msra.mxu0 0.0
        %1741 = vmatprep.subr.mxu0 0.0
        %1742 = vmatpush1.msra.mxu0 0.0
        %1743 = vmatprep.subr.mxu0 0.0
        %1744 = vmatpush1.msra.mxu0 0.0
        %1745 = vmatprep.subr.mxu0 0.0
        %1746 = vmatpush1.msra.mxu0 0.0
        %1747 = vmatprep.subr.mxu0 0.0
        %1748 = vmatpush1.msra.mxu0 0.0
        %1749 = vmatprep.subr.mxu0 0.0
        %1750 = vmatpush1.msra.mxu0 0.0
        %1751 = vmatprep.subr.mxu0 0.0
        %1752 = vmatpush1.msra.mxu0 0.0
        %1753 = vmatprep.subr.mxu0 0.0
        %1754 = vmatpush1.msra.mxu0 0.0
        %1755 = vmatprep.subr.mxu0 0.0
        %1756 = vmatpush1.msra.mxu0 0.0
        %1757 = vmatprep.subr.mxu0 0.0
        %1758 = vmatpush1.msra.mxu0 0.0
        %1759 = vmatprep.subr.mxu0 0.0
        %1760 = vmatpush1.msra.mxu0 0.0
        %1761 = vmatprep.subr.mxu0 0.0
        %1762 = vmatpush1.msra.mxu0 0.0
        %1763 = vmatprep.subr.mxu0 0.0
        %1764 = vmatpush1.msra.mxu0 0.0
        %1765 = vmatprep.subr.mxu0 0.0
        %1766 = vmatpush1.msra.mxu0 0.0
        %1767 = vmatprep.subr.mxu0 0.0
        %1768 = vmatpush1.msra.mxu0 0.0
        %1769 = vmatprep.subr.mxu0 0.0
        %1770 = vmatpush1.msra.mxu0 0.0
        %1771 = vmatprep.subr.mxu0 0.0
        %1772 = vmatpush1.msra.mxu0 0.0
        %1773 = vmatprep.subr.mxu0 0.0
        %1774 = vmatpush1.msra.mxu0 0.0
        %1775 = vmatprep.subr.mxu0 0.0
        %1776 = vmatpush1.msra.mxu0 0.0
        %1777 = vmatprep.subr.mxu0 0.0
        %1778 = vmatpush1.msra.mxu0 0.0
        %1779 = vmatprep.subr.mxu0 0.0
        %1780 = vmatpush1.msra.mxu0 0.0
        %1781 = vmatprep.subr.mxu0 0.0
        %1782 = vmatpush1.msra.mxu0 0.0
        %1783 = vmatprep.subr.mxu0 0.0
        %1784 = vmatpush1.msra.mxu0 0.0
        %1785 = vmatprep.subr.mxu0 0.0
        %1786 = vmatpush1.msra.mxu0 0.0
        %1787 = vmatprep.subr.mxu0 0.0
        %1788 = vmatpush1.msra.mxu0 0.0
        %1789 = vmatprep.mubr.f32.mxu0 0.0
        %1790 = vmatmul.mubr.f32.gmra.mrb[0].mxu0 %v996
        %v1791 = vpop.f32.mrb[0].mxu0
        %v1792 = vadd.f32 1e-05, %v1791
        %v1793 = vpop.f32.mrb[0].mxu0
        %1794 = vmatprep.mubr.f32.mxu0 0.0
        %1795 = vmatmul.mubr.f32.gmra.mrb[0].mxu0 %v999
        %v1796 = vpop.f32.mrb[0].mxu0
        %v1797 = vadd.f32 1e-05, %v1796
        %v1798 = vpop.f32.mrb[0].mxu0
        %1799 = vdwg.mxu0
        %v1800 = vrsqrt.pop %v1792
        %v1801 = vrsqrt.pop %v1797
        %v1802 = vmul.f32 %v1640, %v1800
        %v1803 = vmul.f32 %v1641, %v1801
        %v1805 = vlaneseq
        %v1806 = vshrl.u32 %v1805, 7
        %v1807 = vsub.s32 0, %v1806
        %v1808 = vrot.slane %v1273, %v1807
        %v1810 = vmul.f32 %v1802, %v1808
        %v1811 = vmul.f32 %v1803, %v1808
        %v1813 = vlaneseq
        %v1814 = vshrl.u32 %v1813, 7
        %v1815 = vsub.s32 0, %v1814
        %v1816 = vrot.slane %v1275, %v1815
        %v1818 = vadd.f32 %v1810, %v1816
        %v1819 = vadd.f32 %v1811, %v1816
        %v1820 = vxor.u32 %v1818, 2147483648
        %v1821 = vxor.u32 %v1819, 2147483648
        %v1822 = vmul.f32 %v1820, 1.442695
        %v1823 = vpow.pop %v1822
        %v1824 = vmul.f32 %v1821, 1.442695
        %v1825 = vpow.pop %v1824
        %v1826 = vadd.f32 %v1823, 1.0
        %v1827 = vadd.f32 %v1825, 1.0
        %v1828 = vrcp.pop %v1826
        %v1829 = vmul.f32 1.0, %v1828
        %v1830 = vrcp.pop %v1827
        %v1831 = vmul.f32 1.0, %v1830
        %v1832 = vmul.f32 %v1818, %v1829
        %v1833 = vmul.f32 %v1819, %v1831
        %v1834 = vadd.f32 %v1832, %v658
        %v1835 = vadd.f32 %v1833, %v659
        %s1836 = scalar_lea.vmem %s616, 2
        %v1837 = vld [vmem:[%s1836] sm:$0x1]
        %s1838 = scalar_lea.vmem %s620, 2
        %v1839 = vld [vmem:[%s1838] sm:$0x1]
        %s1840 = scalar_lea.vmem %s624, 2
        %v1841 = vld [vmem:[%s1840] sm:$0x1]
        %v1842 = vrot.slane %v1834, 7
        %v1843 = vrot.slane %v1835, 7
        %v1844 = vsel %vm705, %v1842, %v1843
        %v1845 = vsel %vm705, %v1843, %v1842
        %v1846 = vsel %vm696, %v1845, 0.0
        %v1847 = vsel %vm697, %v1844, 0.0
        %v1848 = vpack.c.bf16 %v1847, %v1846
        %s1849 = scalar_lea.vmem %s536, 96 [#allocation4]
        %v1850 = vld [vmem:[%s1849] sm:$0xf]
        %v1851 = vld [vmem:[%s1849 + $0x4] sm:$0xf]
        %v1852 = vld [vmem:[%s1849 + $0x8] sm:$0xf]
        %v1853 = vld [vmem:[%s1849 + $0xc] sm:$0xf]
        %v1854 = vpack.c.bf16 %v1835, %v1834
        %s1855 = scalar_lea.vmem %s536, 112 [#allocation4]
        %v1856 = vld [vmem:[%s1855] sm:$0xf]
        %v1857 = vld [vmem:[%s1855 + $0x4] sm:$0xf]
        %v1858 = vld [vmem:[%s1855 + $0x8] sm:$0xf]
        %v1859 = vld [vmem:[%s1855 + $0xc] sm:$0xf]
        %v1864 = vunpack.c.l.b16 %v1856
        %v1865 = vunpack.c.l.b16 %v1857
        %v1866 = vunpack.c.l.b16 %v1858
        %v1867 = vunpack.c.l.b16 %v1859
        %v1868 = vpack.c.b16 %v1865, %v1864
        %v1869 = vpack.c.b16 %v1867, %v1866
        %v1873 = vsel %vm733, %v1854, 0
        %1875 = vmatprep.subr.bf16.mxu0 0
        %1876 = vmatpush1.bf16.msra.mxu0 %v1868
        %1877 = vmatprep.subr.bf16.mxu0 0
        %1878 = vmatpush1.bf16.msra.mxu0 %v1869
        %1879 = vmatprep.subr.bf16.mxu0 0
        %1880 = vmatpush1.bf16.msra.mxu0 0
        %1881 = vmatprep.subr.bf16.mxu0 0
        %1882 = vmatpush1.bf16.msra.mxu0 0
        %1883 = vmatprep.subr.bf16.mxu0 0
        %1884 = vmatpush1.bf16.msra.mxu0 0
        %1885 = vmatprep.subr.bf16.mxu0 0
        %1886 = vmatpush1.bf16.msra.mxu0 0
        %1887 = vmatprep.subr.bf16.mxu0 0
        %1888 = vmatpush1.bf16.msra.mxu0 0
        %1889 = vmatprep.subr.bf16.mxu0 0
        %1890 = vmatpush1.bf16.msra.mxu0 0
        %1891 = vmatprep.subr.bf16.mxu0 0
        %1892 = vmatpush1.bf16.msra.mxu0 0
        %1893 = vmatprep.subr.bf16.mxu0 0
        %1894 = vmatpush1.bf16.msra.mxu0 0
        %1895 = vmatprep.subr.bf16.mxu0 0
        %1896 = vmatpush1.bf16.msra.mxu0 0
        %1897 = vmatprep.subr.bf16.mxu0 0
        %1898 = vmatpush1.bf16.msra.mxu0 0
        %1899 = vmatprep.subr.bf16.mxu0 0
        %1900 = vmatpush1.bf16.msra.mxu0 0
        %1901 = vmatprep.subr.bf16.mxu0 0
        %1902 = vmatpush1.bf16.msra.mxu0 0
        %1903 = vmatprep.subr.bf16.mxu0 0
        %1904 = vmatpush1.bf16.msra.mxu0 0
        %1905 = vmatprep.subr.bf16.mxu0 0
        %1906 = vmatpush1.bf16.msra.mxu0 0
        %1907 = vmatprep.mubr.bf16.mxu0 0
        %1908 = vmatmul.mubr.bf16.gmra.mrb[0].mxu0 %v1873
        %v1909 = vpop.f32.mrb[0].mxu0
        %v1910 = vadd.f32 0.0, %v1909
        %v1911 = vpop.f32.mrb[0].mxu0
        %v1912 = vpop.f32.mrb[0].mxu0
        %v1913 = vadd.f32 0.0, %v1912
        %v1914 = vpop.f32.mrb[0].mxu0
        %1915 = vdwg.mxu0
        %v1920 = vunpack.c.l.b16 %v1850
        %v1921 = vunpack.c.l.b16 %v1851
        %v1922 = vunpack.c.l.b16 %v1852
        %v1923 = vunpack.c.l.b16 %v1853
        %v1924 = vpack.c.b16 %v1921, %v1920
        %v1925 = vpack.c.b16 %v1923, %v1922
        %v1929 = vsel %vm733, %v1848, 0
        %1931 = vmatprep.subr.bf16.mxu0 0
        %1932 = vmatpush1.bf16.msra.mxu0 %v1924
        %1933 = vmatprep.subr.bf16.mxu0 0
        %1934 = vmatpush1.bf16.msra.mxu0 %v1925
        %1935 = vmatprep.subr.bf16.mxu0 0
        %1936 = vmatpush1.bf16.msra.mxu0 0
        %1937 = vmatprep.subr.bf16.mxu0 0
        %1938 = vmatpush1.bf16.msra.mxu0 0
        %1939 = vmatprep.subr.bf16.mxu0 0
        %1940 = vmatpush1.bf16.msra.mxu0 0
        %1941 = vmatprep.subr.bf16.mxu0 0
        %1942 = vmatpush1.bf16.msra.mxu0 0
        %1943 = vmatprep.subr.bf16.mxu0 0
        %1944 = vmatpush1.bf16.msra.mxu0 0
        %1945 = vmatprep.subr.bf16.mxu0 0
        %1946 = vmatpush1.bf16.msra.mxu0 0
        %1947 = vmatprep.subr.bf16.mxu0 0
        %1948 = vmatpush1.bf16.msra.mxu0 0
        %1949 = vmatprep.subr.bf16.mxu0 0
        %1950 = vmatpush1.bf16.msra.mxu0 0
        %1951 = vmatprep.subr.bf16.mxu0 0
        %1952 = vmatpush1.bf16.msra.mxu0 0
        %1953 = vmatprep.subr.bf16.mxu0 0
        %1954 = vmatpush1.bf16.msra.mxu0 0
        %1955 = vmatprep.subr.bf16.mxu0 0
        %1956 = vmatpush1.bf16.msra.mxu0 0
        %1957 = vmatprep.subr.bf16.mxu0 0
        %1958 = vmatpush1.bf16.msra.mxu0 0
        %1959 = vmatprep.subr.bf16.mxu0 0
        %1960 = vmatpush1.bf16.msra.mxu0 0
        %1961 = vmatprep.subr.bf16.mxu0 0
        %1962 = vmatpush1.bf16.msra.mxu0 0
        %1963 = vmatprep.mubr.bf16.mxu0 0
        %1964 = vmatmul.mubr.bf16.gmra.mrb[0].mxu0 %v1929
        %v1965 = vpop.f32.mrb[0].mxu0
        %v1966 = vadd.f32 %v1910, %v1965
        %v1967 = vpop.f32.mrb[0].mxu0
        %v1968 = vpop.f32.mrb[0].mxu0
        %v1969 = vadd.f32 %v1913, %v1968
        %v1970 = vpop.f32.mrb[0].mxu0
        %1971 = vdwg.mxu0
        %v1972 = vrot.slane %v1834, 1
        %v1973 = vrot.slane %v1835, 1
        %v1974 = vsel %vm836, %v1972, %v1973
        %v1975 = vsel %vm836, %v1973, %v1972
        %v1976 = vsel %vm698, %v1974, 0.0
        %v1977 = vsel %vm699, %v1975, 0.0
        %v1978 = vpack.c.bf16 %v1977, %v1976
        %s1979 = scalar_lea.vmem %s536, 128 [#allocation4]
        %v1980 = vld [vmem:[%s1979] sm:$0xf]
        %v1981 = vld [vmem:[%s1979 + $0x4] sm:$0xf]
        %v1982 = vld [vmem:[%s1979 + $0x8] sm:$0xf]
        %v1983 = vld [vmem:[%s1979 + $0xc] sm:$0xf]
        %v1988 = vunpack.c.l.b16 %v1980
        %v1989 = vunpack.c.l.b16 %v1981
        %v1990 = vunpack.c.l.b16 %v1982
        %v1991 = vunpack.c.l.b16 %v1983
        %v1992 = vpack.c.b16 %v1989, %v1988
        %v1993 = vpack.c.b16 %v1991, %v1990
        %v1997 = vsel %vm733, %v1978, 0
        %1999 = vmatprep.subr.bf16.mxu0 0
        %2000 = vmatpush1.bf16.msra.mxu0 %v1992
        %2001 = vmatprep.subr.bf16.mxu0 0
        %2002 = vmatpush1.bf16.msra.mxu0 %v1993
        %2003 = vmatprep.subr.bf16.mxu0 0
        %2004 = vmatpush1.bf16.msra.mxu0 0
        %2005 = vmatprep.subr.bf16.mxu0 0
        %2006 = vmatpush1.bf16.msra.mxu0 0
        %2007 = vmatprep.subr.bf16.mxu0 0
        %2008 = vmatpush1.bf16.msra.mxu0 0
        %2009 = vmatprep.subr.bf16.mxu0 0
        %2010 = vmatpush1.bf16.msra.mxu0 0
        %2011 = vmatprep.subr.bf16.mxu0 0
        %2012 = vmatpush1.bf16.msra.mxu0 0
        %2013 = vmatprep.subr.bf16.mxu0 0
        %2014 = vmatpush1.bf16.msra.mxu0 0
        %2015 = vmatprep.subr.bf16.mxu0 0
        %2016 = vmatpush1.bf16.msra.mxu0 0
        %2017 = vmatprep.subr.bf16.mxu0 0
        %2018 = vmatpush1.bf16.msra.mxu0 0
        %2019 = vmatprep.subr.bf16.mxu0 0
        %2020 = vmatpush1.bf16.msra.mxu0 0
        %2021 = vmatprep.subr.bf16.mxu0 0
        %2022 = vmatpush1.bf16.msra.mxu0 0
        %2023 = vmatprep.subr.bf16.mxu0 0
        %2024 = vmatpush1.bf16.msra.mxu0 0
        %2025 = vmatprep.subr.bf16.mxu0 0
        %2026 = vmatpush1.bf16.msra.mxu0 0
        %2027 = vmatprep.subr.bf16.mxu0 0
        %2028 = vmatpush1.bf16.msra.mxu0 0
        %2029 = vmatprep.subr.bf16.mxu0 0
        %2030 = vmatpush1.bf16.msra.mxu0 0
        %2031 = vmatprep.mubr.bf16.mxu0 0
        %2032 = vmatmul.mubr.bf16.gmra.mrb[0].mxu0 %v1997
        %v2033 = vpop.f32.mrb[0].mxu0
        %v2034 = vadd.f32 0.0, %v2033
        %v2035 = vpop.f32.mrb[0].mxu0
        %v2036 = vpop.f32.mrb[0].mxu0
        %v2037 = vadd.f32 0.0, %v2036
        %v2038 = vpop.f32.mrb[0].mxu0
        %2039 = vdwg.mxu0
        %v2040 = vadd.f32 %v1966, %v2034
        %v2041 = vadd.f32 %v1969, %v2037
        %v2043 = vlaneseq
        %v2044 = vshrl.u32 %v2043, 7
        %v2045 = vsub.s32 0, %v2044
        %v2046 = vrot.slane %v1837, %v2045
        %v2048 = vadd.f32 %v2040, %v2046
        %v2049 = vadd.f32 %v2041, %v2046
        %v2051 = vsel %vm733, %v2048, 0
        %v2054 = vsel %vm733, %v2049, 0
        %2056 = vmatprep.subr.mxu0 0.0
        %2057 = vmatpush1.msra.mxu0 %v665
        %2058 = vmatprep.subr.mxu0 0.0
        %2059 = vmatpush1.msra.mxu0 %v666
        %2060 = vmatprep.subr.mxu0 0.0
        %2061 = vmatpush1.msra.mxu0 %v667
        %2062 = vmatprep.subr.mxu0 0.0
        %2063 = vmatpush1.msra.mxu0 %v668
        %2064 = vmatprep.subr.mxu0 0.0
        %2065 = vmatpush1.msra.mxu0 0.0
        %2066 = vmatprep.subr.mxu0 0.0
        %2067 = vmatpush1.msra.mxu0 0.0
        %2068 = vmatprep.subr.mxu0 0.0
        %2069 = vmatpush1.msra.mxu0 0.0
        %2070 = vmatprep.subr.mxu0 0.0
        %2071 = vmatpush1.msra.mxu0 0.0
        %2072 = vmatprep.subr.mxu0 0.0
        %2073 = vmatpush1.msra.mxu0 0.0
        %2074 = vmatprep.subr.mxu0 0.0
        %2075 = vmatpush1.msra.mxu0 0.0
        %2076 = vmatprep.subr.mxu0 0.0
        %2077 = vmatpush1.msra.mxu0 0.0
        %2078 = vmatprep.subr.mxu0 0.0
        %2079 = vmatpush1.msra.mxu0 0.0
        %2080 = vmatprep.subr.mxu0 0.0
        %2081 = vmatpush1.msra.mxu0 0.0
        %2082 = vmatprep.subr.mxu0 0.0
        %2083 = vmatpush1.msra.mxu0 0.0
        %2084 = vmatprep.subr.mxu0 0.0
        %2085 = vmatpush1.msra.mxu0 0.0
        %2086 = vmatprep.subr.mxu0 0.0
        %2087 = vmatpush1.msra.mxu0 0.0
        %2088 = vmatprep.subr.mxu0 0.0
        %2089 = vmatpush1.msra.mxu0 0.0
        %2090 = vmatprep.subr.mxu0 0.0
        %2091 = vmatpush1.msra.mxu0 0.0
        %2092 = vmatprep.subr.mxu0 0.0
        %2093 = vmatpush1.msra.mxu0 0.0
        %2094 = vmatprep.subr.mxu0 0.0
        %2095 = vmatpush1.msra.mxu0 0.0
        %2096 = vmatprep.subr.mxu0 0.0
        %2097 = vmatpush1.msra.mxu0 0.0
        %2098 = vmatprep.subr.mxu0 0.0
        %2099 = vmatpush1.msra.mxu0 0.0
        %2100 = vmatprep.subr.mxu0 0.0
        %2101 = vmatpush1.msra.mxu0 0.0
        %2102 = vmatprep.subr.mxu0 0.0
        %2103 = vmatpush1.msra.mxu0 0.0
        %2104 = vmatprep.subr.mxu0 0.0
        %2105 = vmatpush1.msra.mxu0 0.0
        %2106 = vmatprep.subr.mxu0 0.0
        %2107 = vmatpush1.msra.mxu0 0.0
        %2108 = vmatprep.subr.mxu0 0.0
        %2109 = vmatpush1.msra.mxu0 0.0
        %2110 = vmatprep.subr.mxu0 0.0
        %2111 = vmatpush1.msra.mxu0 0.0
        %2112 = vmatprep.subr.mxu0 0.0
        %2113 = vmatpush1.msra.mxu0 0.0
        %2114 = vmatprep.subr.mxu0 0.0
        %2115 = vmatpush1.msra.mxu0 0.0
        %2116 = vmatprep.subr.mxu0 0.0
        %2117 = vmatpush1.msra.mxu0 0.0
        %2118 = vmatprep.subr.mxu0 0.0
        %2119 = vmatpush1.msra.mxu0 0.0
        %2120 = vmatprep.mubr.f32.mxu0 0.0
        %2121 = vmatmul.mubr.f32.gmra.mrb[0].mxu0 %v2051
        %v2122 = vpop.f32.mrb[0].mxu0
        %v2123 = vadd.f32 0.0, %v2122
        %v2124 = vpop.f32.mrb[0].mxu0
        %2125 = vmatprep.mubr.f32.mxu0 0.0
        %2126 = vmatmul.mubr.f32.gmra.mrb[0].mxu0 %v2054
        %v2127 = vpop.f32.mrb[0].mxu0
        %v2128 = vadd.f32 0.0, %v2127
        %v2129 = vpop.f32.mrb[0].mxu0
        %2130 = vdwg.mxu0
        %2131 = vmatprep.subr.mxu0 0.0
        %2132 = vmatpush1.msra.mxu0 %v2123
        %2133 = vmatprep.subr.mxu0 0.0
        %2134 = vmatpush1.msra.mxu0 %v2128
        %2135 = vmatprep.subr.mxu0 0.0
        %2136 = vmatpush1.msra.mxu0 0.0
        %2137 = vmatprep.subr.mxu0 0.0
        %2138 = vmatpush1.msra.mxu0 0.0
        %2139 = vmatprep.subr.mxu0 0.0
        %2140 = vmatpush1.msra.mxu0 0.0
        %2141 = vmatprep.subr.mxu0 0.0
        %2142 = vmatpush1.msra.mxu0 0.0
        %2143 = vmatprep.subr.mxu0 0.0
        %2144 = vmatpush1.msra.mxu0 0.0
        %2145 = vmatprep.subr.mxu0 0.0
        %2146 = vmatpush1.msra.mxu0 0.0
        %2147 = vmatprep.subr.mxu0 0.0
        %2148 = vmatpush1.msra.mxu0 0.0
        %2149 = vmatprep.subr.mxu0 0.0
        %2150 = vmatpush1.msra.mxu0 0.0
        %2151 = vmatprep.subr.mxu0 0.0
        %2152 = vmatpush1.msra.mxu0 0.0
        %2153 = vmatprep.subr.mxu0 0.0
        %2154 = vmatpush1.msra.mxu0 0.0
        %2155 = vmatprep.subr.mxu0 0.0
        %2156 = vmatpush1.msra.mxu0 0.0
        %2157 = vmatprep.subr.mxu0 0.0
        %2158 = vmatpush1.msra.mxu0 0.0
        %2159 = vmatprep.subr.mxu0 0.0
        %2160 = vmatpush1.msra.mxu0 0.0
        %2161 = vmatprep.subr.mxu0 0.0
        %2162 = vmatpush1.msra.mxu0 0.0
        %2163 = vmatprep.subr.mxu0 0.0
        %2164 = vmatpush1.msra.mxu0 0.0
        %2165 = vmatprep.subr.mxu0 0.0
        %2166 = vmatpush1.msra.mxu0 0.0
        %2167 = vmatprep.subr.mxu0 0.0
        %2168 = vmatpush1.msra.mxu0 0.0
        %2169 = vmatprep.subr.mxu0 0.0
        %2170 = vmatpush1.msra.mxu0 0.0
        %2171 = vmatprep.subr.mxu0 0.0
        %2172 = vmatpush1.msra.mxu0 0.0
        %2173 = vmatprep.subr.mxu0 0.0
        %2174 = vmatpush1.msra.mxu0 0.0
        %2175 = vmatprep.subr.mxu0 0.0
        %2176 = vmatpush1.msra.mxu0 0.0
        %2177 = vmatprep.subr.mxu0 0.0
        %2178 = vmatpush1.msra.mxu0 0.0
        %2179 = vmatprep.subr.mxu0 0.0
        %2180 = vmatpush1.msra.mxu0 0.0
        %2181 = vmatprep.subr.mxu0 0.0
        %2182 = vmatpush1.msra.mxu0 0.0
        %2183 = vmatprep.subr.mxu0 0.0
        %2184 = vmatpush1.msra.mxu0 0.0
        %2185 = vmatprep.subr.mxu0 0.0
        %2186 = vmatpush1.msra.mxu0 0.0
        %2187 = vmatprep.subr.mxu0 0.0
        %2188 = vmatpush1.msra.mxu0 0.0
        %2189 = vmatprep.subr.mxu0 0.0
        %2190 = vmatpush1.msra.mxu0 0.0
        %2191 = vmatprep.subr.mxu0 0.0
        %2192 = vmatpush1.msra.mxu0 0.0
        %2193 = vmatprep.subr.mxu0 0.0
        %2194 = vmatpush1.msra.mxu0 0.0
        %2195 = vmatprep.mubr.f32.mxu0 0.0
        %2196 = vmatmul.mubr.f32.gmra.mrb[0].mxu0 %v996
        %v2197 = vpop.f32.mrb[0].mxu0
        %v2198 = vadd.f32 0.0, %v2197
        %v2199 = vpop.f32.mrb[0].mxu0
        %2200 = vmatprep.mubr.f32.mxu0 0.0
        %2201 = vmatmul.mubr.f32.gmra.mrb[0].mxu0 %v999
        %v2202 = vpop.f32.mrb[0].mxu0
        %v2203 = vadd.f32 0.0, %v2202
        %v2204 = vpop.f32.mrb[0].mxu0
        %2205 = vdwg.mxu0
        %v2206 = vsub.f32 %v2048, %v2198
        %v2207 = vsub.f32 %v2049, %v2203
        %v2208 = vmul.f32 %v2206, %v2206
        %v2209 = vmul.f32 %v2207, %v2207
        %v2211 = vsel %vm733, %v2208, 0
        %v2214 = vsel %vm733, %v2209, 0
        %2216 = vmatprep.subr.mxu0 0.0
        %2217 = vmatpush1.msra.mxu0 %v665
        %2218 = vmatprep.subr.mxu0 0.0
        %2219 = vmatpush1.msra.mxu0 %v666
        %2220 = vmatprep.subr.mxu0 0.0
        %2221 = vmatpush1.msra.mxu0 %v667
        %2222 = vmatprep.subr.mxu0 0.0
        %2223 = vmatpush1.msra.mxu0 %v668
        %2224 = vmatprep.subr.mxu0 0.0
        %2225 = vmatpush1.msra.mxu0 0.0
        %2226 = vmatprep.subr.mxu0 0.0
        %2227 = vmatpush1.msra.mxu0 0.0
        %2228 = vmatprep.subr.mxu0 0.0
        %2229 = vmatpush1.msra.mxu0 0.0
        %2230 = vmatprep.subr.mxu0 0.0
        %2231 = vmatpush1.msra.mxu0 0.0
        %2232 = vmatprep.subr.mxu0 0.0
        %2233 = vmatpush1.msra.mxu0 0.0
        %2234 = vmatprep.subr.mxu0 0.0
        %2235 = vmatpush1.msra.mxu0 0.0
        %2236 = vmatprep.subr.mxu0 0.0
        %2237 = vmatpush1.msra.mxu0 0.0
        %2238 = vmatprep.subr.mxu0 0.0
        %2239 = vmatpush1.msra.mxu0 0.0
        %2240 = vmatprep.subr.mxu0 0.0
        %2241 = vmatpush1.msra.mxu0 0.0
        %2242 = vmatprep.subr.mxu0 0.0
        %2243 = vmatpush1.msra.mxu0 0.0
        %2244 = vmatprep.subr.mxu0 0.0
        %2245 = vmatpush1.msra.mxu0 0.0
        %2246 = vmatprep.subr.mxu0 0.0
        %2247 = vmatpush1.msra.mxu0 0.0
        %2248 = vmatprep.subr.mxu0 0.0
        %2249 = vmatpush1.msra.mxu0 0.0
        %2250 = vmatprep.subr.mxu0 0.0
        %2251 = vmatpush1.msra.mxu0 0.0
        %2252 = vmatprep.subr.mxu0 0.0
        %2253 = vmatpush1.msra.mxu0 0.0
        %2254 = vmatprep.subr.mxu0 0.0
        %2255 = vmatpush1.msra.mxu0 0.0
        %2256 = vmatprep.subr.mxu0 0.0
        %2257 = vmatpush1.msra.mxu0 0.0
        %2258 = vmatprep.subr.mxu0 0.0
        %2259 = vmatpush1.msra.mxu0 0.0
        %2260 = vmatprep.subr.mxu0 0.0
        %2261 = vmatpush1.msra.mxu0 0.0
        %2262 = vmatprep.subr.mxu0 0.0
        %2263 = vmatpush1.msra.mxu0 0.0
        %2264 = vmatprep.subr.mxu0 0.0
        %2265 = vmatpush1.msra.mxu0 0.0
        %2266 = vmatprep.subr.mxu0 0.0
        %2267 = vmatpush1.msra.mxu0 0.0
        %2268 = vmatprep.subr.mxu0 0.0
        %2269 = vmatpush1.msra.mxu0 0.0
        %2270 = vmatprep.subr.mxu0 0.0
        %2271 = vmatpush1.msra.mxu0 0.0
        %2272 = vmatprep.subr.mxu0 0.0
        %2273 = vmatpush1.msra.mxu0 0.0
        %2274 = vmatprep.subr.mxu0 0.0
        %2275 = vmatpush1.msra.mxu0 0.0
        %2276 = vmatprep.subr.mxu0 0.0
        %2277 = vmatpush1.msra.mxu0 0.0
        %2278 = vmatprep.subr.mxu0 0.0
        %2279 = vmatpush1.msra.mxu0 0.0
        %2280 = vmatprep.mubr.f32.mxu0 0.0
        %2281 = vmatmul.mubr.f32.gmra.mrb[0].mxu0 %v2211
        %v2282 = vpop.f32.mrb[0].mxu0
        %v2283 = vadd.f32 0.0, %v2282
        %v2284 = vpop.f32.mrb[0].mxu0
        %2285 = vmatprep.mubr.f32.mxu0 0.0
        %2286 = vmatmul.mubr.f32.gmra.mrb[0].mxu0 %v2214
        %v2287 = vpop.f32.mrb[0].mxu0
        %v2288 = vadd.f32 0.0, %v2287
        %v2289 = vpop.f32.mrb[0].mxu0
        %2290 = vdwg.mxu0
        %2291 = vmatprep.subr.mxu0 0.0
        %2292 = vmatpush1.msra.mxu0 %v2283
        %2293 = vmatprep.subr.mxu0 0.0
        %2294 = vmatpush1.msra.mxu0 %v2288
        %2295 = vmatprep.subr.mxu0 0.0
        %2296 = vmatpush1.msra.mxu0 0.0
        %2297 = vmatprep.subr.mxu0 0.0
        %2298 = vmatpush1.msra.mxu0 0.0
        %2299 = vmatprep.subr.mxu0 0.0
        %2300 = vmatpush1.msra.mxu0 0.0
        %2301 = vmatprep.subr.mxu0 0.0
        %2302 = vmatpush1.msra.mxu0 0.0
        %2303 = vmatprep.subr.mxu0 0.0
        %2304 = vmatpush1.msra.mxu0 0.0
        %2305 = vmatprep.subr.mxu0 0.0
        %2306 = vmatpush1.msra.mxu0 0.0
        %2307 = vmatprep.subr.mxu0 0.0
        %2308 = vmatpush1.msra.mxu0 0.0
        %2309 = vmatprep.subr.mxu0 0.0
        %2310 = vmatpush1.msra.mxu0 0.0
        %2311 = vmatprep.subr.mxu0 0.0
        %2312 = vmatpush1.msra.mxu0 0.0
        %2313 = vmatprep.subr.mxu0 0.0
        %2314 = vmatpush1.msra.mxu0 0.0
        %2315 = vmatprep.subr.mxu0 0.0
        %2316 = vmatpush1.msra.mxu0 0.0
        %2317 = vmatprep.subr.mxu0 0.0
        %2318 = vmatpush1.msra.mxu0 0.0
        %2319 = vmatprep.subr.mxu0 0.0
        %2320 = vmatpush1.msra.mxu0 0.0
        %2321 = vmatprep.subr.mxu0 0.0
        %2322 = vmatpush1.msra.mxu0 0.0
        %2323 = vmatprep.subr.mxu0 0.0
        %2324 = vmatpush1.msra.mxu0 0.0
        %2325 = vmatprep.subr.mxu0 0.0
        %2326 = vmatpush1.msra.mxu0 0.0
        %2327 = vmatprep.subr.mxu0 0.0
        %2328 = vmatpush1.msra.mxu0 0.0
        %2329 = vmatprep.subr.mxu0 0.0
        %2330 = vmatpush1.msra.mxu0 0.0
        %2331 = vmatprep.subr.mxu0 0.0
        %2332 = vmatpush1.msra.mxu0 0.0
        %2333 = vmatprep.subr.mxu0 0.0
        %2334 = vmatpush1.msra.mxu0 0.0
        %2335 = vmatprep.subr.mxu0 0.0
        %2336 = vmatpush1.msra.mxu0 0.0
        %2337 = vmatprep.subr.mxu0 0.0
        %2338 = vmatpush1.msra.mxu0 0.0
        %2339 = vmatprep.subr.mxu0 0.0
        %2340 = vmatpush1.msra.mxu0 0.0
        %2341 = vmatprep.subr.mxu0 0.0
        %2342 = vmatpush1.msra.mxu0 0.0
        %2343 = vmatprep.subr.mxu0 0.0
        %2344 = vmatpush1.msra.mxu0 0.0
        %2345 = vmatprep.subr.mxu0 0.0
        %2346 = vmatpush1.msra.mxu0 0.0
        %2347 = vmatprep.subr.mxu0 0.0
        %2348 = vmatpush1.msra.mxu0 0.0
        %2349 = vmatprep.subr.mxu0 0.0
        %2350 = vmatpush1.msra.mxu0 0.0
        %2351 = vmatprep.subr.mxu0 0.0
        %2352 = vmatpush1.msra.mxu0 0.0
        %2353 = vmatprep.subr.mxu0 0.0
        %2354 = vmatpush1.msra.mxu0 0.0
        %2355 = vmatprep.mubr.f32.mxu0 0.0
        %2356 = vmatmul.mubr.f32.gmra.mrb[0].mxu0 %v996
        %v2357 = vpop.f32.mrb[0].mxu0
        %v2358 = vadd.f32 1e-05, %v2357
        %v2359 = vpop.f32.mrb[0].mxu0
        %2360 = vmatprep.mubr.f32.mxu0 0.0
        %2361 = vmatmul.mubr.f32.gmra.mrb[0].mxu0 %v999
        %v2362 = vpop.f32.mrb[0].mxu0
        %v2363 = vadd.f32 1e-05, %v2362
        %v2364 = vpop.f32.mrb[0].mxu0
        %2365 = vdwg.mxu0
        %v2366 = vrsqrt.pop %v2358
        %v2367 = vrsqrt.pop %v2363
        %v2368 = vmul.f32 %v2206, %v2366
        %v2369 = vmul.f32 %v2207, %v2367
        %v2371 = vlaneseq
        %v2372 = vshrl.u32 %v2371, 7
        %v2373 = vsub.s32 0, %v2372
        %v2374 = vrot.slane %v1839, %v2373
        %v2376 = vmul.f32 %v2368, %v2374
        %v2377 = vmul.f32 %v2369, %v2374
        %v2379 = vlaneseq
        %v2380 = vshrl.u32 %v2379, 7
        %v2381 = vsub.s32 0, %v2380
        %v2382 = vrot.slane %v1841, %v2381
        %v2384 = vadd.f32 %v2376, %v2382
        %v2385 = vadd.f32 %v2377, %v2382
        %v2386 = vxor.u32 %v2384, 2147483648
        %v2387 = vxor.u32 %v2385, 2147483648
        %v2388 = vmul.f32 %v2386, 1.442695
        %v2389 = vpow.pop %v2388
        %v2390 = vmul.f32 %v2387, 1.442695
        %v2391 = vpow.pop %v2390
        %v2392 = vadd.f32 %v2389, 1.0
        %v2393 = vadd.f32 %v2391, 1.0
        %v2394 = vrcp.pop %v2392
        %v2395 = vmul.f32 1.0, %v2394
        %v2396 = vrcp.pop %v2393
        %v2397 = vmul.f32 1.0, %v2396
        %v2398 = vmul.f32 %v2384, %v2395
        %v2399 = vmul.f32 %v2385, %v2397
        %s2400 = scalar_lea.vmem %s616, 3
        %v2401 = vld [vmem:[%s2400] sm:$0x1]
        %s2402 = scalar_lea.vmem %s620, 3
        %v2403 = vld [vmem:[%s2402] sm:$0x1]
        %s2404 = scalar_lea.vmem %s624, 3
        %v2405 = vld [vmem:[%s2404] sm:$0x1]
        %v2406 = vrot.slane %v2398, 7
        %v2407 = vrot.slane %v2399, 7
        %v2408 = vsel %vm705, %v2406, %v2407
        %v2409 = vsel %vm705, %v2407, %v2406
        %v2410 = vsel %vm696, %v2409, 0.0
        %v2411 = vsel %vm697, %v2408, 0.0
        %v2412 = vpack.c.bf16 %v2411, %v2410
        %s2413 = scalar_lea.vmem %s536, 144 [#allocation4]
        %v2414 = vld [vmem:[%s2413] sm:$0xf]
        %v2415 = vld [vmem:[%s2413 + $0x4] sm:$0xf]
        %v2416 = vld [vmem:[%s2413 + $0x8] sm:$0xf]
        %v2417 = vld [vmem:[%s2413 + $0xc] sm:$0xf]
        %v2418 = vpack.c.bf16 %v2399, %v2398
        %s2419 = scalar_lea.vmem %s536, 160 [#allocation4]
        %v2420 = vld [vmem:[%s2419] sm:$0xf]
        %v2421 = vld [vmem:[%s2419 + $0x4] sm:$0xf]
        %v2422 = vld [vmem:[%s2419 + $0x8] sm:$0xf]
        %v2423 = vld [vmem:[%s2419 + $0xc] sm:$0xf]
        %v2428 = vunpack.c.l.b16 %v2420
        %v2429 = vunpack.c.l.b16 %v2421
        %v2430 = vunpack.c.l.b16 %v2422
        %v2431 = vunpack.c.l.b16 %v2423
        %v2432 = vpack.c.b16 %v2429, %v2428
        %v2433 = vpack.c.b16 %v2431, %v2430
        %v2437 = vsel %vm733, %v2418, 0
        %2439 = vmatprep.subr.bf16.mxu0 0
        %2440 = vmatpush1.bf16.msra.mxu0 %v2432
        %2441 = vmatprep.subr.bf16.mxu0 0
        %2442 = vmatpush1.bf16.msra.mxu0 %v2433
        %2443 = vmatprep.subr.bf16.mxu0 0
        %2444 = vmatpush1.bf16.msra.mxu0 0
        %2445 = vmatprep.subr.bf16.mxu0 0
        %2446 = vmatpush1.bf16.msra.mxu0 0
        %2447 = vmatprep.subr.bf16.mxu0 0
        %2448 = vmatpush1.bf16.msra.mxu0 0
        %2449 = vmatprep.subr.bf16.mxu0 0
        %2450 = vmatpush1.bf16.msra.mxu0 0
        %2451 = vmatprep.subr.bf16.mxu0 0
        %2452 = vmatpush1.bf16.msra.mxu0 0
        %2453 = vmatprep.subr.bf16.mxu0 0
        %2454 = vmatpush1.bf16.msra.mxu0 0
        %2455 = vmatprep.subr.bf16.mxu0 0
        %2456 = vmatpush1.bf16.msra.mxu0 0
        %2457 = vmatprep.subr.bf16.mxu0 0
        %2458 = vmatpush1.bf16.msra.mxu0 0
        %2459 = vmatprep.subr.bf16.mxu0 0
        %2460 = vmatpush1.bf16.msra.mxu0 0
        %2461 = vmatprep.subr.bf16.mxu0 0
        %2462 = vmatpush1.bf16.msra.mxu0 0
        %2463 = vmatprep.subr.bf16.mxu0 0
        %2464 = vmatpush1.bf16.msra.mxu0 0
        %2465 = vmatprep.subr.bf16.mxu0 0
        %2466 = vmatpush1.bf16.msra.mxu0 0
        %2467 = vmatprep.subr.bf16.mxu0 0
        %2468 = vmatpush1.bf16.msra.mxu0 0
        %2469 = vmatprep.subr.bf16.mxu0 0
        %2470 = vmatpush1.bf16.msra.mxu0 0
        %2471 = vmatprep.mubr.bf16.mxu0 0
        %2472 = vmatmul.mubr.bf16.gmra.mrb[0].mxu0 %v2437
        %v2473 = vpop.f32.mrb[0].mxu0
        %v2474 = vadd.f32 0.0, %v2473
        %v2475 = vpop.f32.mrb[0].mxu0
        %v2476 = vpop.f32.mrb[0].mxu0
        %v2477 = vadd.f32 0.0, %v2476
        %v2478 = vpop.f32.mrb[0].mxu0
        %2479 = vdwg.mxu0
        %v2484 = vunpack.c.l.b16 %v2414
        %v2485 = vunpack.c.l.b16 %v2415
        %v2486 = vunpack.c.l.b16 %v2416
        %v2487 = vunpack.c.l.b16 %v2417
        %v2488 = vpack.c.b16 %v2485, %v2484
        %v2489 = vpack.c.b16 %v2487, %v2486
        %v2493 = vsel %vm733, %v2412, 0
        %2495 = vmatprep.subr.bf16.mxu0 0
        %2496 = vmatpush1.bf16.msra.mxu0 %v2488
        %2497 = vmatprep.subr.bf16.mxu0 0
        %2498 = vmatpush1.bf16.msra.mxu0 %v2489
        %2499 = vmatprep.subr.bf16.mxu0 0
        %2500 = vmatpush1.bf16.msra.mxu0 0
        %2501 = vmatprep.subr.bf16.mxu0 0
        %2502 = vmatpush1.bf16.msra.mxu0 0
        %2503 = vmatprep.subr.bf16.mxu0 0
        %2504 = vmatpush1.bf16.msra.mxu0 0
        %2505 = vmatprep.subr.bf16.mxu0 0
        %2506 = vmatpush1.bf16.msra.mxu0 0
        %2507 = vmatprep.subr.bf16.mxu0 0
        %2508 = vmatpush1.bf16.msra.mxu0 0
        %2509 = vmatprep.subr.bf16.mxu0 0
        %2510 = vmatpush1.bf16.msra.mxu0 0
        %2511 = vmatprep.subr.bf16.mxu0 0
        %2512 = vmatpush1.bf16.msra.mxu0 0
        %2513 = vmatprep.subr.bf16.mxu0 0
        %2514 = vmatpush1.bf16.msra.mxu0 0
        %2515 = vmatprep.subr.bf16.mxu0 0
        %2516 = vmatpush1.bf16.msra.mxu0 0
        %2517 = vmatprep.subr.bf16.mxu0 0
        %2518 = vmatpush1.bf16.msra.mxu0 0
        %2519 = vmatprep.subr.bf16.mxu0 0
        %2520 = vmatpush1.bf16.msra.mxu0 0
        %2521 = vmatprep.subr.bf16.mxu0 0
        %2522 = vmatpush1.bf16.msra.mxu0 0
        %2523 = vmatprep.subr.bf16.mxu0 0
        %2524 = vmatpush1.bf16.msra.mxu0 0
        %2525 = vmatprep.subr.bf16.mxu0 0
        %2526 = vmatpush1.bf16.msra.mxu0 0
        %2527 = vmatprep.mubr.bf16.mxu0 0
        %2528 = vmatmul.mubr.bf16.gmra.mrb[0].mxu0 %v2493
        %v2529 = vpop.f32.mrb[0].mxu0
        %v2530 = vadd.f32 %v2474, %v2529
        %v2531 = vpop.f32.mrb[0].mxu0
        %v2532 = vpop.f32.mrb[0].mxu0
        %v2533 = vadd.f32 %v2477, %v2532
        %v2534 = vpop.f32.mrb[0].mxu0
        %2535 = vdwg.mxu0
        %v2536 = vrot.slane %v2398, 1
        %v2537 = vrot.slane %v2399, 1
        %v2538 = vsel %vm836, %v2536, %v2537
        %v2539 = vsel %vm836, %v2537, %v2536
        %v2540 = vsel %vm698, %v2538, 0.0
        %v2541 = vsel %vm699, %v2539, 0.0
        %v2542 = vpack.c.bf16 %v2541, %v2540
        %s2543 = scalar_lea.vmem %s536, 176 [#allocation4]
        %v2544 = vld [vmem:[%s2543] sm:$0xf]
        %v2545 = vld [vmem:[%s2543 + $0x4] sm:$0xf]
        %v2546 = vld [vmem:[%s2543 + $0x8] sm:$0xf]
        %v2547 = vld [vmem:[%s2543 + $0xc] sm:$0xf]
        %v2552 = vunpack.c.l.b16 %v2544
        %v2553 = vunpack.c.l.b16 %v2545
        %v2554 = vunpack.c.l.b16 %v2546
        %v2555 = vunpack.c.l.b16 %v2547
        %v2556 = vpack.c.b16 %v2553, %v2552
        %v2557 = vpack.c.b16 %v2555, %v2554
        %v2561 = vsel %vm733, %v2542, 0
        %2563 = vmatprep.subr.bf16.mxu0 0
        %2564 = vmatpush1.bf16.msra.mxu0 %v2556
        %2565 = vmatprep.subr.bf16.mxu0 0
        %2566 = vmatpush1.bf16.msra.mxu0 %v2557
        %2567 = vmatprep.subr.bf16.mxu0 0
        %2568 = vmatpush1.bf16.msra.mxu0 0
        %2569 = vmatprep.subr.bf16.mxu0 0
        %2570 = vmatpush1.bf16.msra.mxu0 0
        %2571 = vmatprep.subr.bf16.mxu0 0
        %2572 = vmatpush1.bf16.msra.mxu0 0
        %2573 = vmatprep.subr.bf16.mxu0 0
        %2574 = vmatpush1.bf16.msra.mxu0 0
        %2575 = vmatprep.subr.bf16.mxu0 0
        %2576 = vmatpush1.bf16.msra.mxu0 0
        %2577 = vmatprep.subr.bf16.mxu0 0
        %2578 = vmatpush1.bf16.msra.mxu0 0
        %2579 = vmatprep.subr.bf16.mxu0 0
        %2580 = vmatpush1.bf16.msra.mxu0 0
        %2581 = vmatprep.subr.bf16.mxu0 0
        %2582 = vmatpush1.bf16.msra.mxu0 0
        %2583 = vmatprep.subr.bf16.mxu0 0
        %2584 = vmatpush1.bf16.msra.mxu0 0
        %2585 = vmatprep.subr.bf16.mxu0 0
        %2586 = vmatpush1.bf16.msra.mxu0 0
        %2587 = vmatprep.subr.bf16.mxu0 0
        %2588 = vmatpush1.bf16.msra.mxu0 0
        %2589 = vmatprep.subr.bf16.mxu0 0
        %2590 = vmatpush1.bf16.msra.mxu0 0
        %2591 = vmatprep.subr.bf16.mxu0 0
        %2592 = vmatpush1.bf16.msra.mxu0 0
        %2593 = vmatprep.subr.bf16.mxu0 0
        %2594 = vmatpush1.bf16.msra.mxu0 0
        %2595 = vmatprep.mubr.bf16.mxu0 0
        %2596 = vmatmul.mubr.bf16.gmra.mrb[0].mxu0 %v2561
        %v2597 = vpop.f32.mrb[0].mxu0
        %v2598 = vadd.f32 0.0, %v2597
        %v2599 = vpop.f32.mrb[0].mxu0
        %v2600 = vpop.f32.mrb[0].mxu0
        %v2601 = vadd.f32 0.0, %v2600
        %v2602 = vpop.f32.mrb[0].mxu0
        %2603 = vdwg.mxu0
        %v2604 = vadd.f32 %v2530, %v2598
        %v2605 = vadd.f32 %v2533, %v2601
        %v2607 = vlaneseq
        %v2608 = vshrl.u32 %v2607, 7
        %v2609 = vsub.s32 0, %v2608
        %v2610 = vrot.slane %v2401, %v2609
        %v2612 = vadd.f32 %v2604, %v2610
        %v2613 = vadd.f32 %v2605, %v2610
        %v2615 = vsel %vm733, %v2612, 0
        %v2618 = vsel %vm733, %v2613, 0
        %2620 = vmatprep.subr.mxu0 0.0
        %2621 = vmatpush1.msra.mxu0 %v665
        %2622 = vmatprep.subr.mxu0 0.0
        %2623 = vmatpush1.msra.mxu0 %v666
        %2624 = vmatprep.subr.mxu0 0.0
        %2625 = vmatpush1.msra.mxu0 %v667
        %2626 = vmatprep.subr.mxu0 0.0
        %2627 = vmatpush1.msra.mxu0 %v668
        %2628 = vmatprep.subr.mxu0 0.0
        %2629 = vmatpush1.msra.mxu0 0.0
        %2630 = vmatprep.subr.mxu0 0.0
        %2631 = vmatpush1.msra.mxu0 0.0
        %2632 = vmatprep.subr.mxu0 0.0
        %2633 = vmatpush1.msra.mxu0 0.0
        %2634 = vmatprep.subr.mxu0 0.0
        %2635 = vmatpush1.msra.mxu0 0.0
        %2636 = vmatprep.subr.mxu0 0.0
        %2637 = vmatpush1.msra.mxu0 0.0
        %2638 = vmatprep.subr.mxu0 0.0
        %2639 = vmatpush1.msra.mxu0 0.0
        %2640 = vmatprep.subr.mxu0 0.0
        %2641 = vmatpush1.msra.mxu0 0.0
        %2642 = vmatprep.subr.mxu0 0.0
        %2643 = vmatpush1.msra.mxu0 0.0
        %2644 = vmatprep.subr.mxu0 0.0
        %2645 = vmatpush1.msra.mxu0 0.0
        %2646 = vmatprep.subr.mxu0 0.0
        %2647 = vmatpush1.msra.mxu0 0.0
        %2648 = vmatprep.subr.mxu0 0.0
        %2649 = vmatpush1.msra.mxu0 0.0
        %2650 = vmatprep.subr.mxu0 0.0
        %2651 = vmatpush1.msra.mxu0 0.0
        %2652 = vmatprep.subr.mxu0 0.0
        %2653 = vmatpush1.msra.mxu0 0.0
        %2654 = vmatprep.subr.mxu0 0.0
        %2655 = vmatpush1.msra.mxu0 0.0
        %2656 = vmatprep.subr.mxu0 0.0
        %2657 = vmatpush1.msra.mxu0 0.0
        %2658 = vmatprep.subr.mxu0 0.0
        %2659 = vmatpush1.msra.mxu0 0.0
        %2660 = vmatprep.subr.mxu0 0.0
        %2661 = vmatpush1.msra.mxu0 0.0
        %2662 = vmatprep.subr.mxu0 0.0
        %2663 = vmatpush1.msra.mxu0 0.0
        %2664 = vmatprep.subr.mxu0 0.0
        %2665 = vmatpush1.msra.mxu0 0.0
        %2666 = vmatprep.subr.mxu0 0.0
        %2667 = vmatpush1.msra.mxu0 0.0
        %2668 = vmatprep.subr.mxu0 0.0
        %2669 = vmatpush1.msra.mxu0 0.0
        %2670 = vmatprep.subr.mxu0 0.0
        %2671 = vmatpush1.msra.mxu0 0.0
        %2672 = vmatprep.subr.mxu0 0.0
        %2673 = vmatpush1.msra.mxu0 0.0
        %2674 = vmatprep.subr.mxu0 0.0
        %2675 = vmatpush1.msra.mxu0 0.0
        %2676 = vmatprep.subr.mxu0 0.0
        %2677 = vmatpush1.msra.mxu0 0.0
        %2678 = vmatprep.subr.mxu0 0.0
        %2679 = vmatpush1.msra.mxu0 0.0
        %2680 = vmatprep.subr.mxu0 0.0
        %2681 = vmatpush1.msra.mxu0 0.0
        %2682 = vmatprep.subr.mxu0 0.0
        %2683 = vmatpush1.msra.mxu0 0.0
        %2684 = vmatprep.mubr.f32.mxu0 0.0
        %2685 = vmatmul.mubr.f32.gmra.mrb[0].mxu0 %v2615
        %v2686 = vpop.f32.mrb[0].mxu0
        %v2687 = vadd.f32 0.0, %v2686
        %v2688 = vpop.f32.mrb[0].mxu0
        %2689 = vmatprep.mubr.f32.mxu0 0.0
        %2690 = vmatmul.mubr.f32.gmra.mrb[0].mxu0 %v2618
        %v2691 = vpop.f32.mrb[0].mxu0
        %v2692 = vadd.f32 0.0, %v2691
        %v2693 = vpop.f32.mrb[0].mxu0
        %2694 = vdwg.mxu0
        %2695 = vmatprep.subr.mxu0 0.0
        %2696 = vmatpush1.msra.mxu0 %v2687
        %2697 = vmatprep.subr.mxu0 0.0
        %2698 = vmatpush1.msra.mxu0 %v2692
        %2699 = vmatprep.subr.mxu0 0.0
        %2700 = vmatpush1.msra.mxu0 0.0
        %2701 = vmatprep.subr.mxu0 0.0
        %2702 = vmatpush1.msra.mxu0 0.0
        %2703 = vmatprep.subr.mxu0 0.0
        %2704 = vmatpush1.msra.mxu0 0.0
        %2705 = vmatprep.subr.mxu0 0.0
        %2706 = vmatpush1.msra.mxu0 0.0
        %2707 = vmatprep.subr.mxu0 0.0
        %2708 = vmatpush1.msra.mxu0 0.0
        %2709 = vmatprep.subr.mxu0 0.0
        %2710 = vmatpush1.msra.mxu0 0.0
        %2711 = vmatprep.subr.mxu0 0.0
        %2712 = vmatpush1.msra.mxu0 0.0
        %2713 = vmatprep.subr.mxu0 0.0
        %2714 = vmatpush1.msra.mxu0 0.0
        %2715 = vmatprep.subr.mxu0 0.0
        %2716 = vmatpush1.msra.mxu0 0.0
        %2717 = vmatprep.subr.mxu0 0.0
        %2718 = vmatpush1.msra.mxu0 0.0
        %2719 = vmatprep.subr.mxu0 0.0
        %2720 = vmatpush1.msra.mxu0 0.0
        %2721 = vmatprep.subr.mxu0 0.0
        %2722 = vmatpush1.msra.mxu0 0.0
        %2723 = vmatprep.subr.mxu0 0.0
        %2724 = vmatpush1.msra.mxu0 0.0
        %2725 = vmatprep.subr.mxu0 0.0
        %2726 = vmatpush1.msra.mxu0 0.0
        %2727 = vmatprep.subr.mxu0 0.0
        %2728 = vmatpush1.msra.mxu0 0.0
        %2729 = vmatprep.subr.mxu0 0.0
        %2730 = vmatpush1.msra.mxu0 0.0
        %2731 = vmatprep.subr.mxu0 0.0
        %2732 = vmatpush1.msra.mxu0 0.0
        %2733 = vmatprep.subr.mxu0 0.0
        %2734 = vmatpush1.msra.mxu0 0.0
        %2735 = vmatprep.subr.mxu0 0.0
        %2736 = vmatpush1.msra.mxu0 0.0
        %2737 = vmatprep.subr.mxu0 0.0
        %2738 = vmatpush1.msra.mxu0 0.0
        %2739 = vmatprep.subr.mxu0 0.0
        %2740 = vmatpush1.msra.mxu0 0.0
        %2741 = vmatprep.subr.mxu0 0.0
        %2742 = vmatpush1.msra.mxu0 0.0
        %2743 = vmatprep.subr.mxu0 0.0
        %2744 = vmatpush1.msra.mxu0 0.0
        %2745 = vmatprep.subr.mxu0 0.0
        %2746 = vmatpush1.msra.mxu0 0.0
        %2747 = vmatprep.subr.mxu0 0.0
        %2748 = vmatpush1.msra.mxu0 0.0
        %2749 = vmatprep.subr.mxu0 0.0
        %2750 = vmatpush1.msra.mxu0 0.0
        %2751 = vmatprep.subr.mxu0 0.0
        %2752 = vmatpush1.msra.mxu0 0.0
        %2753 = vmatprep.subr.mxu0 0.0
        %2754 = vmatpush1.msra.mxu0 0.0
        %2755 = vmatprep.subr.mxu0 0.0
        %2756 = vmatpush1.msra.mxu0 0.0
        %2757 = vmatprep.subr.mxu0 0.0
        %2758 = vmatpush1.msra.mxu0 0.0
        %2759 = vmatprep.mubr.f32.mxu0 0.0
        %2760 = vmatmul.mubr.f32.gmra.mrb[0].mxu0 %v996
        %v2761 = vpop.f32.mrb[0].mxu0
        %v2762 = vadd.f32 0.0, %v2761
        %v2763 = vpop.f32.mrb[0].mxu0
        %2764 = vmatprep.mubr.f32.mxu0 0.0
        %2765 = vmatmul.mubr.f32.gmra.mrb[0].mxu0 %v999
        %v2766 = vpop.f32.mrb[0].mxu0
        %v2767 = vadd.f32 0.0, %v2766
        %v2768 = vpop.f32.mrb[0].mxu0
        %2769 = vdwg.mxu0
        %v2770 = vsub.f32 %v2612, %v2762
        %v2771 = vsub.f32 %v2613, %v2767
        %v2772 = vmul.f32 %v2770, %v2770
        %v2773 = vmul.f32 %v2771, %v2771
        %v2775 = vsel %vm733, %v2772, 0
        %v2778 = vsel %vm733, %v2773, 0
        %2780 = vmatprep.subr.mxu0 0.0
        %2781 = vmatpush1.msra.mxu0 %v665
        %2782 = vmatprep.subr.mxu0 0.0
        %2783 = vmatpush1.msra.mxu0 %v666
        %2784 = vmatprep.subr.mxu0 0.0
        %2785 = vmatpush1.msra.mxu0 %v667
        %2786 = vmatprep.subr.mxu0 0.0
        %2787 = vmatpush1.msra.mxu0 %v668
        %2788 = vmatprep.subr.mxu0 0.0
        %2789 = vmatpush1.msra.mxu0 0.0
        %2790 = vmatprep.subr.mxu0 0.0
        %2791 = vmatpush1.msra.mxu0 0.0
        %2792 = vmatprep.subr.mxu0 0.0
        %2793 = vmatpush1.msra.mxu0 0.0
        %2794 = vmatprep.subr.mxu0 0.0
        %2795 = vmatpush1.msra.mxu0 0.0
        %2796 = vmatprep.subr.mxu0 0.0
        %2797 = vmatpush1.msra.mxu0 0.0
        %2798 = vmatprep.subr.mxu0 0.0
        %2799 = vmatpush1.msra.mxu0 0.0
        %2800 = vmatprep.subr.mxu0 0.0
        %2801 = vmatpush1.msra.mxu0 0.0
        %2802 = vmatprep.subr.mxu0 0.0
        %2803 = vmatpush1.msra.mxu0 0.0
        %2804 = vmatprep.subr.mxu0 0.0
        %2805 = vmatpush1.msra.mxu0 0.0
        %2806 = vmatprep.subr.mxu0 0.0
        %2807 = vmatpush1.msra.mxu0 0.0
        %2808 = vmatprep.subr.mxu0 0.0
        %2809 = vmatpush1.msra.mxu0 0.0
        %2810 = vmatprep.subr.mxu0 0.0
        %2811 = vmatpush1.msra.mxu0 0.0
        %2812 = vmatprep.subr.mxu0 0.0
        %2813 = vmatpush1.msra.mxu0 0.0
        %2814 = vmatprep.subr.mxu0 0.0
        %2815 = vmatpush1.msra.mxu0 0.0
        %2816 = vmatprep.subr.mxu0 0.0
        %2817 = vmatpush1.msra.mxu0 0.0
        %2818 = vmatprep.subr.mxu0 0.0
        %2819 = vmatpush1.msra.mxu0 0.0
        %2820 = vmatprep.subr.mxu0 0.0
        %2821 = vmatpush1.msra.mxu0 0.0
        %2822 = vmatprep.subr.mxu0 0.0
        %2823 = vmatpush1.msra.mxu0 0.0
        %2824 = vmatprep.subr.mxu0 0.0
        %2825 = vmatpush1.msra.mxu0 0.0
        %2826 = vmatprep.subr.mxu0 0.0
        %2827 = vmatpush1.msra.mxu0 0.0
        %2828 = vmatprep.subr.mxu0 0.0
        %2829 = vmatpush1.msra.mxu0 0.0
        %2830 = vmatprep.subr.mxu0 0.0
        %2831 = vmatpush1.msra.mxu0 0.0
        %2832 = vmatprep.subr.mxu0 0.0
        %2833 = vmatpush1.msra.mxu0 0.0
        %2834 = vmatprep.subr.mxu0 0.0
        %2835 = vmatpush1.msra.mxu0 0.0
        %2836 = vmatprep.subr.mxu0 0.0
        %2837 = vmatpush1.msra.mxu0 0.0
        %2838 = vmatprep.subr.mxu0 0.0
        %2839 = vmatpush1.msra.mxu0 0.0
        %2840 = vmatprep.subr.mxu0 0.0
        %2841 = vmatpush1.msra.mxu0 0.0
        %2842 = vmatprep.subr.mxu0 0.0
        %2843 = vmatpush1.msra.mxu0 0.0
        %2844 = vmatprep.mubr.f32.mxu0 0.0
        %2845 = vmatmul.mubr.f32.gmra.mrb[0].mxu0 %v2775
        %v2846 = vpop.f32.mrb[0].mxu0
        %v2847 = vadd.f32 0.0, %v2846
        %v2848 = vpop.f32.mrb[0].mxu0
        %2849 = vmatprep.mubr.f32.mxu0 0.0
        %2850 = vmatmul.mubr.f32.gmra.mrb[0].mxu0 %v2778
        %v2851 = vpop.f32.mrb[0].mxu0
        %v2852 = vadd.f32 0.0, %v2851
        %v2853 = vpop.f32.mrb[0].mxu0
        %2854 = vdwg.mxu0
        %2855 = vmatprep.subr.mxu0 0.0
        %2856 = vmatpush1.msra.mxu0 %v2847
        %2857 = vmatprep.subr.mxu0 0.0
        %2858 = vmatpush1.msra.mxu0 %v2852
        %2859 = vmatprep.subr.mxu0 0.0
        %2860 = vmatpush1.msra.mxu0 0.0
        %2861 = vmatprep.subr.mxu0 0.0
        %2862 = vmatpush1.msra.mxu0 0.0
        %2863 = vmatprep.subr.mxu0 0.0
        %2864 = vmatpush1.msra.mxu0 0.0
        %2865 = vmatprep.subr.mxu0 0.0
        %2866 = vmatpush1.msra.mxu0 0.0
        %2867 = vmatprep.subr.mxu0 0.0
        %2868 = vmatpush1.msra.mxu0 0.0
        %2869 = vmatprep.subr.mxu0 0.0
        %2870 = vmatpush1.msra.mxu0 0.0
        %2871 = vmatprep.subr.mxu0 0.0
        %2872 = vmatpush1.msra.mxu0 0.0
        %2873 = vmatprep.subr.mxu0 0.0
        %2874 = vmatpush1.msra.mxu0 0.0
        %2875 = vmatprep.subr.mxu0 0.0
        %2876 = vmatpush1.msra.mxu0 0.0
        %2877 = vmatprep.subr.mxu0 0.0
        %2878 = vmatpush1.msra.mxu0 0.0
        %2879 = vmatprep.subr.mxu0 0.0
        %2880 = vmatpush1.msra.mxu0 0.0
        %2881 = vmatprep.subr.mxu0 0.0
        %2882 = vmatpush1.msra.mxu0 0.0
        %2883 = vmatprep.subr.mxu0 0.0
        %2884 = vmatpush1.msra.mxu0 0.0
        %2885 = vmatprep.subr.mxu0 0.0
        %2886 = vmatpush1.msra.mxu0 0.0
        %2887 = vmatprep.subr.mxu0 0.0
        %2888 = vmatpush1.msra.mxu0 0.0
        %2889 = vmatprep.subr.mxu0 0.0
        %2890 = vmatpush1.msra.mxu0 0.0
        %2891 = vmatprep.subr.mxu0 0.0
        %2892 = vmatpush1.msra.mxu0 0.0
        %2893 = vmatprep.subr.mxu0 0.0
        %2894 = vmatpush1.msra.mxu0 0.0
        %2895 = vmatprep.subr.mxu0 0.0
        %2896 = vmatpush1.msra.mxu0 0.0
        %2897 = vmatprep.subr.mxu0 0.0
        %2898 = vmatpush1.msra.mxu0 0.0
        %2899 = vmatprep.subr.mxu0 0.0
        %2900 = vmatpush1.msra.mxu0 0.0
        %2901 = vmatprep.subr.mxu0 0.0
        %2902 = vmatpush1.msra.mxu0 0.0
        %2903 = vmatprep.subr.mxu0 0.0
        %2904 = vmatpush1.msra.mxu0 0.0
        %2905 = vmatprep.subr.mxu0 0.0
        %2906 = vmatpush1.msra.mxu0 0.0
        %2907 = vmatprep.subr.mxu0 0.0
        %2908 = vmatpush1.msra.mxu0 0.0
        %2909 = vmatprep.subr.mxu0 0.0
        %2910 = vmatpush1.msra.mxu0 0.0
        %2911 = vmatprep.subr.mxu0 0.0
        %2912 = vmatpush1.msra.mxu0 0.0
        %2913 = vmatprep.subr.mxu0 0.0
        %2914 = vmatpush1.msra.mxu0 0.0
        %2915 = vmatprep.subr.mxu0 0.0
        %2916 = vmatpush1.msra.mxu0 0.0
        %2917 = vmatprep.subr.mxu0 0.0
        %2918 = vmatpush1.msra.mxu0 0.0
        %2919 = vmatprep.mubr.f32.mxu0 0.0
        %2920 = vmatmul.mubr.f32.gmra.mrb[0].mxu0 %v996
        %v2921 = vpop.f32.mrb[0].mxu0
        %v2922 = vadd.f32 1e-05, %v2921
        %v2923 = vpop.f32.mrb[0].mxu0
        %2924 = vmatprep.mubr.f32.mxu0 0.0
        %2925 = vmatmul.mubr.f32.gmra.mrb[0].mxu0 %v999
        %v2926 = vpop.f32.mrb[0].mxu0
        %v2927 = vadd.f32 1e-05, %v2926
        %v2928 = vpop.f32.mrb[0].mxu0
        %2929 = vdwg.mxu0
        %v2930 = vrsqrt.pop %v2922
        %v2931 = vrsqrt.pop %v2927
        %v2932 = vmul.f32 %v2770, %v2930
        %v2933 = vmul.f32 %v2771, %v2931
        %v2935 = vlaneseq
        %v2936 = vshrl.u32 %v2935, 7
        %v2937 = vsub.s32 0, %v2936
        %v2938 = vrot.slane %v2403, %v2937
        %v2940 = vmul.f32 %v2932, %v2938
        %v2941 = vmul.f32 %v2933, %v2938
        %v2943 = vlaneseq
        %v2944 = vshrl.u32 %v2943, 7
        %v2945 = vsub.s32 0, %v2944
        %v2946 = vrot.slane %v2405, %v2945
        %v2948 = vadd.f32 %v2940, %v2946
        %v2949 = vadd.f32 %v2941, %v2946
        %v2950 = vxor.u32 %v2948, 2147483648
        %v2951 = vxor.u32 %v2949, 2147483648
        %v2952 = vmul.f32 %v2950, 1.442695
        %v2953 = vpow.pop %v2952
        %v2954 = vmul.f32 %v2951, 1.442695
        %v2955 = vpow.pop %v2954
        %v2956 = vadd.f32 %v2953, 1.0
        %v2957 = vadd.f32 %v2955, 1.0
        %v2958 = vrcp.pop %v2956
        %v2959 = vmul.f32 1.0, %v2958
        %v2960 = vrcp.pop %v2957
        %v2961 = vmul.f32 1.0, %v2960
        %v2962 = vmul.f32 %v2948, %v2959
        %v2963 = vmul.f32 %v2949, %v2961
        %v2964 = vadd.f32 %v2962, %v1834
        %v2965 = vadd.f32 %v2963, %v1835
        %s2966 = scalar_lea.vmem %s616, 4
        %v2967 = vld [vmem:[%s2966] sm:$0x1]
        %s2968 = scalar_lea.vmem %s620, 4
        %v2969 = vld [vmem:[%s2968] sm:$0x1]
        %s2970 = scalar_lea.vmem %s624, 4
        %v2971 = vld [vmem:[%s2970] sm:$0x1]
        %v2972 = vrot.slane %v2964, 7
        %v2973 = vrot.slane %v2965, 7
        %v2974 = vsel %vm705, %v2972, %v2973
        %v2975 = vsel %vm705, %v2973, %v2972
        %v2976 = vsel %vm696, %v2975, 0.0
        %v2977 = vsel %vm697, %v2974, 0.0
        %v2978 = vpack.c.bf16 %v2977, %v2976
        %s2979 = scalar_lea.vmem %s536, 192 [#allocation4]
        %v2980 = vld [vmem:[%s2979] sm:$0xf]
        %v2981 = vld [vmem:[%s2979 + $0x4] sm:$0xf]
        %v2982 = vld [vmem:[%s2979 + $0x8] sm:$0xf]
        %v2983 = vld [vmem:[%s2979 + $0xc] sm:$0xf]
        %v2984 = vpack.c.bf16 %v2965, %v2964
        %s2985 = scalar_lea.vmem %s536, 208 [#allocation4]
        %v2986 = vld [vmem:[%s2985] sm:$0xf]
        %v2987 = vld [vmem:[%s2985 + $0x4] sm:$0xf]
        %v2988 = vld [vmem:[%s2985 + $0x8] sm:$0xf]
        %v2989 = vld [vmem:[%s2985 + $0xc] sm:$0xf]
        %v2994 = vunpack.c.l.b16 %v2986
        %v2995 = vunpack.c.l.b16 %v2987
        %v2996 = vunpack.c.l.b16 %v2988
        %v2997 = vunpack.c.l.b16 %v2989
        %v2998 = vpack.c.b16 %v2995, %v2994
        %v2999 = vpack.c.b16 %v2997, %v2996
        %v3003 = vsel %vm733, %v2984, 0
        %3005 = vmatprep.subr.bf16.mxu0 0
        %3006 = vmatpush1.bf16.msra.mxu0 %v2998
        %3007 = vmatprep.subr.bf16.mxu0 0
        %3008 = vmatpush1.bf16.msra.mxu0 %v2999
        %3009 = vmatprep.subr.bf16.mxu0 0
        %3010 = vmatpush1.bf16.msra.mxu0 0
        %3011 = vmatprep.subr.bf16.mxu0 0
        %3012 = vmatpush1.bf16.msra.mxu0 0
        %3013 = vmatprep.subr.bf16.mxu0 0
        %3014 = vmatpush1.bf16.msra.mxu0 0
        %3015 = vmatprep.subr.bf16.mxu0 0
        %3016 = vmatpush1.bf16.msra.mxu0 0
        %3017 = vmatprep.subr.bf16.mxu0 0
        %3018 = vmatpush1.bf16.msra.mxu0 0
        %3019 = vmatprep.subr.bf16.mxu0 0
        %3020 = vmatpush1.bf16.msra.mxu0 0
        %3021 = vmatprep.subr.bf16.mxu0 0
        %3022 = vmatpush1.bf16.msra.mxu0 0
        %3023 = vmatprep.subr.bf16.mxu0 0
        %3024 = vmatpush1.bf16.msra.mxu0 0
        %3025 = vmatprep.subr.bf16.mxu0 0
        %3026 = vmatpush1.bf16.msra.mxu0 0
        %3027 = vmatprep.subr.bf16.mxu0 0
        %3028 = vmatpush1.bf16.msra.mxu0 0
        %3029 = vmatprep.subr.bf16.mxu0 0
        %3030 = vmatpush1.bf16.msra.mxu0 0
        %3031 = vmatprep.subr.bf16.mxu0 0
        %3032 = vmatpush1.bf16.msra.mxu0 0
        %3033 = vmatprep.subr.bf16.mxu0 0
        %3034 = vmatpush1.bf16.msra.mxu0 0
        %3035 = vmatprep.subr.bf16.mxu0 0
        %3036 = vmatpush1.bf16.msra.mxu0 0
        %3037 = vmatprep.mubr.bf16.mxu0 0
        %3038 = vmatmul.mubr.bf16.gmra.mrb[0].mxu0 %v3003
        %v3039 = vpop.f32.mrb[0].mxu0
        %v3040 = vadd.f32 0.0, %v3039
        %v3041 = vpop.f32.mrb[0].mxu0
        %v3042 = vpop.f32.mrb[0].mxu0
        %v3043 = vadd.f32 0.0, %v3042
        %v3044 = vpop.f32.mrb[0].mxu0
        %3045 = vdwg.mxu0
        %v3050 = vunpack.c.l.b16 %v2980
        %v3051 = vunpack.c.l.b16 %v2981
        %v3052 = vunpack.c.l.b16 %v2982
        %v3053 = vunpack.c.l.b16 %v2983
        %v3054 = vpack.c.b16 %v3051, %v3050
        %v3055 = vpack.c.b16 %v3053, %v3052
        %v3059 = vsel %vm733, %v2978, 0
        %3061 = vmatprep.subr.bf16.mxu0 0
        %3062 = vmatpush1.bf16.msra.mxu0 %v3054
        %3063 = vmatprep.subr.bf16.mxu0 0
        %3064 = vmatpush1.bf16.msra.mxu0 %v3055
        %3065 = vmatprep.subr.bf16.mxu0 0
        %3066 = vmatpush1.bf16.msra.mxu0 0
        %3067 = vmatprep.subr.bf16.mxu0 0
        %3068 = vmatpush1.bf16.msra.mxu0 0
        %3069 = vmatprep.subr.bf16.mxu0 0
        %3070 = vmatpush1.bf16.msra.mxu0 0
        %3071 = vmatprep.subr.bf16.mxu0 0
        %3072 = vmatpush1.bf16.msra.mxu0 0
        %3073 = vmatprep.subr.bf16.mxu0 0
        %3074 = vmatpush1.bf16.msra.mxu0 0
        %3075 = vmatprep.subr.bf16.mxu0 0
        %3076 = vmatpush1.bf16.msra.mxu0 0
        %3077 = vmatprep.subr.bf16.mxu0 0
        %3078 = vmatpush1.bf16.msra.mxu0 0
        %3079 = vmatprep.subr.bf16.mxu0 0
        %3080 = vmatpush1.bf16.msra.mxu0 0
        %3081 = vmatprep.subr.bf16.mxu0 0
        %3082 = vmatpush1.bf16.msra.mxu0 0
        %3083 = vmatprep.subr.bf16.mxu0 0
        %3084 = vmatpush1.bf16.msra.mxu0 0
        %3085 = vmatprep.subr.bf16.mxu0 0
        %3086 = vmatpush1.bf16.msra.mxu0 0
        %3087 = vmatprep.subr.bf16.mxu0 0
        %3088 = vmatpush1.bf16.msra.mxu0 0
        %3089 = vmatprep.subr.bf16.mxu0 0
        %3090 = vmatpush1.bf16.msra.mxu0 0
        %3091 = vmatprep.subr.bf16.mxu0 0
        %3092 = vmatpush1.bf16.msra.mxu0 0
        %3093 = vmatprep.mubr.bf16.mxu0 0
        %3094 = vmatmul.mubr.bf16.gmra.mrb[0].mxu0 %v3059
        %v3095 = vpop.f32.mrb[0].mxu0
        %v3096 = vadd.f32 %v3040, %v3095
        %v3097 = vpop.f32.mrb[0].mxu0
        %v3098 = vpop.f32.mrb[0].mxu0
        %v3099 = vadd.f32 %v3043, %v3098
        %v3100 = vpop.f32.mrb[0].mxu0
        %3101 = vdwg.mxu0
        %v3102 = vrot.slane %v2964, 1
        %v3103 = vrot.slane %v2965, 1
        %v3104 = vsel %vm836, %v3102, %v3103
        %v3105 = vsel %vm836, %v3103, %v3102
        %v3106 = vsel %vm698, %v3104, 0.0
        %v3107 = vsel %vm699, %v3105, 0.0
        %v3108 = vpack.c.bf16 %v3107, %v3106
        %s3109 = scalar_lea.vmem %s536, 224 [#allocation4]
        %v3110 = vld [vmem:[%s3109] sm:$0xf]
        %v3111 = vld [vmem:[%s3109 + $0x4] sm:$0xf]
        %v3112 = vld [vmem:[%s3109 + $0x8] sm:$0xf]
        %v3113 = vld [vmem:[%s3109 + $0xc] sm:$0xf]
        %v3118 = vunpack.c.l.b16 %v3110
        %v3119 = vunpack.c.l.b16 %v3111
        %v3120 = vunpack.c.l.b16 %v3112
        %v3121 = vunpack.c.l.b16 %v3113
        %v3122 = vpack.c.b16 %v3119, %v3118
        %v3123 = vpack.c.b16 %v3121, %v3120
        %v3127 = vsel %vm733, %v3108, 0
        %3129 = vmatprep.subr.bf16.mxu0 0
        %3130 = vmatpush1.bf16.msra.mxu0 %v3122
        %3131 = vmatprep.subr.bf16.mxu0 0
        %3132 = vmatpush1.bf16.msra.mxu0 %v3123
        %3133 = vmatprep.subr.bf16.mxu0 0
        %3134 = vmatpush1.bf16.msra.mxu0 0
        %3135 = vmatprep.subr.bf16.mxu0 0
        %3136 = vmatpush1.bf16.msra.mxu0 0
        %3137 = vmatprep.subr.bf16.mxu0 0
        %3138 = vmatpush1.bf16.msra.mxu0 0
        %3139 = vmatprep.subr.bf16.mxu0 0
        %3140 = vmatpush1.bf16.msra.mxu0 0
        %3141 = vmatprep.subr.bf16.mxu0 0
        %3142 = vmatpush1.bf16.msra.mxu0 0
        %3143 = vmatprep.subr.bf16.mxu0 0
        %3144 = vmatpush1.bf16.msra.mxu0 0
        %3145 = vmatprep.subr.bf16.mxu0 0
        %3146 = vmatpush1.bf16.msra.mxu0 0
        %3147 = vmatprep.subr.bf16.mxu0 0
        %3148 = vmatpush1.bf16.msra.mxu0 0
        %3149 = vmatprep.subr.bf16.mxu0 0
        %3150 = vmatpush1.bf16.msra.mxu0 0
        %3151 = vmatprep.subr.bf16.mxu0 0
        %3152 = vmatpush1.bf16.msra.mxu0 0
        %3153 = vmatprep.subr.bf16.mxu0 0
        %3154 = vmatpush1.bf16.msra.mxu0 0
        %3155 = vmatprep.subr.bf16.mxu0 0
        %3156 = vmatpush1.bf16.msra.mxu0 0
        %3157 = vmatprep.subr.bf16.mxu0 0
        %3158 = vmatpush1.bf16.msra.mxu0 0
        %3159 = vmatprep.subr.bf16.mxu0 0
        %3160 = vmatpush1.bf16.msra.mxu0 0
        %3161 = vmatprep.mubr.bf16.mxu0 0
        %3162 = vmatmul.mubr.bf16.gmra.mrb[0].mxu0 %v3127
        %v3163 = vpop.f32.mrb[0].mxu0
        %v3164 = vadd.f32 0.0, %v3163
        %v3165 = vpop.f32.mrb[0].mxu0
        %v3166 = vpop.f32.mrb[0].mxu0
        %v3167 = vadd.f32 0.0, %v3166
        %v3168 = vpop.f32.mrb[0].mxu0
        %3169 = vdwg.mxu0
        %v3170 = vadd.f32 %v3096, %v3164
        %v3171 = vadd.f32 %v3099, %v3167
        %v3173 = vlaneseq
        %v3174 = vshrl.u32 %v3173, 7
        %v3175 = vsub.s32 0, %v3174
        %v3176 = vrot.slane %v2967, %v3175
        %v3178 = vadd.f32 %v3170, %v3176
        %v3179 = vadd.f32 %v3171, %v3176
        %v3181 = vsel %vm733, %v3178, 0
        %v3184 = vsel %vm733, %v3179, 0
        %3186 = vmatprep.subr.mxu0 0.0
        %3187 = vmatpush1.msra.mxu0 %v665
        %3188 = vmatprep.subr.mxu0 0.0
        %3189 = vmatpush1.msra.mxu0 %v666
        %3190 = vmatprep.subr.mxu0 0.0
        %3191 = vmatpush1.msra.mxu0 %v667
        %3192 = vmatprep.subr.mxu0 0.0
        %3193 = vmatpush1.msra.mxu0 %v668
        %3194 = vmatprep.subr.mxu0 0.0
        %3195 = vmatpush1.msra.mxu0 0.0
        %3196 = vmatprep.subr.mxu0 0.0
        %3197 = vmatpush1.msra.mxu0 0.0
        %3198 = vmatprep.subr.mxu0 0.0
        %3199 = vmatpush1.msra.mxu0 0.0
        %3200 = vmatprep.subr.mxu0 0.0
        %3201 = vmatpush1.msra.mxu0 0.0
        %3202 = vmatprep.subr.mxu0 0.0
        %3203 = vmatpush1.msra.mxu0 0.0
        %3204 = vmatprep.subr.mxu0 0.0
        %3205 = vmatpush1.msra.mxu0 0.0
        %3206 = vmatprep.subr.mxu0 0.0
        %3207 = vmatpush1.msra.mxu0 0.0
        %3208 = vmatprep.subr.mxu0 0.0
        %3209 = vmatpush1.msra.mxu0 0.0
        %3210 = vmatprep.subr.mxu0 0.0
        %3211 = vmatpush1.msra.mxu0 0.0
        %3212 = vmatprep.subr.mxu0 0.0
        %3213 = vmatpush1.msra.mxu0 0.0
        %3214 = vmatprep.subr.mxu0 0.0
        %3215 = vmatpush1.msra.mxu0 0.0
        %3216 = vmatprep.subr.mxu0 0.0
        %3217 = vmatpush1.msra.mxu0 0.0
        %3218 = vmatprep.subr.mxu0 0.0
        %3219 = vmatpush1.msra.mxu0 0.0
        %3220 = vmatprep.subr.mxu0 0.0
        %3221 = vmatpush1.msra.mxu0 0.0
        %3222 = vmatprep.subr.mxu0 0.0
        %3223 = vmatpush1.msra.mxu0 0.0
        %3224 = vmatprep.subr.mxu0 0.0
        %3225 = vmatpush1.msra.mxu0 0.0
        %3226 = vmatprep.subr.mxu0 0.0
        %3227 = vmatpush1.msra.mxu0 0.0
        %3228 = vmatprep.subr.mxu0 0.0
        %3229 = vmatpush1.msra.mxu0 0.0
        %3230 = vmatprep.subr.mxu0 0.0
        %3231 = vmatpush1.msra.mxu0 0.0
        %3232 = vmatprep.subr.mxu0 0.0
        %3233 = vmatpush1.msra.mxu0 0.0
        %3234 = vmatprep.subr.mxu0 0.0
        %3235 = vmatpush1.msra.mxu0 0.0
        %3236 = vmatprep.subr.mxu0 0.0
        %3237 = vmatpush1.msra.mxu0 0.0
        %3238 = vmatprep.subr.mxu0 0.0
        %3239 = vmatpush1.msra.mxu0 0.0
        %3240 = vmatprep.subr.mxu0 0.0
        %3241 = vmatpush1.msra.mxu0 0.0
        %3242 = vmatprep.subr.mxu0 0.0
        %3243 = vmatpush1.msra.mxu0 0.0
        %3244 = vmatprep.subr.mxu0 0.0
        %3245 = vmatpush1.msra.mxu0 0.0
        %3246 = vmatprep.subr.mxu0 0.0
        %3247 = vmatpush1.msra.mxu0 0.0
        %3248 = vmatprep.subr.mxu0 0.0
        %3249 = vmatpush1.msra.mxu0 0.0
        %3250 = vmatprep.mubr.f32.mxu0 0.0
        %3251 = vmatmul.mubr.f32.gmra.mrb[0].mxu0 %v3181
        %v3252 = vpop.f32.mrb[0].mxu0
        %v3253 = vadd.f32 0.0, %v3252
        %v3254 = vpop.f32.mrb[0].mxu0
        %3255 = vmatprep.mubr.f32.mxu0 0.0
        %3256 = vmatmul.mubr.f32.gmra.mrb[0].mxu0 %v3184
        %v3257 = vpop.f32.mrb[0].mxu0
        %v3258 = vadd.f32 0.0, %v3257
        %v3259 = vpop.f32.mrb[0].mxu0
        %3260 = vdwg.mxu0
        %3261 = vmatprep.subr.mxu0 0.0
        %3262 = vmatpush1.msra.mxu0 %v3253
        %3263 = vmatprep.subr.mxu0 0.0
        %3264 = vmatpush1.msra.mxu0 %v3258
        %3265 = vmatprep.subr.mxu0 0.0
        %3266 = vmatpush1.msra.mxu0 0.0
        %3267 = vmatprep.subr.mxu0 0.0
        %3268 = vmatpush1.msra.mxu0 0.0
        %3269 = vmatprep.subr.mxu0 0.0
        %3270 = vmatpush1.msra.mxu0 0.0
        %3271 = vmatprep.subr.mxu0 0.0
        %3272 = vmatpush1.msra.mxu0 0.0
        %3273 = vmatprep.subr.mxu0 0.0
        %3274 = vmatpush1.msra.mxu0 0.0
        %3275 = vmatprep.subr.mxu0 0.0
        %3276 = vmatpush1.msra.mxu0 0.0
        %3277 = vmatprep.subr.mxu0 0.0
        %3278 = vmatpush1.msra.mxu0 0.0
        %3279 = vmatprep.subr.mxu0 0.0
        %3280 = vmatpush1.msra.mxu0 0.0
        %3281 = vmatprep.subr.mxu0 0.0
        %3282 = vmatpush1.msra.mxu0 0.0
        %3283 = vmatprep.subr.mxu0 0.0
        %3284 = vmatpush1.msra.mxu0 0.0
        %3285 = vmatprep.subr.mxu0 0.0
        %3286 = vmatpush1.msra.mxu0 0.0
        %3287 = vmatprep.subr.mxu0 0.0
        %3288 = vmatpush1.msra.mxu0 0.0
        %3289 = vmatprep.subr.mxu0 0.0
        %3290 = vmatpush1.msra.mxu0 0.0
        %3291 = vmatprep.subr.mxu0 0.0
        %3292 = vmatpush1.msra.mxu0 0.0
        %3293 = vmatprep.subr.mxu0 0.0
        %3294 = vmatpush1.msra.mxu0 0.0
        %3295 = vmatprep.subr.mxu0 0.0
        %3296 = vmatpush1.msra.mxu0 0.0
        %3297 = vmatprep.subr.mxu0 0.0
        %3298 = vmatpush1.msra.mxu0 0.0
        %3299 = vmatprep.subr.mxu0 0.0
        %3300 = vmatpush1.msra.mxu0 0.0
        %3301 = vmatprep.subr.mxu0 0.0
        %3302 = vmatpush1.msra.mxu0 0.0
        %3303 = vmatprep.subr.mxu0 0.0
        %3304 = vmatpush1.msra.mxu0 0.0
        %3305 = vmatprep.subr.mxu0 0.0
        %3306 = vmatpush1.msra.mxu0 0.0
        %3307 = vmatprep.subr.mxu0 0.0
        %3308 = vmatpush1.msra.mxu0 0.0
        %3309 = vmatprep.subr.mxu0 0.0
        %3310 = vmatpush1.msra.mxu0 0.0
        %3311 = vmatprep.subr.mxu0 0.0
        %3312 = vmatpush1.msra.mxu0 0.0
        %3313 = vmatprep.subr.mxu0 0.0
        %3314 = vmatpush1.msra.mxu0 0.0
        %3315 = vmatprep.subr.mxu0 0.0
        %3316 = vmatpush1.msra.mxu0 0.0
        %3317 = vmatprep.subr.mxu0 0.0
        %3318 = vmatpush1.msra.mxu0 0.0
        %3319 = vmatprep.subr.mxu0 0.0
        %3320 = vmatpush1.msra.mxu0 0.0
        %3321 = vmatprep.subr.mxu0 0.0
        %3322 = vmatpush1.msra.mxu0 0.0
        %3323 = vmatprep.subr.mxu0 0.0
        %3324 = vmatpush1.msra.mxu0 0.0
        %3325 = vmatprep.mubr.f32.mxu0 0.0
        %3326 = vmatmul.mubr.f32.gmra.mrb[0].mxu0 %v996
        %v3327 = vpop.f32.mrb[0].mxu0
        %v3328 = vadd.f32 0.0, %v3327
        %v3329 = vpop.f32.mrb[0].mxu0
        %3330 = vmatprep.mubr.f32.mxu0 0.0
        %3331 = vmatmul.mubr.f32.gmra.mrb[0].mxu0 %v999
        %v3332 = vpop.f32.mrb[0].mxu0
        %v3333 = vadd.f32 0.0, %v3332
        %v3334 = vpop.f32.mrb[0].mxu0
        %3335 = vdwg.mxu0
        %v3336 = vsub.f32 %v3178, %v3328
        %v3337 = vsub.f32 %v3179, %v3333
        %v3338 = vmul.f32 %v3336, %v3336
        %v3339 = vmul.f32 %v3337, %v3337
        %v3341 = vsel %vm733, %v3338, 0
        %v3344 = vsel %vm733, %v3339, 0
        %3346 = vmatprep.subr.mxu0 0.0
        %3347 = vmatpush1.msra.mxu0 %v665
        %3348 = vmatprep.subr.mxu0 0.0
        %3349 = vmatpush1.msra.mxu0 %v666
        %3350 = vmatprep.subr.mxu0 0.0
        %3351 = vmatpush1.msra.mxu0 %v667
        %3352 = vmatprep.subr.mxu0 0.0
        %3353 = vmatpush1.msra.mxu0 %v668
        %3354 = vmatprep.subr.mxu0 0.0
        %3355 = vmatpush1.msra.mxu0 0.0
        %3356 = vmatprep.subr.mxu0 0.0
        %3357 = vmatpush1.msra.mxu0 0.0
        %3358 = vmatprep.subr.mxu0 0.0
        %3359 = vmatpush1.msra.mxu0 0.0
        %3360 = vmatprep.subr.mxu0 0.0
        %3361 = vmatpush1.msra.mxu0 0.0
        %3362 = vmatprep.subr.mxu0 0.0
        %3363 = vmatpush1.msra.mxu0 0.0
        %3364 = vmatprep.subr.mxu0 0.0
        %3365 = vmatpush1.msra.mxu0 0.0
        %3366 = vmatprep.subr.mxu0 0.0
        %3367 = vmatpush1.msra.mxu0 0.0
        %3368 = vmatprep.subr.mxu0 0.0
        %3369 = vmatpush1.msra.mxu0 0.0
        %3370 = vmatprep.subr.mxu0 0.0
        %3371 = vmatpush1.msra.mxu0 0.0
        %3372 = vmatprep.subr.mxu0 0.0
        %3373 = vmatpush1.msra.mxu0 0.0
        %3374 = vmatprep.subr.mxu0 0.0
        %3375 = vmatpush1.msra.mxu0 0.0
        %3376 = vmatprep.subr.mxu0 0.0
        %3377 = vmatpush1.msra.mxu0 0.0
        %3378 = vmatprep.subr.mxu0 0.0
        %3379 = vmatpush1.msra.mxu0 0.0
        %3380 = vmatprep.subr.mxu0 0.0
        %3381 = vmatpush1.msra.mxu0 0.0
        %3382 = vmatprep.subr.mxu0 0.0
        %3383 = vmatpush1.msra.mxu0 0.0
        %3384 = vmatprep.subr.mxu0 0.0
        %3385 = vmatpush1.msra.mxu0 0.0
        %3386 = vmatprep.subr.mxu0 0.0
        %3387 = vmatpush1.msra.mxu0 0.0
        %3388 = vmatprep.subr.mxu0 0.0
        %3389 = vmatpush1.msra.mxu0 0.0
        %3390 = vmatprep.subr.mxu0 0.0
        %3391 = vmatpush1.msra.mxu0 0.0
        %3392 = vmatprep.subr.mxu0 0.0
        %3393 = vmatpush1.msra.mxu0 0.0
        %3394 = vmatprep.subr.mxu0 0.0
        %3395 = vmatpush1.msra.mxu0 0.0
        %3396 = vmatprep.subr.mxu0 0.0
        %3397 = vmatpush1.msra.mxu0 0.0
        %3398 = vmatprep.subr.mxu0 0.0
        %3399 = vmatpush1.msra.mxu0 0.0
        %3400 = vmatprep.subr.mxu0 0.0
        %3401 = vmatpush1.msra.mxu0 0.0
        %3402 = vmatprep.subr.mxu0 0.0
        %3403 = vmatpush1.msra.mxu0 0.0
        %3404 = vmatprep.subr.mxu0 0.0
        %3405 = vmatpush1.msra.mxu0 0.0
        %3406 = vmatprep.subr.mxu0 0.0
        %3407 = vmatpush1.msra.mxu0 0.0
        %3408 = vmatprep.subr.mxu0 0.0
        %3409 = vmatpush1.msra.mxu0 0.0
        %3410 = vmatprep.mubr.f32.mxu0 0.0
        %3411 = vmatmul.mubr.f32.gmra.mrb[0].mxu0 %v3341
        %v3412 = vpop.f32.mrb[0].mxu0
        %v3413 = vadd.f32 0.0, %v3412
        %v3414 = vpop.f32.mrb[0].mxu0
        %3415 = vmatprep.mubr.f32.mxu0 0.0
        %3416 = vmatmul.mubr.f32.gmra.mrb[0].mxu0 %v3344
        %v3417 = vpop.f32.mrb[0].mxu0
        %v3418 = vadd.f32 0.0, %v3417
        %v3419 = vpop.f32.mrb[0].mxu0
        %3420 = vdwg.mxu0
        %3421 = vmatprep.subr.mxu0 0.0
        %3422 = vmatpush1.msra.mxu0 %v3413
        %3423 = vmatprep.subr.mxu0 0.0
        %3424 = vmatpush1.msra.mxu0 %v3418
        %3425 = vmatprep.subr.mxu0 0.0
        %3426 = vmatpush1.msra.mxu0 0.0
        %3427 = vmatprep.subr.mxu0 0.0
        %3428 = vmatpush1.msra.mxu0 0.0
        %3429 = vmatprep.subr.mxu0 0.0
        %3430 = vmatpush1.msra.mxu0 0.0
        %3431 = vmatprep.subr.mxu0 0.0
        %3432 = vmatpush1.msra.mxu0 0.0
        %3433 = vmatprep.subr.mxu0 0.0
        %3434 = vmatpush1.msra.mxu0 0.0
        %3435 = vmatprep.subr.mxu0 0.0
        %3436 = vmatpush1.msra.mxu0 0.0
        %3437 = vmatprep.subr.mxu0 0.0
        %3438 = vmatpush1.msra.mxu0 0.0
        %3439 = vmatprep.subr.mxu0 0.0
        %3440 = vmatpush1.msra.mxu0 0.0
        %3441 = vmatprep.subr.mxu0 0.0
        %3442 = vmatpush1.msra.mxu0 0.0
        %3443 = vmatprep.subr.mxu0 0.0
        %3444 = vmatpush1.msra.mxu0 0.0
        %3445 = vmatprep.subr.mxu0 0.0
        %3446 = vmatpush1.msra.mxu0 0.0
        %3447 = vmatprep.subr.mxu0 0.0
        %3448 = vmatpush1.msra.mxu0 0.0
        %3449 = vmatprep.subr.mxu0 0.0
        %3450 = vmatpush1.msra.mxu0 0.0
        %3451 = vmatprep.subr.mxu0 0.0
        %3452 = vmatpush1.msra.mxu0 0.0
        %3453 = vmatprep.subr.mxu0 0.0
        %3454 = vmatpush1.msra.mxu0 0.0
        %3455 = vmatprep.subr.mxu0 0.0
        %3456 = vmatpush1.msra.mxu0 0.0
        %3457 = vmatprep.subr.mxu0 0.0
        %3458 = vmatpush1.msra.mxu0 0.0
        %3459 = vmatprep.subr.mxu0 0.0
        %3460 = vmatpush1.msra.mxu0 0.0
        %3461 = vmatprep.subr.mxu0 0.0
        %3462 = vmatpush1.msra.mxu0 0.0
        %3463 = vmatprep.subr.mxu0 0.0
        %3464 = vmatpush1.msra.mxu0 0.0
        %3465 = vmatprep.subr.mxu0 0.0
        %3466 = vmatpush1.msra.mxu0 0.0
        %3467 = vmatprep.subr.mxu0 0.0
        %3468 = vmatpush1.msra.mxu0 0.0
        %3469 = vmatprep.subr.mxu0 0.0
        %3470 = vmatpush1.msra.mxu0 0.0
        %3471 = vmatprep.subr.mxu0 0.0
        %3472 = vmatpush1.msra.mxu0 0.0
        %3473 = vmatprep.subr.mxu0 0.0
        %3474 = vmatpush1.msra.mxu0 0.0
        %3475 = vmatprep.subr.mxu0 0.0
        %3476 = vmatpush1.msra.mxu0 0.0
        %3477 = vmatprep.subr.mxu0 0.0
        %3478 = vmatpush1.msra.mxu0 0.0
        %3479 = vmatprep.subr.mxu0 0.0
        %3480 = vmatpush1.msra.mxu0 0.0
        %3481 = vmatprep.subr.mxu0 0.0
        %3482 = vmatpush1.msra.mxu0 0.0
        %3483 = vmatprep.subr.mxu0 0.0
        %3484 = vmatpush1.msra.mxu0 0.0
        %3485 = vmatprep.mubr.f32.mxu0 0.0
        %3486 = vmatmul.mubr.f32.gmra.mrb[0].mxu0 %v996
        %v3487 = vpop.f32.mrb[0].mxu0
        %v3488 = vadd.f32 1e-05, %v3487
        %v3489 = vpop.f32.mrb[0].mxu0
        %3490 = vmatprep.mubr.f32.mxu0 0.0
        %3491 = vmatmul.mubr.f32.gmra.mrb[0].mxu0 %v999
        %v3492 = vpop.f32.mrb[0].mxu0
        %v3493 = vadd.f32 1e-05, %v3492
        %v3494 = vpop.f32.mrb[0].mxu0
        %3495 = vdwg.mxu0
        %v3496 = vrsqrt.pop %v3488
        %v3497 = vrsqrt.pop %v3493
        %v3498 = vmul.f32 %v3336, %v3496
        %v3499 = vmul.f32 %v3337, %v3497
        %v3501 = vlaneseq
        %v3502 = vshrl.u32 %v3501, 7
        %v3503 = vsub.s32 0, %v3502
        %v3504 = vrot.slane %v2969, %v3503
        %v3506 = vmul.f32 %v3498, %v3504
        %v3507 = vmul.f32 %v3499, %v3504
        %v3509 = vlaneseq
        %v3510 = vshrl.u32 %v3509, 7
        %v3511 = vsub.s32 0, %v3510
        %v3512 = vrot.slane %v2971, %v3511
        %v3514 = vadd.f32 %v3506, %v3512
        %v3515 = vadd.f32 %v3507, %v3512
        %v3516 = vxor.u32 %v3514, 2147483648
        %v3517 = vxor.u32 %v3515, 2147483648
        %v3518 = vmul.f32 %v3516, 1.442695
        %v3519 = vpow.pop %v3518
        %v3520 = vmul.f32 %v3517, 1.442695
        %v3521 = vpow.pop %v3520
        %v3522 = vadd.f32 %v3519, 1.0
        %v3523 = vadd.f32 %v3521, 1.0
        %v3524 = vrcp.pop %v3522
        %v3525 = vmul.f32 1.0, %v3524
        %v3526 = vrcp.pop %v3523
        %v3527 = vmul.f32 1.0, %v3526
        %v3528 = vmul.f32 %v3514, %v3525
        %v3529 = vmul.f32 %v3515, %v3527
        %s3530 = scalar_lea.vmem %s616, 5
        %v3531 = vld [vmem:[%s3530] sm:$0x1]
        %s3532 = scalar_lea.vmem %s620, 5
        %v3533 = vld [vmem:[%s3532] sm:$0x1]
        %s3534 = scalar_lea.vmem %s624, 5
        %v3535 = vld [vmem:[%s3534] sm:$0x1]
        %v3536 = vrot.slane %v3528, 7
        %v3537 = vrot.slane %v3529, 7
        %v3538 = vsel %vm705, %v3536, %v3537
        %v3539 = vsel %vm705, %v3537, %v3536
        %v3540 = vsel %vm696, %v3539, 0.0
        %v3541 = vsel %vm697, %v3538, 0.0
        %v3542 = vpack.c.bf16 %v3541, %v3540
        %s3543 = scalar_lea.vmem %s536, 240 [#allocation4]
        %v3544 = vld [vmem:[%s3543] sm:$0xf]
        %v3545 = vld [vmem:[%s3543 + $0x4] sm:$0xf]
        %v3546 = vld [vmem:[%s3543 + $0x8] sm:$0xf]
        %v3547 = vld [vmem:[%s3543 + $0xc] sm:$0xf]
        %v3548 = vpack.c.bf16 %v3529, %v3528
        %s3549 = scalar_lea.vmem %s536, 256 [#allocation4]
        %v3550 = vld [vmem:[%s3549] sm:$0xf]
        %v3551 = vld [vmem:[%s3549 + $0x4] sm:$0xf]
        %v3552 = vld [vmem:[%s3549 + $0x8] sm:$0xf]
        %v3553 = vld [vmem:[%s3549 + $0xc] sm:$0xf]
        %v3558 = vunpack.c.l.b16 %v3550
        %v3559 = vunpack.c.l.b16 %v3551
        %v3560 = vunpack.c.l.b16 %v3552
        %v3561 = vunpack.c.l.b16 %v3553
        %v3562 = vpack.c.b16 %v3559, %v3558
        %v3563 = vpack.c.b16 %v3561, %v3560
        %v3567 = vsel %vm733, %v3548, 0
        %3569 = vmatprep.subr.bf16.mxu0 0
        %3570 = vmatpush1.bf16.msra.mxu0 %v3562
        %3571 = vmatprep.subr.bf16.mxu0 0
        %3572 = vmatpush1.bf16.msra.mxu0 %v3563
        %3573 = vmatprep.subr.bf16.mxu0 0
        %3574 = vmatpush1.bf16.msra.mxu0 0
        %3575 = vmatprep.subr.bf16.mxu0 0
        %3576 = vmatpush1.bf16.msra.mxu0 0
        %3577 = vmatprep.subr.bf16.mxu0 0
        %3578 = vmatpush1.bf16.msra.mxu0 0
        %3579 = vmatprep.subr.bf16.mxu0 0
        %3580 = vmatpush1.bf16.msra.mxu0 0
        %3581 = vmatprep.subr.bf16.mxu0 0
        %3582 = vmatpush1.bf16.msra.mxu0 0
        %3583 = vmatprep.subr.bf16.mxu0 0
        %3584 = vmatpush1.bf16.msra.mxu0 0
        %3585 = vmatprep.subr.bf16.mxu0 0
        %3586 = vmatpush1.bf16.msra.mxu0 0
        %3587 = vmatprep.subr.bf16.mxu0 0
        %3588 = vmatpush1.bf16.msra.mxu0 0
        %3589 = vmatprep.subr.bf16.mxu0 0
        %3590 = vmatpush1.bf16.msra.mxu0 0
        %3591 = vmatprep.subr.bf16.mxu0 0
        %3592 = vmatpush1.bf16.msra.mxu0 0
        %3593 = vmatprep.subr.bf16.mxu0 0
        %3594 = vmatpush1.bf16.msra.mxu0 0
        %3595 = vmatprep.subr.bf16.mxu0 0
        %3596 = vmatpush1.bf16.msra.mxu0 0
        %3597 = vmatprep.subr.bf16.mxu0 0
        %3598 = vmatpush1.bf16.msra.mxu0 0
        %3599 = vmatprep.subr.bf16.mxu0 0
        %3600 = vmatpush1.bf16.msra.mxu0 0
        %3601 = vmatprep.mubr.bf16.mxu0 0
        %3602 = vmatmul.mubr.bf16.gmra.mrb[0].mxu0 %v3567
        %v3603 = vpop.f32.mrb[0].mxu0
        %v3604 = vadd.f32 0.0, %v3603
        %v3605 = vpop.f32.mrb[0].mxu0
        %v3606 = vpop.f32.mrb[0].mxu0
        %v3607 = vadd.f32 0.0, %v3606
        %v3608 = vpop.f32.mrb[0].mxu0
        %3609 = vdwg.mxu0
        %v3614 = vunpack.c.l.b16 %v3544
        %v3615 = vunpack.c.l.b16 %v3545
        %v3616 = vunpack.c.l.b16 %v3546
        %v3617 = vunpack.c.l.b16 %v3547
        %v3618 = vpack.c.b16 %v3615, %v3614
        %v3619 = vpack.c.b16 %v3617, %v3616
        %v3623 = vsel %vm733, %v3542, 0
        %3625 = vmatprep.subr.bf16.mxu0 0
        %3626 = vmatpush1.bf16.msra.mxu0 %v3618
        %3627 = vmatprep.subr.bf16.mxu0 0
        %3628 = vmatpush1.bf16.msra.mxu0 %v3619
        %3629 = vmatprep.subr.bf16.mxu0 0
        %3630 = vmatpush1.bf16.msra.mxu0 0
        %3631 = vmatprep.subr.bf16.mxu0 0
        %3632 = vmatpush1.bf16.msra.mxu0 0
        %3633 = vmatprep.subr.bf16.mxu0 0
        %3634 = vmatpush1.bf16.msra.mxu0 0
        %3635 = vmatprep.subr.bf16.mxu0 0
        %3636 = vmatpush1.bf16.msra.mxu0 0
        %3637 = vmatprep.subr.bf16.mxu0 0
        %3638 = vmatpush1.bf16.msra.mxu0 0
        %3639 = vmatprep.subr.bf16.mxu0 0
        %3640 = vmatpush1.bf16.msra.mxu0 0
        %3641 = vmatprep.subr.bf16.mxu0 0
        %3642 = vmatpush1.bf16.msra.mxu0 0
        %3643 = vmatprep.subr.bf16.mxu0 0
        %3644 = vmatpush1.bf16.msra.mxu0 0
        %3645 = vmatprep.subr.bf16.mxu0 0
        %3646 = vmatpush1.bf16.msra.mxu0 0
        %3647 = vmatprep.subr.bf16.mxu0 0
        %3648 = vmatpush1.bf16.msra.mxu0 0
        %3649 = vmatprep.subr.bf16.mxu0 0
        %3650 = vmatpush1.bf16.msra.mxu0 0
        %3651 = vmatprep.subr.bf16.mxu0 0
        %3652 = vmatpush1.bf16.msra.mxu0 0
        %3653 = vmatprep.subr.bf16.mxu0 0
        %3654 = vmatpush1.bf16.msra.mxu0 0
        %3655 = vmatprep.subr.bf16.mxu0 0
        %3656 = vmatpush1.bf16.msra.mxu0 0
        %3657 = vmatprep.mubr.bf16.mxu0 0
        %3658 = vmatmul.mubr.bf16.gmra.mrb[0].mxu0 %v3623
        %v3659 = vpop.f32.mrb[0].mxu0
        %v3660 = vadd.f32 %v3604, %v3659
        %v3661 = vpop.f32.mrb[0].mxu0
        %v3662 = vpop.f32.mrb[0].mxu0
        %v3663 = vadd.f32 %v3607, %v3662
        %v3664 = vpop.f32.mrb[0].mxu0
        %3665 = vdwg.mxu0
        %v3666 = vrot.slane %v3528, 1
        %v3667 = vrot.slane %v3529, 1
        %v3668 = vsel %vm836, %v3666, %v3667
        %v3669 = vsel %vm836, %v3667, %v3666
        %v3670 = vsel %vm698, %v3668, 0.0
        %v3671 = vsel %vm699, %v3669, 0.0
        %v3672 = vpack.c.bf16 %v3671, %v3670
        %s3673 = scalar_lea.vmem %s536, 272 [#allocation4]
        %v3674 = vld [vmem:[%s3673] sm:$0xf]
        %v3675 = vld [vmem:[%s3673 + $0x4] sm:$0xf]
        %v3676 = vld [vmem:[%s3673 + $0x8] sm:$0xf]
        %v3677 = vld [vmem:[%s3673 + $0xc] sm:$0xf]
        %v3682 = vunpack.c.l.b16 %v3674
        %v3683 = vunpack.c.l.b16 %v3675
        %v3684 = vunpack.c.l.b16 %v3676
        %v3685 = vunpack.c.l.b16 %v3677
        %v3686 = vpack.c.b16 %v3683, %v3682
        %v3687 = vpack.c.b16 %v3685, %v3684
        %v3691 = vsel %vm733, %v3672, 0
        %3693 = vmatprep.subr.bf16.mxu0 0
        %3694 = vmatpush1.bf16.msra.mxu0 %v3686
        %3695 = vmatprep.subr.bf16.mxu0 0
        %3696 = vmatpush1.bf16.msra.mxu0 %v3687
        %3697 = vmatprep.subr.bf16.mxu0 0
        %3698 = vmatpush1.bf16.msra.mxu0 0
        %3699 = vmatprep.subr.bf16.mxu0 0
        %3700 = vmatpush1.bf16.msra.mxu0 0
        %3701 = vmatprep.subr.bf16.mxu0 0
        %3702 = vmatpush1.bf16.msra.mxu0 0
        %3703 = vmatprep.subr.bf16.mxu0 0
        %3704 = vmatpush1.bf16.msra.mxu0 0
        %3705 = vmatprep.subr.bf16.mxu0 0
        %3706 = vmatpush1.bf16.msra.mxu0 0
        %3707 = vmatprep.subr.bf16.mxu0 0
        %3708 = vmatpush1.bf16.msra.mxu0 0
        %3709 = vmatprep.subr.bf16.mxu0 0
        %3710 = vmatpush1.bf16.msra.mxu0 0
        %3711 = vmatprep.subr.bf16.mxu0 0
        %3712 = vmatpush1.bf16.msra.mxu0 0
        %3713 = vmatprep.subr.bf16.mxu0 0
        %3714 = vmatpush1.bf16.msra.mxu0 0
        %3715 = vmatprep.subr.bf16.mxu0 0
        %3716 = vmatpush1.bf16.msra.mxu0 0
        %3717 = vmatprep.subr.bf16.mxu0 0
        %3718 = vmatpush1.bf16.msra.mxu0 0
        %3719 = vmatprep.subr.bf16.mxu0 0
        %3720 = vmatpush1.bf16.msra.mxu0 0
        %3721 = vmatprep.subr.bf16.mxu0 0
        %3722 = vmatpush1.bf16.msra.mxu0 0
        %3723 = vmatprep.subr.bf16.mxu0 0
        %3724 = vmatpush1.bf16.msra.mxu0 0
        %3725 = vmatprep.mubr.bf16.mxu0 0
        %3726 = vmatmul.mubr.bf16.gmra.mrb[0].mxu0 %v3691
        %v3727 = vpop.f32.mrb[0].mxu0
        %v3728 = vadd.f32 0.0, %v3727
        %v3729 = vpop.f32.mrb[0].mxu0
        %v3730 = vpop.f32.mrb[0].mxu0
        %v3731 = vadd.f32 0.0, %v3730
        %v3732 = vpop.f32.mrb[0].mxu0
        %3733 = vdwg.mxu0
        %v3734 = vadd.f32 %v3660, %v3728
        %v3735 = vadd.f32 %v3663, %v3731
        %v3737 = vlaneseq
        %v3738 = vshrl.u32 %v3737, 7
        %v3739 = vsub.s32 0, %v3738
        %v3740 = vrot.slane %v3531, %v3739
        %v3742 = vadd.f32 %v3734, %v3740
        %v3743 = vadd.f32 %v3735, %v3740
        %v3745 = vsel %vm733, %v3742, 0
        %v3748 = vsel %vm733, %v3743, 0
        %3750 = vmatprep.subr.mxu0 0.0
        %3751 = vmatpush1.msra.mxu0 %v665
        %3752 = vmatprep.subr.mxu0 0.0
        %3753 = vmatpush1.msra.mxu0 %v666
        %3754 = vmatprep.subr.mxu0 0.0
        %3755 = vmatpush1.msra.mxu0 %v667
        %3756 = vmatprep.subr.mxu0 0.0
        %3757 = vmatpush1.msra.mxu0 %v668
        %3758 = vmatprep.subr.mxu0 0.0
        %3759 = vmatpush1.msra.mxu0 0.0
        %3760 = vmatprep.subr.mxu0 0.0
        %3761 = vmatpush1.msra.mxu0 0.0
        %3762 = vmatprep.subr.mxu0 0.0
        %3763 = vmatpush1.msra.mxu0 0.0
        %3764 = vmatprep.subr.mxu0 0.0
        %3765 = vmatpush1.msra.mxu0 0.0
        %3766 = vmatprep.subr.mxu0 0.0
        %3767 = vmatpush1.msra.mxu0 0.0
        %3768 = vmatprep.subr.mxu0 0.0
        %3769 = vmatpush1.msra.mxu0 0.0
        %3770 = vmatprep.subr.mxu0 0.0
        %3771 = vmatpush1.msra.mxu0 0.0
        %3772 = vmatprep.subr.mxu0 0.0
        %3773 = vmatpush1.msra.mxu0 0.0
        %3774 = vmatprep.subr.mxu0 0.0
        %3775 = vmatpush1.msra.mxu0 0.0
        %3776 = vmatprep.subr.mxu0 0.0
        %3777 = vmatpush1.msra.mxu0 0.0
        %3778 = vmatprep.subr.mxu0 0.0
        %3779 = vmatpush1.msra.mxu0 0.0
        %3780 = vmatprep.subr.mxu0 0.0
        %3781 = vmatpush1.msra.mxu0 0.0
        %3782 = vmatprep.subr.mxu0 0.0
        %3783 = vmatpush1.msra.mxu0 0.0
        %3784 = vmatprep.subr.mxu0 0.0
        %3785 = vmatpush1.msra.mxu0 0.0
        %3786 = vmatprep.subr.mxu0 0.0
        %3787 = vmatpush1.msra.mxu0 0.0
        %3788 = vmatprep.subr.mxu0 0.0
        %3789 = vmatpush1.msra.mxu0 0.0
        %3790 = vmatprep.subr.mxu0 0.0
        %3791 = vmatpush1.msra.mxu0 0.0
        %3792 = vmatprep.subr.mxu0 0.0
        %3793 = vmatpush1.msra.mxu0 0.0
        %3794 = vmatprep.subr.mxu0 0.0
        %3795 = vmatpush1.msra.mxu0 0.0
        %3796 = vmatprep.subr.mxu0 0.0
        %3797 = vmatpush1.msra.mxu0 0.0
        %3798 = vmatprep.subr.mxu0 0.0
        %3799 = vmatpush1.msra.mxu0 0.0
        %3800 = vmatprep.subr.mxu0 0.0
        %3801 = vmatpush1.msra.mxu0 0.0
        %3802 = vmatprep.subr.mxu0 0.0
        %3803 = vmatpush1.msra.mxu0 0.0
        %3804 = vmatprep.subr.mxu0 0.0
        %3805 = vmatpush1.msra.mxu0 0.0
        %3806 = vmatprep.subr.mxu0 0.0
        %3807 = vmatpush1.msra.mxu0 0.0
        %3808 = vmatprep.subr.mxu0 0.0
        %3809 = vmatpush1.msra.mxu0 0.0
        %3810 = vmatprep.subr.mxu0 0.0
        %3811 = vmatpush1.msra.mxu0 0.0
        %3812 = vmatprep.subr.mxu0 0.0
        %3813 = vmatpush1.msra.mxu0 0.0
        %3814 = vmatprep.mubr.f32.mxu0 0.0
        %3815 = vmatmul.mubr.f32.gmra.mrb[0].mxu0 %v3745
        %v3816 = vpop.f32.mrb[0].mxu0
        %v3817 = vadd.f32 0.0, %v3816
        %v3818 = vpop.f32.mrb[0].mxu0
        %3819 = vmatprep.mubr.f32.mxu0 0.0
        %3820 = vmatmul.mubr.f32.gmra.mrb[0].mxu0 %v3748
        %v3821 = vpop.f32.mrb[0].mxu0
        %v3822 = vadd.f32 0.0, %v3821
        %v3823 = vpop.f32.mrb[0].mxu0
        %3824 = vdwg.mxu0
        %3825 = vmatprep.subr.mxu0 0.0
        %3826 = vmatpush1.msra.mxu0 %v3817
        %3827 = vmatprep.subr.mxu0 0.0
        %3828 = vmatpush1.msra.mxu0 %v3822
        %3829 = vmatprep.subr.mxu0 0.0
        %3830 = vmatpush1.msra.mxu0 0.0
        %3831 = vmatprep.subr.mxu0 0.0
        %3832 = vmatpush1.msra.mxu0 0.0
        %3833 = vmatprep.subr.mxu0 0.0
        %3834 = vmatpush1.msra.mxu0 0.0
        %3835 = vmatprep.subr.mxu0 0.0
        %3836 = vmatpush1.msra.mxu0 0.0
        %3837 = vmatprep.subr.mxu0 0.0
        %3838 = vmatpush1.msra.mxu0 0.0
        %3839 = vmatprep.subr.mxu0 0.0
        %3840 = vmatpush1.msra.mxu0 0.0
        %3841 = vmatprep.subr.mxu0 0.0
        %3842 = vmatpush1.msra.mxu0 0.0
        %3843 = vmatprep.subr.mxu0 0.0
        %3844 = vmatpush1.msra.mxu0 0.0
        %3845 = vmatprep.subr.mxu0 0.0
        %3846 = vmatpush1.msra.mxu0 0.0
        %3847 = vmatprep.subr.mxu0 0.0
        %3848 = vmatpush1.msra.mxu0 0.0
        %3849 = vmatprep.subr.mxu0 0.0
        %3850 = vmatpush1.msra.mxu0 0.0
        %3851 = vmatprep.subr.mxu0 0.0
        %3852 = vmatpush1.msra.mxu0 0.0
        %3853 = vmatprep.subr.mxu0 0.0
        %3854 = vmatpush1.msra.mxu0 0.0
        %3855 = vmatprep.subr.mxu0 0.0
        %3856 = vmatpush1.msra.mxu0 0.0
        %3857 = vmatprep.subr.mxu0 0.0
        %3858 = vmatpush1.msra.mxu0 0.0
        %3859 = vmatprep.subr.mxu0 0.0
        %3860 = vmatpush1.msra.mxu0 0.0
        %3861 = vmatprep.subr.mxu0 0.0
        %3862 = vmatpush1.msra.mxu0 0.0
        %3863 = vmatprep.subr.mxu0 0.0
        %3864 = vmatpush1.msra.mxu0 0.0
        %3865 = vmatprep.subr.mxu0 0.0
        %3866 = vmatpush1.msra.mxu0 0.0
        %3867 = vmatprep.subr.mxu0 0.0
        %3868 = vmatpush1.msra.mxu0 0.0
        %3869 = vmatprep.subr.mxu0 0.0
        %3870 = vmatpush1.msra.mxu0 0.0
        %3871 = vmatprep.subr.mxu0 0.0
        %3872 = vmatpush1.msra.mxu0 0.0
        %3873 = vmatprep.subr.mxu0 0.0
        %3874 = vmatpush1.msra.mxu0 0.0
        %3875 = vmatprep.subr.mxu0 0.0
        %3876 = vmatpush1.msra.mxu0 0.0
        %3877 = vmatprep.subr.mxu0 0.0
        %3878 = vmatpush1.msra.mxu0 0.0
        %3879 = vmatprep.subr.mxu0 0.0
        %3880 = vmatpush1.msra.mxu0 0.0
        %3881 = vmatprep.subr.mxu0 0.0
        %3882 = vmatpush1.msra.mxu0 0.0
        %3883 = vmatprep.subr.mxu0 0.0
        %3884 = vmatpush1.msra.mxu0 0.0
        %3885 = vmatprep.subr.mxu0 0.0
        %3886 = vmatpush1.msra.mxu0 0.0
        %3887 = vmatprep.subr.mxu0 0.0
        %3888 = vmatpush1.msra.mxu0 0.0
        %3889 = vmatprep.mubr.f32.mxu0 0.0
        %3890 = vmatmul.mubr.f32.gmra.mrb[0].mxu0 %v996
        %v3891 = vpop.f32.mrb[0].mxu0
        %v3892 = vadd.f32 0.0, %v3891
        %v3893 = vpop.f32.mrb[0].mxu0
        %3894 = vmatprep.mubr.f32.mxu0 0.0
        %3895 = vmatmul.mubr.f32.gmra.mrb[0].mxu0 %v999
        %v3896 = vpop.f32.mrb[0].mxu0
        %v3897 = vadd.f32 0.0, %v3896
        %v3898 = vpop.f32.mrb[0].mxu0
        %3899 = vdwg.mxu0
        %v3900 = vsub.f32 %v3742, %v3892
        %v3901 = vsub.f32 %v3743, %v3897
        %v3902 = vmul.f32 %v3900, %v3900
        %v3903 = vmul.f32 %v3901, %v3901
        %v3905 = vsel %vm733, %v3902, 0
        %v3908 = vsel %vm733, %v3903, 0
        %3910 = vmatprep.subr.mxu0 0.0
        %3911 = vmatpush1.msra.mxu0 %v665
        %3912 = vmatprep.subr.mxu0 0.0
        %3913 = vmatpush1.msra.mxu0 %v666
        %3914 = vmatprep.subr.mxu0 0.0
        %3915 = vmatpush1.msra.mxu0 %v667
        %3916 = vmatprep.subr.mxu0 0.0
        %3917 = vmatpush1.msra.mxu0 %v668
        %3918 = vmatprep.subr.mxu0 0.0
        %3919 = vmatpush1.msra.mxu0 0.0
        %3920 = vmatprep.subr.mxu0 0.0
        %3921 = vmatpush1.msra.mxu0 0.0
        %3922 = vmatprep.subr.mxu0 0.0
        %3923 = vmatpush1.msra.mxu0 0.0
        %3924 = vmatprep.subr.mxu0 0.0
        %3925 = vmatpush1.msra.mxu0 0.0
        %3926 = vmatprep.subr.mxu0 0.0
        %3927 = vmatpush1.msra.mxu0 0.0
        %3928 = vmatprep.subr.mxu0 0.0
        %3929 = vmatpush1.msra.mxu0 0.0
        %3930 = vmatprep.subr.mxu0 0.0
        %3931 = vmatpush1.msra.mxu0 0.0
        %3932 = vmatprep.subr.mxu0 0.0
        %3933 = vmatpush1.msra.mxu0 0.0
        %3934 = vmatprep.subr.mxu0 0.0
        %3935 = vmatpush1.msra.mxu0 0.0
        %3936 = vmatprep.subr.mxu0 0.0
        %3937 = vmatpush1.msra.mxu0 0.0
        %3938 = vmatprep.subr.mxu0 0.0
        %3939 = vmatpush1.msra.mxu0 0.0
        %3940 = vmatprep.subr.mxu0 0.0
        %3941 = vmatpush1.msra.mxu0 0.0
        %3942 = vmatprep.subr.mxu0 0.0
        %3943 = vmatpush1.msra.mxu0 0.0
        %3944 = vmatprep.subr.mxu0 0.0
        %3945 = vmatpush1.msra.mxu0 0.0
        %3946 = vmatprep.subr.mxu0 0.0
        %3947 = vmatpush1.msra.mxu0 0.0
        %3948 = vmatprep.subr.mxu0 0.0
        %3949 = vmatpush1.msra.mxu0 0.0
        %3950 = vmatprep.subr.mxu0 0.0
        %3951 = vmatpush1.msra.mxu0 0.0
        %3952 = vmatprep.subr.mxu0 0.0
        %3953 = vmatpush1.msra.mxu0 0.0
        %3954 = vmatprep.subr.mxu0 0.0
        %3955 = vmatpush1.msra.mxu0 0.0
        %3956 = vmatprep.subr.mxu0 0.0
        %3957 = vmatpush1.msra.mxu0 0.0
        %3958 = vmatprep.subr.mxu0 0.0
        %3959 = vmatpush1.msra.mxu0 0.0
        %3960 = vmatprep.subr.mxu0 0.0
        %3961 = vmatpush1.msra.mxu0 0.0
        %3962 = vmatprep.subr.mxu0 0.0
        %3963 = vmatpush1.msra.mxu0 0.0
        %3964 = vmatprep.subr.mxu0 0.0
        %3965 = vmatpush1.msra.mxu0 0.0
        %3966 = vmatprep.subr.mxu0 0.0
        %3967 = vmatpush1.msra.mxu0 0.0
        %3968 = vmatprep.subr.mxu0 0.0
        %3969 = vmatpush1.msra.mxu0 0.0
        %3970 = vmatprep.subr.mxu0 0.0
        %3971 = vmatpush1.msra.mxu0 0.0
        %3972 = vmatprep.subr.mxu0 0.0
        %3973 = vmatpush1.msra.mxu0 0.0
        %3974 = vmatprep.mubr.f32.mxu0 0.0
        %3975 = vmatmul.mubr.f32.gmra.mrb[0].mxu0 %v3905
        %v3976 = vpop.f32.mrb[0].mxu0
        %v3977 = vadd.f32 0.0, %v3976
        %v3978 = vpop.f32.mrb[0].mxu0
        %3979 = vmatprep.mubr.f32.mxu0 0.0
        %3980 = vmatmul.mubr.f32.gmra.mrb[0].mxu0 %v3908
        %v3981 = vpop.f32.mrb[0].mxu0
        %v3982 = vadd.f32 0.0, %v3981
        %v3983 = vpop.f32.mrb[0].mxu0
        %3984 = vdwg.mxu0
        %3985 = vmatprep.subr.mxu0 0.0
        %3986 = vmatpush1.msra.mxu0 %v3977
        %3987 = vmatprep.subr.mxu0 0.0
        %3988 = vmatpush1.msra.mxu0 %v3982
        %3989 = vmatprep.subr.mxu0 0.0
        %3990 = vmatpush1.msra.mxu0 0.0
        %3991 = vmatprep.subr.mxu0 0.0
        %3992 = vmatpush1.msra.mxu0 0.0
        %3993 = vmatprep.subr.mxu0 0.0
        %3994 = vmatpush1.msra.mxu0 0.0
        %3995 = vmatprep.subr.mxu0 0.0
        %3996 = vmatpush1.msra.mxu0 0.0
        %3997 = vmatprep.subr.mxu0 0.0
        %3998 = vmatpush1.msra.mxu0 0.0
        %3999 = vmatprep.subr.mxu0 0.0
        %4000 = vmatpush1.msra.mxu0 0.0
        %4001 = vmatprep.subr.mxu0 0.0
        %4002 = vmatpush1.msra.mxu0 0.0
        %4003 = vmatprep.subr.mxu0 0.0
        %4004 = vmatpush1.msra.mxu0 0.0
        %4005 = vmatprep.subr.mxu0 0.0
        %4006 = vmatpush1.msra.mxu0 0.0
        %4007 = vmatprep.subr.mxu0 0.0
        %4008 = vmatpush1.msra.mxu0 0.0
        %4009 = vmatprep.subr.mxu0 0.0
        %4010 = vmatpush1.msra.mxu0 0.0
        %4011 = vmatprep.subr.mxu0 0.0
        %4012 = vmatpush1.msra.mxu0 0.0
        %4013 = vmatprep.subr.mxu0 0.0
        %4014 = vmatpush1.msra.mxu0 0.0
        %4015 = vmatprep.subr.mxu0 0.0
        %4016 = vmatpush1.msra.mxu0 0.0
        %4017 = vmatprep.subr.mxu0 0.0
        %4018 = vmatpush1.msra.mxu0 0.0
        %4019 = vmatprep.subr.mxu0 0.0
        %4020 = vmatpush1.msra.mxu0 0.0
        %4021 = vmatprep.subr.mxu0 0.0
        %4022 = vmatpush1.msra.mxu0 0.0
        %4023 = vmatprep.subr.mxu0 0.0
        %4024 = vmatpush1.msra.mxu0 0.0
        %4025 = vmatprep.subr.mxu0 0.0
        %4026 = vmatpush1.msra.mxu0 0.0
        %4027 = vmatprep.subr.mxu0 0.0
        %4028 = vmatpush1.msra.mxu0 0.0
        %4029 = vmatprep.subr.mxu0 0.0
        %4030 = vmatpush1.msra.mxu0 0.0
        %4031 = vmatprep.subr.mxu0 0.0
        %4032 = vmatpush1.msra.mxu0 0.0
        %4033 = vmatprep.subr.mxu0 0.0
        %4034 = vmatpush1.msra.mxu0 0.0
        %4035 = vmatprep.subr.mxu0 0.0
        %4036 = vmatpush1.msra.mxu0 0.0
        %4037 = vmatprep.subr.mxu0 0.0
        %4038 = vmatpush1.msra.mxu0 0.0
        %4039 = vmatprep.subr.mxu0 0.0
        %4040 = vmatpush1.msra.mxu0 0.0
        %4041 = vmatprep.subr.mxu0 0.0
        %4042 = vmatpush1.msra.mxu0 0.0
        %4043 = vmatprep.subr.mxu0 0.0
        %4044 = vmatpush1.msra.mxu0 0.0
        %4045 = vmatprep.subr.mxu0 0.0
        %4046 = vmatpush1.msra.mxu0 0.0
        %4047 = vmatprep.subr.mxu0 0.0
        %4048 = vmatpush1.msra.mxu0 0.0
        %4049 = vmatprep.mubr.f32.mxu0 0.0
        %4050 = vmatmul.mubr.f32.gmra.mrb[0].mxu0 %v996
        %v4051 = vpop.f32.mrb[0].mxu0
        %v4052 = vadd.f32 1e-05, %v4051
        %v4053 = vpop.f32.mrb[0].mxu0
        %4054 = vmatprep.mubr.f32.mxu0 0.0
        %4055 = vmatmul.mubr.f32.gmra.mrb[0].mxu0 %v999
        %v4056 = vpop.f32.mrb[0].mxu0
        %v4057 = vadd.f32 1e-05, %v4056
        %v4058 = vpop.f32.mrb[0].mxu0
        %4059 = vdwg.mxu0
        %v4060 = vrsqrt.pop %v4052
        %v4061 = vrsqrt.pop %v4057
        %v4062 = vmul.f32 %v3900, %v4060
        %v4063 = vmul.f32 %v3901, %v4061
        %v4065 = vlaneseq
        %v4066 = vshrl.u32 %v4065, 7
        %v4067 = vsub.s32 0, %v4066
        %v4068 = vrot.slane %v3533, %v4067
        %v4070 = vmul.f32 %v4062, %v4068
        %v4071 = vmul.f32 %v4063, %v4068
        %v4073 = vlaneseq
        %v4074 = vshrl.u32 %v4073, 7
        %v4075 = vsub.s32 0, %v4074
        %v4076 = vrot.slane %v3535, %v4075
        %v4078 = vadd.f32 %v4070, %v4076
        %v4079 = vadd.f32 %v4071, %v4076
        %v4080 = vxor.u32 %v4078, 2147483648
        %v4081 = vxor.u32 %v4079, 2147483648
        %v4082 = vmul.f32 %v4080, 1.442695
        %v4083 = vpow.pop %v4082
        %v4084 = vmul.f32 %v4081, 1.442695
        %v4085 = vpow.pop %v4084
        %v4086 = vadd.f32 %v4083, 1.0
        %v4087 = vadd.f32 %v4085, 1.0
        %v4088 = vrcp.pop %v4086
        %v4089 = vmul.f32 1.0, %v4088
        %v4090 = vrcp.pop %v4087
        %v4091 = vmul.f32 1.0, %v4090
        %v4092 = vmul.f32 %v4078, %v4089
        %v4093 = vmul.f32 %v4079, %v4091
        %v4094 = vadd.f32 %v4092, %v2964
        %v4095 = vadd.f32 %v4093, %v2965
        %v4096 = vld [vmem:[%s627] sm:$0x1]
        %v4097 = vmul.f32 %v4094, %v4094
        %v4098 = vmul.f32 %v4095, %v4095
        %v4099 = vsel %vm733, %v4097, 0.0
        %4100 = vadd.xlane.f32.xlu0 %v4099
        %v4101 = vpop.xlane.xlu0 %4100
        %v4102 = vsel %vm733, %v4098, 0.0
        %4103 = vadd.xlane.f32.xlu0 %v4102
        %v4104 = vpop.xlane.xlu0 %4103
        %v4105 = vmax.f32 %v4101, 1e-24
        %v4106 = vmax.f32 %v4104, 1e-24
        %v4107 = vrsqrt.pop %v4105
        %v4108 = vrsqrt.pop %v4106
        %v4109 = vmul.f32 %v4094, %v4107
        %v4110 = vmul.f32 %v4095, %v4108
        %v4111 = vmul.f32 %v4109, 5.656854
        %v4112 = vmul.f32 %v4110, 5.656854
        %v4114 = vlaneseq
        %v4115 = vshrl.u32 %v4114, 7
        %v4116 = vsub.s32 0, %v4115
        %v4117 = vrot.slane %v4096, %v4116
        %v4119 = vmul.f32 %v4111, %v4117
        %v4120 = vmul.f32 %v4112, %v4117
        %v4121 = vpack.c.bf16 %v4120, %v4119
        %v4122 = vld [vmem:[%s632] sm:$0xf]
        %v4123 = vld [vmem:[%s632 + $0x4] sm:$0xf]
        %v4124 = vld [vmem:[%s632 + $0x8] sm:$0xf]
        %v4125 = vld [vmem:[%s632 + $0xc] sm:$0xf]
        %v4130 = vunpack.c.l.b16 %v4122
        %v4131 = vunpack.c.l.b16 %v4123
        %v4132 = vunpack.c.l.b16 %v4124
        %v4133 = vunpack.c.l.b16 %v4125
        %v4134 = vpack.c.b16 %v4131, %v4130
        %v4135 = vpack.c.b16 %v4133, %v4132
        %v4139 = vsel %vm733, %v4121, 0
        %4141 = vmatprep.subr.bf16.mxu0 0
        %4142 = vmatpush1.bf16.msra.mxu0 %v4134
        %4143 = vmatprep.subr.bf16.mxu0 0
        %4144 = vmatpush1.bf16.msra.mxu0 %v4135
        %4145 = vmatprep.subr.bf16.mxu0 0
        %4146 = vmatpush1.bf16.msra.mxu0 0
        %4147 = vmatprep.subr.bf16.mxu0 0
        %4148 = vmatpush1.bf16.msra.mxu0 0
        %4149 = vmatprep.subr.bf16.mxu0 0
        %4150 = vmatpush1.bf16.msra.mxu0 0
        %4151 = vmatprep.subr.bf16.mxu0 0
        %4152 = vmatpush1.bf16.msra.mxu0 0
        %4153 = vmatprep.subr.bf16.mxu0 0
        %4154 = vmatpush1.bf16.msra.mxu0 0
        %4155 = vmatprep.subr.bf16.mxu0 0
        %4156 = vmatpush1.bf16.msra.mxu0 0
        %4157 = vmatprep.subr.bf16.mxu0 0
        %4158 = vmatpush1.bf16.msra.mxu0 0
        %4159 = vmatprep.subr.bf16.mxu0 0
        %4160 = vmatpush1.bf16.msra.mxu0 0
        %4161 = vmatprep.subr.bf16.mxu0 0
        %4162 = vmatpush1.bf16.msra.mxu0 0
        %4163 = vmatprep.subr.bf16.mxu0 0
        %4164 = vmatpush1.bf16.msra.mxu0 0
        %4165 = vmatprep.subr.bf16.mxu0 0
        %4166 = vmatpush1.bf16.msra.mxu0 0
        %4167 = vmatprep.subr.bf16.mxu0 0
        %4168 = vmatpush1.bf16.msra.mxu0 0
        %4169 = vmatprep.subr.bf16.mxu0 0
        %4170 = vmatpush1.bf16.msra.mxu0 0
        %4171 = vmatprep.subr.bf16.mxu0 0
        %4172 = vmatpush1.bf16.msra.mxu0 0
        %4173 = vmatprep.mubr.bf16.mxu0 0
        %4174 = vmatmul.mubr.bf16.gmra.mrb[0].mxu0 %v4139
        %v4175 = vpop.f32.mrb[0].mxu0
        %v4176 = vadd.f32 0.0, %v4175
        %v4177 = vpop.f32.mrb[0].mxu0
        %v4178 = vpop.f32.mrb[0].mxu0
        %v4179 = vadd.f32 0.0, %v4178
        %v4180 = vpop.f32.mrb[0].mxu0
        %4181 = vdwg.mxu0
        %v4182 = vmul.f32 %v4176, 0.35355338
        %v4183 = vmul.f32 %v4179, 0.35355338
        %v4184 = vld [vmem:[%s637] sm:$0xf]
        %v4185 = vld [vmem:[%s637 + $0x4] sm:$0xf]
        %v4186 = vld [vmem:[%s637 + $0x8] sm:$0xf]
        %v4187 = vld [vmem:[%s637 + $0xc] sm:$0xf]
        %v4192 = vunpack.c.l.b16 %v4184
        %v4193 = vunpack.c.l.b16 %v4185
        %v4194 = vunpack.c.l.b16 %v4186
        %v4195 = vunpack.c.l.b16 %v4187
        %v4196 = vpack.c.b16 %v4193, %v4192
        %v4197 = vpack.c.b16 %v4195, %v4194
        %4200 = vmatprep.subr.bf16.mxu0 0
        %4201 = vmatpush1.bf16.msra.mxu0 %v4196
        %4202 = vmatprep.subr.bf16.mxu0 0
        %4203 = vmatpush1.bf16.msra.mxu0 %v4197
        %4204 = vmatprep.subr.bf16.mxu0 0
        %4205 = vmatpush1.bf16.msra.mxu0 0
        %4206 = vmatprep.subr.bf16.mxu0 0
        %4207 = vmatpush1.bf16.msra.mxu0 0
        %4208 = vmatprep.subr.bf16.mxu0 0
        %4209 = vmatpush1.bf16.msra.mxu0 0
        %4210 = vmatprep.subr.bf16.mxu0 0
        %4211 = vmatpush1.bf16.msra.mxu0 0
        %4212 = vmatprep.subr.bf16.mxu0 0
        %4213 = vmatpush1.bf16.msra.mxu0 0
        %4214 = vmatprep.subr.bf16.mxu0 0
        %4215 = vmatpush1.bf16.msra.mxu0 0
        %4216 = vmatprep.subr.bf16.mxu0 0
        %4217 = vmatpush1.bf16.msra.mxu0 0
        %4218 = vmatprep.subr.bf16.mxu0 0
        %4219 = vmatpush1.bf16.msra.mxu0 0
        %4220 = vmatprep.subr.bf16.mxu0 0
        %4221 = vmatpush1.bf16.msra.mxu0 0
        %4222 = vmatprep.subr.bf16.mxu0 0
        %4223 = vmatpush1.bf16.msra.mxu0 0
        %4224 = vmatprep.subr.bf16.mxu0 0
        %4225 = vmatpush1.bf16.msra.mxu0 0
        %4226 = vmatprep.subr.bf16.mxu0 0
        %4227 = vmatpush1.bf16.msra.mxu0 0
        %4228 = vmatprep.subr.bf16.mxu0 0
        %4229 = vmatpush1.bf16.msra.mxu0 0
        %4230 = vmatprep.subr.bf16.mxu0 0
        %4231 = vmatpush1.bf16.msra.mxu0 0
        %4232 = vmatprep.mubr.bf16.mxu0 0
        %4233 = vmatmul.mubr.bf16.gmra.mrb[0].mxu0 %v4139
        %v4234 = vpop.f32.mrb[0].mxu0
        %v4235 = vadd.f32 0.0, %v4234
        %v4236 = vpop.f32.mrb[0].mxu0
        %v4237 = vpop.f32.mrb[0].mxu0
        %v4238 = vadd.f32 0.0, %v4237
        %v4239 = vpop.f32.mrb[0].mxu0
        %4240 = vdwg.mxu0
        %v4242 = vsel %vm733, %v662, 0
        %4244 = vmatprep.subr.bf16.mxu0 0
        %4245 = vmatpush1.bf16.msra.mxu0 %v4196
        %4246 = vmatprep.subr.bf16.mxu0 0
        %4247 = vmatpush1.bf16.msra.mxu0 %v4197
        %4248 = vmatprep.subr.bf16.mxu0 0
        %4249 = vmatpush1.bf16.msra.mxu0 0
        %4250 = vmatprep.subr.bf16.mxu0 0
        %4251 = vmatpush1.bf16.msra.mxu0 0
        %4252 = vmatprep.subr.bf16.mxu0 0
        %4253 = vmatpush1.bf16.msra.mxu0 0
        %4254 = vmatprep.subr.bf16.mxu0 0
        %4255 = vmatpush1.bf16.msra.mxu0 0
        %4256 = vmatprep.subr.bf16.mxu0 0
        %4257 = vmatpush1.bf16.msra.mxu0 0
        %4258 = vmatprep.subr.bf16.mxu0 0
        %4259 = vmatpush1.bf16.msra.mxu0 0
        %4260 = vmatprep.subr.bf16.mxu0 0
        %4261 = vmatpush1.bf16.msra.mxu0 0
        %4262 = vmatprep.subr.bf16.mxu0 0
        %4263 = vmatpush1.bf16.msra.mxu0 0
        %4264 = vmatprep.subr.bf16.mxu0 0
        %4265 = vmatpush1.bf16.msra.mxu0 0
        %4266 = vmatprep.subr.bf16.mxu0 0
        %4267 = vmatpush1.bf16.msra.mxu0 0
        %4268 = vmatprep.subr.bf16.mxu0 0
        %4269 = vmatpush1.bf16.msra.mxu0 0
        %4270 = vmatprep.subr.bf16.mxu0 0
        %4271 = vmatpush1.bf16.msra.mxu0 0
        %4272 = vmatprep.subr.bf16.mxu0 0
        %4273 = vmatpush1.bf16.msra.mxu0 0
        %4274 = vmatprep.subr.bf16.mxu0 0
        %4275 = vmatpush1.bf16.msra.mxu0 0
        %4276 = vmatprep.mubr.bf16.mxu0 0
        %4277 = vmatmul.mubr.bf16.gmra.mrb[0].mxu0 %v4242
        %v4278 = vpop.f32.mrb[0].mxu0
        %v4279 = vadd.f32 0.0, %v4278
        %v4280 = vpop.f32.mrb[0].mxu0
        %v4281 = vpop.f32.mrb[0].mxu0
        %v4282 = vadd.f32 0.0, %v4281
        %v4283 = vpop.f32.mrb[0].mxu0
        %4284 = vdwg.mxu0
        %v4285 = vld [vmem:[%s642] sm:$0xf]
        %v4286 = vld [vmem:[%s642 + $0x4] sm:$0xf]
        %v4287 = vld [vmem:[%s642 + $0x8] sm:$0xf]
        %v4288 = vld [vmem:[%s642 + $0xc] sm:$0xf]
        %v4293 = vunpack.c.l.b16 %v4285
        %v4294 = vunpack.c.l.b16 %v4286
        %v4295 = vunpack.c.l.b16 %v4287
        %v4296 = vunpack.c.l.b16 %v4288
        %v4297 = vpack.c.b16 %v4294, %v4293
        %v4298 = vpack.c.b16 %v4296, %v4295
        %4301 = vmatprep.subr.bf16.mxu0 0
        %4302 = vmatpush1.bf16.msra.mxu0 %v4297
        %4303 = vmatprep.subr.bf16.mxu0 0
        %4304 = vmatpush1.bf16.msra.mxu0 %v4298
        %4305 = vmatprep.subr.bf16.mxu0 0
        %4306 = vmatpush1.bf16.msra.mxu0 0
        %4307 = vmatprep.subr.bf16.mxu0 0
        %4308 = vmatpush1.bf16.msra.mxu0 0
        %4309 = vmatprep.subr.bf16.mxu0 0
        %4310 = vmatpush1.bf16.msra.mxu0 0
        %4311 = vmatprep.subr.bf16.mxu0 0
        %4312 = vmatpush1.bf16.msra.mxu0 0
        %4313 = vmatprep.subr.bf16.mxu0 0
        %4314 = vmatpush1.bf16.msra.mxu0 0
        %4315 = vmatprep.subr.bf16.mxu0 0
        %4316 = vmatpush1.bf16.msra.mxu0 0
        %4317 = vmatprep.subr.bf16.mxu0 0
        %4318 = vmatpush1.bf16.msra.mxu0 0
        %4319 = vmatprep.subr.bf16.mxu0 0
        %4320 = vmatpush1.bf16.msra.mxu0 0
        %4321 = vmatprep.subr.bf16.mxu0 0
        %4322 = vmatpush1.bf16.msra.mxu0 0
        %4323 = vmatprep.subr.bf16.mxu0 0
        %4324 = vmatpush1.bf16.msra.mxu0 0
        %4325 = vmatprep.subr.bf16.mxu0 0
        %4326 = vmatpush1.bf16.msra.mxu0 0
        %4327 = vmatprep.subr.bf16.mxu0 0
        %4328 = vmatpush1.bf16.msra.mxu0 0
        %4329 = vmatprep.subr.bf16.mxu0 0
        %4330 = vmatpush1.bf16.msra.mxu0 0
        %4331 = vmatprep.subr.bf16.mxu0 0
        %4332 = vmatpush1.bf16.msra.mxu0 0
        %4333 = vmatprep.mubr.bf16.mxu0 0
        %4334 = vmatmul.mubr.bf16.gmra.mrb[0].mxu0 %v4139
        %v4335 = vpop.f32.mrb[0].mxu0
        %v4336 = vadd.f32 0.0, %v4335
        %v4337 = vpop.f32.mrb[0].mxu0
        %v4338 = vpop.f32.mrb[0].mxu0
        %v4339 = vadd.f32 0.0, %v4338
        %v4340 = vpop.f32.mrb[0].mxu0
        %4341 = vdwg.mxu0
        %4342 = vmatprep.subr.bf16.mxu0 0
        %4343 = vmatpush1.bf16.msra.mxu0 %v4297
        %4344 = vmatprep.subr.bf16.mxu0 0
        %4345 = vmatpush1.bf16.msra.mxu0 %v4298
        %4346 = vmatprep.subr.bf16.mxu0 0
        %4347 = vmatpush1.bf16.msra.mxu0 0
        %4348 = vmatprep.subr.bf16.mxu0 0
        %4349 = vmatpush1.bf16.msra.mxu0 0
        %4350 = vmatprep.subr.bf16.mxu0 0
        %4351 = vmatpush1.bf16.msra.mxu0 0
        %4352 = vmatprep.subr.bf16.mxu0 0
        %4353 = vmatpush1.bf16.msra.mxu0 0
        %4354 = vmatprep.subr.bf16.mxu0 0
        %4355 = vmatpush1.bf16.msra.mxu0 0
        %4356 = vmatprep.subr.bf16.mxu0 0
        %4357 = vmatpush1.bf16.msra.mxu0 0
        %4358 = vmatprep.subr.bf16.mxu0 0
        %4359 = vmatpush1.bf16.msra.mxu0 0
        %4360 = vmatprep.subr.bf16.mxu0 0
        %4361 = vmatpush1.bf16.msra.mxu0 0
        %4362 = vmatprep.subr.bf16.mxu0 0
        %4363 = vmatpush1.bf16.msra.mxu0 0
        %4364 = vmatprep.subr.bf16.mxu0 0
        %4365 = vmatpush1.bf16.msra.mxu0 0
        %4366 = vmatprep.subr.bf16.mxu0 0
        %4367 = vmatpush1.bf16.msra.mxu0 0
        %4368 = vmatprep.subr.bf16.mxu0 0
        %4369 = vmatpush1.bf16.msra.mxu0 0
        %4370 = vmatprep.subr.bf16.mxu0 0
        %4371 = vmatpush1.bf16.msra.mxu0 0
        %4372 = vmatprep.subr.bf16.mxu0 0
        %4373 = vmatpush1.bf16.msra.mxu0 0
        %4374 = vmatprep.mubr.bf16.mxu0 0
        %4375 = vmatmul.mubr.bf16.gmra.mrb[0].mxu0 %v4242
        %v4376 = vpop.f32.mrb[0].mxu0
        %v4377 = vadd.f32 0.0, %v4376
        %v4378 = vpop.f32.mrb[0].mxu0
        %v4379 = vpop.f32.mrb[0].mxu0
        %v4380 = vadd.f32 0.0, %v4379
        %v4381 = vpop.f32.mrb[0].mxu0
        %4382 = vdwg.mxu0
        %v4383 = vpack.c.bf16 %v4182, %v4182
        %v4384 = vpack.c.bf16 %v4279, %v4235
        %vm4385 = vcmask 64512
        %v4387 = vsel %vm4385, %v4383, 0
        %v4390 = vsel %vm4385, %v4384, 0
        %4392 = vmatprep.subr.bf16.mxu0 0
        %4393 = vmatpush1.bf16.xpose.msra.mxu0 %v4390
        %4394 = vmatprep.subr.bf16.mxu0 0
        %4395 = vmatpush1.bf16.xpose.msra.mxu0 0
        %4396 = vmatprep.subr.bf16.mxu0 0
        %4397 = vmatpush1.bf16.xpose.msra.mxu0 0
        %4398 = vmatprep.subr.bf16.mxu0 0
        %4399 = vmatpush1.bf16.xpose.msra.mxu0 0
        %4400 = vmatprep.subr.bf16.mxu0 0
        %4401 = vmatpush1.bf16.xpose.msra.mxu0 0
        %4402 = vmatprep.subr.bf16.mxu0 0
        %4403 = vmatpush1.bf16.xpose.msra.mxu0 0
        %4404 = vmatprep.subr.bf16.mxu0 0
        %4405 = vmatpush1.bf16.xpose.msra.mxu0 0
        %4406 = vmatprep.subr.bf16.mxu0 0
        %4407 = vmatpush1.bf16.xpose.msra.mxu0 0
        %4408 = vmatprep.subr.bf16.mxu0 0
        %4409 = vmatpush1.bf16.xpose.msra.mxu0 0
        %4410 = vmatprep.subr.bf16.mxu0 0
        %4411 = vmatpush1.bf16.xpose.msra.mxu0 0
        %4412 = vmatprep.subr.bf16.mxu0 0
        %4413 = vmatpush1.bf16.xpose.msra.mxu0 0
        %4414 = vmatprep.subr.bf16.mxu0 0
        %4415 = vmatpush1.bf16.xpose.msra.mxu0 0
        %4416 = vmatprep.subr.bf16.mxu0 0
        %4417 = vmatpush1.bf16.xpose.msra.mxu0 0
        %4418 = vmatprep.subr.bf16.mxu0 0
        %4419 = vmatpush1.bf16.xpose.msra.mxu0 0
        %4420 = vmatprep.subr.bf16.mxu0 0
        %4421 = vmatpush1.bf16.xpose.msra.mxu0 0
        %4422 = vmatprep.subr.bf16.mxu0 0
        %4423 = vmatpush1.bf16.xpose.msra.mxu0 0
        %4424 = vmatprep.mubr.bf16.mxu0 0
        %4425 = vmatmul.mubr.bf16.gmra.mrb[0].mxu0 %v4387
        %v4426 = vpop.f32.mrb[0].mxu0
        %v4427 = vadd.f32 0.0, %v4426
        %v4428 = vpop.f32.mrb[0].mxu0
        %v4429 = vpop.f32.mrb[0].mxu0
        %v4430 = vpop.f32.mrb[0].mxu0
        %4431 = vdwg.mxu0
        %v4432 = vsel %vm994, %v4427, -inf
        %4433 = vmax.xlane.f32.xlu0 %v4432
        %v4434 = vpop.xlane.xlu0 %4433
        %v4435 = vsub.f32 %v4427, %v4434
        %v4436 = vmul.f32 %v4435, 1.442695
        %v4437 = vpow.pop %v4436
        %v4438 = vsel %vm994, %v4437, 0.0
        %4439 = vadd.xlane.f32.xlu0 %v4438
        %v4440 = vpop.xlane.xlu0 %4439
        %v4441 = vpack.c.bf16 %v4437, %v4437
        %v4442 = vpack.c.bf16 %v4377, %v4336
        %v4444 = vsel %vm994, %v4441, 0
        %4446 = vmatprep.subr.bf16.mxu0 0
        %4447 = vmatpush1.bf16.msra.mxu0 %v4442
        %4448 = vmatprep.subr.bf16.mxu0 0
        %4449 = vmatpush1.bf16.msra.mxu0 0
        %4450 = vmatprep.subr.bf16.mxu0 0
        %4451 = vmatpush1.bf16.msra.mxu0 0
        %4452 = vmatprep.subr.bf16.mxu0 0
        %4453 = vmatpush1.bf16.msra.mxu0 0
        %4454 = vmatprep.subr.bf16.mxu0 0
        %4455 = vmatpush1.bf16.msra.mxu0 0
        %4456 = vmatprep.subr.bf16.mxu0 0
        %4457 = vmatpush1.bf16.msra.mxu0 0
        %4458 = vmatprep.subr.bf16.mxu0 0
        %4459 = vmatpush1.bf16.msra.mxu0 0
        %4460 = vmatprep.subr.bf16.mxu0 0
        %4461 = vmatpush1.bf16.msra.mxu0 0
        %4462 = vmatprep.subr.bf16.mxu0 0
        %4463 = vmatpush1.bf16.msra.mxu0 0
        %4464 = vmatprep.subr.bf16.mxu0 0
        %4465 = vmatpush1.bf16.msra.mxu0 0
        %4466 = vmatprep.subr.bf16.mxu0 0
        %4467 = vmatpush1.bf16.msra.mxu0 0
        %4468 = vmatprep.subr.bf16.mxu0 0
        %4469 = vmatpush1.bf16.msra.mxu0 0
        %4470 = vmatprep.subr.bf16.mxu0 0
        %4471 = vmatpush1.bf16.msra.mxu0 0
        %4472 = vmatprep.subr.bf16.mxu0 0
        %4473 = vmatpush1.bf16.msra.mxu0 0
        %4474 = vmatprep.subr.bf16.mxu0 0
        %4475 = vmatpush1.bf16.msra.mxu0 0
        %4476 = vmatprep.subr.bf16.mxu0 0
        %4477 = vmatpush1.bf16.msra.mxu0 0
        %4478 = vmatprep.mubr.bf16.mxu0 0
        %4479 = vmatmul.mubr.bf16.gmra.mrb[0].mxu0 %v4444
        %v4480 = vpop.f32.mrb[0].mxu0
        %v4481 = vadd.f32 0.0, %v4480
        %v4482 = vpop.f32.mrb[0].mxu0
        %v4483 = vpop.f32.mrb[0].mxu0
        %v4484 = vpop.f32.mrb[0].mxu0
        %4485 = vdwg.mxu0
        %v4486 = vrcp.pop %v4440
        %v4487 = vmul.f32 %v4481, %v4486
        %v4488 = vpack.c.bf16 %v4183, %v4183
        %v4489 = vpack.c.bf16 %v4282, %v4238
        %v4491 = vsel %vm4385, %v4488, 0
        %v4494 = vsel %vm4385, %v4489, 0
        %4496 = vmatprep.subr.bf16.mxu0 0
        %4497 = vmatpush1.bf16.xpose.msra.mxu0 %v4494
        %4498 = vmatprep.subr.bf16.mxu0 0
        %4499 = vmatpush1.bf16.xpose.msra.mxu0 0
        %4500 = vmatprep.subr.bf16.mxu0 0
        %4501 = vmatpush1.bf16.xpose.msra.mxu0 0
        %4502 = vmatprep.subr.bf16.mxu0 0
        %4503 = vmatpush1.bf16.xpose.msra.mxu0 0
        %4504 = vmatprep.subr.bf16.mxu0 0
        %4505 = vmatpush1.bf16.xpose.msra.mxu0 0
        %4506 = vmatprep.subr.bf16.mxu0 0
        %4507 = vmatpush1.bf16.xpose.msra.mxu0 0
        %4508 = vmatprep.subr.bf16.mxu0 0
        %4509 = vmatpush1.bf16.xpose.msra.mxu0 0
        %4510 = vmatprep.subr.bf16.mxu0 0
        %4511 = vmatpush1.bf16.xpose.msra.mxu0 0
        %4512 = vmatprep.subr.bf16.mxu0 0
        %4513 = vmatpush1.bf16.xpose.msra.mxu0 0
        %4514 = vmatprep.subr.bf16.mxu0 0
        %4515 = vmatpush1.bf16.xpose.msra.mxu0 0
        %4516 = vmatprep.subr.bf16.mxu0 0
        %4517 = vmatpush1.bf16.xpose.msra.mxu0 0
        %4518 = vmatprep.subr.bf16.mxu0 0
        %4519 = vmatpush1.bf16.xpose.msra.mxu0 0
        %4520 = vmatprep.subr.bf16.mxu0 0
        %4521 = vmatpush1.bf16.xpose.msra.mxu0 0
        %4522 = vmatprep.subr.bf16.mxu0 0
        %4523 = vmatpush1.bf16.xpose.msra.mxu0 0
        %4524 = vmatprep.subr.bf16.mxu0 0
        %4525 = vmatpush1.bf16.xpose.msra.mxu0 0
        %4526 = vmatprep.subr.bf16.mxu0 0
        %4527 = vmatpush1.bf16.xpose.msra.mxu0 0
        %4528 = vmatprep.mubr.bf16.mxu0 0
        %4529 = vmatmul.mubr.bf16.gmra.mrb[0].mxu0 %v4491
        %v4530 = vpop.f32.mrb[0].mxu0
        %v4531 = vadd.f32 0.0, %v4530
        %v4532 = vpop.f32.mrb[0].mxu0
        %v4533 = vpop.f32.mrb[0].mxu0
        %v4534 = vpop.f32.mrb[0].mxu0
        %4535 = vdwg.mxu0
        %v4536 = vsel %vm994, %v4531, -inf
        %4537 = vmax.xlane.f32.xlu0 %v4536
        %v4538 = vpop.xlane.xlu0 %4537
        %v4539 = vsub.f32 %v4531, %v4538
        %v4540 = vmul.f32 %v4539, 1.442695
        %v4541 = vpow.pop %v4540
        %v4542 = vsel %vm994, %v4541, 0.0
        %4543 = vadd.xlane.f32.xlu0 %v4542
        %v4544 = vpop.xlane.xlu0 %4543
        %v4545 = vpack.c.bf16 %v4541, %v4541
        %v4546 = vpack.c.bf16 %v4380, %v4339
        %v4548 = vsel %vm994, %v4545, 0
        %4550 = vmatprep.subr.bf16.mxu0 0
        %4551 = vmatpush1.bf16.msra.mxu0 %v4546
        %4552 = vmatprep.subr.bf16.mxu0 0
        %4553 = vmatpush1.bf16.msra.mxu0 0
        %4554 = vmatprep.subr.bf16.mxu0 0
        %4555 = vmatpush1.bf16.msra.mxu0 0
        %4556 = vmatprep.subr.bf16.mxu0 0
        %4557 = vmatpush1.bf16.msra.mxu0 0
        %4558 = vmatprep.subr.bf16.mxu0 0
        %4559 = vmatpush1.bf16.msra.mxu0 0
        %4560 = vmatprep.subr.bf16.mxu0 0
        %4561 = vmatpush1.bf16.msra.mxu0 0
        %4562 = vmatprep.subr.bf16.mxu0 0
        %4563 = vmatpush1.bf16.msra.mxu0 0
        %4564 = vmatprep.subr.bf16.mxu0 0
        %4565 = vmatpush1.bf16.msra.mxu0 0
        %4566 = vmatprep.subr.bf16.mxu0 0
        %4567 = vmatpush1.bf16.msra.mxu0 0
        %4568 = vmatprep.subr.bf16.mxu0 0
        %4569 = vmatpush1.bf16.msra.mxu0 0
        %4570 = vmatprep.subr.bf16.mxu0 0
        %4571 = vmatpush1.bf16.msra.mxu0 0
        %4572 = vmatprep.subr.bf16.mxu0 0
        %4573 = vmatpush1.bf16.msra.mxu0 0
        %4574 = vmatprep.subr.bf16.mxu0 0
        %4575 = vmatpush1.bf16.msra.mxu0 0
        %4576 = vmatprep.subr.bf16.mxu0 0
        %4577 = vmatpush1.bf16.msra.mxu0 0
        %4578 = vmatprep.subr.bf16.mxu0 0
        %4579 = vmatpush1.bf16.msra.mxu0 0
        %4580 = vmatprep.subr.bf16.mxu0 0
        %4581 = vmatpush1.bf16.msra.mxu0 0
        %4582 = vmatprep.mubr.bf16.mxu0 0
        %4583 = vmatmul.mubr.bf16.gmra.mrb[0].mxu0 %v4548
        %v4584 = vpop.f32.mrb[0].mxu0
        %v4585 = vadd.f32 0.0, %v4584
        %v4586 = vpop.f32.mrb[0].mxu0
        %v4587 = vpop.f32.mrb[0].mxu0
        %v4588 = vpop.f32.mrb[0].mxu0
        %4589 = vdwg.mxu0
        %v4590 = vrcp.pop %v4544
        %v4591 = vmul.f32 %v4585, %v4590
        %v4592 = vpack.c.bf16 %v4591, %v4487
        %v4593 = vld [vmem:[%s647] sm:$0xf]
        %v4595 = vsel %vm4385, %v4592, 0
        %vm4597 = vcmask 1043456
        %v4599 = vsel %vm4597, %v4593, 0
        %4601 = vmatprep.subr.bf16.mxu0 0
        %4602 = vmatpush1.bf16.msra.mxu0 %v4599
        %4603 = vmatprep.subr.bf16.mxu0 0
        %4604 = vmatpush1.bf16.msra.mxu0 0
        %4605 = vmatprep.subr.bf16.mxu0 0
        %4606 = vmatpush1.bf16.msra.mxu0 0
        %4607 = vmatprep.subr.bf16.mxu0 0
        %4608 = vmatpush1.bf16.msra.mxu0 0
        %4609 = vmatprep.subr.bf16.mxu0 0
        %4610 = vmatpush1.bf16.msra.mxu0 0
        %4611 = vmatprep.subr.bf16.mxu0 0
        %4612 = vmatpush1.bf16.msra.mxu0 0
        %4613 = vmatprep.subr.bf16.mxu0 0
        %4614 = vmatpush1.bf16.msra.mxu0 0
        %4615 = vmatprep.subr.bf16.mxu0 0
        %4616 = vmatpush1.bf16.msra.mxu0 0
        %4617 = vmatprep.subr.bf16.mxu0 0
        %4618 = vmatpush1.bf16.msra.mxu0 0
        %4619 = vmatprep.subr.bf16.mxu0 0
        %4620 = vmatpush1.bf16.msra.mxu0 0
        %4621 = vmatprep.subr.bf16.mxu0 0
        %4622 = vmatpush1.bf16.msra.mxu0 0
        %4623 = vmatprep.subr.bf16.mxu0 0
        %4624 = vmatpush1.bf16.msra.mxu0 0
        %4625 = vmatprep.subr.bf16.mxu0 0
        %4626 = vmatpush1.bf16.msra.mxu0 0
        %4627 = vmatprep.subr.bf16.mxu0 0
        %4628 = vmatpush1.bf16.msra.mxu0 0
        %4629 = vmatprep.subr.bf16.mxu0 0
        %4630 = vmatpush1.bf16.msra.mxu0 0
        %4631 = vmatprep.subr.bf16.mxu0 0
        %4632 = vmatpush1.bf16.msra.mxu0 0
        %4633 = vmatprep.mubr.bf16.mxu0 0
        %4634 = vmatmul.mubr.bf16.gmra.mrb[0].mxu0 %v4595
        %v4635 = vpop.f32.mrb[0].mxu0
        %v4636 = vadd.f32 0.0, %v4635
        %v4637 = vpop.f32.mrb[0].mxu0
        %v4638 = vpop.f32.mrb[0].mxu0
        %v4639 = vadd.f32 0.0, %v4638
        %v4640 = vpop.f32.mrb[0].mxu0
        %4641 = vdwg.mxu0
        %v4642 = vadd.f32 %v4094, %v4636
        %v4643 = vadd.f32 %v4095, %v4639
        %s4644 = scalar_lea.vmem %s632, 16
        %v4645 = vld [vmem:[%s4644] sm:$0xf]
        %v4646 = vld [vmem:[%s4644 + $0x4] sm:$0xf]
        %v4647 = vld [vmem:[%s4644 + $0x8] sm:$0xf]
        %v4648 = vld [vmem:[%s4644 + $0xc] sm:$0xf]
        %v4653 = vunpack.c.l.b16 %v4645
        %v4654 = vunpack.c.l.b16 %v4646
        %v4655 = vunpack.c.l.b16 %v4647
        %v4656 = vunpack.c.l.b16 %v4648
        %v4657 = vpack.c.b16 %v4654, %v4653
        %v4658 = vpack.c.b16 %v4656, %v4655
        %4661 = vmatprep.subr.bf16.mxu0 0
        %4662 = vmatpush1.bf16.msra.mxu0 %v4657
        %4663 = vmatprep.subr.bf16.mxu0 0
        %4664 = vmatpush1.bf16.msra.mxu0 %v4658
        %4665 = vmatprep.subr.bf16.mxu0 0
        %4666 = vmatpush1.bf16.msra.mxu0 0
        %4667 = vmatprep.subr.bf16.mxu0 0
        %4668 = vmatpush1.bf16.msra.mxu0 0
        %4669 = vmatprep.subr.bf16.mxu0 0
        %4670 = vmatpush1.bf16.msra.mxu0 0
        %4671 = vmatprep.subr.bf16.mxu0 0
        %4672 = vmatpush1.bf16.msra.mxu0 0
        %4673 = vmatprep.subr.bf16.mxu0 0
        %4674 = vmatpush1.bf16.msra.mxu0 0
        %4675 = vmatprep.subr.bf16.mxu0 0
        %4676 = vmatpush1.bf16.msra.mxu0 0
        %4677 = vmatprep.subr.bf16.mxu0 0
        %4678 = vmatpush1.bf16.msra.mxu0 0
        %4679 = vmatprep.subr.bf16.mxu0 0
        %4680 = vmatpush1.bf16.msra.mxu0 0
        %4681 = vmatprep.subr.bf16.mxu0 0
        %4682 = vmatpush1.bf16.msra.mxu0 0
        %4683 = vmatprep.subr.bf16.mxu0 0
        %4684 = vmatpush1.bf16.msra.mxu0 0
        %4685 = vmatprep.subr.bf16.mxu0 0
        %4686 = vmatpush1.bf16.msra.mxu0 0
        %4687 = vmatprep.subr.bf16.mxu0 0
        %4688 = vmatpush1.bf16.msra.mxu0 0
        %4689 = vmatprep.subr.bf16.mxu0 0
        %4690 = vmatpush1.bf16.msra.mxu0 0
        %4691 = vmatprep.subr.bf16.mxu0 0
        %4692 = vmatpush1.bf16.msra.mxu0 0
        %4693 = vmatprep.mubr.bf16.mxu0 0
        %4694 = vmatmul.mubr.bf16.gmra.mrb[0].mxu0 %v4139
        %v4695 = vpop.f32.mrb[0].mxu0
        %v4696 = vadd.f32 0.0, %v4695
        %v4697 = vpop.f32.mrb[0].mxu0
        %v4698 = vpop.f32.mrb[0].mxu0
        %v4699 = vadd.f32 0.0, %v4698
        %v4700 = vpop.f32.mrb[0].mxu0
        %4701 = vdwg.mxu0
        %v4702 = vmul.f32 %v4696, 0.35355338
        %v4703 = vmul.f32 %v4699, 0.35355338
        %s4704 = scalar_lea.vmem %s637, 16
        %v4705 = vld [vmem:[%s4704] sm:$0xf]
        %v4706 = vld [vmem:[%s4704 + $0x4] sm:$0xf]
        %v4707 = vld [vmem:[%s4704 + $0x8] sm:$0xf]
        %v4708 = vld [vmem:[%s4704 + $0xc] sm:$0xf]
        %v4713 = vunpack.c.l.b16 %v4705
        %v4714 = vunpack.c.l.b16 %v4706
        %v4715 = vunpack.c.l.b16 %v4707
        %v4716 = vunpack.c.l.b16 %v4708
        %v4717 = vpack.c.b16 %v4714, %v4713
        %v4718 = vpack.c.b16 %v4716, %v4715
        %4721 = vmatprep.subr.bf16.mxu0 0
        %4722 = vmatpush1.bf16.msra.mxu0 %v4717
        %4723 = vmatprep.subr.bf16.mxu0 0
        %4724 = vmatpush1.bf16.msra.mxu0 %v4718
        %4725 = vmatprep.subr.bf16.mxu0 0
        %4726 = vmatpush1.bf16.msra.mxu0 0
        %4727 = vmatprep.subr.bf16.mxu0 0
        %4728 = vmatpush1.bf16.msra.mxu0 0
        %4729 = vmatprep.subr.bf16.mxu0 0
        %4730 = vmatpush1.bf16.msra.mxu0 0
        %4731 = vmatprep.subr.bf16.mxu0 0
        %4732 = vmatpush1.bf16.msra.mxu0 0
        %4733 = vmatprep.subr.bf16.mxu0 0
        %4734 = vmatpush1.bf16.msra.mxu0 0
        %4735 = vmatprep.subr.bf16.mxu0 0
        %4736 = vmatpush1.bf16.msra.mxu0 0
        %4737 = vmatprep.subr.bf16.mxu0 0
        %4738 = vmatpush1.bf16.msra.mxu0 0
        %4739 = vmatprep.subr.bf16.mxu0 0
        %4740 = vmatpush1.bf16.msra.mxu0 0
        %4741 = vmatprep.subr.bf16.mxu0 0
        %4742 = vmatpush1.bf16.msra.mxu0 0
        %4743 = vmatprep.subr.bf16.mxu0 0
        %4744 = vmatpush1.bf16.msra.mxu0 0
        %4745 = vmatprep.subr.bf16.mxu0 0
        %4746 = vmatpush1.bf16.msra.mxu0 0
        %4747 = vmatprep.subr.bf16.mxu0 0
        %4748 = vmatpush1.bf16.msra.mxu0 0
        %4749 = vmatprep.subr.bf16.mxu0 0
        %4750 = vmatpush1.bf16.msra.mxu0 0
        %4751 = vmatprep.subr.bf16.mxu0 0
        %4752 = vmatpush1.bf16.msra.mxu0 0
        %4753 = vmatprep.mubr.bf16.mxu0 0
        %4754 = vmatmul.mubr.bf16.gmra.mrb[0].mxu0 %v4139
        %v4755 = vpop.f32.mrb[0].mxu0
        %v4756 = vadd.f32 0.0, %v4755
        %v4757 = vpop.f32.mrb[0].mxu0
        %v4758 = vpop.f32.mrb[0].mxu0
        %v4759 = vadd.f32 0.0, %v4758
        %v4760 = vpop.f32.mrb[0].mxu0
        %4761 = vdwg.mxu0
        %4762 = vmatprep.subr.bf16.mxu0 0
        %4763 = vmatpush1.bf16.msra.mxu0 %v4717
        %4764 = vmatprep.subr.bf16.mxu0 0
        %4765 = vmatpush1.bf16.msra.mxu0 %v4718
        %4766 = vmatprep.subr.bf16.mxu0 0
        %4767 = vmatpush1.bf16.msra.mxu0 0
        %4768 = vmatprep.subr.bf16.mxu0 0
        %4769 = vmatpush1.bf16.msra.mxu0 0
        %4770 = vmatprep.subr.bf16.mxu0 0
        %4771 = vmatpush1.bf16.msra.mxu0 0
        %4772 = vmatprep.subr.bf16.mxu0 0
        %4773 = vmatpush1.bf16.msra.mxu0 0
        %4774 = vmatprep.subr.bf16.mxu0 0
        %4775 = vmatpush1.bf16.msra.mxu0 0
        %4776 = vmatprep.subr.bf16.mxu0 0
        %4777 = vmatpush1.bf16.msra.mxu0 0
        %4778 = vmatprep.subr.bf16.mxu0 0
        %4779 = vmatpush1.bf16.msra.mxu0 0
        %4780 = vmatprep.subr.bf16.mxu0 0
        %4781 = vmatpush1.bf16.msra.mxu0 0
        %4782 = vmatprep.subr.bf16.mxu0 0
        %4783 = vmatpush1.bf16.msra.mxu0 0
        %4784 = vmatprep.subr.bf16.mxu0 0
        %4785 = vmatpush1.bf16.msra.mxu0 0
        %4786 = vmatprep.subr.bf16.mxu0 0
        %4787 = vmatpush1.bf16.msra.mxu0 0
        %4788 = vmatprep.subr.bf16.mxu0 0
        %4789 = vmatpush1.bf16.msra.mxu0 0
        %4790 = vmatprep.subr.bf16.mxu0 0
        %4791 = vmatpush1.bf16.msra.mxu0 0
        %4792 = vmatprep.subr.bf16.mxu0 0
        %4793 = vmatpush1.bf16.msra.mxu0 0
        %4794 = vmatprep.mubr.bf16.mxu0 0
        %4795 = vmatmul.mubr.bf16.gmra.mrb[0].mxu0 %v4242
        %v4796 = vpop.f32.mrb[0].mxu0
        %v4797 = vadd.f32 0.0, %v4796
        %v4798 = vpop.f32.mrb[0].mxu0
        %v4799 = vpop.f32.mrb[0].mxu0
        %v4800 = vadd.f32 0.0, %v4799
        %v4801 = vpop.f32.mrb[0].mxu0
        %4802 = vdwg.mxu0
        %s4803 = scalar_lea.vmem %s642, 16
        %v4804 = vld [vmem:[%s4803] sm:$0xf]
        %v4805 = vld [vmem:[%s4803 + $0x4] sm:$0xf]
        %v4806 = vld [vmem:[%s4803 + $0x8] sm:$0xf]
        %v4807 = vld [vmem:[%s4803 + $0xc] sm:$0xf]
        %v4812 = vunpack.c.l.b16 %v4804
        %v4813 = vunpack.c.l.b16 %v4805
        %v4814 = vunpack.c.l.b16 %v4806
        %v4815 = vunpack.c.l.b16 %v4807
        %v4816 = vpack.c.b16 %v4813, %v4812
        %v4817 = vpack.c.b16 %v4815, %v4814
        %4820 = vmatprep.subr.bf16.mxu0 0
        %4821 = vmatpush1.bf16.msra.mxu0 %v4816
        %4822 = vmatprep.subr.bf16.mxu0 0
        %4823 = vmatpush1.bf16.msra.mxu0 %v4817
        %4824 = vmatprep.subr.bf16.mxu0 0
        %4825 = vmatpush1.bf16.msra.mxu0 0
        %4826 = vmatprep.subr.bf16.mxu0 0
        %4827 = vmatpush1.bf16.msra.mxu0 0
        %4828 = vmatprep.subr.bf16.mxu0 0
        %4829 = vmatpush1.bf16.msra.mxu0 0
        %4830 = vmatprep.subr.bf16.mxu0 0
        %4831 = vmatpush1.bf16.msra.mxu0 0
        %4832 = vmatprep.subr.bf16.mxu0 0
        %4833 = vmatpush1.bf16.msra.mxu0 0
        %4834 = vmatprep.subr.bf16.mxu0 0
        %4835 = vmatpush1.bf16.msra.mxu0 0
        %4836 = vmatprep.subr.bf16.mxu0 0
        %4837 = vmatpush1.bf16.msra.mxu0 0
        %4838 = vmatprep.subr.bf16.mxu0 0
        %4839 = vmatpush1.bf16.msra.mxu0 0
        %4840 = vmatprep.subr.bf16.mxu0 0
        %4841 = vmatpush1.bf16.msra.mxu0 0
        %4842 = vmatprep.subr.bf16.mxu0 0
        %4843 = vmatpush1.bf16.msra.mxu0 0
        %4844 = vmatprep.subr.bf16.mxu0 0
        %4845 = vmatpush1.bf16.msra.mxu0 0
        %4846 = vmatprep.subr.bf16.mxu0 0
        %4847 = vmatpush1.bf16.msra.mxu0 0
        %4848 = vmatprep.subr.bf16.mxu0 0
        %4849 = vmatpush1.bf16.msra.mxu0 0
        %4850 = vmatprep.subr.bf16.mxu0 0
        %4851 = vmatpush1.bf16.msra.mxu0 0
        %4852 = vmatprep.mubr.bf16.mxu0 0
        %4853 = vmatmul.mubr.bf16.gmra.mrb[0].mxu0 %v4139
        %v4854 = vpop.f32.mrb[0].mxu0
        %v4855 = vadd.f32 0.0, %v4854
        %v4856 = vpop.f32.mrb[0].mxu0
        %v4857 = vpop.f32.mrb[0].mxu0
        %v4858 = vadd.f32 0.0, %v4857
        %v4859 = vpop.f32.mrb[0].mxu0
        %4860 = vdwg.mxu0
        %4861 = vmatprep.subr.bf16.mxu0 0
        %4862 = vmatpush1.bf16.msra.mxu0 %v4816
        %4863 = vmatprep.subr.bf16.mxu0 0
        %4864 = vmatpush1.bf16.msra.mxu0 %v4817
        %4865 = vmatprep.subr.bf16.mxu0 0
        %4866 = vmatpush1.bf16.msra.mxu0 0
        %4867 = vmatprep.subr.bf16.mxu0 0
        %4868 = vmatpush1.bf16.msra.mxu0 0
        %4869 = vmatprep.subr.bf16.mxu0 0
        %4870 = vmatpush1.bf16.msra.mxu0 0
        %4871 = vmatprep.subr.bf16.mxu0 0
        %4872 = vmatpush1.bf16.msra.mxu0 0
        %4873 = vmatprep.subr.bf16.mxu0 0
        %4874 = vmatpush1.bf16.msra.mxu0 0
        %4875 = vmatprep.subr.bf16.mxu0 0
        %4876 = vmatpush1.bf16.msra.mxu0 0
        %4877 = vmatprep.subr.bf16.mxu0 0
        %4878 = vmatpush1.bf16.msra.mxu0 0
        %4879 = vmatprep.subr.bf16.mxu0 0
        %4880 = vmatpush1.bf16.msra.mxu0 0
        %4881 = vmatprep.subr.bf16.mxu0 0
        %4882 = vmatpush1.bf16.msra.mxu0 0
        %4883 = vmatprep.subr.bf16.mxu0 0
        %4884 = vmatpush1.bf16.msra.mxu0 0
        %4885 = vmatprep.subr.bf16.mxu0 0
        %4886 = vmatpush1.bf16.msra.mxu0 0
        %4887 = vmatprep.subr.bf16.mxu0 0
        %4888 = vmatpush1.bf16.msra.mxu0 0
        %4889 = vmatprep.subr.bf16.mxu0 0
        %4890 = vmatpush1.bf16.msra.mxu0 0
        %4891 = vmatprep.subr.bf16.mxu0 0
        %4892 = vmatpush1.bf16.msra.mxu0 0
        %4893 = vmatprep.mubr.bf16.mxu0 0
        %4894 = vmatmul.mubr.bf16.gmra.mrb[0].mxu0 %v4242
        %v4895 = vpop.f32.mrb[0].mxu0
        %v4896 = vadd.f32 0.0, %v4895
        %v4897 = vpop.f32.mrb[0].mxu0
        %v4898 = vpop.f32.mrb[0].mxu0
        %v4899 = vadd.f32 0.0, %v4898
        %v4900 = vpop.f32.mrb[0].mxu0
        %4901 = vdwg.mxu0
        %v4902 = vpack.c.bf16 %v4702, %v4702
        %v4903 = vpack.c.bf16 %v4797, %v4756
        %v4905 = vsel %vm4385, %v4902, 0
        %v4908 = vsel %vm4385, %v4903, 0
        %4910 = vmatprep.subr.bf16.mxu0 0
        %4911 = vmatpush1.bf16.xpose.msra.mxu0 %v4908
        %4912 = vmatprep.subr.bf16.mxu0 0
        %4913 = vmatpush1.bf16.xpose.msra.mxu0 0
        %4914 = vmatprep.subr.bf16.mxu0 0
        %4915 = vmatpush1.bf16.xpose.msra.mxu0 0
        %4916 = vmatprep.subr.bf16.mxu0 0
        %4917 = vmatpush1.bf16.xpose.msra.mxu0 0
        %4918 = vmatprep.subr.bf16.mxu0 0
        %4919 = vmatpush1.bf16.xpose.msra.mxu0 0
        %4920 = vmatprep.subr.bf16.mxu0 0
        %4921 = vmatpush1.bf16.xpose.msra.mxu0 0
        %4922 = vmatprep.subr.bf16.mxu0 0
        %4923 = vmatpush1.bf16.xpose.msra.mxu0 0
        %4924 = vmatprep.subr.bf16.mxu0 0
        %4925 = vmatpush1.bf16.xpose.msra.mxu0 0
        %4926 = vmatprep.subr.bf16.mxu0 0
        %4927 = vmatpush1.bf16.xpose.msra.mxu0 0
        %4928 = vmatprep.subr.bf16.mxu0 0
        %4929 = vmatpush1.bf16.xpose.msra.mxu0 0
        %4930 = vmatprep.subr.bf16.mxu0 0
        %4931 = vmatpush1.bf16.xpose.msra.mxu0 0
        %4932 = vmatprep.subr.bf16.mxu0 0
        %4933 = vmatpush1.bf16.xpose.msra.mxu0 0
        %4934 = vmatprep.subr.bf16.mxu0 0
        %4935 = vmatpush1.bf16.xpose.msra.mxu0 0
        %4936 = vmatprep.subr.bf16.mxu0 0
        %4937 = vmatpush1.bf16.xpose.msra.mxu0 0
        %4938 = vmatprep.subr.bf16.mxu0 0
        %4939 = vmatpush1.bf16.xpose.msra.mxu0 0
        %4940 = vmatprep.subr.bf16.mxu0 0
        %4941 = vmatpush1.bf16.xpose.msra.mxu0 0
        %4942 = vmatprep.mubr.bf16.mxu0 0
        %4943 = vmatmul.mubr.bf16.gmra.mrb[0].mxu0 %v4905
        %v4944 = vpop.f32.mrb[0].mxu0
        %v4945 = vadd.f32 0.0, %v4944
        %v4946 = vpop.f32.mrb[0].mxu0
        %v4947 = vpop.f32.mrb[0].mxu0
        %v4948 = vpop.f32.mrb[0].mxu0
        %4949 = vdwg.mxu0
        %v4950 = vsel %vm994, %v4945, -inf
        %4951 = vmax.xlane.f32.xlu0 %v4950
        %v4952 = vpop.xlane.xlu0 %4951
        %v4953 = vsub.f32 %v4945, %v4952
        %v4954 = vmul.f32 %v4953, 1.442695
        %v4955 = vpow.pop %v4954
        %v4956 = vsel %vm994, %v4955, 0.0
        %4957 = vadd.xlane.f32.xlu0 %v4956
        %v4958 = vpop.xlane.xlu0 %4957
        %v4959 = vpack.c.bf16 %v4955, %v4955
        %v4960 = vpack.c.bf16 %v4896, %v4855
        %v4962 = vsel %vm994, %v4959, 0
        %4964 = vmatprep.subr.bf16.mxu0 0
        %4965 = vmatpush1.bf16.msra.mxu0 %v4960
        %4966 = vmatprep.subr.bf16.mxu0 0
        %4967 = vmatpush1.bf16.msra.mxu0 0
        %4968 = vmatprep.subr.bf16.mxu0 0
        %4969 = vmatpush1.bf16.msra.mxu0 0
        %4970 = vmatprep.subr.bf16.mxu0 0
        %4971 = vmatpush1.bf16.msra.mxu0 0
        %4972 = vmatprep.subr.bf16.mxu0 0
        %4973 = vmatpush1.bf16.msra.mxu0 0
        %4974 = vmatprep.subr.bf16.mxu0 0
        %4975 = vmatpush1.bf16.msra.mxu0 0
        %4976 = vmatprep.subr.bf16.mxu0 0
        %4977 = vmatpush1.bf16.msra.mxu0 0
        %4978 = vmatprep.subr.bf16.mxu0 0
        %4979 = vmatpush1.bf16.msra.mxu0 0
        %4980 = vmatprep.subr.bf16.mxu0 0
        %4981 = vmatpush1.bf16.msra.mxu0 0
        %4982 = vmatprep.subr.bf16.mxu0 0
        %4983 = vmatpush1.bf16.msra.mxu0 0
        %4984 = vmatprep.subr.bf16.mxu0 0
        %4985 = vmatpush1.bf16.msra.mxu0 0
        %4986 = vmatprep.subr.bf16.mxu0 0
        %4987 = vmatpush1.bf16.msra.mxu0 0
        %4988 = vmatprep.subr.bf16.mxu0 0
        %4989 = vmatpush1.bf16.msra.mxu0 0
        %4990 = vmatprep.subr.bf16.mxu0 0
        %4991 = vmatpush1.bf16.msra.mxu0 0
        %4992 = vmatprep.subr.bf16.mxu0 0
        %4993 = vmatpush1.bf16.msra.mxu0 0
        %4994 = vmatprep.subr.bf16.mxu0 0
        %4995 = vmatpush1.bf16.msra.mxu0 0
        %4996 = vmatprep.mubr.bf16.mxu0 0
        %4997 = vmatmul.mubr.bf16.gmra.mrb[0].mxu0 %v4962
        %v4998 = vpop.f32.mrb[0].mxu0
        %v4999 = vadd.f32 0.0, %v4998
        %v5000 = vpop.f32.mrb[0].mxu0
        %v5001 = vpop.f32.mrb[0].mxu0
        %v5002 = vpop.f32.mrb[0].mxu0
        %5003 = vdwg.mxu0
        %v5004 = vrcp.pop %v4958
        %v5005 = vmul.f32 %v4999, %v5004
        %v5006 = vpack.c.bf16 %v4703, %v4703
        %v5007 = vpack.c.bf16 %v4800, %v4759
        %v5009 = vsel %vm4385, %v5006, 0
        %v5012 = vsel %vm4385, %v5007, 0
        %5014 = vmatprep.subr.bf16.mxu0 0
        %5015 = vmatpush1.bf16.xpose.msra.mxu0 %v5012
        %5016 = vmatprep.subr.bf16.mxu0 0
        %5017 = vmatpush1.bf16.xpose.msra.mxu0 0
        %5018 = vmatprep.subr.bf16.mxu0 0
        %5019 = vmatpush1.bf16.xpose.msra.mxu0 0
        %5020 = vmatprep.subr.bf16.mxu0 0
        %5021 = vmatpush1.bf16.xpose.msra.mxu0 0
        %5022 = vmatprep.subr.bf16.mxu0 0
        %5023 = vmatpush1.bf16.xpose.msra.mxu0 0
        %5024 = vmatprep.subr.bf16.mxu0 0
        %5025 = vmatpush1.bf16.xpose.msra.mxu0 0
        %5026 = vmatprep.subr.bf16.mxu0 0
        %5027 = vmatpush1.bf16.xpose.msra.mxu0 0
        %5028 = vmatprep.subr.bf16.mxu0 0
        %5029 = vmatpush1.bf16.xpose.msra.mxu0 0
        %5030 = vmatprep.subr.bf16.mxu0 0
        %5031 = vmatpush1.bf16.xpose.msra.mxu0 0
        %5032 = vmatprep.subr.bf16.mxu0 0
        %5033 = vmatpush1.bf16.xpose.msra.mxu0 0
        %5034 = vmatprep.subr.bf16.mxu0 0
        %5035 = vmatpush1.bf16.xpose.msra.mxu0 0
        %5036 = vmatprep.subr.bf16.mxu0 0
        %5037 = vmatpush1.bf16.xpose.msra.mxu0 0
        %5038 = vmatprep.subr.bf16.mxu0 0
        %5039 = vmatpush1.bf16.xpose.msra.mxu0 0
        %5040 = vmatprep.subr.bf16.mxu0 0
        %5041 = vmatpush1.bf16.xpose.msra.mxu0 0
        %5042 = vmatprep.subr.bf16.mxu0 0
        %5043 = vmatpush1.bf16.xpose.msra.mxu0 0
        %5044 = vmatprep.subr.bf16.mxu0 0
        %5045 = vmatpush1.bf16.xpose.msra.mxu0 0
        %5046 = vmatprep.mubr.bf16.mxu0 0
        %5047 = vmatmul.mubr.bf16.gmra.mrb[0].mxu0 %v5009
        %v5048 = vpop.f32.mrb[0].mxu0
        %v5049 = vadd.f32 0.0, %v5048
        %v5050 = vpop.f32.mrb[0].mxu0
        %v5051 = vpop.f32.mrb[0].mxu0
        %v5052 = vpop.f32.mrb[0].mxu0
        %5053 = vdwg.mxu0
        %v5054 = vsel %vm994, %v5049, -inf
        %5055 = vmax.xlane.f32.xlu0 %v5054
        %v5056 = vpop.xlane.xlu0 %5055
        %v5057 = vsub.f32 %v5049, %v5056
        %v5058 = vmul.f32 %v5057, 1.442695
        %v5059 = vpow.pop %v5058
        %v5060 = vsel %vm994, %v5059, 0.0
        %5061 = vadd.xlane.f32.xlu0 %v5060
        %v5062 = vpop.xlane.xlu0 %5061
        %v5063 = vpack.c.bf16 %v5059, %v5059
        %v5064 = vpack.c.bf16 %v4899, %v4858
        %v5066 = vsel %vm994, %v5063, 0
        %5068 = vmatprep.subr.bf16.mxu0 0
        %5069 = vmatpush1.bf16.msra.mxu0 %v5064
        %5070 = vmatprep.subr.bf16.mxu0 0
        %5071 = vmatpush1.bf16.msra.mxu0 0
        %5072 = vmatprep.subr.bf16.mxu0 0
        %5073 = vmatpush1.bf16.msra.mxu0 0
        %5074 = vmatprep.subr.bf16.mxu0 0
        %5075 = vmatpush1.bf16.msra.mxu0 0
        %5076 = vmatprep.subr.bf16.mxu0 0
        %5077 = vmatpush1.bf16.msra.mxu0 0
        %5078 = vmatprep.subr.bf16.mxu0 0
        %5079 = vmatpush1.bf16.msra.mxu0 0
        %5080 = vmatprep.subr.bf16.mxu0 0
        %5081 = vmatpush1.bf16.msra.mxu0 0
        %5082 = vmatprep.subr.bf16.mxu0 0
        %5083 = vmatpush1.bf16.msra.mxu0 0
        %5084 = vmatprep.subr.bf16.mxu0 0
        %5085 = vmatpush1.bf16.msra.mxu0 0
        %5086 = vmatprep.subr.bf16.mxu0 0
        %5087 = vmatpush1.bf16.msra.mxu0 0
        %5088 = vmatprep.subr.bf16.mxu0 0
        %5089 = vmatpush1.bf16.msra.mxu0 0
        %5090 = vmatprep.subr.bf16.mxu0 0
        %5091 = vmatpush1.bf16.msra.mxu0 0
        %5092 = vmatprep.subr.bf16.mxu0 0
        %5093 = vmatpush1.bf16.msra.mxu0 0
        %5094 = vmatprep.subr.bf16.mxu0 0
        %5095 = vmatpush1.bf16.msra.mxu0 0
        %5096 = vmatprep.subr.bf16.mxu0 0
        %5097 = vmatpush1.bf16.msra.mxu0 0
        %5098 = vmatprep.subr.bf16.mxu0 0
        %5099 = vmatpush1.bf16.msra.mxu0 0
        %5100 = vmatprep.mubr.bf16.mxu0 0
        %5101 = vmatmul.mubr.bf16.gmra.mrb[0].mxu0 %v5066
        %v5102 = vpop.f32.mrb[0].mxu0
        %v5103 = vadd.f32 0.0, %v5102
        %v5104 = vpop.f32.mrb[0].mxu0
        %v5105 = vpop.f32.mrb[0].mxu0
        %v5106 = vpop.f32.mrb[0].mxu0
        %5107 = vdwg.mxu0
        %v5108 = vrcp.pop %v5062
        %v5109 = vmul.f32 %v5103, %v5108
        %v5110 = vpack.c.bf16 %v5109, %v5005
        %s5111 = scalar_lea.vmem %s647, 4
        %v5112 = vld [vmem:[%s5111] sm:$0xf]
        %v5114 = vsel %vm4385, %v5110, 0
        %v5117 = vsel %vm4597, %v5112, 0
        %5119 = vmatprep.subr.bf16.mxu0 0
        %5120 = vmatpush1.bf16.msra.mxu0 %v5117
        %5121 = vmatprep.subr.bf16.mxu0 0
        %5122 = vmatpush1.bf16.msra.mxu0 0
        %5123 = vmatprep.subr.bf16.mxu0 0
        %5124 = vmatpush1.bf16.msra.mxu0 0
        %5125 = vmatprep.subr.bf16.mxu0 0
        %5126 = vmatpush1.bf16.msra.mxu0 0
        %5127 = vmatprep.subr.bf16.mxu0 0
        %5128 = vmatpush1.bf16.msra.mxu0 0
        %5129 = vmatprep.subr.bf16.mxu0 0
        %5130 = vmatpush1.bf16.msra.mxu0 0
        %5131 = vmatprep.subr.bf16.mxu0 0
        %5132 = vmatpush1.bf16.msra.mxu0 0
        %5133 = vmatprep.subr.bf16.mxu0 0
        %5134 = vmatpush1.bf16.msra.mxu0 0
        %5135 = vmatprep.subr.bf16.mxu0 0
        %5136 = vmatpush1.bf16.msra.mxu0 0
        %5137 = vmatprep.subr.bf16.mxu0 0
        %5138 = vmatpush1.bf16.msra.mxu0 0
        %5139 = vmatprep.subr.bf16.mxu0 0
        %5140 = vmatpush1.bf16.msra.mxu0 0
        %5141 = vmatprep.subr.bf16.mxu0 0
        %5142 = vmatpush1.bf16.msra.mxu0 0
        %5143 = vmatprep.subr.bf16.mxu0 0
        %5144 = vmatpush1.bf16.msra.mxu0 0
        %5145 = vmatprep.subr.bf16.mxu0 0
        %5146 = vmatpush1.bf16.msra.mxu0 0
        %5147 = vmatprep.subr.bf16.mxu0 0
        %5148 = vmatpush1.bf16.msra.mxu0 0
        %5149 = vmatprep.subr.bf16.mxu0 0
        %5150 = vmatpush1.bf16.msra.mxu0 0
        %5151 = vmatprep.mubr.bf16.mxu0 0
        %5152 = vmatmul.mubr.bf16.gmra.mrb[0].mxu0 %v5114
        %v5153 = vpop.f32.mrb[0].mxu0
        %v5154 = vadd.f32 0.0, %v5153
        %v5155 = vpop.f32.mrb[0].mxu0
        %v5156 = vpop.f32.mrb[0].mxu0
        %v5157 = vadd.f32 0.0, %v5156
        %v5158 = vpop.f32.mrb[0].mxu0
        %5159 = vdwg.mxu0
        %v5160 = vadd.f32 %v4642, %v5154
        %v5161 = vadd.f32 %v4643, %v5157
        %5162 = vst.msk [vmem:[#allocation2] sm:$0xff] %vm733, %v5160
        %5163 = vst.msk [vmem:[#allocation2 + $0x8] sm:$0xff] %vm733, %v5161
        %p5164 = scmp.eq.s32.totalorder %s32, 1
        // Predicated region
        $region89: #{tpu_custom_call.1} parent=79 // pred_check
          %p5165 = pneg %p5164
        $region90: #{tpu_custom_call.1} parent=79 // pred_check_branch
          %5167 = sbr.rel (%p5165) target = $region92
        $region91: #{tpu_custom_call.1} parent=79 // pred_region
          %v5168 = vld [vmem:[%s13] sm:$0x1]
          %v5169 = vld [vmem:[#allocation3] sm:$0x1]
          %5171 = vset.pattern.permute.xlu0 0
          %5172 = vperm.xlu0 %5171, %v5169
          %v5173 = vpop.permute.xlu0 %5172
          %v5175 = vlaneseq
          %v5176 = vshrl.u32 %v5175, 7
          %v5177 = vsub.s32 0, %v5176
          %v5178 = vrot.slane %v5173, %v5177
          %v5180 = vsel %vm733, %v5168, 0
          %v5183 = vsel %vm733, %v5160, 0
          %v5186 = vsel %vm733, %v5161, 0
          %5188 = vmatprep.subr.mxu0 0.0
          %5189 = vmatpush1.xpose.msra.mxu0 %v5183
          %5190 = vmatprep.subr.mxu0 0.0
          %5191 = vmatpush1.xpose.msra.mxu0 %v5186
          %5192 = vmatprep.subr.mxu0 0.0
          %5193 = vmatpush1.xpose.msra.mxu0 0.0
          %5194 = vmatprep.subr.mxu0 0.0
          %5195 = vmatpush1.xpose.msra.mxu0 0.0
          %5196 = vmatprep.subr.mxu0 0.0
          %5197 = vmatpush1.xpose.msra.mxu0 0.0
          %5198 = vmatprep.subr.mxu0 0.0
          %5199 = vmatpush1.xpose.msra.mxu0 0.0
          %5200 = vmatprep.subr.mxu0 0.0
          %5201 = vmatpush1.xpose.msra.mxu0 0.0
          %5202 = vmatprep.subr.mxu0 0.0
          %5203 = vmatpush1.xpose.msra.mxu0 0.0
          %5204 = vmatprep.subr.mxu0 0.0
          %5205 = vmatpush1.xpose.msra.mxu0 0.0
          %5206 = vmatprep.subr.mxu0 0.0
          %5207 = vmatpush1.xpose.msra.mxu0 0.0
          %5208 = vmatprep.subr.mxu0 0.0
          %5209 = vmatpush1.xpose.msra.mxu0 0.0
          %5210 = vmatprep.subr.mxu0 0.0
          %5211 = vmatpush1.xpose.msra.mxu0 0.0
          %5212 = vmatprep.subr.mxu0 0.0
          %5213 = vmatpush1.xpose.msra.mxu0 0.0
          %5214 = vmatprep.subr.mxu0 0.0
          %5215 = vmatpush1.xpose.msra.mxu0 0.0
          %5216 = vmatprep.subr.mxu0 0.0
          %5217 = vmatpush1.xpose.msra.mxu0 0.0
          %5218 = vmatprep.subr.mxu0 0.0
          %5219 = vmatpush1.xpose.msra.mxu0 0.0
          %5220 = vmatprep.subr.mxu0 0.0
          %5221 = vmatpush1.xpose.msra.mxu0 0.0
          %5222 = vmatprep.subr.mxu0 0.0
          %5223 = vmatpush1.xpose.msra.mxu0 0.0
          %5224 = vmatprep.subr.mxu0 0.0
          %5225 = vmatpush1.xpose.msra.mxu0 0.0
          %5226 = vmatprep.subr.mxu0 0.0
          %5227 = vmatpush1.xpose.msra.mxu0 0.0
          %5228 = vmatprep.subr.mxu0 0.0
          %5229 = vmatpush1.xpose.msra.mxu0 0.0
          %5230 = vmatprep.subr.mxu0 0.0
          %5231 = vmatpush1.xpose.msra.mxu0 0.0
          %5232 = vmatprep.subr.mxu0 0.0
          %5233 = vmatpush1.xpose.msra.mxu0 0.0
          %5234 = vmatprep.subr.mxu0 0.0
          %5235 = vmatpush1.xpose.msra.mxu0 0.0
          %5236 = vmatprep.subr.mxu0 0.0
          %5237 = vmatpush1.xpose.msra.mxu0 0.0
          %5238 = vmatprep.subr.mxu0 0.0
          %5239 = vmatpush1.xpose.msra.mxu0 0.0
          %5240 = vmatprep.subr.mxu0 0.0
          %5241 = vmatpush1.xpose.msra.mxu0 0.0
          %5242 = vmatprep.subr.mxu0 0.0
          %5243 = vmatpush1.xpose.msra.mxu0 0.0
          %5244 = vmatprep.subr.mxu0 0.0
          %5245 = vmatpush1.xpose.msra.mxu0 0.0
          %5246 = vmatprep.subr.mxu0 0.0
          %5247 = vmatpush1.xpose.msra.mxu0 0.0
          %5248 = vmatprep.subr.mxu0 0.0
          %5249 = vmatpush1.xpose.msra.mxu0 0.0
          %5250 = vmatprep.subr.mxu0 0.0
          %5251 = vmatpush1.xpose.msra.mxu0 0.0
          %5252 = vmatprep.mubr.f32.mxu0 0.0
          %5253 = vmatmul.mubr.f32.gmra.mrb[0].mxu0 %v5180
          %v5254 = vpop.f32.mrb[0].mxu0
          %v5255 = vadd.f32 %v5178, %v5254
          %v5256 = vpop.f32.mrb[0].mxu0
          %5257 = vdwg.mxu0
          %v5258 = vmax.f32 %v5255, 0.0
          %vm5259 = vcmask 122880
          %5260 = vst.msk [vmem:[#allocation7] sm:$0x1] %vm5259, %v5258
        $region92: #{tpu_custom_call.1} parent=79 // pred_fallthru
          _
        // Predicated region
        $region93: #{tpu_custom_call.1} parent=79 // pred_check
          %p5261 = pneg %p405
        $region94: #{tpu_custom_call.1} parent=79 // pred_check_branch
          %5263 = sbr.rel (%p5261) target = $region96
        $region95: #{tpu_custom_call.1} parent=79 // pred_region
          %s5265 = ssub.s32 16, 16
          %5266 = vsyncadd [#allocation6], %s5265
          %s5268 = sshll.u32 [#allocation7], 4
          %s5269 = int_to_ptr.vmem [resolvable:$true] %s5268
          %5271 = dma.vmem_to_hbm [thread:$0]  %s5269, 16, %s15, [#allocation6]
        $region96: #{tpu_custom_call.1} parent=79 // pred_fallthru
          _
        // Predicated region
        $region97: #{tpu_custom_call.1} parent=79 // pred_check
          %p5272 = pneg %p405
        $region98: #{tpu_custom_call.1} parent=79 // pred_check_branch
          %5274 = sbr.rel (%p5272) target = $region100
        $region99: #{tpu_custom_call.1} parent=79 // pred_region
          %5275 = dma.done [#allocation6], 16
        $region100: #{tpu_custom_call.1} parent=79 // pred_fallthru
          _
      $region80: #{tpu_custom_call.1} parent=5 // pred_fallthru
        _
      %p5276 = scmp.le.s32.totalorder 2, %s27
      // Predicated region
      $region101: #{tpu_custom_call.1} parent=5 // pred_check
        %p5277 = pneg %p5276
      $region102: #{tpu_custom_call.1} parent=5 // pred_check_branch
        %5279 = sbr.rel (%p5277) target = $region104
      $region103: #{tpu_custom_call.1} parent=5 // pred_region
        %s5280 = ssub.s32 %s27, 2
      $region104: #{tpu_custom_call.1} parent=5 // pred_fallthru
        _
    $region6: #{tpu_custom_call.1} parent=1 // loop_footer
      %s31 = sadd.s32 1, %s27
    $region7: #{tpu_custom_call.1} parent=1 // loop_footer_branch
      %26 = sbr.rel target = $region3
    $region8: #{tpu_custom_call.1} parent=1 // loop_exit
      _
    %5281 = vsyncpa [#allocation5], 1
    %s5282 = scalar_lea.sflag [#allocation5], 1
    %5283 = vsyncpa %s5282, 1
    %5284 = vsyncpa [#allocation6], 1
    %s5285 = scalar_lea.sflag [#allocation6], 1
    %5286 = vsyncpa %s5285, 1

</llo_original>
